<compile_context>
chip_gen: v7x
topology: tpu7x:2x2x1
jax: 0.10.0
libtpu: 0.0.40
codegen_flags: <defaults>
</compile_context>

<pallas_src>
import functools

import jax
import jax.numpy as jnp
from jax.experimental import pallas as pl
from jax.experimental.pallas import tpu as pltpu


# Flip to jnp.bfloat16 for large-batch runs on v6e/v7x (bf16-native MXU,
# halves weight DMA); f32 default matches PyTorch numerics exactly.
MXU_INPUT_DTYPE = jnp.float32


# ----------------------------------------------------------------------------
# helpers
# ----------------------------------------------------------------------------
def _pick_tm(m):
    """Largest sublane-aligned row tile that divides M and leaves >=2 grid
    steps (so both v7x TensorCores get work; harmless on 1-TC v5e/v6e)."""
    for tm in (512, 256, 128, 64, 32, 16, 8):
        if m % tm == 0 and m // tm >= 2:
            return tm
    return m


def _apply_act(x, act):
    if act == "relu":
        return jnp.maximum(x, 0.0)
    if act == "sigmoid":
        return jax.nn.sigmoid(x)
    return x


# ----------------------------------------------------------------------------
# Pallas kernels
# ----------------------------------------------------------------------------
def _gemm_bias_act_kernel(x_ref, w_ref, b_ref, o_ref, *, act):
    """o = act(x @ w + b); fused GEMM epilogue on the MXU/VPU."""
    acc = jnp.dot(x_ref[...].astype(MXU_INPUT_DTYPE),
                  w_ref[...].astype(MXU_INPUT_DTYPE),
                  preferred_element_type=jnp.float32)
    acc = acc + b_ref[...]
    o_ref[...] = _apply_act(acc, act).astype(o_ref.dtype)


def _middle_kernel(h_ref, eps_ref,
                   wfc_ref, bfc_ref, wmu_ref, bmu_ref, wlv_ref, blv_ref,
                   win_ref, bin_ref, wdfc_ref, bdfc_ref,
                   mu_ref, lv_ref, dec_ref):
    """Fused: ReLU(h@Wfc+bfc) -> mu / log_var -> z = mu + exp(.5 lv)*eps
    -> z@Win+bin -> ReLU(.@Wdfc+bdfc).  z stays in VMEM."""
    h = jnp.dot(h_ref[...].astype(MXU_INPUT_DTYPE),
                wfc_ref[...].astype(MXU_INPUT_DTYPE),
                preferred_element_type=jnp.float32)
    h = jnp.maximum(h + bfc_ref[...], 0.0)
    mu = jnp.dot(h, wmu_ref[...], preferred_element_type=jnp.float32) + bmu_ref[...]
    lv = jnp.dot(h, wlv_ref[...], preferred_element_type=jnp.float32) + blv_ref[...]
    z = mu + jnp.exp(0.5 * lv) * eps_ref[...]
    d = jnp.dot(z, win_ref[...], preferred_element_type=jnp.float32) + bin_ref[...]
    d = jnp.dot(d.astype(MXU_INPUT_DTYPE),
                wdfc_ref[...].astype(MXU_INPUT_DTYPE),
                preferred_element_type=jnp.float32) + bdfc_ref[...]
    mu_ref[...] = mu.astype(mu_ref.dtype)
    lv_ref[...] = lv.astype(lv_ref.dtype)
    dec_ref[...] = jnp.maximum(d, 0.0).astype(dec_ref.dtype)


# ----------------------------------------------------------------------------
# pallas_call wrappers
# ----------------------------------------------------------------------------
def gemm_bias_act(x, w, b, act="none"):
    """x:(M,K) @ w:(K,N) + b:(1,N); N equals the true out-channel count."""
    m, k = x.shape
    n = w.shape[1]
    tm = _pick_tm(m)
    kern = functools.partial(_gemm_bias_act_kernel, act=act)
    cost = pl.CostEstimate(
        flops=2 * m * k * n,
        transcendentals=m * n if act == "sigmoid" else 0,
        bytes_accessed=4 * (m * k + k * n + n + m * n))
    return pl.pallas_call(
        kern,
        out_shape=jax.ShapeDtypeStruct((m, n), jnp.float32),
        grid=(m // tm,),
        in_specs=[
            pl.BlockSpec((tm, k), lambda i: (i, 0)),
            pl.BlockSpec((k, n), lambda i: (0, 0)),
            pl.BlockSpec((1, n), lambda i: (0, 0)),
        ],
        out_specs=pl.BlockSpec((tm, n), lambda i: (i, 0)),
        compiler_params=pltpu.CompilerParams(dimension_semantics=("parallel",)),
        cost_estimate=cost,
    )(x, w, b)


def batched_gemm_bias_act(x, w, b, act="none"):
    """Batched over parity: x:(P,M,K) @ w:(P,K,N) + b:(1,N), single launch."""
    p, m, k = x.shape
    n = w.shape[2]
    tm = _pick_tm(m)
    kern = functools.partial(_gemm_bias_act_kernel, act=act)
    cost = pl.CostEstimate(
        flops=2 * p * m * k * n,
        transcendentals=p * m * n if act == "sigmoid" else 0,
        bytes_accessed=4 * (p * m * k + p * k * n + n + p * m * n))
    return pl.pallas_call(
        kern,
        out_shape=jax.ShapeDtypeStruct((p, m, n), jnp.float32),
        grid=(p, m // tm),
        in_specs=[
            pl.BlockSpec((None, tm, k), lambda pi, i: (pi, i, 0)),
            pl.BlockSpec((None, k, n), lambda pi, i: (pi, 0, 0)),
            pl.BlockSpec((1, n), lambda pi, i: (0, 0)),
        ],
        out_specs=pl.BlockSpec((None, tm, n), lambda pi, i: (pi, i, 0)),
        compiler_params=pltpu.CompilerParams(
            dimension_semantics=("parallel", "parallel")),
        cost_estimate=cost,
    )(x, w, b)


def middle_pallas(h, eps, p):
    """Fused enc_fc + fc_mu/fc_log_var + reparameterize + decoder_input + dec_fc."""
    n, feat = h.shape
    hid = p["w_fc"].shape[1]
    zdim = eps.shape[1]
    dfeat = p["w_dfc"].shape[1]
    flops = 2 * n * (feat * hid + hid * zdim * 2 + zdim * hid + hid * dfeat)
    nbytes = 4 * (n * feat + n * zdim + feat * hid + hid * zdim * 2
                  + zdim * hid + hid * dfeat + hid * 2 + zdim * 2 + feat
                  + 2 * n * zdim + n * dfeat)
    out_shape = (
        jax.ShapeDtypeStruct((n, zdim), jnp.float32),      # mu
        jax.ShapeDtypeStruct((n, zdim), jnp.float32),      # log_var
        jax.ShapeDtypeStruct((n, dfeat), jnp.float32),     # decoder features
    )
    return pl.pallas_call(
        _middle_kernel,
        out_shape=out_shape,
        compiler_params=pltpu.CompilerParams(vmem_limit_bytes=32 * 1024 * 1024),
        cost_estimate=pl.CostEstimate(flops=flops, transcendentals=n * zdim,
                                      bytes_accessed=nbytes),
    )(h, eps, p["w_fc"], p["b_fc"], p["w_mu"], p["b_mu"], p["w_lv"], p["b_lv"],
      p["w_in"], p["b_in"], p["w_dfc"], p["b_dfc"])


# ----------------------------------------------------------------------------
# conv layers (NHWC, k=4, s=2, p=1) lowered to fused Pallas GEMMs
# ----------------------------------------------------------------------------
def conv2d_k4s2p1(x, p, act):
    """x:(B,H,W,C) -> (B,H/2,W/2,O) via XLA im2col + one fused Pallas GEMM."""
    b, h, w, c = x.shape
    ho, wo = h // 2, w // 2
    o = p["w"].shape[1]
    xp = jnp.pad(x, ((0, 0), (1, 1), (1, 1), (0, 0)))
    cols = [xp[:, ki:ki + 2 * ho:2, kj:kj + 2 * wo:2, :]
            for ki in range(4) for kj in range(4)]
    patches = jnp.concatenate(cols, axis=-1).reshape(b * ho * wo, 16 * c)
    out = gemm_bias_act(patches, p["w"], p["b"], act=act)        # (B*Ho*Wo, O)
    return out.reshape(b, ho, wo, o)


def conv_transpose_k4s2p1(x, p, act):
    """x:(B,H,W,C) -> (B,2H,2W,O).

    4-way output-parity decomposition: each output parity (py,px) is a 2x2
    stride-1 sub-conv (no zero-dilated input, 4x fewer MXU FLOPs). The four
    parity GEMMs run as ONE batched pallas_call; the parity planes are
    interleaved once in XLA afterwards.
    """
    b, h, w, c = x.shape
    o = p["w"].shape[2]
    xp = jnp.pad(x, ((0, 0), (1, 1), (1, 1), (0, 0)))
    planes = []
    for py in (0, 1):
        for px in (0, 1):
            taps = [xp[:, py + dy:py + dy + h, px + dx:px + dx + w, :]
                    for dy in (0, 1) for dx in (0, 1)]
            planes.append(jnp.concatenate(taps, axis=-1).reshape(b * h * w, 4 * c))
    patches = jnp.stack(planes, axis=0)                          # (4, BHW, 4C)
    out = batched_gemm_bias_act(patches, p["w"], p["b"], act=act)  # (4, BHW, O)
    out = out.reshape(2, 2, b, h, w, o)
    # out[py, px, b, r, c, :] -> image[b, 2r+py, 2c+px, :]
    return out.transpose(2, 3, 0, 4, 1, 5).reshape(b, 2 * h, 2 * w, o)


# ----------------------------------------------------------------------------
# parameter construction (weights pre-converted to GEMM layout, no padding,
# no non-array leaves -> everything is safe to trace under jit)
# ----------------------------------------------------------------------------
def _init_linear(key, fan_in, fan_out):
    kw, kb = jax.random.split(key)
    bound = float(fan_in) ** -0.5
    w = jax.random.uniform(kw, (fan_in, fan_out), jnp.float32, -bound, bound)
    b = jax.random.uniform(kb, (1, fan_out), jnp.float32, -bound, bound)
    return w, b


def make_conv_params(key, in_c, out_c):
    """Conv2d(k=4,s=2,p=1). GEMM row (ki*4+kj)*C + c <-> torch w[o, c, ki, kj]."""
    kw, kb = jax.random.split(key)
    bound = float(in_c * 16) ** -0.5
    w = jax.random.uniform(kw, (out_c, in_c, 4, 4), jnp.float32, -bound, bound)
    b = jax.random.uniform(kb, (1, out_c), jnp.float32, -bound, bound)
    w_gemm = w.transpose(2, 3, 1, 0).reshape(16 * in_c, out_c)
    return {"w": w_gemm, "b": b}


def make_convT_params(key, in_c, out_c):
    """ConvTranspose2d(k=4,s=2,p=1) as 4 output-parity sub-kernels.

    Sub-kernel for parity (py,px): GEMM row (dy*2+dx)*C + c, column o maps to
    torch w[c, o, 3-(2*dy+py), 3-(2*dx+px)].
    """
    kw, kb = jax.random.split(key)
    bound = float(out_c * 16) ** -0.5       # torch fan_in for ConvTranspose2d
    w = jax.random.uniform(kw, (in_c, out_c, 4, 4), jnp.float32, -bound, bound)
    b = jax.random.uniform(kb, (1, out_c), jnp.float32, -bound, bound)
    subs = []
    for py in (0, 1):
        for px in (0, 1):
            taps = [w[:, :, 3 - (2 * dy + py), 3 - (2 * dx + px)]   # (C, O)
                    for dy in (0, 1) for dx in (0, 1)]
            subs.append(jnp.stack(taps, axis=0).reshape(4 * in_c, out_c))
    return {"w": jnp.stack(subs, axis=0), "b": b}                   # (4, 4C, O)


def make_middle_params(key, feat, hidden, zdim):
    # NOTE: w_fc rows / w_dfc columns follow the NHWC flatten order (h, w, c);
    # a torch checkpoint (NCHW flatten: c, h, w) needs a row/col permutation.
    k1, k2, k3, k4, k5 = jax.random.split(key, 5)
    w_fc, b_fc = _init_linear(k1, feat, hidden)        # encoder Linear 2048->256
    w_mu, b_mu = _init_linear(k2, hidden, zdim)        # fc_mu
    w_lv, b_lv = _init_linear(k3, hidden, zdim)        # fc_log_var
    w_in, b_in = _init_linear(k4, zdim, hidden)        # decoder_input
    w_dfc, b_dfc = _init_linear(k5, hidden, feat)      # decoder Linear 256->2048
    return {"w_fc": w_fc, "b_fc": b_fc, "w_mu": w_mu, "b_mu": b_mu,
            "w_lv": w_lv, "b_lv": b_lv, "w_in": w_in, "b_in": b_in,
            "w_dfc": w_dfc, "b_dfc": b_dfc}


# ----------------------------------------------------------------------------
# BetaVAE forward
# ----------------------------------------------------------------------------
def betavae_forward(params, x, eps):
    n = x.shape[0]
    x = jnp.transpose(x, (0, 2, 3, 1))                           # NCHW -> NHWC once
    # encoder
    h = conv2d_k4s2p1(x, params["enc_conv1"], act="relu")        # (B,16,16, 32)
    h = conv2d_k4s2p1(h, params["enc_conv2"], act="relu")        # (B, 8, 8, 64)
    h = conv2d_k4s2p1(h, params["enc_conv3"], act="relu")        # (B, 4, 4,128)
    h = h.reshape(n, -1)                                         # (B, 2048) NHWC flatten
    # fused encoder head + reparameterization + decoder head
    mu, log_var, d = middle_pallas(h, eps, params["middle"])
    d = d.reshape(n, 4, 4, 128)                                  # NHWC unflatten
    # decoder conv-transposes
    d = conv_transpose_k4s2p1(d, params["dec_convt1"], act="relu")        # (B, 8, 8,64)
    d = conv_transpose_k4s2p1(d, params["dec_convt2"], act="relu")        # (B,16,16,32)
    recon = conv_transpose_k4s2p1(d, params["dec_convt3"], act="sigmoid")  # (B,32,32, 3)
    recon = jnp.transpose(recon, (0, 3, 1, 2))                   # NHWC -> NCHW once
    return recon, mu, log_var


if __name__ == "__main__":
    latent_dims = 16
    key = jax.random.PRNGKey(0)
    keys = jax.random.split(key, 9)
    params = {
        "enc_conv1": make_conv_params(keys[0], 3, 32),
        "enc_conv2": make_conv_params(keys[1], 32, 64),
        "enc_conv3": make_conv_params(keys[2], 64, 128),
        "middle": make_middle_params(keys[3], 128 * 4 * 4, 256, latent_dims),
        "dec_convt1": make_convT_params(keys[4], 128, 64),
        "dec_convt2": make_convT_params(keys[5], 64, 32),
        "dec_convt3": make_convT_params(keys[6], 32, 3),
    }
    x = jax.random.uniform(keys[7], (2, 3, 32, 32), jnp.float32)
    # TODO(synk): torch.randn_like is stateful RNG; the reparameterization
    # noise is drawn here with a fixed key and fed to the fused middle kernel.
    eps = jax.random.normal(keys[8], (2, latent_dims), jnp.float32)

    fwd = jax.jit(betavae_forward)
    recon, mu, log_var = fwd(params, x, eps)
    jax.block_until_ready((recon, mu, log_var))
    assert recon.shape == (2, 3, 32, 32)
    assert mu.shape == (2, latent_dims) and log_var.shape == (2, latent_dims)
    assert bool(jnp.all(jnp.isfinite(recon)))
    print("KERNEL_OK")
</pallas_src>

<mosaic_0001>
module attributes {stable_mosaic.version = 11 : i64} {
  func.func @_gemm_bias_act_kernel(%arg0: i32, %arg1: memref<256x48xf32, #tpu.memory_space<vmem>>, %arg2: memref<48x32xf32, #tpu.memory_space<vmem>>, %arg3: memref<1x32xf32, #tpu.memory_space<vmem>>, %arg4: memref<256x32xf32, #tpu.memory_space<vmem>>) attributes {dimension_semantics = [#tpu.dimension_semantics<parallel>], iteration_bounds = array<i64: 2>, scalar_prefetch = 0 : i64, scratch_operands = 0 : i64, tpu.core_type = #tpu.core_type<tc>, window_params = [{transform_indices = @transform_0, window_bounds = array<i64: 256, 48>}, {pipeline_mode = #tpu.pipeline_mode<synchronous>, transform_indices = @transform_1, window_bounds = array<i64: 48, 32>}, {pipeline_mode = #tpu.pipeline_mode<synchronous>, transform_indices = @transform_2, window_bounds = array<i64: 1, 32>}, {transform_indices = @transform_3, window_bounds = array<i64: 256, 32>}]} {
    %c0 = arith.constant 0 : index
    %c0_0 = arith.constant 0 : index
    %0 = vector.load %arg1[%c0, %c0_0] : memref<256x48xf32, #tpu.memory_space<vmem>>, vector<256x48xf32>
    %c0_1 = arith.constant 0 : index
    %c0_2 = arith.constant 0 : index
    %1 = vector.load %arg2[%c0_1, %c0_2] : memref<48x32xf32, #tpu.memory_space<vmem>>, vector<48x32xf32>
    %cst = arith.constant dense<0.000000e+00> : vector<256x32xf32>
    %2 = tpu.matmul %0, %1, %cst {dimension_numbers = #tpu.dot_dimension_numbers<[1], [0], [0], [1], [0, 0, 1, 1], [], []>} : vector<256x48xf32>, vector<48x32xf32>, vector<256x32xf32> -> vector<256x32xf32>
    %c0_3 = arith.constant 0 : index
    %c0_4 = arith.constant 0 : index
    %3 = vector.load %arg3[%c0_3, %c0_4] : memref<1x32xf32, #tpu.memory_space<vmem>>, vector<1x32xf32>
    %4 = vector.broadcast %3 : vector<1x32xf32> to vector<256x32xf32>
    %5 = arith.addf %2, %4 : vector<256x32xf32>
    %cst_5 = arith.constant 0.000000e+00 : f32
    %6 = vector.broadcast %cst_5 : f32 to vector<256x32xf32>
    %7 = arith.maximumf %5, %6 : vector<256x32xf32>
    %c0_6 = arith.constant 0 : index
    %c0_7 = arith.constant 0 : index
    %8 = vector.load %arg4[%c0_6, %c0_7] : memref<256x32xf32, #tpu.memory_space<vmem>>, vector<256x32xf32>
    tpu.vector_store %arg4[%c0_6, %c0_7], %7 {strides = array<i32>} : memref<256x32xf32, #tpu.memory_space<vmem>>, vector<256x32xf32>,
    return
  }
  func.func @transform_0(%arg0: i32) -> (i32, i32) {
    %c0_i32 = arith.constant 0 : i32
    %c0_i32_0 = arith.constant 0 : i32
    return %arg0, %c0_i32 : i32, i32
  }
  func.func @transform_1(%arg0: i32) -> (i32, i32) {
    %c0_i32 = arith.constant 0 : i32
    %c0_i32_0 = arith.constant 0 : i32
    %c0_i32_1 = arith.constant 0 : i32
    return %c0_i32, %c0_i32_0 : i32, i32
  }
  func.func @transform_2(%arg0: i32) -> (i32, i32) {
    %c0_i32 = arith.constant 0 : i32
    %c0_i32_0 = arith.constant 0 : i32
    %c0_i32_1 = arith.constant 0 : i32
    return %c0_i32, %c0_i32_0 : i32, i32
  }
  func.func @transform_3(%arg0: i32) -> (i32, i32) {
    %c0_i32 = arith.constant 0 : i32
    %c0_i32_0 = arith.constant 0 : i32
    return %arg0, %c0_i32 : i32, i32
  }
}

module attributes {stable_mosaic.version = 11 : i64} {
  func.func @_gemm_bias_act_kernel(%arg0: i32, %arg1: memref<64x512xf32, #tpu.memory_space<vmem>>, %arg2: memref<512x64xf32, #tpu.memory_space<vmem>>, %arg3: memref<1x64xf32, #tpu.memory_space<vmem>>, %arg4: memref<64x64xf32, #tpu.memory_space<vmem>>) attributes {dimension_semantics = [#tpu.dimension_semantics<parallel>], iteration_bounds = array<i64: 2>, scalar_prefetch = 0 : i64, scratch_operands = 0 : i64, tpu.core_type = #tpu.core_type<tc>, window_params = [{transform_indices = @transform_0, window_bounds = array<i64: 64, 512>}, {pipeline_mode = #tpu.pipeline_mode<synchronous>, transform_indices = @transform_1, window_bounds = array<i64: 512, 64>}, {pipeline_mode = #tpu.pipeline_mode<synchronous>, transform_indices = @transform_2, window_bounds = array<i64: 1, 64>}, {transform_indices = @transform_3, window_bounds = array<i64: 64, 64>}]} {
    %c0 = arith.constant 0 : index
    %c0_0 = arith.constant 0 : index
    %0 = vector.load %arg1[%c0, %c0_0] : memref<64x512xf32, #tpu.memory_space<vmem>>, vector<64x512xf32>
    %c0_1 = arith.constant 0 : index
    %c0_2 = arith.constant 0 : index
    %1 = vector.load %arg2[%c0_1, %c0_2] : memref<512x64xf32, #tpu.memory_space<vmem>>, vector<512x64xf32>
    %cst = arith.constant dense<0.000000e+00> : vector<64x64xf32>
    %2 = tpu.matmul %0, %1, %cst {dimension_numbers = #tpu.dot_dimension_numbers<[1], [0], [0], [1], [0, 0, 1, 1], [], []>} : vector<64x512xf32>, vector<512x64xf32>, vector<64x64xf32> -> vector<64x64xf32>
    %c0_3 = arith.constant 0 : index
    %c0_4 = arith.constant 0 : index
    %3 = vector.load %arg3[%c0_3, %c0_4] : memref<1x64xf32, #tpu.memory_space<vmem>>, vector<1x64xf32>
    %4 = vector.broadcast %3 : vector<1x64xf32> to vector<64x64xf32>
    %5 = arith.addf %2, %4 : vector<64x64xf32>
    %cst_5 = arith.constant 0.000000e+00 : f32
    %6 = vector.broadcast %cst_5 : f32 to vector<64x64xf32>
    %7 = arith.maximumf %5, %6 : vector<64x64xf32>
    %c0_6 = arith.constant 0 : index
    %c0_7 = arith.constant 0 : index
    %8 = vector.load %arg4[%c0_6, %c0_7] : memref<64x64xf32, #tpu.memory_space<vmem>>, vector<64x64xf32>
    tpu.vector_store %arg4[%c0_6, %c0_7], %7 {strides = array<i32>} : memref<64x64xf32, #tpu.memory_space<vmem>>, vector<64x64xf32>,
    return
  }
  func.func @transform_0(%arg0: i32) -> (i32, i32) {
    %c0_i32 = arith.constant 0 : i32
    %c0_i32_0 = arith.constant 0 : i32
    return %arg0, %c0_i32 : i32, i32
  }
  func.func @transform_1(%arg0: i32) -> (i32, i32) {
    %c0_i32 = arith.constant 0 : i32
    %c0_i32_0 = arith.constant 0 : i32
    %c0_i32_1 = arith.constant 0 : i32
    return %c0_i32, %c0_i32_0 : i32, i32
  }
  func.func @transform_2(%arg0: i32) -> (i32, i32) {
    %c0_i32 = arith.constant 0 : i32
    %c0_i32_0 = arith.constant 0 : i32
    %c0_i32_1 = arith.constant 0 : i32
    return %c0_i32, %c0_i32_0 : i32, i32
  }
  func.func @transform_3(%arg0: i32) -> (i32, i32) {
    %c0_i32 = arith.constant 0 : i32
    %c0_i32_0 = arith.constant 0 : i32
    return %arg0, %c0_i32 : i32, i32
  }
}

module attributes {stable_mosaic.version = 11 : i64} {
  func.func @_gemm_bias_act_kernel(%arg0: i32, %arg1: memref<16x1024xf32, #tpu.memory_space<vmem>>, %arg2: memref<1024x128xf32, #tpu.memory_space<vmem>>, %arg3: memref<1x128xf32, #tpu.memory_space<vmem>>, %arg4: memref<16x128xf32, #tpu.memory_space<vmem>>) attributes {dimension_semantics = [#tpu.dimension_semantics<parallel>], iteration_bounds = array<i64: 2>, scalar_prefetch = 0 : i64, scratch_operands = 0 : i64, tpu.core_type = #tpu.core_type<tc>, window_params = [{transform_indices = @transform_0, window_bounds = array<i64: 16, 1024>}, {pipeline_mode = #tpu.pipeline_mode<synchronous>, transform_indices = @transform_1, window_bounds = array<i64: 1024, 128>}, {pipeline_mode = #tpu.pipeline_mode<synchronous>, transform_indices = @transform_2, window_bounds = array<i64: 1, 128>}, {transform_indices = @transform_3, window_bounds = array<i64: 16, 128>}]} {
    %c0 = arith.constant 0 : index
    %c0_0 = arith.constant 0 : index
    %0 = vector.load %arg1[%c0, %c0_0] : memref<16x1024xf32, #tpu.memory_space<vmem>>, vector<16x1024xf32>
    %c0_1 = arith.constant 0 : index
    %c0_2 = arith.constant 0 : index
    %1 = vector.load %arg2[%c0_1, %c0_2] : memref<1024x128xf32, #tpu.memory_space<vmem>>, vector<1024x128xf32>
    %cst = arith.constant dense<0.000000e+00> : vector<16x128xf32>
    %2 = tpu.matmul %0, %1, %cst {dimension_numbers = #tpu.dot_dimension_numbers<[1], [0], [0], [1], [0, 0, 1, 1], [], []>} : vector<16x1024xf32>, vector<1024x128xf32>, vector<16x128xf32> -> vector<16x128xf32>
    %c0_3 = arith.constant 0 : index
    %c0_4 = arith.constant 0 : index
    %3 = vector.load %arg3[%c0_3, %c0_4] : memref<1x128xf32, #tpu.memory_space<vmem>>, vector<1x128xf32>
    %4 = vector.broadcast %3 : vector<1x128xf32> to vector<16x128xf32>
    %5 = arith.addf %2, %4 : vector<16x128xf32>
    %cst_5 = arith.constant 0.000000e+00 : f32
    %6 = vector.broadcast %cst_5 : f32 to vector<16x128xf32>
    %7 = arith.maximumf %5, %6 : vector<16x128xf32>
    %c0_6 = arith.constant 0 : index
    %c0_7 = arith.constant 0 : index
    %8 = vector.load %arg4[%c0_6, %c0_7] : memref<16x128xf32, #tpu.memory_space<vmem>>, vector<16x128xf32>
    tpu.vector_store %arg4[%c0_6, %c0_7], %7 {strides = array<i32>} : memref<16x128xf32, #tpu.memory_space<vmem>>, vector<16x128xf32>,
    return
  }
  func.func @transform_0(%arg0: i32) -> (i32, i32) {
    %c0_i32 = arith.constant 0 : i32
    %c0_i32_0 = arith.constant 0 : i32
    return %arg0, %c0_i32 : i32, i32
  }
  func.func @transform_1(%arg0: i32) -> (i32, i32) {
    %c0_i32 = arith.constant 0 : i32
    %c0_i32_0 = arith.constant 0 : i32
    %c0_i32_1 = arith.constant 0 : i32
    return %c0_i32, %c0_i32_0 : i32, i32
  }
  func.func @transform_2(%arg0: i32) -> (i32, i32) {
    %c0_i32 = arith.constant 0 : i32
    %c0_i32_0 = arith.constant 0 : i32
    %c0_i32_1 = arith.constant 0 : i32
    return %c0_i32, %c0_i32_0 : i32, i32
  }
  func.func @transform_3(%arg0: i32) -> (i32, i32) {
    %c0_i32 = arith.constant 0 : i32
    %c0_i32_0 = arith.constant 0 : i32
    return %arg0, %c0_i32 : i32, i32
  }
}

module attributes {stable_mosaic.version = 11 : i64} {
  func.func @_middle_kernel(%arg0: memref<2x2048xf32, #tpu.memory_space<vmem>>, %arg1: memref<2x16xf32, #tpu.memory_space<vmem>>, %arg2: memref<2048x256xf32, #tpu.memory_space<vmem>>, %arg3: memref<1x256xf32, #tpu.memory_space<vmem>>, %arg4: memref<256x16xf32, #tpu.memory_space<vmem>>, %arg5: memref<1x16xf32, #tpu.memory_space<vmem>>, %arg6: memref<256x16xf32, #tpu.memory_space<vmem>>, %arg7: memref<1x16xf32, #tpu.memory_space<vmem>>, %arg8: memref<16x256xf32, #tpu.memory_space<vmem>>, %arg9: memref<1x256xf32, #tpu.memory_space<vmem>>, %arg10: memref<256x2048xf32, #tpu.memory_space<vmem>>, %arg11: memref<1x2048xf32, #tpu.memory_space<vmem>>, %arg12: memref<2x16xf32, #tpu.memory_space<vmem>>, %arg13: memref<2x16xf32, #tpu.memory_space<vmem>>, %arg14: memref<2x2048xf32, #tpu.memory_space<vmem>>) attributes {dimension_semantics = [], scalar_prefetch = 0 : i64, scratch_operands = 0 : i64, tpu.core_type = #tpu.core_type<tc>} {
    %c0 = arith.constant 0 : index
    %c0_0 = arith.constant 0 : index
    %0 = vector.load %arg0[%c0, %c0_0] : memref<2x2048xf32, #tpu.memory_space<vmem>>, vector<2x2048xf32>
    %c0_1 = arith.constant 0 : index
    %c0_2 = arith.constant 0 : index
    %1 = vector.load %arg2[%c0_1, %c0_2] : memref<2048x256xf32, #tpu.memory_space<vmem>>, vector<2048x256xf32>
    %cst = arith.constant dense<0.000000e+00> : vector<2x256xf32>
    %2 = tpu.matmul %0, %1, %cst {dimension_numbers = #tpu.dot_dimension_numbers<[1], [0], [0], [1], [0, 0, 1, 1], [], []>} : vector<2x2048xf32>, vector<2048x256xf32>, vector<2x256xf32> -> vector<2x256xf32>
    %c0_3 = arith.constant 0 : index
    %c0_4 = arith.constant 0 : index
    %3 = vector.load %arg3[%c0_3, %c0_4] : memref<1x256xf32, #tpu.memory_space<vmem>>, vector<1x256xf32>
    %4 = vector.broadcast %3 : vector<1x256xf32> to vector<2x256xf32>
    %5 = arith.addf %2, %4 : vector<2x256xf32>
    %cst_5 = arith.constant 0.000000e+00 : f32
    %6 = vector.broadcast %cst_5 : f32 to vector<2x256xf32>
    %7 = arith.maximumf %5, %6 : vector<2x256xf32>
    %c0_6 = arith.constant 0 : index
    %c0_7 = arith.constant 0 : index
    %8 = vector.load %arg4[%c0_6, %c0_7] : memref<256x16xf32, #tpu.memory_space<vmem>>, vector<256x16xf32>
    %cst_8 = arith.constant dense<0.000000e+00> : vector<2x16xf32>
    %9 = tpu.matmul %7, %8, %cst_8 {dimension_numbers = #tpu.dot_dimension_numbers<[1], [0], [0], [1], [0, 0, 1, 1], [], []>} : vector<2x256xf32>, vector<256x16xf32>, vector<2x16xf32> -> vector<2x16xf32>
    %c0_9 = arith.constant 0 : index
    %c0_10 = arith.constant 0 : index
    %10 = vector.load %arg5[%c0_9, %c0_10] : memref<1x16xf32, #tpu.memory_space<vmem>>, vector<1x16xf32>
    %11 = vector.broadcast %10 : vector<1x16xf32> to vector<2x16xf32>
    %12 = arith.addf %9, %11 : vector<2x16xf32>
    %c0_11 = arith.constant 0 : index
    %c0_12 = arith.constant 0 : index
    %13 = vector.load %arg6[%c0_11, %c0_12] : memref<256x16xf32, #tpu.memory_space<vmem>>, vector<256x16xf32>
    %cst_13 = arith.constant dense<0.000000e+00> : vector<2x16xf32>
    %14 = tpu.matmul %7, %13, %cst_13 {dimension_numbers = #tpu.dot_dimension_numbers<[1], [0], [0], [1], [0, 0, 1, 1], [], []>} : vector<2x256xf32>, vector<256x16xf32>, vector<2x16xf32> -> vector<2x16xf32>
    %c0_14 = arith.constant 0 : index
    %c0_15 = arith.constant 0 : index
    %15 = vector.load %arg7[%c0_14, %c0_15] : memref<1x16xf32, #tpu.memory_space<vmem>>, vector<1x16xf32>
    %16 = vector.broadcast %15 : vector<1x16xf32> to vector<2x16xf32>
    %17 = arith.addf %14, %16 : vector<2x16xf32>
    %cst_16 = arith.constant 5.000000e-01 : f32
    %18 = vector.broadcast %cst_16 : f32 to vector<2x16xf32>
    %19 = arith.mulf %18, %17 : vector<2x16xf32>
    %20 = math.exp %19 : vector<2x16xf32>
    %c0_17 = arith.constant 0 : index
    %c0_18 = arith.constant 0 : index
    %21 = vector.load %arg1[%c0_17, %c0_18] : memref<2x16xf32, #tpu.memory_space<vmem>>, vector<2x16xf32>
    %22 = arith.mulf %20, %21 : vector<2x16xf32>
    %23 = arith.addf %12, %22 : vector<2x16xf32>
    %c0_19 = arith.constant 0 : index
    %c0_20 = arith.constant 0 : index
    %24 = vector.load %arg8[%c0_19, %c0_20] : memref<16x256xf32, #tpu.memory_space<vmem>>, vector<16x256xf32>
    %cst_21 = arith.constant dense<0.000000e+00> : vector<2x256xf32>
    %25 = tpu.matmul %23, %24, %cst_21 {dimension_numbers = #tpu.dot_dimension_numbers<[1], [0], [0], [1], [0, 0, 1, 1], [], []>} : vector<2x16xf32>, vector<16x256xf32>, vector<2x256xf32> -> vector<2x256xf32>
    %c0_22 = arith.constant 0 : index
    %c0_23 = arith.constant 0 : index
    %26 = vector.load %arg9[%c0_22, %c0_23] : memref<1x256xf32, #tpu.memory_space<vmem>>, vector<1x256xf32>
    %27 = vector.broadcast %26 : vector<1x256xf32> to vector<2x256xf32>
    %28 = arith.addf %25, %27 : vector<2x256xf32>
    %c0_24 = arith.constant 0 : index
    %c0_25 = arith.constant 0 : index
    %29 = vector.load %arg10[%c0_24, %c0_25] : memref<256x2048xf32, #tpu.memory_space<vmem>>, vector<256x2048xf32>
    %cst_26 = arith.constant dense<0.000000e+00> : vector<2x2048xf32>
    %30 = tpu.matmul %28, %29, %cst_26 {dimension_numbers = #tpu.dot_dimension_numbers<[1], [0], [0], [1], [0, 0, 1, 1], [], []>} : vector<2x256xf32>, vector<256x2048xf32>, vector<2x2048xf32> -> vector<2x2048xf32>
    %c0_27 = arith.constant 0 : index
    %c0_28 = arith.constant 0 : index
    %31 = vector.load %arg11[%c0_27, %c0_28] : memref<1x2048xf32, #tpu.memory_space<vmem>>, vector<1x2048xf32>
    %32 = vector.broadcast %31 : vector<1x2048xf32> to vector<2x2048xf32>
    %33 = arith.addf %30, %32 : vector<2x2048xf32>
    %c0_29 = arith.constant 0 : index
    %c0_30 = arith.constant 0 : index
    %34 = vector.load %arg12[%c0_29, %c0_30] : memref<2x16xf32, #tpu.memory_space<vmem>>, vector<2x16xf32>
    tpu.vector_store %arg12[%c0_29, %c0_30], %12 {strides = array<i32>} : memref<2x16xf32, #tpu.memory_space<vmem>>, vector<2x16xf32>,
    %c0_31 = arith.constant 0 : index
    %c0_32 = arith.constant 0 : index
    %35 = vector.load %arg13[%c0_31, %c0_32] : memref<2x16xf32, #tpu.memory_space<vmem>>, vector<2x16xf32>
    tpu.vector_store %arg13[%c0_31, %c0_32], %17 {strides = array<i32>} : memref<2x16xf32, #tpu.memory_space<vmem>>, vector<2x16xf32>,
    %cst_33 = arith.constant 0.000000e+00 : f32
    %36 = vector.broadcast %cst_33 : f32 to vector<2x2048xf32>
    %37 = arith.maximumf %33, %36 : vector<2x2048xf32>
    %c0_34 = arith.constant 0 : index
    %c0_35 = arith.constant 0 : index
    %38 = vector.load %arg14[%c0_34, %c0_35] : memref<2x2048xf32, #tpu.memory_space<vmem>>, vector<2x2048xf32>
    tpu.vector_store %arg14[%c0_34, %c0_35], %37 {strides = array<i32>} : memref<2x2048xf32, #tpu.memory_space<vmem>>, vector<2x2048xf32>,
    return
  }
}

module attributes {stable_mosaic.version = 11 : i64} {
  func.func @_gemm_bias_act_kernel(%arg0: i32, %arg1: i32, %arg2: memref<1x16x512xf32, #tpu.memory_space<vmem>>, %arg3: memref<1x512x64xf32, #tpu.memory_space<vmem>>, %arg4: memref<1x64xf32, #tpu.memory_space<vmem>>, %arg5: memref<1x16x64xf32, #tpu.memory_space<vmem>>) attributes {dimension_semantics = [#tpu.dimension_semantics<parallel>, #tpu.dimension_semantics<parallel>], iteration_bounds = array<i64: 4, 2>, scalar_prefetch = 0 : i64, scratch_operands = 0 : i64, tpu.core_type = #tpu.core_type<tc>, window_params = [{transform_indices = @transform_0, window_bounds = array<i64: 1, 16, 512>}, {transform_indices = @transform_1, window_bounds = array<i64: 1, 512, 64>}, {pipeline_mode = #tpu.pipeline_mode<synchronous>, transform_indices = @transform_2, window_bounds = array<i64: 1, 64>}, {transform_indices = @transform_3, window_bounds = array<i64: 1, 16, 64>}]} {
    %c0 = arith.constant 0 : index
    %c0_0 = arith.constant 0 : index
    %c0_1 = arith.constant 0 : index
    %0 = vector.load %arg2[%c0, %c0_0, %c0_1] : memref<1x16x512xf32, #tpu.memory_space<vmem>>, vector<1x16x512xf32>
    %1 = vector.shape_cast %0 : vector<1x16x512xf32> to vector<16x512xf32>
    %c0_2 = arith.constant 0 : index
    %c0_3 = arith.constant 0 : index
    %c0_4 = arith.constant 0 : index
    %2 = vector.load %arg3[%c0_2, %c0_3, %c0_4] : memref<1x512x64xf32, #tpu.memory_space<vmem>>, vector<1x512x64xf32>
    %3 = vector.shape_cast %2 : vector<1x512x64xf32> to vector<512x64xf32>
    %cst = arith.constant dense<0.000000e+00> : vector<16x64xf32>
    %4 = tpu.matmul %1, %3, %cst {dimension_numbers = #tpu.dot_dimension_numbers<[1], [0], [0], [1], [0, 0, 1, 1], [], []>} : vector<16x512xf32>, vector<512x64xf32>, vector<16x64xf32> -> vector<16x64xf32>
    %c0_5 = arith.constant 0 : index
    %c0_6 = arith.constant 0 : index
    %5 = vector.load %arg4[%c0_5, %c0_6] : memref<1x64xf32, #tpu.memory_space<vmem>>, vector<1x64xf32>
    %6 = vector.broadcast %5 : vector<1x64xf32> to vector<16x64xf32>
    %7 = arith.addf %4, %6 : vector<16x64xf32>
    %cst_7 = arith.constant 0.000000e+00 : f32
    %8 = vector.broadcast %cst_7 : f32 to vector<16x64xf32>
    %9 = arith.maximumf %7, %8 : vector<16x64xf32>
    %c0_8 = arith.constant 0 : index
    %c0_9 = arith.constant 0 : index
    %c0_10 = arith.constant 0 : index
    %10 = vector.load %arg5[%c0_8, %c0_9, %c0_10] : memref<1x16x64xf32, #tpu.memory_space<vmem>>, vector<1x16x64xf32>
    %11 = vector.shape_cast %10 : vector<1x16x64xf32> to vector<16x64xf32>
    %12 = vector.shape_cast %9 : vector<16x64xf32> to vector<1x16x64xf32>
    tpu.vector_store %arg5[%c0_8, %c0_9, %c0_10], %12 {strides = array<i32>} : memref<1x16x64xf32, #tpu.memory_space<vmem>>, vector<1x16x64xf32>,
    return
  }
  func.func @transform_0(%arg0: i32, %arg1: i32) -> (i32, i32, i32) {
    %c0_i32 = arith.constant 0 : i32
    %c0_i32_0 = arith.constant 0 : i32
    return %arg0, %arg1, %c0_i32 : i32, i32, i32
  }
  func.func @transform_1(%arg0: i32, %arg1: i32) -> (i32, i32, i32) {
    %c0_i32 = arith.constant 0 : i32
    %c0_i32_0 = arith.constant 0 : i32
    %c0_i32_1 = arith.constant 0 : i32
    return %arg0, %c0_i32, %c0_i32_0 : i32, i32, i32
  }
  func.func @transform_2(%arg0: i32, %arg1: i32) -> (i32, i32) {
    %c0_i32 = arith.constant 0 : i32
    %c0_i32_0 = arith.constant 0 : i32
    %c0_i32_1 = arith.constant 0 : i32
    return %c0_i32, %c0_i32_0 : i32, i32
  }
  func.func @transform_3(%arg0: i32, %arg1: i32) -> (i32, i32, i32) {
    %c0_i32 = arith.constant 0 : i32
    %c0_i32_0 = arith.constant 0 : i32
    return %arg0, %arg1, %c0_i32 : i32, i32, i32
  }
}

module attributes {stable_mosaic.version = 11 : i64} {
  func.func @_gemm_bias_act_kernel(%arg0: i32, %arg1: i32, %arg2: memref<1x64x256xf32, #tpu.memory_space<vmem>>, %arg3: memref<1x256x32xf32, #tpu.memory_space<vmem>>, %arg4: memref<1x32xf32, #tpu.memory_space<vmem>>, %arg5: memref<1x64x32xf32, #tpu.memory_space<vmem>>) attributes {dimension_semantics = [#tpu.dimension_semantics<parallel>, #tpu.dimension_semantics<parallel>], iteration_bounds = array<i64: 4, 2>, scalar_prefetch = 0 : i64, scratch_operands = 0 : i64, tpu.core_type = #tpu.core_type<tc>, window_params = [{transform_indices = @transform_0, window_bounds = array<i64: 1, 64, 256>}, {transform_indices = @transform_1, window_bounds = array<i64: 1, 256, 32>}, {pipeline_mode = #tpu.pipeline_mode<synchronous>, transform_indices = @transform_2, window_bounds = array<i64: 1, 32>}, {transform_indices = @transform_3, window_bounds = array<i64: 1, 64, 32>}]} {
    %c0 = arith.constant 0 : index
    %c0_0 = arith.constant 0 : index
    %c0_1 = arith.constant 0 : index
    %0 = vector.load %arg2[%c0, %c0_0, %c0_1] : memref<1x64x256xf32, #tpu.memory_space<vmem>>, vector<1x64x256xf32>
    %1 = vector.shape_cast %0 : vector<1x64x256xf32> to vector<64x256xf32>
    %c0_2 = arith.constant 0 : index
    %c0_3 = arith.constant 0 : index
    %c0_4 = arith.constant 0 : index
    %2 = vector.load %arg3[%c0_2, %c0_3, %c0_4] : memref<1x256x32xf32, #tpu.memory_space<vmem>>, vector<1x256x32xf32>
    %3 = vector.shape_cast %2 : vector<1x256x32xf32> to vector<256x32xf32>
    %cst = arith.constant dense<0.000000e+00> : vector<64x32xf32>
    %4 = tpu.matmul %1, %3, %cst {dimension_numbers = #tpu.dot_dimension_numbers<[1], [0], [0], [1], [0, 0, 1, 1], [], []>} : vector<64x256xf32>, vector<256x32xf32>, vector<64x32xf32> -> vector<64x32xf32>
    %c0_5 = arith.constant 0 : index
    %c0_6 = arith.constant 0 : index
    %5 = vector.load %arg4[%c0_5, %c0_6] : memref<1x32xf32, #tpu.memory_space<vmem>>, vector<1x32xf32>
    %6 = vector.broadcast %5 : vector<1x32xf32> to vector<64x32xf32>
    %7 = arith.addf %4, %6 : vector<64x32xf32>
    %cst_7 = arith.constant 0.000000e+00 : f32
    %8 = vector.broadcast %cst_7 : f32 to vector<64x32xf32>
    %9 = arith.maximumf %7, %8 : vector<64x32xf32>
    %c0_8 = arith.constant 0 : index
    %c0_9 = arith.constant 0 : index
    %c0_10 = arith.constant 0 : index
    %10 = vector.load %arg5[%c0_8, %c0_9, %c0_10] : memref<1x64x32xf32, #tpu.memory_space<vmem>>, vector<1x64x32xf32>
    %11 = vector.shape_cast %10 : vector<1x64x32xf32> to vector<64x32xf32>
    %12 = vector.shape_cast %9 : vector<64x32xf32> to vector<1x64x32xf32>
    tpu.vector_store %arg5[%c0_8, %c0_9, %c0_10], %12 {strides = array<i32>} : memref<1x64x32xf32, #tpu.memory_space<vmem>>, vector<1x64x32xf32>,
    return
  }
  func.func @transform_0(%arg0: i32, %arg1: i32) -> (i32, i32, i32) {
    %c0_i32 = arith.constant 0 : i32
    %c0_i32_0 = arith.constant 0 : i32
    return %arg0, %arg1, %c0_i32 : i32, i32, i32
  }
  func.func @transform_1(%arg0: i32, %arg1: i32) -> (i32, i32, i32) {
    %c0_i32 = arith.constant 0 : i32
    %c0_i32_0 = arith.constant 0 : i32
    %c0_i32_1 = arith.constant 0 : i32
    return %arg0, %c0_i32, %c0_i32_0 : i32, i32, i32
  }
  func.func @transform_2(%arg0: i32, %arg1: i32) -> (i32, i32) {
    %c0_i32 = arith.constant 0 : i32
    %c0_i32_0 = arith.constant 0 : i32
    %c0_i32_1 = arith.constant 0 : i32
    return %c0_i32, %c0_i32_0 : i32, i32
  }
  func.func @transform_3(%arg0: i32, %arg1: i32) -> (i32, i32, i32) {
    %c0_i32 = arith.constant 0 : i32
    %c0_i32_0 = arith.constant 0 : i32
    return %arg0, %arg1, %c0_i32 : i32, i32, i32
  }
}

module attributes {stable_mosaic.version = 11 : i64} {
  func.func @_gemm_bias_act_kernel(%arg0: i32, %arg1: i32, %arg2: memref<1x256x128xf32, #tpu.memory_space<vmem>>, %arg3: memref<1x128x3xf32, #tpu.memory_space<vmem>>, %arg4: memref<1x3xf32, #tpu.memory_space<vmem>>, %arg5: memref<1x256x3xf32, #tpu.memory_space<vmem>>) attributes {dimension_semantics = [#tpu.dimension_semantics<parallel>, #tpu.dimension_semantics<parallel>], iteration_bounds = array<i64: 4, 2>, scalar_prefetch = 0 : i64, scratch_operands = 0 : i64, tpu.core_type = #tpu.core_type<tc>, window_params = [{transform_indices = @transform_0, window_bounds = array<i64: 1, 256, 128>}, {transform_indices = @transform_1, window_bounds = array<i64: 1, 128, 3>}, {pipeline_mode = #tpu.pipeline_mode<synchronous>, transform_indices = @transform_2, window_bounds = array<i64: 1, 3>}, {transform_indices = @transform_3, window_bounds = array<i64: 1, 256, 3>}]} {
    %c0 = arith.constant 0 : index
    %c0_0 = arith.constant 0 : index
    %c0_1 = arith.constant 0 : index
    %0 = vector.load %arg2[%c0, %c0_0, %c0_1] : memref<1x256x128xf32, #tpu.memory_space<vmem>>, vector<1x256x128xf32>
    %1 = vector.shape_cast %0 : vector<1x256x128xf32> to vector<256x128xf32>
    %c0_2 = arith.constant 0 : index
    %c0_3 = arith.constant 0 : index
    %c0_4 = arith.constant 0 : index
    %2 = vector.load %arg3[%c0_2, %c0_3, %c0_4] : memref<1x128x3xf32, #tpu.memory_space<vmem>>, vector<1x128x3xf32>
    %3 = vector.shape_cast %2 : vector<1x128x3xf32> to vector<128x3xf32>
    %cst = arith.constant dense<0.000000e+00> : vector<256x3xf32>
    %4 = tpu.matmul %1, %3, %cst {dimension_numbers = #tpu.dot_dimension_numbers<[1], [0], [0], [1], [0, 0, 1, 1], [], []>} : vector<256x128xf32>, vector<128x3xf32>, vector<256x3xf32> -> vector<256x3xf32>
    %c0_5 = arith.constant 0 : index
    %c0_6 = arith.constant 0 : index
    %5 = vector.load %arg4[%c0_5, %c0_6] : memref<1x3xf32, #tpu.memory_space<vmem>>, vector<1x3xf32>
    %6 = vector.broadcast %5 : vector<1x3xf32> to vector<256x3xf32>
    %7 = arith.addf %4, %6 : vector<256x3xf32>
    %8 = arith.negf %7 : vector<256x3xf32>
    %9 = math.exp %8 : vector<256x3xf32>
    %cst_7 = arith.constant 1.000000e+00 : f32
    %10 = vector.broadcast %cst_7 : f32 to vector<256x3xf32>
    %11 = arith.addf %10, %9 : vector<256x3xf32>
    %12 = arith.divf %10, %11 : vector<256x3xf32>
    %c0_8 = arith.constant 0 : index
    %c0_9 = arith.constant 0 : index
    %c0_10 = arith.constant 0 : index
    %13 = vector.load %arg5[%c0_8, %c0_9, %c0_10] : memref<1x256x3xf32, #tpu.memory_space<vmem>>, vector<1x256x3xf32>
    %14 = vector.shape_cast %13 : vector<1x256x3xf32> to vector<256x3xf32>
    %15 = vector.shape_cast %12 : vector<256x3xf32> to vector<1x256x3xf32>
    tpu.vector_store %arg5[%c0_8, %c0_9, %c0_10], %15 {strides = array<i32>} : memref<1x256x3xf32, #tpu.memory_space<vmem>>, vector<1x256x3xf32>,
    return
  }
  func.func @transform_0(%arg0: i32, %arg1: i32) -> (i32, i32, i32) {
    %c0_i32 = arith.constant 0 : i32
    %c0_i32_0 = arith.constant 0 : i32
    return %arg0, %arg1, %c0_i32 : i32, i32, i32
  }
  func.func @transform_1(%arg0: i32, %arg1: i32) -> (i32, i32, i32) {
    %c0_i32 = arith.constant 0 : i32
    %c0_i32_0 = arith.constant 0 : i32
    %c0_i32_1 = arith.constant 0 : i32
    return %arg0, %c0_i32, %c0_i32_0 : i32, i32, i32
  }
  func.func @transform_2(%arg0: i32, %arg1: i32) -> (i32, i32) {
    %c0_i32 = arith.constant 0 : i32
    %c0_i32_0 = arith.constant 0 : i32
    %c0_i32_1 = arith.constant 0 : i32
    return %c0_i32, %c0_i32_0 : i32, i32
  }
  func.func @transform_3(%arg0: i32, %arg1: i32) -> (i32, i32, i32) {
    %c0_i32 = arith.constant 0 : i32
    %c0_i32_0 = arith.constant 0 : i32
    return %arg0, %arg1, %c0_i32 : i32, i32, i32
  }
}

</mosaic_0001>

<llo_original>
// kernel: betavae_forward.7
$region0: #{betavae_forward.7}
  #allocation0 [shape = 'u32[]', space=smem, size = 0x4, offset = 0x4, fixed_abs, tag = 'smem constant byte address 0x4 - core index']
  #allocation1 [shape = 'u32[144,128]{1,0:T(1,128)}', space=vmem, size = 0x12000, scoped, tag = 'internal scratch']
  %s0 = inlined_call_operand.vmem [shape: f32[512,48], index: 0, kind: input, shape index: {}]
  %s1 = inlined_call_operand.vmem [shape: f32[48,32], index: 1, kind: input, shape index: {}]
  %s2 = inlined_call_operand.vmem [shape: f32[1,32], index: 2, kind: input, shape index: {}]
  %s3 = inlined_call_operand.vmem [shape: f32[512,32], index: 3, kind: output, shape index: {}]
  %s4 = sld [smem:[#allocation0]]
  $region45: #{betavae_forward.7} parent=0
    _
  %s6 = ssub.s32 1, %s4
  %s7 = scalar_select 0, %s6, %s4
  loop: start=0, step=1, limit=4
  $region2: #{betavae_forward.7} parent=0 // loop_pre_header
    _
  $region3: #{betavae_forward.7} parent=0 // loop_header
    %s9 = sphi 0, %s13
    %p10 = scmp.ge.s32.totalorder %s9, 4
    %s19 = sphi 0, %s21
    %s22 = sphi 0, %s19
    %s23 = sphi 0, %s22
    %s39 = sphi 0, %s23
    %s43 = sphi 0, %s43
    %s45 = sphi 0, %s43
    %s46 = sphi 0, %s45
    %s60 = sphi 0, %s46
    %s64 = sphi 0, %s64
    %s66 = sphi 0, %s64
    %s67 = sphi 0, %s66
    %s81 = sphi 0, %s67
    %s87 = sphi 0, %s89
    %s90 = sphi 0, %s87
    %s91 = sphi 0, %s90
    %s107 = sphi 0, %s91
  $region4: #{betavae_forward.7} parent=0 // loop_header_branch
    %12 = sbr.rel (%p10) target = $region8
  $region5: #{betavae_forward.7} parent=0 // loop_body
    %s14 = ssub.s32 %s9, 1
    %s15 = ssub.s32 %s9, 2
    %s16 = sadd.s32 %s9, 1
    %s17 = ssub.s32 %s9, %s16
    %p18 = scmp.eq.s32.totalorder %s17, 0
    %s20 = sadd.s32 %s19, 1
    %s21 = scalar_select %p18, %s19, %s20
    %p24 = pneg %p18
    %p25 = scmp.eq.s32.totalorder %s9, 1
    %p26 = por %p24, %p25
    %p27 = scmp.ne.s32.totalorder %s19, %s22
    %p28 = scmp.eq.s32.totalorder %s9, 0
    %p29 = por %p27, %p28
    %p30 = scmp.ne.s32.totalorder %s19, %s22
    %p31 = scmp.eq.s32.totalorder %s14, 1
    %p32 = por %p30, %p31
    %p33 = scmp.ne.s32.totalorder %s22, %s23
    %p34 = scmp.eq.s32.totalorder %s14, 0
    %p35 = por %p33, %p34
    %p36 = scmp.ne.s32.totalorder %s22, %s23
    %p37 = scmp.eq.s32.totalorder %s15, 1
    %p38 = por %p36, %p37
    %p40 = scmp.ne.s32.totalorder %s23, %s39
    %p41 = scmp.eq.s32.totalorder %s15, 0
    %p42 = por %p40, %p41
    %s44 = sadd.s32 %s43, 1
    %p47 = scmp.eq.s32.totalorder %s9, 1
    %p48 = scmp.ne.s32.totalorder %s43, %s45
    %p49 = scmp.eq.s32.totalorder %s9, 0
    %p50 = por %p48, %p49
    %p51 = scmp.ne.s32.totalorder %s43, %s45
    %p52 = scmp.eq.s32.totalorder %s14, 1
    %p53 = por %p51, %p52
    %p54 = scmp.ne.s32.totalorder %s45, %s46
    %p55 = scmp.eq.s32.totalorder %s14, 0
    %p56 = por %p54, %p55
    %p57 = scmp.ne.s32.totalorder %s45, %s46
    %p58 = scmp.eq.s32.totalorder %s15, 1
    %p59 = por %p57, %p58
    %p61 = scmp.ne.s32.totalorder %s46, %s60
    %p62 = scmp.eq.s32.totalorder %s15, 0
    %p63 = por %p61, %p62
    %s65 = sadd.s32 %s64, 1
    %p68 = scmp.eq.s32.totalorder %s9, 1
    %p69 = scmp.ne.s32.totalorder %s64, %s66
    %p70 = scmp.eq.s32.totalorder %s9, 0
    %p71 = por %p69, %p70
    %p72 = scmp.ne.s32.totalorder %s64, %s66
    %p73 = scmp.eq.s32.totalorder %s14, 1
    %p74 = por %p72, %p73
    %p75 = scmp.ne.s32.totalorder %s66, %s67
    %p76 = scmp.eq.s32.totalorder %s14, 0
    %p77 = por %p75, %p76
    %p78 = scmp.ne.s32.totalorder %s66, %s67
    %p79 = scmp.eq.s32.totalorder %s15, 1
    %p80 = por %p78, %p79
    %p82 = scmp.ne.s32.totalorder %s67, %s81
    %p83 = scmp.eq.s32.totalorder %s15, 0
    %p84 = por %p82, %p83
    %s85 = ssub.s32 %s9, %s16
    %p86 = scmp.eq.s32.totalorder %s85, 0
    %s88 = sadd.s32 %s87, 1
    %s89 = scalar_select %p86, %s87, %s88
    %p92 = pneg %p86
    %p93 = scmp.eq.s32.totalorder %s9, 1
    %p94 = por %p92, %p93
    %p95 = scmp.ne.s32.totalorder %s87, %s90
    %p96 = scmp.eq.s32.totalorder %s9, 0
    %p97 = por %p95, %p96
    %p98 = scmp.ne.s32.totalorder %s87, %s90
    %p99 = scmp.eq.s32.totalorder %s14, 1
    %p100 = por %p98, %p99
    %p101 = scmp.ne.s32.totalorder %s90, %s91
    %p102 = scmp.eq.s32.totalorder %s14, 0
    %p103 = por %p101, %p102
    %p104 = scmp.ne.s32.totalorder %s90, %s91
    %p105 = scmp.eq.s32.totalorder %s15, 1
    %p106 = por %p104, %p105
    %p108 = scmp.ne.s32.totalorder %s91, %s107
    %p109 = scmp.eq.s32.totalorder %s15, 0
    %p110 = por %p108, %p109
    %p111 = scmp.le.s32.totalorder 1, %s9
    %p112 = scmp.lt.s32.totalorder %s9, 3
    %p113 = pnand %p111, %p112
    %p114 = pneg %p113
    // Predicated region
    $region9: #{betavae_forward.7} parent=5 // pred_check
      _
    $region10: #{betavae_forward.7} parent=5 // pred_check_branch
      %116 = sbr.rel (%p113) target = $region12
    $region11: #{betavae_forward.7} parent=5 // pred_region
      %s117 = ssub.s32 %s9, 1
      // Predicated region
      $region13: #{betavae_forward.7} parent=11 // pred_check
        %p118 = pneg %p56
      $region14: #{betavae_forward.7} parent=11 // pred_check_branch
        %120 = sbr.rel (%p118) target = $region16
      $region15: #{betavae_forward.7} parent=11 // pred_region
        _
      $region16: #{betavae_forward.7} parent=11 // pred_fallthru
        _
      // Predicated region
      $region17: #{betavae_forward.7} parent=11 // pred_check
        %p121 = pneg %p77
      $region18: #{betavae_forward.7} parent=11 // pred_check_branch
        %123 = sbr.rel (%p121) target = $region20
      $region19: #{betavae_forward.7} parent=11 // pred_region
        _
      $region20: #{betavae_forward.7} parent=11 // pred_fallthru
        _
    $region12: #{betavae_forward.7} parent=5 // pred_fallthru
      _
    %p124 = scmp.lt.s32.totalorder %s9, 2
    // Predicated region
    $region21: #{betavae_forward.7} parent=5 // pred_check
      %p125 = pneg %p124
    $region22: #{betavae_forward.7} parent=5 // pred_check_branch
      %127 = sbr.rel (%p125) target = $region24
    $region23: #{betavae_forward.7} parent=5 // pred_region
      // Predicated region
      $region25: #{betavae_forward.7} parent=23 // pred_check
        %p128 = pneg %p29
      $region26: #{betavae_forward.7} parent=23 // pred_check_branch
        %130 = sbr.rel (%p128) target = $region28
      $region27: #{betavae_forward.7} parent=23 // pred_region
        %s131 = smul.u32 32, %s9
        %p132 = scmp.lt.s32.totalorder %s131, 63
        %s133 = scalar_select %p132, %s131, 63
        %s134 = smul.addr %s133, 8
        %s135 = scalar_lea.vmem %s0, %s134
        %s136 = smul.u32 32, %s9
      $region28: #{betavae_forward.7} parent=23 // pred_fallthru
        _
    $region24: #{betavae_forward.7} parent=5 // pred_fallthru
      _
    %p137 = scmp.le.s32.totalorder 1, %s9
    %p138 = scmp.lt.s32.totalorder %s9, 3
    %p139 = pnand %p137, %p138
    %p140 = pneg %p139
    // Predicated region
    $region29: #{betavae_forward.7} parent=5 // pred_check
      _
    $region30: #{betavae_forward.7} parent=5 // pred_check_branch
      %142 = sbr.rel (%p139) target = $region32
    $region31: #{betavae_forward.7} parent=5 // pred_region
      %s143 = ssub.s32 %s9, 1
      %s144 = smul.u32 32, %s14
      %p145 = scmp.lt.s32.totalorder %s144, 63
      %s146 = scalar_select %p145, %s144, 63
      %s147 = smul.addr %s146, 8
      %s148 = scalar_lea.vmem %s0, %s147
      %p149 = pneg %p35
      %p150 = pneg %p32
      %p151 = pneg %p56
      %p152 = pneg %p53
      %p153 = pneg %p77
      %p154 = pneg %p74
      %p155 = pneg %p103
      %p156 = pneg %p100
      %s157 = smul.u32 32, %s14
      %p158 = scmp.lt.s32.totalorder %s157, 63
      %s159 = scalar_select %p158, %s157, 63
      %s160 = smul.addr %s159, 8
      %s161 = scalar_lea.vmem %s3, %s160
      %s162 = smul.u32 32, %s14
      %p163 = scmp.lt.s32.totalorder %s162, 63
      %s164 = scalar_select %p163, %s162, 63
      %s165 = smul.addr %s164, 8
      %s166 = scalar_lea.vmem %s0, %s165
      %s167 = smul.u32 32, %s14
      %s168 = smul.u32 32, %s14
      %p169 = scmp.lt.s32.totalorder %s168, 63
      %s170 = scalar_select %p169, %s168, 63
      %s171 = smul.addr %s170, 8
      %s172 = scalar_lea.vmem %s3, %s171
      %s173 = smul.u32 32, %s14
      %v174 = vld [vmem:[%s166] sm:$0xff]
      %v175 = vld [vmem:[%s166 + $0x8] sm:$0xff]
      %v176 = vld [vmem:[%s166 + $0x10] sm:$0xff]
      %v177 = vld [vmem:[%s166 + $0x18] sm:$0xff]
      %v178 = vld [vmem:[%s166 + $0x20] sm:$0xff]
      %v179 = vld [vmem:[%s166 + $0x28] sm:$0xff]
      %v180 = vld [vmem:[%s166 + $0x30] sm:$0xff]
      %v181 = vld [vmem:[%s166 + $0x38] sm:$0xff]
      %v182 = vld [vmem:[%s166 + $0x40] sm:$0xff]
      %v183 = vld [vmem:[%s166 + $0x48] sm:$0xff]
      %v184 = vld [vmem:[%s166 + $0x50] sm:$0xff]
      %v185 = vld [vmem:[%s166 + $0x58] sm:$0xff]
      %v186 = vld [vmem:[%s166 + $0x60] sm:$0xff]
      %v187 = vld [vmem:[%s166 + $0x68] sm:$0xff]
      %v188 = vld [vmem:[%s166 + $0x70] sm:$0xff]
      %v189 = vld [vmem:[%s166 + $0x78] sm:$0xff]
      %v190 = vld [vmem:[%s166 + $0x80] sm:$0xff]
      %v191 = vld [vmem:[%s166 + $0x88] sm:$0xff]
      %v192 = vld [vmem:[%s166 + $0x90] sm:$0xff]
      %v193 = vld [vmem:[%s166 + $0x98] sm:$0xff]
      %v194 = vld [vmem:[%s166 + $0xa0] sm:$0xff]
      %v195 = vld [vmem:[%s166 + $0xa8] sm:$0xff]
      %v196 = vld [vmem:[%s166 + $0xb0] sm:$0xff]
      %v197 = vld [vmem:[%s166 + $0xb8] sm:$0xff]
      %v198 = vld [vmem:[%s166 + $0xc0] sm:$0xff]
      %v199 = vld [vmem:[%s166 + $0xc8] sm:$0xff]
      %v200 = vld [vmem:[%s166 + $0xd0] sm:$0xff]
      %v201 = vld [vmem:[%s166 + $0xd8] sm:$0xff]
      %v202 = vld [vmem:[%s166 + $0xe0] sm:$0xff]
      %v203 = vld [vmem:[%s166 + $0xe8] sm:$0xff]
      %v204 = vld [vmem:[%s166 + $0xf0] sm:$0xff]
      %v205 = vld [vmem:[%s166 + $0xf8] sm:$0xff]
      %v206 = vld [vmem:[%s1] sm:$0xff]
      %v207 = vld [vmem:[%s1 + $0x8] sm:$0xff]
      %v208 = vld [vmem:[%s1 + $0x10] sm:$0xff]
      %v209 = vld [vmem:[%s1 + $0x18] sm:$0xff]
      %v210 = vld [vmem:[%s1 + $0x20] sm:$0xff]
      %v211 = vld [vmem:[%s1 + $0x28] sm:$0xff]
      %v212 = vld [vmem:[%s2] sm:$0x1]
      %v214 = vlaneseq
      %v215 = vshrl.u32 %v214, 7
      %v216 = vsub.s32 0, %v215
      %v217 = vrot.slane %v212, %v216
      %vm219 = vcmask 392192
      %v221 = vsel %vm219, %v174, 0
      %v224 = vsel %vm219, %v175, 0
      %v227 = vsel %vm219, %v176, 0
      %v230 = vsel %vm219, %v177, 0
      %v233 = vsel %vm219, %v178, 0
      %v236 = vsel %vm219, %v179, 0
      %v239 = vsel %vm219, %v180, 0
      %v242 = vsel %vm219, %v181, 0
      %v245 = vsel %vm219, %v182, 0
      %v248 = vsel %vm219, %v183, 0
      %v251 = vsel %vm219, %v184, 0
      %v254 = vsel %vm219, %v185, 0
      %v257 = vsel %vm219, %v186, 0
      %v260 = vsel %vm219, %v187, 0
      %v263 = vsel %vm219, %v188, 0
      %v266 = vsel %vm219, %v189, 0
      %v269 = vsel %vm219, %v190, 0
      %v272 = vsel %vm219, %v191, 0
      %v275 = vsel %vm219, %v192, 0
      %v278 = vsel %vm219, %v193, 0
      %v281 = vsel %vm219, %v194, 0
      %v284 = vsel %vm219, %v195, 0
      %v287 = vsel %vm219, %v196, 0
      %v290 = vsel %vm219, %v197, 0
      %v293 = vsel %vm219, %v198, 0
      %v296 = vsel %vm219, %v199, 0
      %v299 = vsel %vm219, %v200, 0
      %v302 = vsel %vm219, %v201, 0
      %v305 = vsel %vm219, %v202, 0
      %v308 = vsel %vm219, %v203, 0
      %v311 = vsel %vm219, %v204, 0
      %v314 = vsel %vm219, %v205, 0
      %316 = vmatprep.subr.mxu0 0.0
      %317 = vmatpush1.msra.mxu0 %v206
      %318 = vmatprep.subr.mxu0 0.0
      %319 = vmatpush1.msra.mxu0 %v207
      %320 = vmatprep.subr.mxu0 0.0
      %321 = vmatpush1.msra.mxu0 %v208
      %322 = vmatprep.subr.mxu0 0.0
      %323 = vmatpush1.msra.mxu0 %v209
      %324 = vmatprep.subr.mxu0 0.0
      %325 = vmatpush1.msra.mxu0 %v210
      %326 = vmatprep.subr.mxu0 0.0
      %327 = vmatpush1.msra.mxu0 %v211
      %328 = vmatprep.subr.mxu0 0.0
      %329 = vmatpush1.msra.mxu0 0.0
      %330 = vmatprep.subr.mxu0 0.0
      %331 = vmatpush1.msra.mxu0 0.0
      %332 = vmatprep.subr.mxu0 0.0
      %333 = vmatpush1.msra.mxu0 0.0
      %334 = vmatprep.subr.mxu0 0.0
      %335 = vmatpush1.msra.mxu0 0.0
      %336 = vmatprep.subr.mxu0 0.0
      %337 = vmatpush1.msra.mxu0 0.0
      %338 = vmatprep.subr.mxu0 0.0
      %339 = vmatpush1.msra.mxu0 0.0
      %340 = vmatprep.subr.mxu0 0.0
      %341 = vmatpush1.msra.mxu0 0.0
      %342 = vmatprep.subr.mxu0 0.0
      %343 = vmatpush1.msra.mxu0 0.0
      %344 = vmatprep.subr.mxu0 0.0
      %345 = vmatpush1.msra.mxu0 0.0
      %346 = vmatprep.subr.mxu0 0.0
      %347 = vmatpush1.msra.mxu0 0.0
      %348 = vmatprep.subr.mxu0 0.0
      %349 = vmatpush1.msra.mxu0 0.0
      %350 = vmatprep.subr.mxu0 0.0
      %351 = vmatpush1.msra.mxu0 0.0
      %352 = vmatprep.subr.mxu0 0.0
      %353 = vmatpush1.msra.mxu0 0.0
      %354 = vmatprep.subr.mxu0 0.0
      %355 = vmatpush1.msra.mxu0 0.0
      %356 = vmatprep.subr.mxu0 0.0
      %357 = vmatpush1.msra.mxu0 0.0
      %358 = vmatprep.subr.mxu0 0.0
      %359 = vmatpush1.msra.mxu0 0.0
      %360 = vmatprep.subr.mxu0 0.0
      %361 = vmatpush1.msra.mxu0 0.0
      %362 = vmatprep.subr.mxu0 0.0
      %363 = vmatpush1.msra.mxu0 0.0
      %364 = vmatprep.subr.mxu0 0.0
      %365 = vmatpush1.msra.mxu0 0.0
      %366 = vmatprep.subr.mxu0 0.0
      %367 = vmatpush1.msra.mxu0 0.0
      %368 = vmatprep.subr.mxu0 0.0
      %369 = vmatpush1.msra.mxu0 0.0
      %370 = vmatprep.subr.mxu0 0.0
      %371 = vmatpush1.msra.mxu0 0.0
      %372 = vmatprep.subr.mxu0 0.0
      %373 = vmatpush1.msra.mxu0 0.0
      %374 = vmatprep.subr.mxu0 0.0
      %375 = vmatpush1.msra.mxu0 0.0
      %376 = vmatprep.subr.mxu0 0.0
      %377 = vmatpush1.msra.mxu0 0.0
      %378 = vmatprep.subr.mxu0 0.0
      %379 = vmatpush1.msra.mxu0 0.0
      %380 = vmatprep.mubr.f32.mxu0 0.0
      %381 = vmatmul.mubr.f32.gmra.mrb[0].mxu0 %v221
      %v382 = vpop.f32.mrb[0].mxu0
      %v383 = vadd.f32 %v217, %v382
      %v384 = vpop.f32.mrb[0].mxu0
      %385 = vmatprep.mubr.f32.mxu0 0.0
      %386 = vmatmul.mubr.f32.gmra.mrb[0].mxu0 %v224
      %v387 = vpop.f32.mrb[0].mxu0
      %v388 = vadd.f32 %v217, %v387
      %v389 = vpop.f32.mrb[0].mxu0
      %390 = vmatprep.mubr.f32.mxu0 0.0
      %391 = vmatmul.mubr.f32.gmra.mrb[0].mxu0 %v227
      %v392 = vpop.f32.mrb[0].mxu0
      %v393 = vadd.f32 %v217, %v392
      %v394 = vpop.f32.mrb[0].mxu0
      %395 = vmatprep.mubr.f32.mxu0 0.0
      %396 = vmatmul.mubr.f32.gmra.mrb[0].mxu0 %v230
      %v397 = vpop.f32.mrb[0].mxu0
      %v398 = vadd.f32 %v217, %v397
      %v399 = vpop.f32.mrb[0].mxu0
      %400 = vmatprep.mubr.f32.mxu0 0.0
      %401 = vmatmul.mubr.f32.gmra.mrb[0].mxu0 %v233
      %v402 = vpop.f32.mrb[0].mxu0
      %v403 = vadd.f32 %v217, %v402
      %v404 = vpop.f32.mrb[0].mxu0
      %405 = vmatprep.mubr.f32.mxu0 0.0
      %406 = vmatmul.mubr.f32.gmra.mrb[0].mxu0 %v236
      %v407 = vpop.f32.mrb[0].mxu0
      %v408 = vadd.f32 %v217, %v407
      %v409 = vpop.f32.mrb[0].mxu0
      %410 = vmatprep.mubr.f32.mxu0 0.0
      %411 = vmatmul.mubr.f32.gmra.mrb[0].mxu0 %v239
      %v412 = vpop.f32.mrb[0].mxu0
      %v413 = vadd.f32 %v217, %v412
      %v414 = vpop.f32.mrb[0].mxu0
      %415 = vmatprep.mubr.f32.mxu0 0.0
      %416 = vmatmul.mubr.f32.gmra.mrb[0].mxu0 %v242
      %v417 = vpop.f32.mrb[0].mxu0
      %v418 = vadd.f32 %v217, %v417
      %v419 = vpop.f32.mrb[0].mxu0
      %420 = vmatprep.mubr.f32.mxu0 0.0
      %421 = vmatmul.mubr.f32.gmra.mrb[0].mxu0 %v245
      %v422 = vpop.f32.mrb[0].mxu0
      %v423 = vadd.f32 %v217, %v422
      %v424 = vpop.f32.mrb[0].mxu0
      %425 = vmatprep.mubr.f32.mxu0 0.0
      %426 = vmatmul.mubr.f32.gmra.mrb[0].mxu0 %v248
      %v427 = vpop.f32.mrb[0].mxu0
      %v428 = vadd.f32 %v217, %v427
      %v429 = vpop.f32.mrb[0].mxu0
      %430 = vmatprep.mubr.f32.mxu0 0.0
      %431 = vmatmul.mubr.f32.gmra.mrb[0].mxu0 %v251
      %v432 = vpop.f32.mrb[0].mxu0
      %v433 = vadd.f32 %v217, %v432
      %v434 = vpop.f32.mrb[0].mxu0
      %435 = vmatprep.mubr.f32.mxu0 0.0
      %436 = vmatmul.mubr.f32.gmra.mrb[0].mxu0 %v254
      %v437 = vpop.f32.mrb[0].mxu0
      %v438 = vadd.f32 %v217, %v437
      %v439 = vpop.f32.mrb[0].mxu0
      %440 = vmatprep.mubr.f32.mxu0 0.0
      %441 = vmatmul.mubr.f32.gmra.mrb[0].mxu0 %v257
      %v442 = vpop.f32.mrb[0].mxu0
      %v443 = vadd.f32 %v217, %v442
      %v444 = vpop.f32.mrb[0].mxu0
      %445 = vmatprep.mubr.f32.mxu0 0.0
      %446 = vmatmul.mubr.f32.gmra.mrb[0].mxu0 %v260
      %v447 = vpop.f32.mrb[0].mxu0
      %v448 = vadd.f32 %v217, %v447
      %v449 = vpop.f32.mrb[0].mxu0
      %450 = vmatprep.mubr.f32.mxu0 0.0
      %451 = vmatmul.mubr.f32.gmra.mrb[0].mxu0 %v263
      %v452 = vpop.f32.mrb[0].mxu0
      %v453 = vadd.f32 %v217, %v452
      %v454 = vpop.f32.mrb[0].mxu0
      %455 = vmatprep.mubr.f32.mxu0 0.0
      %456 = vmatmul.mubr.f32.gmra.mrb[0].mxu0 %v266
      %v457 = vpop.f32.mrb[0].mxu0
      %v458 = vadd.f32 %v217, %v457
      %v459 = vpop.f32.mrb[0].mxu0
      %460 = vmatprep.mubr.f32.mxu0 0.0
      %461 = vmatmul.mubr.f32.gmra.mrb[0].mxu0 %v269
      %v462 = vpop.f32.mrb[0].mxu0
      %v463 = vadd.f32 %v217, %v462
      %v464 = vpop.f32.mrb[0].mxu0
      %465 = vmatprep.mubr.f32.mxu0 0.0
      %466 = vmatmul.mubr.f32.gmra.mrb[0].mxu0 %v272
      %v467 = vpop.f32.mrb[0].mxu0
      %v468 = vadd.f32 %v217, %v467
      %v469 = vpop.f32.mrb[0].mxu0
      %470 = vmatprep.mubr.f32.mxu0 0.0
      %471 = vmatmul.mubr.f32.gmra.mrb[0].mxu0 %v275
      %v472 = vpop.f32.mrb[0].mxu0
      %v473 = vadd.f32 %v217, %v472
      %v474 = vpop.f32.mrb[0].mxu0
      %475 = vmatprep.mubr.f32.mxu0 0.0
      %476 = vmatmul.mubr.f32.gmra.mrb[0].mxu0 %v278
      %v477 = vpop.f32.mrb[0].mxu0
      %v478 = vadd.f32 %v217, %v477
      %v479 = vpop.f32.mrb[0].mxu0
      %480 = vmatprep.mubr.f32.mxu0 0.0
      %481 = vmatmul.mubr.f32.gmra.mrb[0].mxu0 %v281
      %v482 = vpop.f32.mrb[0].mxu0
      %v483 = vadd.f32 %v217, %v482
      %v484 = vpop.f32.mrb[0].mxu0
      %485 = vmatprep.mubr.f32.mxu0 0.0
      %486 = vmatmul.mubr.f32.gmra.mrb[0].mxu0 %v284
      %v487 = vpop.f32.mrb[0].mxu0
      %v488 = vadd.f32 %v217, %v487
      %v489 = vpop.f32.mrb[0].mxu0
      %490 = vmatprep.mubr.f32.mxu0 0.0
      %491 = vmatmul.mubr.f32.gmra.mrb[0].mxu0 %v287
      %v492 = vpop.f32.mrb[0].mxu0
      %v493 = vadd.f32 %v217, %v492
      %v494 = vpop.f32.mrb[0].mxu0
      %495 = vmatprep.mubr.f32.mxu0 0.0
      %496 = vmatmul.mubr.f32.gmra.mrb[0].mxu0 %v290
      %v497 = vpop.f32.mrb[0].mxu0
      %v498 = vadd.f32 %v217, %v497
      %v499 = vpop.f32.mrb[0].mxu0
      %500 = vmatprep.mubr.f32.mxu0 0.0
      %501 = vmatmul.mubr.f32.gmra.mrb[0].mxu0 %v293
      %v502 = vpop.f32.mrb[0].mxu0
      %v503 = vadd.f32 %v217, %v502
      %v504 = vpop.f32.mrb[0].mxu0
      %505 = vmatprep.mubr.f32.mxu0 0.0
      %506 = vmatmul.mubr.f32.gmra.mrb[0].mxu0 %v296
      %v507 = vpop.f32.mrb[0].mxu0
      %v508 = vadd.f32 %v217, %v507
      %v509 = vpop.f32.mrb[0].mxu0
      %510 = vmatprep.mubr.f32.mxu0 0.0
      %511 = vmatmul.mubr.f32.gmra.mrb[0].mxu0 %v299
      %v512 = vpop.f32.mrb[0].mxu0
      %v513 = vadd.f32 %v217, %v512
      %v514 = vpop.f32.mrb[0].mxu0
      %515 = vmatprep.mubr.f32.mxu0 0.0
      %516 = vmatmul.mubr.f32.gmra.mrb[0].mxu0 %v302
      %v517 = vpop.f32.mrb[0].mxu0
      %v518 = vadd.f32 %v217, %v517
      %v519 = vpop.f32.mrb[0].mxu0
      %520 = vmatprep.mubr.f32.mxu0 0.0
      %521 = vmatmul.mubr.f32.gmra.mrb[0].mxu0 %v305
      %v522 = vpop.f32.mrb[0].mxu0
      %v523 = vadd.f32 %v217, %v522
      %v524 = vpop.f32.mrb[0].mxu0
      %525 = vmatprep.mubr.f32.mxu0 0.0
      %526 = vmatmul.mubr.f32.gmra.mrb[0].mxu0 %v308
      %v527 = vpop.f32.mrb[0].mxu0
      %v528 = vadd.f32 %v217, %v527
      %v529 = vpop.f32.mrb[0].mxu0
      %530 = vmatprep.mubr.f32.mxu0 0.0
      %531 = vmatmul.mubr.f32.gmra.mrb[0].mxu0 %v311
      %v532 = vpop.f32.mrb[0].mxu0
      %v533 = vadd.f32 %v217, %v532
      %v534 = vpop.f32.mrb[0].mxu0
      %535 = vmatprep.mubr.f32.mxu0 0.0
      %536 = vmatmul.mubr.f32.gmra.mrb[0].mxu0 %v314
      %v537 = vpop.f32.mrb[0].mxu0
      %v538 = vadd.f32 %v217, %v537
      %v539 = vpop.f32.mrb[0].mxu0
      %540 = vdwg.mxu0
      %v541 = vmax.f32 %v383, 0.0
      %v542 = vmax.f32 %v388, 0.0
      %v543 = vmax.f32 %v393, 0.0
      %v544 = vmax.f32 %v398, 0.0
      %v545 = vmax.f32 %v403, 0.0
      %v546 = vmax.f32 %v408, 0.0
      %v547 = vmax.f32 %v413, 0.0
      %v548 = vmax.f32 %v418, 0.0
      %v549 = vmax.f32 %v423, 0.0
      %v550 = vmax.f32 %v428, 0.0
      %v551 = vmax.f32 %v433, 0.0
      %v552 = vmax.f32 %v438, 0.0
      %v553 = vmax.f32 %v443, 0.0
      %v554 = vmax.f32 %v448, 0.0
      %v555 = vmax.f32 %v453, 0.0
      %v556 = vmax.f32 %v458, 0.0
      %v557 = vmax.f32 %v463, 0.0
      %v558 = vmax.f32 %v468, 0.0
      %v559 = vmax.f32 %v473, 0.0
      %v560 = vmax.f32 %v478, 0.0
      %v561 = vmax.f32 %v483, 0.0
      %v562 = vmax.f32 %v488, 0.0
      %v563 = vmax.f32 %v493, 0.0
      %v564 = vmax.f32 %v498, 0.0
      %v565 = vmax.f32 %v503, 0.0
      %v566 = vmax.f32 %v508, 0.0
      %v567 = vmax.f32 %v513, 0.0
      %v568 = vmax.f32 %v518, 0.0
      %v569 = vmax.f32 %v523, 0.0
      %v570 = vmax.f32 %v528, 0.0
      %v571 = vmax.f32 %v533, 0.0
      %v572 = vmax.f32 %v538, 0.0
      %vm573 = vcmask 261120
      %574 = vst.msk [vmem:[%s172] sm:$0xff] %vm573, %v541
      %575 = vst.msk [vmem:[%s172 + $0x8] sm:$0xff] %vm573, %v542
      %576 = vst.msk [vmem:[%s172 + $0x10] sm:$0xff] %vm573, %v543
      %577 = vst.msk [vmem:[%s172 + $0x18] sm:$0xff] %vm573, %v544
      %578 = vst.msk [vmem:[%s172 + $0x20] sm:$0xff] %vm573, %v545
      %579 = vst.msk [vmem:[%s172 + $0x28] sm:$0xff] %vm573, %v546
      %580 = vst.msk [vmem:[%s172 + $0x30] sm:$0xff] %vm573, %v547
      %581 = vst.msk [vmem:[%s172 + $0x38] sm:$0xff] %vm573, %v548
      %582 = vst.msk [vmem:[%s172 + $0x40] sm:$0xff] %vm573, %v549
      %583 = vst.msk [vmem:[%s172 + $0x48] sm:$0xff] %vm573, %v550
      %584 = vst.msk [vmem:[%s172 + $0x50] sm:$0xff] %vm573, %v551
      %585 = vst.msk [vmem:[%s172 + $0x58] sm:$0xff] %vm573, %v552
      %586 = vst.msk [vmem:[%s172 + $0x60] sm:$0xff] %vm573, %v553
      %587 = vst.msk [vmem:[%s172 + $0x68] sm:$0xff] %vm573, %v554
      %588 = vst.msk [vmem:[%s172 + $0x70] sm:$0xff] %vm573, %v555
      %589 = vst.msk [vmem:[%s172 + $0x78] sm:$0xff] %vm573, %v556
      %590 = vst.msk [vmem:[%s172 + $0x80] sm:$0xff] %vm573, %v557
      %591 = vst.msk [vmem:[%s172 + $0x88] sm:$0xff] %vm573, %v558
      %592 = vst.msk [vmem:[%s172 + $0x90] sm:$0xff] %vm573, %v559
      %593 = vst.msk [vmem:[%s172 + $0x98] sm:$0xff] %vm573, %v560
      %594 = vst.msk [vmem:[%s172 + $0xa0] sm:$0xff] %vm573, %v561
      %595 = vst.msk [vmem:[%s172 + $0xa8] sm:$0xff] %vm573, %v562
      %596 = vst.msk [vmem:[%s172 + $0xb0] sm:$0xff] %vm573, %v563
      %597 = vst.msk [vmem:[%s172 + $0xb8] sm:$0xff] %vm573, %v564
      %598 = vst.msk [vmem:[%s172 + $0xc0] sm:$0xff] %vm573, %v565
      %599 = vst.msk [vmem:[%s172 + $0xc8] sm:$0xff] %vm573, %v566
      %600 = vst.msk [vmem:[%s172 + $0xd0] sm:$0xff] %vm573, %v567
      %601 = vst.msk [vmem:[%s172 + $0xd8] sm:$0xff] %vm573, %v568
      %602 = vst.msk [vmem:[%s172 + $0xe0] sm:$0xff] %vm573, %v569
      %603 = vst.msk [vmem:[%s172 + $0xe8] sm:$0xff] %vm573, %v570
      %604 = vst.msk [vmem:[%s172 + $0xf0] sm:$0xff] %vm573, %v571
      %605 = vst.msk [vmem:[%s172 + $0xf8] sm:$0xff] %vm573, %v572
      %s606 = smul.u32 32, %s14
      %p607 = scmp.lt.s32.totalorder %s606, 63
      %s608 = scalar_select %p607, %s606, 63
      %s609 = smul.addr %s608, 8
      %s610 = scalar_lea.vmem %s3, %s609
      // Predicated region
      $region33: #{betavae_forward.7} parent=31 // pred_check
        %p611 = pneg %p100
      $region34: #{betavae_forward.7} parent=31 // pred_check_branch
        %613 = sbr.rel (%p611) target = $region36
      $region35: #{betavae_forward.7} parent=31 // pred_region
        %s614 = smul.u32 32, %s14
      $region36: #{betavae_forward.7} parent=31 // pred_fallthru
        _
    $region32: #{betavae_forward.7} parent=5 // pred_fallthru
      _
    %p615 = scmp.le.s32.totalorder 2, %s9
    // Predicated region
    $region37: #{betavae_forward.7} parent=5 // pred_check
      %p616 = pneg %p615
    $region38: #{betavae_forward.7} parent=5 // pred_check_branch
      %618 = sbr.rel (%p616) target = $region40
    $region39: #{betavae_forward.7} parent=5 // pred_region
      %s619 = ssub.s32 %s9, 2
      // Predicated region
      $region41: #{betavae_forward.7} parent=39 // pred_check
        %p620 = pneg %p106
      $region42: #{betavae_forward.7} parent=39 // pred_check_branch
        %622 = sbr.rel (%p620) target = $region44
      $region43: #{betavae_forward.7} parent=39 // pred_region
        %s623 = smul.u32 32, %s15
        %p624 = scmp.lt.s32.totalorder %s623, 63
        %s625 = scalar_select %p624, %s623, 63
        %s626 = smul.addr %s625, 8
        %s627 = scalar_lea.vmem %s3, %s626
      $region44: #{betavae_forward.7} parent=39 // pred_fallthru
        _
    $region40: #{betavae_forward.7} parent=5 // pred_fallthru
      _
  $region6: #{betavae_forward.7} parent=0 // loop_footer
    %s13 = sadd.s32 1, %s9
  $region7: #{betavae_forward.7} parent=0 // loop_footer_branch
    %8 = sbr.rel target = $region3
  $region8: #{betavae_forward.7} parent=0 // loop_exit
    _

// kernel: betavae_forward.8
$region0: #{betavae_forward.8}
  #allocation0 [shape = 'u32[]', space=smem, size = 0x4, offset = 0x4, fixed_abs, tag = 'smem constant byte address 0x4 - core index']
  #allocation1 [shape = 'u32[144,128]{1,0:T(1,128)}', space=vmem, size = 0x12000, scoped, tag = 'internal scratch']
  %s0 = inlined_call_operand.vmem [shape: f32[128,512], index: 0, kind: input, shape index: {}]
  %s1 = inlined_call_operand.vmem [shape: f32[512,64], index: 1, kind: input, shape index: {}]
  %s2 = inlined_call_operand.vmem [shape: f32[1,64], index: 2, kind: input, shape index: {}]
  %s3 = inlined_call_operand.vmem [shape: f32[128,64], index: 3, kind: output, shape index: {}]
  %s4 = sld [smem:[#allocation0]]
  $region45: #{betavae_forward.8} parent=0
    _
  %s6 = ssub.s32 1, %s4
  %s7 = scalar_select 0, %s6, %s4
  loop: start=0, step=1, limit=4
  $region2: #{betavae_forward.8} parent=0 // loop_pre_header
    _
  $region3: #{betavae_forward.8} parent=0 // loop_header
    %s9 = sphi 0, %s13
    %p10 = scmp.ge.s32.totalorder %s9, 4
    %s19 = sphi 0, %s21
    %s22 = sphi 0, %s19
    %s23 = sphi 0, %s22
    %s39 = sphi 0, %s23
    %s43 = sphi 0, %s43
    %s45 = sphi 0, %s43
    %s46 = sphi 0, %s45
    %s60 = sphi 0, %s46
    %s64 = sphi 0, %s64
    %s66 = sphi 0, %s64
    %s67 = sphi 0, %s66
    %s81 = sphi 0, %s67
    %s87 = sphi 0, %s89
    %s90 = sphi 0, %s87
    %s91 = sphi 0, %s90
    %s107 = sphi 0, %s91
  $region4: #{betavae_forward.8} parent=0 // loop_header_branch
    %12 = sbr.rel (%p10) target = $region8
  $region5: #{betavae_forward.8} parent=0 // loop_body
    %s14 = ssub.s32 %s9, 1
    %s15 = ssub.s32 %s9, 2
    %s16 = sadd.s32 %s9, 1
    %s17 = ssub.s32 %s9, %s16
    %p18 = scmp.eq.s32.totalorder %s17, 0
    %s20 = sadd.s32 %s19, 1
    %s21 = scalar_select %p18, %s19, %s20
    %p24 = pneg %p18
    %p25 = scmp.eq.s32.totalorder %s9, 1
    %p26 = por %p24, %p25
    %p27 = scmp.ne.s32.totalorder %s19, %s22
    %p28 = scmp.eq.s32.totalorder %s9, 0
    %p29 = por %p27, %p28
    %p30 = scmp.ne.s32.totalorder %s19, %s22
    %p31 = scmp.eq.s32.totalorder %s14, 1
    %p32 = por %p30, %p31
    %p33 = scmp.ne.s32.totalorder %s22, %s23
    %p34 = scmp.eq.s32.totalorder %s14, 0
    %p35 = por %p33, %p34
    %p36 = scmp.ne.s32.totalorder %s22, %s23
    %p37 = scmp.eq.s32.totalorder %s15, 1
    %p38 = por %p36, %p37
    %p40 = scmp.ne.s32.totalorder %s23, %s39
    %p41 = scmp.eq.s32.totalorder %s15, 0
    %p42 = por %p40, %p41
    %s44 = sadd.s32 %s43, 1
    %p47 = scmp.eq.s32.totalorder %s9, 1
    %p48 = scmp.ne.s32.totalorder %s43, %s45
    %p49 = scmp.eq.s32.totalorder %s9, 0
    %p50 = por %p48, %p49
    %p51 = scmp.ne.s32.totalorder %s43, %s45
    %p52 = scmp.eq.s32.totalorder %s14, 1
    %p53 = por %p51, %p52
    %p54 = scmp.ne.s32.totalorder %s45, %s46
    %p55 = scmp.eq.s32.totalorder %s14, 0
    %p56 = por %p54, %p55
    %p57 = scmp.ne.s32.totalorder %s45, %s46
    %p58 = scmp.eq.s32.totalorder %s15, 1
    %p59 = por %p57, %p58
    %p61 = scmp.ne.s32.totalorder %s46, %s60
    %p62 = scmp.eq.s32.totalorder %s15, 0
    %p63 = por %p61, %p62
    %s65 = sadd.s32 %s64, 1
    %p68 = scmp.eq.s32.totalorder %s9, 1
    %p69 = scmp.ne.s32.totalorder %s64, %s66
    %p70 = scmp.eq.s32.totalorder %s9, 0
    %p71 = por %p69, %p70
    %p72 = scmp.ne.s32.totalorder %s64, %s66
    %p73 = scmp.eq.s32.totalorder %s14, 1
    %p74 = por %p72, %p73
    %p75 = scmp.ne.s32.totalorder %s66, %s67
    %p76 = scmp.eq.s32.totalorder %s14, 0
    %p77 = por %p75, %p76
    %p78 = scmp.ne.s32.totalorder %s66, %s67
    %p79 = scmp.eq.s32.totalorder %s15, 1
    %p80 = por %p78, %p79
    %p82 = scmp.ne.s32.totalorder %s67, %s81
    %p83 = scmp.eq.s32.totalorder %s15, 0
    %p84 = por %p82, %p83
    %s85 = ssub.s32 %s9, %s16
    %p86 = scmp.eq.s32.totalorder %s85, 0
    %s88 = sadd.s32 %s87, 1
    %s89 = scalar_select %p86, %s87, %s88
    %p92 = pneg %p86
    %p93 = scmp.eq.s32.totalorder %s9, 1
    %p94 = por %p92, %p93
    %p95 = scmp.ne.s32.totalorder %s87, %s90
    %p96 = scmp.eq.s32.totalorder %s9, 0
    %p97 = por %p95, %p96
    %p98 = scmp.ne.s32.totalorder %s87, %s90
    %p99 = scmp.eq.s32.totalorder %s14, 1
    %p100 = por %p98, %p99
    %p101 = scmp.ne.s32.totalorder %s90, %s91
    %p102 = scmp.eq.s32.totalorder %s14, 0
    %p103 = por %p101, %p102
    %p104 = scmp.ne.s32.totalorder %s90, %s91
    %p105 = scmp.eq.s32.totalorder %s15, 1
    %p106 = por %p104, %p105
    %p108 = scmp.ne.s32.totalorder %s91, %s107
    %p109 = scmp.eq.s32.totalorder %s15, 0
    %p110 = por %p108, %p109
    %p111 = scmp.le.s32.totalorder 1, %s9
    %p112 = scmp.lt.s32.totalorder %s9, 3
    %p113 = pnand %p111, %p112
    %p114 = pneg %p113
    // Predicated region
    $region9: #{betavae_forward.8} parent=5 // pred_check
      _
    $region10: #{betavae_forward.8} parent=5 // pred_check_branch
      %116 = sbr.rel (%p113) target = $region12
    $region11: #{betavae_forward.8} parent=5 // pred_region
      %s117 = ssub.s32 %s9, 1
      // Predicated region
      $region13: #{betavae_forward.8} parent=11 // pred_check
        %p118 = pneg %p56
      $region14: #{betavae_forward.8} parent=11 // pred_check_branch
        %120 = sbr.rel (%p118) target = $region16
      $region15: #{betavae_forward.8} parent=11 // pred_region
        _
      $region16: #{betavae_forward.8} parent=11 // pred_fallthru
        _
      // Predicated region
      $region17: #{betavae_forward.8} parent=11 // pred_check
        %p121 = pneg %p77
      $region18: #{betavae_forward.8} parent=11 // pred_check_branch
        %123 = sbr.rel (%p121) target = $region20
      $region19: #{betavae_forward.8} parent=11 // pred_region
        _
      $region20: #{betavae_forward.8} parent=11 // pred_fallthru
        _
    $region12: #{betavae_forward.8} parent=5 // pred_fallthru
      _
    %p124 = scmp.lt.s32.totalorder %s9, 2
    // Predicated region
    $region21: #{betavae_forward.8} parent=5 // pred_check
      %p125 = pneg %p124
    $region22: #{betavae_forward.8} parent=5 // pred_check_branch
      %127 = sbr.rel (%p125) target = $region24
    $region23: #{betavae_forward.8} parent=5 // pred_region
      // Predicated region
      $region25: #{betavae_forward.8} parent=23 // pred_check
        %p128 = pneg %p29
      $region26: #{betavae_forward.8} parent=23 // pred_check_branch
        %130 = sbr.rel (%p128) target = $region28
      $region27: #{betavae_forward.8} parent=23 // pred_region
        %s131 = smul.u32 8, %s9
        %p132 = scmp.lt.s32.totalorder %s131, 15
        %s133 = scalar_select %p132, %s131, 15
        %s134 = smul.addr %s133, 4
        %s135 = smul.addr %s134, 8
        %s136 = scalar_lea.vmem %s0, %s135
        %s137 = smul.u32 8, %s9
      $region28: #{betavae_forward.8} parent=23 // pred_fallthru
        _
    $region24: #{betavae_forward.8} parent=5 // pred_fallthru
      _
    %p138 = scmp.le.s32.totalorder 1, %s9
    %p139 = scmp.lt.s32.totalorder %s9, 3
    %p140 = pnand %p138, %p139
    %p141 = pneg %p140
    // Predicated region
    $region29: #{betavae_forward.8} parent=5 // pred_check
      _
    $region30: #{betavae_forward.8} parent=5 // pred_check_branch
      %143 = sbr.rel (%p140) target = $region32
    $region31: #{betavae_forward.8} parent=5 // pred_region
      %s144 = ssub.s32 %s9, 1
      %s145 = smul.u32 8, %s14
      %p146 = scmp.lt.s32.totalorder %s145, 15
      %s147 = scalar_select %p146, %s145, 15
      %s148 = smul.addr %s147, 4
      %s149 = smul.addr %s148, 8
      %s150 = scalar_lea.vmem %s0, %s149
      %p151 = pneg %p35
      %p152 = pneg %p32
      %p153 = pneg %p56
      %p154 = pneg %p53
      %p155 = pneg %p77
      %p156 = pneg %p74
      %p157 = pneg %p103
      %p158 = pneg %p100
      %s159 = smul.u32 8, %s14
      %p160 = scmp.lt.s32.totalorder %s159, 15
      %s161 = scalar_select %p160, %s159, 15
      %s162 = smul.addr %s161, 8
      %s163 = scalar_lea.vmem %s3, %s162
      %s164 = smul.u32 8, %s14
      %p165 = scmp.lt.s32.totalorder %s164, 15
      %s166 = scalar_select %p165, %s164, 15
      %s167 = smul.addr %s166, 4
      %s168 = smul.addr %s167, 8
      %s169 = scalar_lea.vmem %s0, %s168
      %s170 = smul.u32 8, %s14
      %s171 = smul.u32 8, %s14
      %p172 = scmp.lt.s32.totalorder %s171, 15
      %s173 = scalar_select %p172, %s171, 15
      %s174 = smul.addr %s173, 8
      %s175 = scalar_lea.vmem %s3, %s174
      %s176 = smul.u32 8, %s14
      %v177 = vld [vmem:[%s169] sm:$0xff]
      %v178 = vld [vmem:[%s169 + $0x8] sm:$0xff]
      %v179 = vld [vmem:[%s169 + $0x10] sm:$0xff]
      %v180 = vld [vmem:[%s169 + $0x18] sm:$0xff]
      %v181 = vld [vmem:[%s169 + $0x20] sm:$0xff]
      %v182 = vld [vmem:[%s169 + $0x28] sm:$0xff]
      %v183 = vld [vmem:[%s169 + $0x30] sm:$0xff]
      %v184 = vld [vmem:[%s169 + $0x38] sm:$0xff]
      %v185 = vld [vmem:[%s169 + $0x40] sm:$0xff]
      %v186 = vld [vmem:[%s169 + $0x48] sm:$0xff]
      %v187 = vld [vmem:[%s169 + $0x50] sm:$0xff]
      %v188 = vld [vmem:[%s169 + $0x58] sm:$0xff]
      %v189 = vld [vmem:[%s169 + $0x60] sm:$0xff]
      %v190 = vld [vmem:[%s169 + $0x68] sm:$0xff]
      %v191 = vld [vmem:[%s169 + $0x70] sm:$0xff]
      %v192 = vld [vmem:[%s169 + $0x78] sm:$0xff]
      %v193 = vld [vmem:[%s169 + $0x80] sm:$0xff]
      %v194 = vld [vmem:[%s169 + $0x88] sm:$0xff]
      %v195 = vld [vmem:[%s169 + $0x90] sm:$0xff]
      %v196 = vld [vmem:[%s169 + $0x98] sm:$0xff]
      %v197 = vld [vmem:[%s169 + $0xa0] sm:$0xff]
      %v198 = vld [vmem:[%s169 + $0xa8] sm:$0xff]
      %v199 = vld [vmem:[%s169 + $0xb0] sm:$0xff]
      %v200 = vld [vmem:[%s169 + $0xb8] sm:$0xff]
      %v201 = vld [vmem:[%s169 + $0xc0] sm:$0xff]
      %v202 = vld [vmem:[%s169 + $0xc8] sm:$0xff]
      %v203 = vld [vmem:[%s169 + $0xd0] sm:$0xff]
      %v204 = vld [vmem:[%s169 + $0xd8] sm:$0xff]
      %v205 = vld [vmem:[%s169 + $0xe0] sm:$0xff]
      %v206 = vld [vmem:[%s169 + $0xe8] sm:$0xff]
      %v207 = vld [vmem:[%s169 + $0xf0] sm:$0xff]
      %v208 = vld [vmem:[%s169 + $0xf8] sm:$0xff]
      %v209 = vld [vmem:[%s1] sm:$0xff]
      %v210 = vld [vmem:[%s1 + $0x8] sm:$0xff]
      %v211 = vld [vmem:[%s1 + $0x10] sm:$0xff]
      %v212 = vld [vmem:[%s1 + $0x18] sm:$0xff]
      %v213 = vld [vmem:[%s1 + $0x20] sm:$0xff]
      %v214 = vld [vmem:[%s1 + $0x28] sm:$0xff]
      %v215 = vld [vmem:[%s1 + $0x30] sm:$0xff]
      %v216 = vld [vmem:[%s1 + $0x38] sm:$0xff]
      %v217 = vld [vmem:[%s1 + $0x40] sm:$0xff]
      %v218 = vld [vmem:[%s1 + $0x48] sm:$0xff]
      %v219 = vld [vmem:[%s1 + $0x50] sm:$0xff]
      %v220 = vld [vmem:[%s1 + $0x58] sm:$0xff]
      %v221 = vld [vmem:[%s1 + $0x60] sm:$0xff]
      %v222 = vld [vmem:[%s1 + $0x68] sm:$0xff]
      %v223 = vld [vmem:[%s1 + $0x70] sm:$0xff]
      %v224 = vld [vmem:[%s1 + $0x78] sm:$0xff]
      %v225 = vld [vmem:[%s1 + $0x80] sm:$0xff]
      %v226 = vld [vmem:[%s1 + $0x88] sm:$0xff]
      %v227 = vld [vmem:[%s1 + $0x90] sm:$0xff]
      %v228 = vld [vmem:[%s1 + $0x98] sm:$0xff]
      %v229 = vld [vmem:[%s1 + $0xa0] sm:$0xff]
      %v230 = vld [vmem:[%s1 + $0xa8] sm:$0xff]
      %v231 = vld [vmem:[%s1 + $0xb0] sm:$0xff]
      %v232 = vld [vmem:[%s1 + $0xb8] sm:$0xff]
      %v233 = vld [vmem:[%s1 + $0xc0] sm:$0xff]
      %v234 = vld [vmem:[%s1 + $0xc8] sm:$0xff]
      %v235 = vld [vmem:[%s1 + $0xd0] sm:$0xff]
      %v236 = vld [vmem:[%s1 + $0xd8] sm:$0xff]
      %v237 = vld [vmem:[%s1 + $0xe0] sm:$0xff]
      %v238 = vld [vmem:[%s1 + $0xe8] sm:$0xff]
      %v239 = vld [vmem:[%s1 + $0xf0] sm:$0xff]
      %v240 = vld [vmem:[%s1 + $0xf8] sm:$0xff]
      %v241 = vld [vmem:[%s1 + $0x100] sm:$0xff]
      %v242 = vld [vmem:[%s1 + $0x108] sm:$0xff]
      %v243 = vld [vmem:[%s1 + $0x110] sm:$0xff]
      %v244 = vld [vmem:[%s1 + $0x118] sm:$0xff]
      %v245 = vld [vmem:[%s1 + $0x120] sm:$0xff]
      %v246 = vld [vmem:[%s1 + $0x128] sm:$0xff]
      %v247 = vld [vmem:[%s1 + $0x130] sm:$0xff]
      %v248 = vld [vmem:[%s1 + $0x138] sm:$0xff]
      %v249 = vld [vmem:[%s1 + $0x140] sm:$0xff]
      %v250 = vld [vmem:[%s1 + $0x148] sm:$0xff]
      %v251 = vld [vmem:[%s1 + $0x150] sm:$0xff]
      %v252 = vld [vmem:[%s1 + $0x158] sm:$0xff]
      %v253 = vld [vmem:[%s1 + $0x160] sm:$0xff]
      %v254 = vld [vmem:[%s1 + $0x168] sm:$0xff]
      %v255 = vld [vmem:[%s1 + $0x170] sm:$0xff]
      %v256 = vld [vmem:[%s1 + $0x178] sm:$0xff]
      %v257 = vld [vmem:[%s1 + $0x180] sm:$0xff]
      %v258 = vld [vmem:[%s1 + $0x188] sm:$0xff]
      %v259 = vld [vmem:[%s1 + $0x190] sm:$0xff]
      %v260 = vld [vmem:[%s1 + $0x198] sm:$0xff]
      %v261 = vld [vmem:[%s1 + $0x1a0] sm:$0xff]
      %v262 = vld [vmem:[%s1 + $0x1a8] sm:$0xff]
      %v263 = vld [vmem:[%s1 + $0x1b0] sm:$0xff]
      %v264 = vld [vmem:[%s1 + $0x1b8] sm:$0xff]
      %v265 = vld [vmem:[%s1 + $0x1c0] sm:$0xff]
      %v266 = vld [vmem:[%s1 + $0x1c8] sm:$0xff]
      %v267 = vld [vmem:[%s1 + $0x1d0] sm:$0xff]
      %v268 = vld [vmem:[%s1 + $0x1d8] sm:$0xff]
      %v269 = vld [vmem:[%s1 + $0x1e0] sm:$0xff]
      %v270 = vld [vmem:[%s1 + $0x1e8] sm:$0xff]
      %v271 = vld [vmem:[%s1 + $0x1f0] sm:$0xff]
      %v272 = vld [vmem:[%s1 + $0x1f8] sm:$0xff]
      %v273 = vld [vmem:[%s2] sm:$0x1]
      %v275 = vlaneseq
      %v276 = vshrl.u32 %v275, 7
      %v277 = vsub.s32 0, %v276
      %v278 = vrot.slane %v273, %v277
      %280 = vmatprep.subr.mxu0 0.0
      %281 = vmatpush1.msra.mxu0 %v209
      %282 = vmatprep.subr.mxu0 0.0
      %283 = vmatpush1.msra.mxu0 %v210
      %284 = vmatprep.subr.mxu0 0.0
      %285 = vmatpush1.msra.mxu0 %v211
      %286 = vmatprep.subr.mxu0 0.0
      %287 = vmatpush1.msra.mxu0 %v212
      %288 = vmatprep.subr.mxu0 0.0
      %289 = vmatpush1.msra.mxu0 %v213
      %290 = vmatprep.subr.mxu0 0.0
      %291 = vmatpush1.msra.mxu0 %v214
      %292 = vmatprep.subr.mxu0 0.0
      %293 = vmatpush1.msra.mxu0 %v215
      %294 = vmatprep.subr.mxu0 0.0
      %295 = vmatpush1.msra.mxu0 %v216
      %296 = vmatprep.subr.mxu0 0.0
      %297 = vmatpush1.msra.mxu0 %v217
      %298 = vmatprep.subr.mxu0 0.0
      %299 = vmatpush1.msra.mxu0 %v218
      %300 = vmatprep.subr.mxu0 0.0
      %301 = vmatpush1.msra.mxu0 %v219
      %302 = vmatprep.subr.mxu0 0.0
      %303 = vmatpush1.msra.mxu0 %v220
      %304 = vmatprep.subr.mxu0 0.0
      %305 = vmatpush1.msra.mxu0 %v221
      %306 = vmatprep.subr.mxu0 0.0
      %307 = vmatpush1.msra.mxu0 %v222
      %308 = vmatprep.subr.mxu0 0.0
      %309 = vmatpush1.msra.mxu0 %v223
      %310 = vmatprep.subr.mxu0 0.0
      %311 = vmatpush1.msra.mxu0 %v224
      %312 = vmatprep.subr.mxu0 0.0
      %313 = vmatpush1.msra.mxu0 %v225
      %314 = vmatprep.subr.mxu0 0.0
      %315 = vmatpush1.msra.mxu0 %v226
      %316 = vmatprep.subr.mxu0 0.0
      %317 = vmatpush1.msra.mxu0 %v227
      %318 = vmatprep.subr.mxu0 0.0
      %319 = vmatpush1.msra.mxu0 %v228
      %320 = vmatprep.subr.mxu0 0.0
      %321 = vmatpush1.msra.mxu0 %v229
      %322 = vmatprep.subr.mxu0 0.0
      %323 = vmatpush1.msra.mxu0 %v230
      %324 = vmatprep.subr.mxu0 0.0
      %325 = vmatpush1.msra.mxu0 %v231
      %326 = vmatprep.subr.mxu0 0.0
      %327 = vmatpush1.msra.mxu0 %v232
      %328 = vmatprep.subr.mxu0 0.0
      %329 = vmatpush1.msra.mxu0 %v233
      %330 = vmatprep.subr.mxu0 0.0
      %331 = vmatpush1.msra.mxu0 %v234
      %332 = vmatprep.subr.mxu0 0.0
      %333 = vmatpush1.msra.mxu0 %v235
      %334 = vmatprep.subr.mxu0 0.0
      %335 = vmatpush1.msra.mxu0 %v236
      %336 = vmatprep.subr.mxu0 0.0
      %337 = vmatpush1.msra.mxu0 %v237
      %338 = vmatprep.subr.mxu0 0.0
      %339 = vmatpush1.msra.mxu0 %v238
      %340 = vmatprep.subr.mxu0 0.0
      %341 = vmatpush1.msra.mxu0 %v239
      %342 = vmatprep.subr.mxu0 0.0
      %343 = vmatpush1.msra.mxu0 %v240
      %344 = vmatprep.mubr.f32.mxu0 %v178
      %345 = vmatmul.mubr.f32.gmra.mrb[0].mxu0 %v177
      %v346 = vpop.f32.mrb[0].mxu0
      %v347 = vadd.f32 %v278, %v346
      %v348 = vpop.f32.mrb[0].mxu0
      %349 = vmatprep.mubr.f32.mxu0 %v182
      %350 = vmatmul.mubr.f32.gmra.mrb[0].mxu0 %v181
      %v351 = vpop.f32.mrb[0].mxu0
      %v352 = vadd.f32 %v278, %v351
      %v353 = vpop.f32.mrb[0].mxu0
      %354 = vmatprep.mubr.f32.mxu0 %v186
      %355 = vmatmul.mubr.f32.gmra.mrb[0].mxu0 %v185
      %v356 = vpop.f32.mrb[0].mxu0
      %v357 = vadd.f32 %v278, %v356
      %v358 = vpop.f32.mrb[0].mxu0
      %359 = vmatprep.mubr.f32.mxu0 %v190
      %360 = vmatmul.mubr.f32.gmra.mrb[0].mxu0 %v189
      %v361 = vpop.f32.mrb[0].mxu0
      %v362 = vadd.f32 %v278, %v361
      %v363 = vpop.f32.mrb[0].mxu0
      %364 = vmatprep.mubr.f32.mxu0 %v194
      %365 = vmatmul.mubr.f32.gmra.mrb[0].mxu0 %v193
      %v366 = vpop.f32.mrb[0].mxu0
      %v367 = vadd.f32 %v278, %v366
      %v368 = vpop.f32.mrb[0].mxu0
      %369 = vmatprep.mubr.f32.mxu0 %v198
      %370 = vmatmul.mubr.f32.gmra.mrb[0].mxu0 %v197
      %v371 = vpop.f32.mrb[0].mxu0
      %v372 = vadd.f32 %v278, %v371
      %v373 = vpop.f32.mrb[0].mxu0
      %374 = vmatprep.mubr.f32.mxu0 %v202
      %375 = vmatmul.mubr.f32.gmra.mrb[0].mxu0 %v201
      %v376 = vpop.f32.mrb[0].mxu0
      %v377 = vadd.f32 %v278, %v376
      %v378 = vpop.f32.mrb[0].mxu0
      %379 = vmatprep.mubr.f32.mxu0 %v206
      %380 = vmatmul.mubr.f32.gmra.mrb[0].mxu0 %v205
      %v381 = vpop.f32.mrb[0].mxu0
      %v382 = vadd.f32 %v278, %v381
      %v383 = vpop.f32.mrb[0].mxu0
      %384 = vdwg.mxu0
      %385 = vmatprep.subr.mxu0 0.0
      %386 = vmatpush1.msra.mxu0 %v241
      %387 = vmatprep.subr.mxu0 0.0
      %388 = vmatpush1.msra.mxu0 %v242
      %389 = vmatprep.subr.mxu0 0.0
      %390 = vmatpush1.msra.mxu0 %v243
      %391 = vmatprep.subr.mxu0 0.0
      %392 = vmatpush1.msra.mxu0 %v244
      %393 = vmatprep.subr.mxu0 0.0
      %394 = vmatpush1.msra.mxu0 %v245
      %395 = vmatprep.subr.mxu0 0.0
      %396 = vmatpush1.msra.mxu0 %v246
      %397 = vmatprep.subr.mxu0 0.0
      %398 = vmatpush1.msra.mxu0 %v247
      %399 = vmatprep.subr.mxu0 0.0
      %400 = vmatpush1.msra.mxu0 %v248
      %401 = vmatprep.subr.mxu0 0.0
      %402 = vmatpush1.msra.mxu0 %v249
      %403 = vmatprep.subr.mxu0 0.0
      %404 = vmatpush1.msra.mxu0 %v250
      %405 = vmatprep.subr.mxu0 0.0
      %406 = vmatpush1.msra.mxu0 %v251
      %407 = vmatprep.subr.mxu0 0.0
      %408 = vmatpush1.msra.mxu0 %v252
      %409 = vmatprep.subr.mxu0 0.0
      %410 = vmatpush1.msra.mxu0 %v253
      %411 = vmatprep.subr.mxu0 0.0
      %412 = vmatpush1.msra.mxu0 %v254
      %413 = vmatprep.subr.mxu0 0.0
      %414 = vmatpush1.msra.mxu0 %v255
      %415 = vmatprep.subr.mxu0 0.0
      %416 = vmatpush1.msra.mxu0 %v256
      %417 = vmatprep.subr.mxu0 0.0
      %418 = vmatpush1.msra.mxu0 %v257
      %419 = vmatprep.subr.mxu0 0.0
      %420 = vmatpush1.msra.mxu0 %v258
      %421 = vmatprep.subr.mxu0 0.0
      %422 = vmatpush1.msra.mxu0 %v259
      %423 = vmatprep.subr.mxu0 0.0
      %424 = vmatpush1.msra.mxu0 %v260
      %425 = vmatprep.subr.mxu0 0.0
      %426 = vmatpush1.msra.mxu0 %v261
      %427 = vmatprep.subr.mxu0 0.0
      %428 = vmatpush1.msra.mxu0 %v262
      %429 = vmatprep.subr.mxu0 0.0
      %430 = vmatpush1.msra.mxu0 %v263
      %431 = vmatprep.subr.mxu0 0.0
      %432 = vmatpush1.msra.mxu0 %v264
      %433 = vmatprep.subr.mxu0 0.0
      %434 = vmatpush1.msra.mxu0 %v265
      %435 = vmatprep.subr.mxu0 0.0
      %436 = vmatpush1.msra.mxu0 %v266
      %437 = vmatprep.subr.mxu0 0.0
      %438 = vmatpush1.msra.mxu0 %v267
      %439 = vmatprep.subr.mxu0 0.0
      %440 = vmatpush1.msra.mxu0 %v268
      %441 = vmatprep.subr.mxu0 0.0
      %442 = vmatpush1.msra.mxu0 %v269
      %443 = vmatprep.subr.mxu0 0.0
      %444 = vmatpush1.msra.mxu0 %v270
      %445 = vmatprep.subr.mxu0 0.0
      %446 = vmatpush1.msra.mxu0 %v271
      %447 = vmatprep.subr.mxu0 0.0
      %448 = vmatpush1.msra.mxu0 %v272
      %449 = vmatprep.mubr.f32.mxu0 %v180
      %450 = vmatmul.mubr.f32.gmra.mrb[0].mxu0 %v179
      %v451 = vpop.f32.mrb[0].mxu0
      %v452 = vadd.f32 %v347, %v451
      %v453 = vpop.f32.mrb[0].mxu0
      %454 = vmatprep.mubr.f32.mxu0 %v184
      %455 = vmatmul.mubr.f32.gmra.mrb[0].mxu0 %v183
      %v456 = vpop.f32.mrb[0].mxu0
      %v457 = vadd.f32 %v352, %v456
      %v458 = vpop.f32.mrb[0].mxu0
      %459 = vmatprep.mubr.f32.mxu0 %v188
      %460 = vmatmul.mubr.f32.gmra.mrb[0].mxu0 %v187
      %v461 = vpop.f32.mrb[0].mxu0
      %v462 = vadd.f32 %v357, %v461
      %v463 = vpop.f32.mrb[0].mxu0
      %464 = vmatprep.mubr.f32.mxu0 %v192
      %465 = vmatmul.mubr.f32.gmra.mrb[0].mxu0 %v191
      %v466 = vpop.f32.mrb[0].mxu0
      %v467 = vadd.f32 %v362, %v466
      %v468 = vpop.f32.mrb[0].mxu0
      %469 = vmatprep.mubr.f32.mxu0 %v196
      %470 = vmatmul.mubr.f32.gmra.mrb[0].mxu0 %v195
      %v471 = vpop.f32.mrb[0].mxu0
      %v472 = vadd.f32 %v367, %v471
      %v473 = vpop.f32.mrb[0].mxu0
      %474 = vmatprep.mubr.f32.mxu0 %v200
      %475 = vmatmul.mubr.f32.gmra.mrb[0].mxu0 %v199
      %v476 = vpop.f32.mrb[0].mxu0
      %v477 = vadd.f32 %v372, %v476
      %v478 = vpop.f32.mrb[0].mxu0
      %479 = vmatprep.mubr.f32.mxu0 %v204
      %480 = vmatmul.mubr.f32.gmra.mrb[0].mxu0 %v203
      %v481 = vpop.f32.mrb[0].mxu0
      %v482 = vadd.f32 %v377, %v481
      %v483 = vpop.f32.mrb[0].mxu0
      %484 = vmatprep.mubr.f32.mxu0 %v208
      %485 = vmatmul.mubr.f32.gmra.mrb[0].mxu0 %v207
      %v486 = vpop.f32.mrb[0].mxu0
      %v487 = vadd.f32 %v382, %v486
      %v488 = vpop.f32.mrb[0].mxu0
      %489 = vdwg.mxu0
      %v490 = vmax.f32 %v452, 0.0
      %v491 = vmax.f32 %v457, 0.0
      %v492 = vmax.f32 %v462, 0.0
      %v493 = vmax.f32 %v467, 0.0
      %v494 = vmax.f32 %v472, 0.0
      %v495 = vmax.f32 %v477, 0.0
      %v496 = vmax.f32 %v482, 0.0
      %v497 = vmax.f32 %v487, 0.0
      %vm498 = vcmask 523264
      %499 = vst.msk [vmem:[%s175] sm:$0xff] %vm498, %v490
      %500 = vst.msk [vmem:[%s175 + $0x8] sm:$0xff] %vm498, %v491
      %501 = vst.msk [vmem:[%s175 + $0x10] sm:$0xff] %vm498, %v492
      %502 = vst.msk [vmem:[%s175 + $0x18] sm:$0xff] %vm498, %v493
      %503 = vst.msk [vmem:[%s175 + $0x20] sm:$0xff] %vm498, %v494
      %504 = vst.msk [vmem:[%s175 + $0x28] sm:$0xff] %vm498, %v495
      %505 = vst.msk [vmem:[%s175 + $0x30] sm:$0xff] %vm498, %v496
      %506 = vst.msk [vmem:[%s175 + $0x38] sm:$0xff] %vm498, %v497
      %s507 = smul.u32 8, %s14
      %p508 = scmp.lt.s32.totalorder %s507, 15
      %s509 = scalar_select %p508, %s507, 15
      %s510 = smul.addr %s509, 8
      %s511 = scalar_lea.vmem %s3, %s510
      // Predicated region
      $region33: #{betavae_forward.8} parent=31 // pred_check
        %p512 = pneg %p100
      $region34: #{betavae_forward.8} parent=31 // pred_check_branch
        %514 = sbr.rel (%p512) target = $region36
      $region35: #{betavae_forward.8} parent=31 // pred_region
        %s515 = smul.u32 8, %s14
      $region36: #{betavae_forward.8} parent=31 // pred_fallthru
        _
    $region32: #{betavae_forward.8} parent=5 // pred_fallthru
      _
    %p516 = scmp.le.s32.totalorder 2, %s9
    // Predicated region
    $region37: #{betavae_forward.8} parent=5 // pred_check
      %p517 = pneg %p516
    $region38: #{betavae_forward.8} parent=5 // pred_check_branch
      %519 = sbr.rel (%p517) target = $region40
    $region39: #{betavae_forward.8} parent=5 // pred_region
      %s520 = ssub.s32 %s9, 2
      // Predicated region
      $region41: #{betavae_forward.8} parent=39 // pred_check
        %p521 = pneg %p106
      $region42: #{betavae_forward.8} parent=39 // pred_check_branch
        %523 = sbr.rel (%p521) target = $region44
      $region43: #{betavae_forward.8} parent=39 // pred_region
        %s524 = smul.u32 8, %s15
        %p525 = scmp.lt.s32.totalorder %s524, 15
        %s526 = scalar_select %p525, %s524, 15
        %s527 = smul.addr %s526, 8
        %s528 = scalar_lea.vmem %s3, %s527
      $region44: #{betavae_forward.8} parent=39 // pred_fallthru
        _
    $region40: #{betavae_forward.8} parent=5 // pred_fallthru
      _
  $region6: #{betavae_forward.8} parent=0 // loop_footer
    %s13 = sadd.s32 1, %s9
  $region7: #{betavae_forward.8} parent=0 // loop_footer_branch
    %8 = sbr.rel target = $region3
  $region8: #{betavae_forward.8} parent=0 // loop_exit
    _

// kernel: betavae_forward.9
$region0: #{betavae_forward.9}
  #allocation0 [shape = 'u32[]', space=smem, size = 0x4, offset = 0x4, fixed_abs, tag = 'smem constant byte address 0x4 - core index']
  #allocation1 [shape = 'u32[144,128]{1,0:T(1,128)}', space=vmem, size = 0x12000, scoped, tag = 'internal scratch']
  %s0 = inlined_call_operand.vmem [shape: f32[32,1024], index: 0, kind: input, shape index: {}]
  %s1 = inlined_call_operand.vmem [shape: f32[1024,128], index: 1, kind: input, shape index: {}]
  %s2 = inlined_call_operand.vmem [shape: f32[1,128], index: 2, kind: input, shape index: {}]
  %s3 = inlined_call_operand.vmem [shape: f32[32,128], index: 3, kind: output, shape index: {}]
  %s4 = sld [smem:[#allocation0]]
  $region45: #{betavae_forward.9} parent=0
    _
  %s6 = ssub.s32 1, %s4
  %s7 = scalar_select 0, %s6, %s4
  loop: start=0, step=1, limit=4
  $region2: #{betavae_forward.9} parent=0 // loop_pre_header
    _
  $region3: #{betavae_forward.9} parent=0 // loop_header
    %s9 = sphi 0, %s13
    %p10 = scmp.ge.s32.totalorder %s9, 4
    %s19 = sphi 0, %s21
    %s22 = sphi 0, %s19
    %s23 = sphi 0, %s22
    %s39 = sphi 0, %s23
    %s43 = sphi 0, %s43
    %s45 = sphi 0, %s43
    %s46 = sphi 0, %s45
    %s60 = sphi 0, %s46
    %s64 = sphi 0, %s64
    %s66 = sphi 0, %s64
    %s67 = sphi 0, %s66
    %s81 = sphi 0, %s67
    %s87 = sphi 0, %s89
    %s90 = sphi 0, %s87
    %s91 = sphi 0, %s90
    %s107 = sphi 0, %s91
  $region4: #{betavae_forward.9} parent=0 // loop_header_branch
    %12 = sbr.rel (%p10) target = $region8
  $region5: #{betavae_forward.9} parent=0 // loop_body
    %s14 = ssub.s32 %s9, 1
    %s15 = ssub.s32 %s9, 2
    %s16 = sadd.s32 %s9, 1
    %s17 = ssub.s32 %s9, %s16
    %p18 = scmp.eq.s32.totalorder %s17, 0
    %s20 = sadd.s32 %s19, 1
    %s21 = scalar_select %p18, %s19, %s20
    %p24 = pneg %p18
    %p25 = scmp.eq.s32.totalorder %s9, 1
    %p26 = por %p24, %p25
    %p27 = scmp.ne.s32.totalorder %s19, %s22
    %p28 = scmp.eq.s32.totalorder %s9, 0
    %p29 = por %p27, %p28
    %p30 = scmp.ne.s32.totalorder %s19, %s22
    %p31 = scmp.eq.s32.totalorder %s14, 1
    %p32 = por %p30, %p31
    %p33 = scmp.ne.s32.totalorder %s22, %s23
    %p34 = scmp.eq.s32.totalorder %s14, 0
    %p35 = por %p33, %p34
    %p36 = scmp.ne.s32.totalorder %s22, %s23
    %p37 = scmp.eq.s32.totalorder %s15, 1
    %p38 = por %p36, %p37
    %p40 = scmp.ne.s32.totalorder %s23, %s39
    %p41 = scmp.eq.s32.totalorder %s15, 0
    %p42 = por %p40, %p41
    %s44 = sadd.s32 %s43, 1
    %p47 = scmp.eq.s32.totalorder %s9, 1
    %p48 = scmp.ne.s32.totalorder %s43, %s45
    %p49 = scmp.eq.s32.totalorder %s9, 0
    %p50 = por %p48, %p49
    %p51 = scmp.ne.s32.totalorder %s43, %s45
    %p52 = scmp.eq.s32.totalorder %s14, 1
    %p53 = por %p51, %p52
    %p54 = scmp.ne.s32.totalorder %s45, %s46
    %p55 = scmp.eq.s32.totalorder %s14, 0
    %p56 = por %p54, %p55
    %p57 = scmp.ne.s32.totalorder %s45, %s46
    %p58 = scmp.eq.s32.totalorder %s15, 1
    %p59 = por %p57, %p58
    %p61 = scmp.ne.s32.totalorder %s46, %s60
    %p62 = scmp.eq.s32.totalorder %s15, 0
    %p63 = por %p61, %p62
    %s65 = sadd.s32 %s64, 1
    %p68 = scmp.eq.s32.totalorder %s9, 1
    %p69 = scmp.ne.s32.totalorder %s64, %s66
    %p70 = scmp.eq.s32.totalorder %s9, 0
    %p71 = por %p69, %p70
    %p72 = scmp.ne.s32.totalorder %s64, %s66
    %p73 = scmp.eq.s32.totalorder %s14, 1
    %p74 = por %p72, %p73
    %p75 = scmp.ne.s32.totalorder %s66, %s67
    %p76 = scmp.eq.s32.totalorder %s14, 0
    %p77 = por %p75, %p76
    %p78 = scmp.ne.s32.totalorder %s66, %s67
    %p79 = scmp.eq.s32.totalorder %s15, 1
    %p80 = por %p78, %p79
    %p82 = scmp.ne.s32.totalorder %s67, %s81
    %p83 = scmp.eq.s32.totalorder %s15, 0
    %p84 = por %p82, %p83
    %s85 = ssub.s32 %s9, %s16
    %p86 = scmp.eq.s32.totalorder %s85, 0
    %s88 = sadd.s32 %s87, 1
    %s89 = scalar_select %p86, %s87, %s88
    %p92 = pneg %p86
    %p93 = scmp.eq.s32.totalorder %s9, 1
    %p94 = por %p92, %p93
    %p95 = scmp.ne.s32.totalorder %s87, %s90
    %p96 = scmp.eq.s32.totalorder %s9, 0
    %p97 = por %p95, %p96
    %p98 = scmp.ne.s32.totalorder %s87, %s90
    %p99 = scmp.eq.s32.totalorder %s14, 1
    %p100 = por %p98, %p99
    %p101 = scmp.ne.s32.totalorder %s90, %s91
    %p102 = scmp.eq.s32.totalorder %s14, 0
    %p103 = por %p101, %p102
    %p104 = scmp.ne.s32.totalorder %s90, %s91
    %p105 = scmp.eq.s32.totalorder %s15, 1
    %p106 = por %p104, %p105
    %p108 = scmp.ne.s32.totalorder %s91, %s107
    %p109 = scmp.eq.s32.totalorder %s15, 0
    %p110 = por %p108, %p109
    %p111 = scmp.le.s32.totalorder 1, %s9
    %p112 = scmp.lt.s32.totalorder %s9, 3
    %p113 = pnand %p111, %p112
    %p114 = pneg %p113
    // Predicated region
    $region9: #{betavae_forward.9} parent=5 // pred_check
      _
    $region10: #{betavae_forward.9} parent=5 // pred_check_branch
      %116 = sbr.rel (%p113) target = $region12
    $region11: #{betavae_forward.9} parent=5 // pred_region
      %s117 = ssub.s32 %s9, 1
      // Predicated region
      $region13: #{betavae_forward.9} parent=11 // pred_check
        %p118 = pneg %p56
      $region14: #{betavae_forward.9} parent=11 // pred_check_branch
        %120 = sbr.rel (%p118) target = $region16
      $region15: #{betavae_forward.9} parent=11 // pred_region
        _
      $region16: #{betavae_forward.9} parent=11 // pred_fallthru
        _
      // Predicated region
      $region17: #{betavae_forward.9} parent=11 // pred_check
        %p121 = pneg %p77
      $region18: #{betavae_forward.9} parent=11 // pred_check_branch
        %123 = sbr.rel (%p121) target = $region20
      $region19: #{betavae_forward.9} parent=11 // pred_region
        _
      $region20: #{betavae_forward.9} parent=11 // pred_fallthru
        _
    $region12: #{betavae_forward.9} parent=5 // pred_fallthru
      _
    %p124 = scmp.lt.s32.totalorder %s9, 2
    // Predicated region
    $region21: #{betavae_forward.9} parent=5 // pred_check
      %p125 = pneg %p124
    $region22: #{betavae_forward.9} parent=5 // pred_check_branch
      %127 = sbr.rel (%p125) target = $region24
    $region23: #{betavae_forward.9} parent=5 // pred_region
      // Predicated region
      $region25: #{betavae_forward.9} parent=23 // pred_check
        %p128 = pneg %p29
      $region26: #{betavae_forward.9} parent=23 // pred_check_branch
        %130 = sbr.rel (%p128) target = $region28
      $region27: #{betavae_forward.9} parent=23 // pred_region
        %s131 = smul.u32 2, %s9
        %p132 = scmp.lt.s32.totalorder %s131, 3
        %s133 = scalar_select %p132, %s131, 3
        %s134 = smul.addr %s133, 8
        %s135 = smul.addr %s134, 8
        %s136 = scalar_lea.vmem %s0, %s135
        %s137 = smul.u32 2, %s9
      $region28: #{betavae_forward.9} parent=23 // pred_fallthru
        _
    $region24: #{betavae_forward.9} parent=5 // pred_fallthru
      _
    %p138 = scmp.le.s32.totalorder 1, %s9
    %p139 = scmp.lt.s32.totalorder %s9, 3
    %p140 = pnand %p138, %p139
    %p141 = pneg %p140
    // Predicated region
    $region29: #{betavae_forward.9} parent=5 // pred_check
      _
    $region30: #{betavae_forward.9} parent=5 // pred_check_branch
      %143 = sbr.rel (%p140) target = $region32
    $region31: #{betavae_forward.9} parent=5 // pred_region
      %s144 = ssub.s32 %s9, 1
      %s145 = smul.u32 2, %s14
      %p146 = scmp.lt.s32.totalorder %s145, 3
      %s147 = scalar_select %p146, %s145, 3
      %s148 = smul.addr %s147, 8
      %s149 = smul.addr %s148, 8
      %s150 = scalar_lea.vmem %s0, %s149
      %p151 = pneg %p35
      %p152 = pneg %p32
      %p153 = pneg %p56
      %p154 = pneg %p53
      %p155 = pneg %p77
      %p156 = pneg %p74
      %p157 = pneg %p103
      %p158 = pneg %p100
      %s159 = smul.u32 2, %s14
      %p160 = scmp.lt.s32.totalorder %s159, 3
      %s161 = scalar_select %p160, %s159, 3
      %s162 = smul.addr %s161, 8
      %s163 = scalar_lea.vmem %s3, %s162
      %s164 = smul.u32 2, %s14
      %p165 = scmp.lt.s32.totalorder %s164, 3
      %s166 = scalar_select %p165, %s164, 3
      %s167 = smul.addr %s166, 8
      %s168 = smul.addr %s167, 8
      %s169 = scalar_lea.vmem %s0, %s168
      %s170 = smul.u32 2, %s14
      %s171 = smul.u32 2, %s14
      %p172 = scmp.lt.s32.totalorder %s171, 3
      %s173 = scalar_select %p172, %s171, 3
      %s174 = smul.addr %s173, 8
      %s175 = scalar_lea.vmem %s3, %s174
      %s176 = smul.u32 2, %s14
      %v177 = vld [vmem:[%s169] sm:$0xff]
      %v178 = vld [vmem:[%s169 + $0x8] sm:$0xff]
      %v179 = vld [vmem:[%s169 + $0x10] sm:$0xff]
      %v180 = vld [vmem:[%s169 + $0x18] sm:$0xff]
      %v181 = vld [vmem:[%s169 + $0x20] sm:$0xff]
      %v182 = vld [vmem:[%s169 + $0x28] sm:$0xff]
      %v183 = vld [vmem:[%s169 + $0x30] sm:$0xff]
      %v184 = vld [vmem:[%s169 + $0x38] sm:$0xff]
      %v185 = vld [vmem:[%s169 + $0x40] sm:$0xff]
      %v186 = vld [vmem:[%s169 + $0x48] sm:$0xff]
      %v187 = vld [vmem:[%s169 + $0x50] sm:$0xff]
      %v188 = vld [vmem:[%s169 + $0x58] sm:$0xff]
      %v189 = vld [vmem:[%s169 + $0x60] sm:$0xff]
      %v190 = vld [vmem:[%s169 + $0x68] sm:$0xff]
      %v191 = vld [vmem:[%s169 + $0x70] sm:$0xff]
      %v192 = vld [vmem:[%s169 + $0x78] sm:$0xff]
      %v193 = vld [vmem:[%s1] sm:$0xff]
      %v194 = vld [vmem:[%s1 + $0x8] sm:$0xff]
      %v195 = vld [vmem:[%s1 + $0x10] sm:$0xff]
      %v196 = vld [vmem:[%s1 + $0x18] sm:$0xff]
      %v197 = vld [vmem:[%s1 + $0x20] sm:$0xff]
      %v198 = vld [vmem:[%s1 + $0x28] sm:$0xff]
      %v199 = vld [vmem:[%s1 + $0x30] sm:$0xff]
      %v200 = vld [vmem:[%s1 + $0x38] sm:$0xff]
      %v201 = vld [vmem:[%s1 + $0x40] sm:$0xff]
      %v202 = vld [vmem:[%s1 + $0x48] sm:$0xff]
      %v203 = vld [vmem:[%s1 + $0x50] sm:$0xff]
      %v204 = vld [vmem:[%s1 + $0x58] sm:$0xff]
      %v205 = vld [vmem:[%s1 + $0x60] sm:$0xff]
      %v206 = vld [vmem:[%s1 + $0x68] sm:$0xff]
      %v207 = vld [vmem:[%s1 + $0x70] sm:$0xff]
      %v208 = vld [vmem:[%s1 + $0x78] sm:$0xff]
      %v209 = vld [vmem:[%s1 + $0x80] sm:$0xff]
      %v210 = vld [vmem:[%s1 + $0x88] sm:$0xff]
      %v211 = vld [vmem:[%s1 + $0x90] sm:$0xff]
      %v212 = vld [vmem:[%s1 + $0x98] sm:$0xff]
      %v213 = vld [vmem:[%s1 + $0xa0] sm:$0xff]
      %v214 = vld [vmem:[%s1 + $0xa8] sm:$0xff]
      %v215 = vld [vmem:[%s1 + $0xb0] sm:$0xff]
      %v216 = vld [vmem:[%s1 + $0xb8] sm:$0xff]
      %v217 = vld [vmem:[%s1 + $0xc0] sm:$0xff]
      %v218 = vld [vmem:[%s1 + $0xc8] sm:$0xff]
      %v219 = vld [vmem:[%s1 + $0xd0] sm:$0xff]
      %v220 = vld [vmem:[%s1 + $0xd8] sm:$0xff]
      %v221 = vld [vmem:[%s1 + $0xe0] sm:$0xff]
      %v222 = vld [vmem:[%s1 + $0xe8] sm:$0xff]
      %v223 = vld [vmem:[%s1 + $0xf0] sm:$0xff]
      %v224 = vld [vmem:[%s1 + $0xf8] sm:$0xff]
      %v225 = vld [vmem:[%s1 + $0x100] sm:$0xff]
      %v226 = vld [vmem:[%s1 + $0x108] sm:$0xff]
      %v227 = vld [vmem:[%s1 + $0x110] sm:$0xff]
      %v228 = vld [vmem:[%s1 + $0x118] sm:$0xff]
      %v229 = vld [vmem:[%s1 + $0x120] sm:$0xff]
      %v230 = vld [vmem:[%s1 + $0x128] sm:$0xff]
      %v231 = vld [vmem:[%s1 + $0x130] sm:$0xff]
      %v232 = vld [vmem:[%s1 + $0x138] sm:$0xff]
      %v233 = vld [vmem:[%s1 + $0x140] sm:$0xff]
      %v234 = vld [vmem:[%s1 + $0x148] sm:$0xff]
      %v235 = vld [vmem:[%s1 + $0x150] sm:$0xff]
      %v236 = vld [vmem:[%s1 + $0x158] sm:$0xff]
      %v237 = vld [vmem:[%s1 + $0x160] sm:$0xff]
      %v238 = vld [vmem:[%s1 + $0x168] sm:$0xff]
      %v239 = vld [vmem:[%s1 + $0x170] sm:$0xff]
      %v240 = vld [vmem:[%s1 + $0x178] sm:$0xff]
      %v241 = vld [vmem:[%s1 + $0x180] sm:$0xff]
      %v242 = vld [vmem:[%s1 + $0x188] sm:$0xff]
      %v243 = vld [vmem:[%s1 + $0x190] sm:$0xff]
      %v244 = vld [vmem:[%s1 + $0x198] sm:$0xff]
      %v245 = vld [vmem:[%s1 + $0x1a0] sm:$0xff]
      %v246 = vld [vmem:[%s1 + $0x1a8] sm:$0xff]
      %v247 = vld [vmem:[%s1 + $0x1b0] sm:$0xff]
      %v248 = vld [vmem:[%s1 + $0x1b8] sm:$0xff]
      %v249 = vld [vmem:[%s1 + $0x1c0] sm:$0xff]
      %v250 = vld [vmem:[%s1 + $0x1c8] sm:$0xff]
      %v251 = vld [vmem:[%s1 + $0x1d0] sm:$0xff]
      %v252 = vld [vmem:[%s1 + $0x1d8] sm:$0xff]
      %v253 = vld [vmem:[%s1 + $0x1e0] sm:$0xff]
      %v254 = vld [vmem:[%s1 + $0x1e8] sm:$0xff]
      %v255 = vld [vmem:[%s1 + $0x1f0] sm:$0xff]
      %v256 = vld [vmem:[%s1 + $0x1f8] sm:$0xff]
      %v257 = vld [vmem:[%s1 + $0x200] sm:$0xff]
      %v258 = vld [vmem:[%s1 + $0x208] sm:$0xff]
      %v259 = vld [vmem:[%s1 + $0x210] sm:$0xff]
      %v260 = vld [vmem:[%s1 + $0x218] sm:$0xff]
      %v261 = vld [vmem:[%s1 + $0x220] sm:$0xff]
      %v262 = vld [vmem:[%s1 + $0x228] sm:$0xff]
      %v263 = vld [vmem:[%s1 + $0x230] sm:$0xff]
      %v264 = vld [vmem:[%s1 + $0x238] sm:$0xff]
      %v265 = vld [vmem:[%s1 + $0x240] sm:$0xff]
      %v266 = vld [vmem:[%s1 + $0x248] sm:$0xff]
      %v267 = vld [vmem:[%s1 + $0x250] sm:$0xff]
      %v268 = vld [vmem:[%s1 + $0x258] sm:$0xff]
      %v269 = vld [vmem:[%s1 + $0x260] sm:$0xff]
      %v270 = vld [vmem:[%s1 + $0x268] sm:$0xff]
      %v271 = vld [vmem:[%s1 + $0x270] sm:$0xff]
      %v272 = vld [vmem:[%s1 + $0x278] sm:$0xff]
      %v273 = vld [vmem:[%s1 + $0x280] sm:$0xff]
      %v274 = vld [vmem:[%s1 + $0x288] sm:$0xff]
      %v275 = vld [vmem:[%s1 + $0x290] sm:$0xff]
      %v276 = vld [vmem:[%s1 + $0x298] sm:$0xff]
      %v277 = vld [vmem:[%s1 + $0x2a0] sm:$0xff]
      %v278 = vld [vmem:[%s1 + $0x2a8] sm:$0xff]
      %v279 = vld [vmem:[%s1 + $0x2b0] sm:$0xff]
      %v280 = vld [vmem:[%s1 + $0x2b8] sm:$0xff]
      %v281 = vld [vmem:[%s1 + $0x2c0] sm:$0xff]
      %v282 = vld [vmem:[%s1 + $0x2c8] sm:$0xff]
      %v283 = vld [vmem:[%s1 + $0x2d0] sm:$0xff]
      %v284 = vld [vmem:[%s1 + $0x2d8] sm:$0xff]
      %v285 = vld [vmem:[%s1 + $0x2e0] sm:$0xff]
      %v286 = vld [vmem:[%s1 + $0x2e8] sm:$0xff]
      %v287 = vld [vmem:[%s1 + $0x2f0] sm:$0xff]
      %v288 = vld [vmem:[%s1 + $0x2f8] sm:$0xff]
      %v289 = vld [vmem:[%s1 + $0x300] sm:$0xff]
      %v290 = vld [vmem:[%s1 + $0x308] sm:$0xff]
      %v291 = vld [vmem:[%s1 + $0x310] sm:$0xff]
      %v292 = vld [vmem:[%s1 + $0x318] sm:$0xff]
      %v293 = vld [vmem:[%s1 + $0x320] sm:$0xff]
      %v294 = vld [vmem:[%s1 + $0x328] sm:$0xff]
      %v295 = vld [vmem:[%s1 + $0x330] sm:$0xff]
      %v296 = vld [vmem:[%s1 + $0x338] sm:$0xff]
      %v297 = vld [vmem:[%s1 + $0x340] sm:$0xff]
      %v298 = vld [vmem:[%s1 + $0x348] sm:$0xff]
      %v299 = vld [vmem:[%s1 + $0x350] sm:$0xff]
      %v300 = vld [vmem:[%s1 + $0x358] sm:$0xff]
      %v301 = vld [vmem:[%s1 + $0x360] sm:$0xff]
      %v302 = vld [vmem:[%s1 + $0x368] sm:$0xff]
      %v303 = vld [vmem:[%s1 + $0x370] sm:$0xff]
      %v304 = vld [vmem:[%s1 + $0x378] sm:$0xff]
      %v305 = vld [vmem:[%s1 + $0x380] sm:$0xff]
      %v306 = vld [vmem:[%s1 + $0x388] sm:$0xff]
      %v307 = vld [vmem:[%s1 + $0x390] sm:$0xff]
      %v308 = vld [vmem:[%s1 + $0x398] sm:$0xff]
      %v309 = vld [vmem:[%s1 + $0x3a0] sm:$0xff]
      %v310 = vld [vmem:[%s1 + $0x3a8] sm:$0xff]
      %v311 = vld [vmem:[%s1 + $0x3b0] sm:$0xff]
      %v312 = vld [vmem:[%s1 + $0x3b8] sm:$0xff]
      %v313 = vld [vmem:[%s1 + $0x3c0] sm:$0xff]
      %v314 = vld [vmem:[%s1 + $0x3c8] sm:$0xff]
      %v315 = vld [vmem:[%s1 + $0x3d0] sm:$0xff]
      %v316 = vld [vmem:[%s1 + $0x3d8] sm:$0xff]
      %v317 = vld [vmem:[%s1 + $0x3e0] sm:$0xff]
      %v318 = vld [vmem:[%s1 + $0x3e8] sm:$0xff]
      %v319 = vld [vmem:[%s1 + $0x3f0] sm:$0xff]
      %v320 = vld [vmem:[%s1 + $0x3f8] sm:$0xff]
      %v321 = vld [vmem:[%s2] sm:$0x1]
      %v323 = vlaneseq
      %v324 = vshrl.u32 %v323, 7
      %v325 = vsub.s32 0, %v324
      %v326 = vrot.slane %v321, %v325
      %328 = vmatprep.subr.mxu0 0.0
      %329 = vmatpush1.msra.mxu0 %v193
      %330 = vmatprep.subr.mxu0 0.0
      %331 = vmatpush1.msra.mxu0 %v194
      %332 = vmatprep.subr.mxu0 0.0
      %333 = vmatpush1.msra.mxu0 %v195
      %334 = vmatprep.subr.mxu0 0.0
      %335 = vmatpush1.msra.mxu0 %v196
      %336 = vmatprep.subr.mxu0 0.0
      %337 = vmatpush1.msra.mxu0 %v197
      %338 = vmatprep.subr.mxu0 0.0
      %339 = vmatpush1.msra.mxu0 %v198
      %340 = vmatprep.subr.mxu0 0.0
      %341 = vmatpush1.msra.mxu0 %v199
      %342 = vmatprep.subr.mxu0 0.0
      %343 = vmatpush1.msra.mxu0 %v200
      %344 = vmatprep.subr.mxu0 0.0
      %345 = vmatpush1.msra.mxu0 %v201
      %346 = vmatprep.subr.mxu0 0.0
      %347 = vmatpush1.msra.mxu0 %v202
      %348 = vmatprep.subr.mxu0 0.0
      %349 = vmatpush1.msra.mxu0 %v203
      %350 = vmatprep.subr.mxu0 0.0
      %351 = vmatpush1.msra.mxu0 %v204
      %352 = vmatprep.subr.mxu0 0.0
      %353 = vmatpush1.msra.mxu0 %v205
      %354 = vmatprep.subr.mxu0 0.0
      %355 = vmatpush1.msra.mxu0 %v206
      %356 = vmatprep.subr.mxu0 0.0
      %357 = vmatpush1.msra.mxu0 %v207
      %358 = vmatprep.subr.mxu0 0.0
      %359 = vmatpush1.msra.mxu0 %v208
      %360 = vmatprep.subr.mxu0 0.0
      %361 = vmatpush1.msra.mxu0 %v209
      %362 = vmatprep.subr.mxu0 0.0
      %363 = vmatpush1.msra.mxu0 %v210
      %364 = vmatprep.subr.mxu0 0.0
      %365 = vmatpush1.msra.mxu0 %v211
      %366 = vmatprep.subr.mxu0 0.0
      %367 = vmatpush1.msra.mxu0 %v212
      %368 = vmatprep.subr.mxu0 0.0
      %369 = vmatpush1.msra.mxu0 %v213
      %370 = vmatprep.subr.mxu0 0.0
      %371 = vmatpush1.msra.mxu0 %v214
      %372 = vmatprep.subr.mxu0 0.0
      %373 = vmatpush1.msra.mxu0 %v215
      %374 = vmatprep.subr.mxu0 0.0
      %375 = vmatpush1.msra.mxu0 %v216
      %376 = vmatprep.subr.mxu0 0.0
      %377 = vmatpush1.msra.mxu0 %v217
      %378 = vmatprep.subr.mxu0 0.0
      %379 = vmatpush1.msra.mxu0 %v218
      %380 = vmatprep.subr.mxu0 0.0
      %381 = vmatpush1.msra.mxu0 %v219
      %382 = vmatprep.subr.mxu0 0.0
      %383 = vmatpush1.msra.mxu0 %v220
      %384 = vmatprep.subr.mxu0 0.0
      %385 = vmatpush1.msra.mxu0 %v221
      %386 = vmatprep.subr.mxu0 0.0
      %387 = vmatpush1.msra.mxu0 %v222
      %388 = vmatprep.subr.mxu0 0.0
      %389 = vmatpush1.msra.mxu0 %v223
      %390 = vmatprep.subr.mxu0 0.0
      %391 = vmatpush1.msra.mxu0 %v224
      %392 = vmatprep.mubr.f32.mxu0 %v178
      %393 = vmatmul.mubr.f32.gmra.mrb[0].mxu0 %v177
      %v394 = vpop.f32.mrb[0].mxu0
      %v395 = vadd.f32 %v326, %v394
      %v396 = vpop.f32.mrb[0].mxu0
      %397 = vmatprep.mubr.f32.mxu0 %v186
      %398 = vmatmul.mubr.f32.gmra.mrb[0].mxu0 %v185
      %v399 = vpop.f32.mrb[0].mxu0
      %v400 = vadd.f32 %v326, %v399
      %v401 = vpop.f32.mrb[0].mxu0
      %402 = vdwg.mxu0
      %403 = vmatprep.subr.mxu0 0.0
      %404 = vmatpush1.msra.mxu0 %v225
      %405 = vmatprep.subr.mxu0 0.0
      %406 = vmatpush1.msra.mxu0 %v226
      %407 = vmatprep.subr.mxu0 0.0
      %408 = vmatpush1.msra.mxu0 %v227
      %409 = vmatprep.subr.mxu0 0.0
      %410 = vmatpush1.msra.mxu0 %v228
      %411 = vmatprep.subr.mxu0 0.0
      %412 = vmatpush1.msra.mxu0 %v229
      %413 = vmatprep.subr.mxu0 0.0
      %414 = vmatpush1.msra.mxu0 %v230
      %415 = vmatprep.subr.mxu0 0.0
      %416 = vmatpush1.msra.mxu0 %v231
      %417 = vmatprep.subr.mxu0 0.0
      %418 = vmatpush1.msra.mxu0 %v232
      %419 = vmatprep.subr.mxu0 0.0
      %420 = vmatpush1.msra.mxu0 %v233
      %421 = vmatprep.subr.mxu0 0.0
      %422 = vmatpush1.msra.mxu0 %v234
      %423 = vmatprep.subr.mxu0 0.0
      %424 = vmatpush1.msra.mxu0 %v235
      %425 = vmatprep.subr.mxu0 0.0
      %426 = vmatpush1.msra.mxu0 %v236
      %427 = vmatprep.subr.mxu0 0.0
      %428 = vmatpush1.msra.mxu0 %v237
      %429 = vmatprep.subr.mxu0 0.0
      %430 = vmatpush1.msra.mxu0 %v238
      %431 = vmatprep.subr.mxu0 0.0
      %432 = vmatpush1.msra.mxu0 %v239
      %433 = vmatprep.subr.mxu0 0.0
      %434 = vmatpush1.msra.mxu0 %v240
      %435 = vmatprep.subr.mxu0 0.0
      %436 = vmatpush1.msra.mxu0 %v241
      %437 = vmatprep.subr.mxu0 0.0
      %438 = vmatpush1.msra.mxu0 %v242
      %439 = vmatprep.subr.mxu0 0.0
      %440 = vmatpush1.msra.mxu0 %v243
      %441 = vmatprep.subr.mxu0 0.0
      %442 = vmatpush1.msra.mxu0 %v244
      %443 = vmatprep.subr.mxu0 0.0
      %444 = vmatpush1.msra.mxu0 %v245
      %445 = vmatprep.subr.mxu0 0.0
      %446 = vmatpush1.msra.mxu0 %v246
      %447 = vmatprep.subr.mxu0 0.0
      %448 = vmatpush1.msra.mxu0 %v247
      %449 = vmatprep.subr.mxu0 0.0
      %450 = vmatpush1.msra.mxu0 %v248
      %451 = vmatprep.subr.mxu0 0.0
      %452 = vmatpush1.msra.mxu0 %v249
      %453 = vmatprep.subr.mxu0 0.0
      %454 = vmatpush1.msra.mxu0 %v250
      %455 = vmatprep.subr.mxu0 0.0
      %456 = vmatpush1.msra.mxu0 %v251
      %457 = vmatprep.subr.mxu0 0.0
      %458 = vmatpush1.msra.mxu0 %v252
      %459 = vmatprep.subr.mxu0 0.0
      %460 = vmatpush1.msra.mxu0 %v253
      %461 = vmatprep.subr.mxu0 0.0
      %462 = vmatpush1.msra.mxu0 %v254
      %463 = vmatprep.subr.mxu0 0.0
      %464 = vmatpush1.msra.mxu0 %v255
      %465 = vmatprep.subr.mxu0 0.0
      %466 = vmatpush1.msra.mxu0 %v256
      %467 = vmatprep.mubr.f32.mxu0 %v180
      %468 = vmatmul.mubr.f32.gmra.mrb[0].mxu0 %v179
      %v469 = vpop.f32.mrb[0].mxu0
      %v470 = vadd.f32 %v395, %v469
      %v471 = vpop.f32.mrb[0].mxu0
      %472 = vmatprep.mubr.f32.mxu0 %v188
      %473 = vmatmul.mubr.f32.gmra.mrb[0].mxu0 %v187
      %v474 = vpop.f32.mrb[0].mxu0
      %v475 = vadd.f32 %v400, %v474
      %v476 = vpop.f32.mrb[0].mxu0
      %477 = vdwg.mxu0
      %478 = vmatprep.subr.mxu0 0.0
      %479 = vmatpush1.msra.mxu0 %v257
      %480 = vmatprep.subr.mxu0 0.0
      %481 = vmatpush1.msra.mxu0 %v258
      %482 = vmatprep.subr.mxu0 0.0
      %483 = vmatpush1.msra.mxu0 %v259
      %484 = vmatprep.subr.mxu0 0.0
      %485 = vmatpush1.msra.mxu0 %v260
      %486 = vmatprep.subr.mxu0 0.0
      %487 = vmatpush1.msra.mxu0 %v261
      %488 = vmatprep.subr.mxu0 0.0
      %489 = vmatpush1.msra.mxu0 %v262
      %490 = vmatprep.subr.mxu0 0.0
      %491 = vmatpush1.msra.mxu0 %v263
      %492 = vmatprep.subr.mxu0 0.0
      %493 = vmatpush1.msra.mxu0 %v264
      %494 = vmatprep.subr.mxu0 0.0
      %495 = vmatpush1.msra.mxu0 %v265
      %496 = vmatprep.subr.mxu0 0.0
      %497 = vmatpush1.msra.mxu0 %v266
      %498 = vmatprep.subr.mxu0 0.0
      %499 = vmatpush1.msra.mxu0 %v267
      %500 = vmatprep.subr.mxu0 0.0
      %501 = vmatpush1.msra.mxu0 %v268
      %502 = vmatprep.subr.mxu0 0.0
      %503 = vmatpush1.msra.mxu0 %v269
      %504 = vmatprep.subr.mxu0 0.0
      %505 = vmatpush1.msra.mxu0 %v270
      %506 = vmatprep.subr.mxu0 0.0
      %507 = vmatpush1.msra.mxu0 %v271
      %508 = vmatprep.subr.mxu0 0.0
      %509 = vmatpush1.msra.mxu0 %v272
      %510 = vmatprep.subr.mxu0 0.0
      %511 = vmatpush1.msra.mxu0 %v273
      %512 = vmatprep.subr.mxu0 0.0
      %513 = vmatpush1.msra.mxu0 %v274
      %514 = vmatprep.subr.mxu0 0.0
      %515 = vmatpush1.msra.mxu0 %v275
      %516 = vmatprep.subr.mxu0 0.0
      %517 = vmatpush1.msra.mxu0 %v276
      %518 = vmatprep.subr.mxu0 0.0
      %519 = vmatpush1.msra.mxu0 %v277
      %520 = vmatprep.subr.mxu0 0.0
      %521 = vmatpush1.msra.mxu0 %v278
      %522 = vmatprep.subr.mxu0 0.0
      %523 = vmatpush1.msra.mxu0 %v279
      %524 = vmatprep.subr.mxu0 0.0
      %525 = vmatpush1.msra.mxu0 %v280
      %526 = vmatprep.subr.mxu0 0.0
      %527 = vmatpush1.msra.mxu0 %v281
      %528 = vmatprep.subr.mxu0 0.0
      %529 = vmatpush1.msra.mxu0 %v282
      %530 = vmatprep.subr.mxu0 0.0
      %531 = vmatpush1.msra.mxu0 %v283
      %532 = vmatprep.subr.mxu0 0.0
      %533 = vmatpush1.msra.mxu0 %v284
      %534 = vmatprep.subr.mxu0 0.0
      %535 = vmatpush1.msra.mxu0 %v285
      %536 = vmatprep.subr.mxu0 0.0
      %537 = vmatpush1.msra.mxu0 %v286
      %538 = vmatprep.subr.mxu0 0.0
      %539 = vmatpush1.msra.mxu0 %v287
      %540 = vmatprep.subr.mxu0 0.0
      %541 = vmatpush1.msra.mxu0 %v288
      %542 = vmatprep.mubr.f32.mxu0 %v182
      %543 = vmatmul.mubr.f32.gmra.mrb[0].mxu0 %v181
      %v544 = vpop.f32.mrb[0].mxu0
      %v545 = vadd.f32 %v470, %v544
      %v546 = vpop.f32.mrb[0].mxu0
      %547 = vmatprep.mubr.f32.mxu0 %v190
      %548 = vmatmul.mubr.f32.gmra.mrb[0].mxu0 %v189
      %v549 = vpop.f32.mrb[0].mxu0
      %v550 = vadd.f32 %v475, %v549
      %v551 = vpop.f32.mrb[0].mxu0
      %552 = vdwg.mxu0
      %553 = vmatprep.subr.mxu0 0.0
      %554 = vmatpush1.msra.mxu0 %v289
      %555 = vmatprep.subr.mxu0 0.0
      %556 = vmatpush1.msra.mxu0 %v290
      %557 = vmatprep.subr.mxu0 0.0
      %558 = vmatpush1.msra.mxu0 %v291
      %559 = vmatprep.subr.mxu0 0.0
      %560 = vmatpush1.msra.mxu0 %v292
      %561 = vmatprep.subr.mxu0 0.0
      %562 = vmatpush1.msra.mxu0 %v293
      %563 = vmatprep.subr.mxu0 0.0
      %564 = vmatpush1.msra.mxu0 %v294
      %565 = vmatprep.subr.mxu0 0.0
      %566 = vmatpush1.msra.mxu0 %v295
      %567 = vmatprep.subr.mxu0 0.0
      %568 = vmatpush1.msra.mxu0 %v296
      %569 = vmatprep.subr.mxu0 0.0
      %570 = vmatpush1.msra.mxu0 %v297
      %571 = vmatprep.subr.mxu0 0.0
      %572 = vmatpush1.msra.mxu0 %v298
      %573 = vmatprep.subr.mxu0 0.0
      %574 = vmatpush1.msra.mxu0 %v299
      %575 = vmatprep.subr.mxu0 0.0
      %576 = vmatpush1.msra.mxu0 %v300
      %577 = vmatprep.subr.mxu0 0.0
      %578 = vmatpush1.msra.mxu0 %v301
      %579 = vmatprep.subr.mxu0 0.0
      %580 = vmatpush1.msra.mxu0 %v302
      %581 = vmatprep.subr.mxu0 0.0
      %582 = vmatpush1.msra.mxu0 %v303
      %583 = vmatprep.subr.mxu0 0.0
      %584 = vmatpush1.msra.mxu0 %v304
      %585 = vmatprep.subr.mxu0 0.0
      %586 = vmatpush1.msra.mxu0 %v305
      %587 = vmatprep.subr.mxu0 0.0
      %588 = vmatpush1.msra.mxu0 %v306
      %589 = vmatprep.subr.mxu0 0.0
      %590 = vmatpush1.msra.mxu0 %v307
      %591 = vmatprep.subr.mxu0 0.0
      %592 = vmatpush1.msra.mxu0 %v308
      %593 = vmatprep.subr.mxu0 0.0
      %594 = vmatpush1.msra.mxu0 %v309
      %595 = vmatprep.subr.mxu0 0.0
      %596 = vmatpush1.msra.mxu0 %v310
      %597 = vmatprep.subr.mxu0 0.0
      %598 = vmatpush1.msra.mxu0 %v311
      %599 = vmatprep.subr.mxu0 0.0
      %600 = vmatpush1.msra.mxu0 %v312
      %601 = vmatprep.subr.mxu0 0.0
      %602 = vmatpush1.msra.mxu0 %v313
      %603 = vmatprep.subr.mxu0 0.0
      %604 = vmatpush1.msra.mxu0 %v314
      %605 = vmatprep.subr.mxu0 0.0
      %606 = vmatpush1.msra.mxu0 %v315
      %607 = vmatprep.subr.mxu0 0.0
      %608 = vmatpush1.msra.mxu0 %v316
      %609 = vmatprep.subr.mxu0 0.0
      %610 = vmatpush1.msra.mxu0 %v317
      %611 = vmatprep.subr.mxu0 0.0
      %612 = vmatpush1.msra.mxu0 %v318
      %613 = vmatprep.subr.mxu0 0.0
      %614 = vmatpush1.msra.mxu0 %v319
      %615 = vmatprep.subr.mxu0 0.0
      %616 = vmatpush1.msra.mxu0 %v320
      %617 = vmatprep.mubr.f32.mxu0 %v184
      %618 = vmatmul.mubr.f32.gmra.mrb[0].mxu0 %v183
      %v619 = vpop.f32.mrb[0].mxu0
      %v620 = vadd.f32 %v545, %v619
      %v621 = vpop.f32.mrb[0].mxu0
      %622 = vmatprep.mubr.f32.mxu0 %v192
      %623 = vmatmul.mubr.f32.gmra.mrb[0].mxu0 %v191
      %v624 = vpop.f32.mrb[0].mxu0
      %v625 = vadd.f32 %v550, %v624
      %v626 = vpop.f32.mrb[0].mxu0
      %627 = vdwg.mxu0
      %v628 = vmax.f32 %v620, 0.0
      %v629 = vmax.f32 %v625, 0.0
      %630 = vst [vmem:[%s175] sm:$0xff] %v628
      %631 = vst [vmem:[%s175 + $0x8] sm:$0xff] %v629
      %s632 = smul.u32 2, %s14
      %p633 = scmp.lt.s32.totalorder %s632, 3
      %s634 = scalar_select %p633, %s632, 3
      %s635 = smul.addr %s634, 8
      %s636 = scalar_lea.vmem %s3, %s635
      // Predicated region
      $region33: #{betavae_forward.9} parent=31 // pred_check
        %p637 = pneg %p100
      $region34: #{betavae_forward.9} parent=31 // pred_check_branch
        %639 = sbr.rel (%p637) target = $region36
      $region35: #{betavae_forward.9} parent=31 // pred_region
        %s640 = smul.u32 2, %s14
      $region36: #{betavae_forward.9} parent=31 // pred_fallthru
        _
    $region32: #{betavae_forward.9} parent=5 // pred_fallthru
      _
    %p641 = scmp.le.s32.totalorder 2, %s9
    // Predicated region
    $region37: #{betavae_forward.9} parent=5 // pred_check
      %p642 = pneg %p641
    $region38: #{betavae_forward.9} parent=5 // pred_check_branch
      %644 = sbr.rel (%p642) target = $region40
    $region39: #{betavae_forward.9} parent=5 // pred_region
      %s645 = ssub.s32 %s9, 2
      // Predicated region
      $region41: #{betavae_forward.9} parent=39 // pred_check
        %p646 = pneg %p106
      $region42: #{betavae_forward.9} parent=39 // pred_check_branch
        %648 = sbr.rel (%p646) target = $region44
      $region43: #{betavae_forward.9} parent=39 // pred_region
        %s649 = smul.u32 2, %s15
        %p650 = scmp.lt.s32.totalorder %s649, 3
        %s651 = scalar_select %p650, %s649, 3
        %s652 = smul.addr %s651, 8
        %s653 = scalar_lea.vmem %s3, %s652
      $region44: #{betavae_forward.9} parent=39 // pred_fallthru
        _
    $region40: #{betavae_forward.9} parent=5 // pred_fallthru
      _
  $region6: #{betavae_forward.9} parent=0 // loop_footer
    %s13 = sadd.s32 1, %s9
  $region7: #{betavae_forward.9} parent=0 // loop_footer_branch
    %8 = sbr.rel target = $region3
  $region8: #{betavae_forward.9} parent=0 // loop_exit
    _

// kernel: betavae_forward.11
$region0: #{betavae_forward.11}
  #allocation0 [shape = 'u32[]', space=smem, size = 0x4, offset = 0x4, fixed_abs, tag = 'smem constant byte address 0x4 - core index']
  #allocation1 [shape = 'u32[144,128]{1,0:T(1,128)}', space=vmem, size = 0x12000, scoped, tag = 'internal scratch']
  %s0 = inlined_call_operand.vmem [shape: f32[4,32,512], index: 0, kind: input, shape index: {}]
  %s1 = inlined_call_operand.vmem [shape: f32[4,512,64], index: 1, kind: input, shape index: {}]
  %s2 = inlined_call_operand.vmem [shape: f32[1,64], index: 2, kind: input, shape index: {}]
  %s3 = inlined_call_operand.vmem [shape: f32[4,32,64], index: 3, kind: output, shape index: {}]
  %s4 = sld [smem:[#allocation0]]
  $region45: #{betavae_forward.11} parent=0
    _
  %s6 = ssub.s32 1, %s4
  %s7 = scalar_select 0, %s6, %s4
  loop: start=0, step=1, limit=10
  $region2: #{betavae_forward.11} parent=0 // loop_pre_header
    _
  $region3: #{betavae_forward.11} parent=0 // loop_header
    %s9 = sphi 0, %s13
    %p10 = scmp.ge.s32.totalorder %s9, 10
    %s16 = sphi 0, %s28
    %s17 = sphi 0, %s24
    %s18 = sphi 0, %s16
    %s19 = sphi 0, %s17
    %s20 = sphi 0, %s18
    %s21 = sphi 0, %s19
    %s33 = sphi 0, %s35
    %s36 = sphi 0, %s33
    %s37 = sphi 0, %s36
    %s53 = sphi 0, %s37
    %s59 = sphi 0, %s61
    %s62 = sphi 0, %s59
    %s63 = sphi 0, %s62
    %s79 = sphi 0, %s63
    %s83 = sphi 0, %s83
    %s85 = sphi 0, %s83
    %s86 = sphi 0, %s85
    %s100 = sphi 0, %s86
    %s108 = sphi 0, %s110
    %s111 = sphi 0, %s108
    %s112 = sphi 0, %s111
    %s128 = sphi 0, %s112
  $region4: #{betavae_forward.11} parent=0 // loop_header_branch
    %12 = sbr.rel (%p10) target = $region8
  $region5: #{betavae_forward.11} parent=0 // loop_body
    %s14 = ssub.s32 %s9, 1
    %s15 = ssub.s32 %s9, 2
    %s22 = sadd.s32 1, %s17
    %p23 = scmp.ge.s32.totalorder %s22, 2
    %s24 = scalar_select %p23, 0, %s22
    %s25 = sadd.s32 1, %s16
    %s26 = scalar_select %p23, %s25, %s16
    %p27 = scmp.ge.s32.totalorder %s26, 4
    %s28 = scalar_select %p27, 0, %s26
    %s29 = ssub.s32 %s16, %s28
    %s30 = ssub.s32 %s17, %s24
    %s31 = sor.u32 %s29, %s30
    %p32 = scmp.eq.s32.totalorder %s31, 0
    %s34 = sadd.s32 %s33, 1
    %s35 = scalar_select %p32, %s33, %s34
    %p38 = pneg %p32
    %p39 = scmp.eq.s32.totalorder %s9, 7
    %p40 = por %p38, %p39
    %p41 = scmp.ne.s32.totalorder %s33, %s36
    %p42 = scmp.eq.s32.totalorder %s9, 0
    %p43 = por %p41, %p42
    %p44 = scmp.ne.s32.totalorder %s33, %s36
    %p45 = scmp.eq.s32.totalorder %s14, 7
    %p46 = por %p44, %p45
    %p47 = scmp.ne.s32.totalorder %s36, %s37
    %p48 = scmp.eq.s32.totalorder %s14, 0
    %p49 = por %p47, %p48
    %p50 = scmp.ne.s32.totalorder %s36, %s37
    %p51 = scmp.eq.s32.totalorder %s15, 7
    %p52 = por %p50, %p51
    %p54 = scmp.ne.s32.totalorder %s37, %s53
    %p55 = scmp.eq.s32.totalorder %s15, 0
    %p56 = por %p54, %p55
    %s57 = ssub.s32 %s16, %s28
    %p58 = scmp.eq.s32.totalorder %s57, 0
    %s60 = sadd.s32 %s59, 1
    %s61 = scalar_select %p58, %s59, %s60
    %p64 = pneg %p58
    %p65 = scmp.eq.s32.totalorder %s9, 7
    %p66 = por %p64, %p65
    %p67 = scmp.ne.s32.totalorder %s59, %s62
    %p68 = scmp.eq.s32.totalorder %s9, 0
    %p69 = por %p67, %p68
    %p70 = scmp.ne.s32.totalorder %s59, %s62
    %p71 = scmp.eq.s32.totalorder %s14, 7
    %p72 = por %p70, %p71
    %p73 = scmp.ne.s32.totalorder %s62, %s63
    %p74 = scmp.eq.s32.totalorder %s14, 0
    %p75 = por %p73, %p74
    %p76 = scmp.ne.s32.totalorder %s62, %s63
    %p77 = scmp.eq.s32.totalorder %s15, 7
    %p78 = por %p76, %p77
    %p80 = scmp.ne.s32.totalorder %s63, %s79
    %p81 = scmp.eq.s32.totalorder %s15, 0
    %p82 = por %p80, %p81
    %s84 = sadd.s32 %s83, 1
    %p87 = scmp.eq.s32.totalorder %s9, 7
    %p88 = scmp.ne.s32.totalorder %s83, %s85
    %p89 = scmp.eq.s32.totalorder %s9, 0
    %p90 = por %p88, %p89
    %p91 = scmp.ne.s32.totalorder %s83, %s85
    %p92 = scmp.eq.s32.totalorder %s14, 7
    %p93 = por %p91, %p92
    %p94 = scmp.ne.s32.totalorder %s85, %s86
    %p95 = scmp.eq.s32.totalorder %s14, 0
    %p96 = por %p94, %p95
    %p97 = scmp.ne.s32.totalorder %s85, %s86
    %p98 = scmp.eq.s32.totalorder %s15, 7
    %p99 = por %p97, %p98
    %p101 = scmp.ne.s32.totalorder %s86, %s100
    %p102 = scmp.eq.s32.totalorder %s15, 0
    %p103 = por %p101, %p102
    %s104 = ssub.s32 %s16, %s28
    %s105 = ssub.s32 %s17, %s24
    %s106 = sor.u32 %s104, %s105
    %p107 = scmp.eq.s32.totalorder %s106, 0
    %s109 = sadd.s32 %s108, 1
    %s110 = scalar_select %p107, %s108, %s109
    %p113 = pneg %p107
    %p114 = scmp.eq.s32.totalorder %s9, 7
    %p115 = por %p113, %p114
    %p116 = scmp.ne.s32.totalorder %s108, %s111
    %p117 = scmp.eq.s32.totalorder %s9, 0
    %p118 = por %p116, %p117
    %p119 = scmp.ne.s32.totalorder %s108, %s111
    %p120 = scmp.eq.s32.totalorder %s14, 7
    %p121 = por %p119, %p120
    %p122 = scmp.ne.s32.totalorder %s111, %s112
    %p123 = scmp.eq.s32.totalorder %s14, 0
    %p124 = por %p122, %p123
    %p125 = scmp.ne.s32.totalorder %s111, %s112
    %p126 = scmp.eq.s32.totalorder %s15, 7
    %p127 = por %p125, %p126
    %p129 = scmp.ne.s32.totalorder %s112, %s128
    %p130 = scmp.eq.s32.totalorder %s15, 0
    %p131 = por %p129, %p130
    %p132 = scmp.le.s32.totalorder 1, %s9
    %p133 = scmp.lt.s32.totalorder %s9, 9
    %p134 = pnand %p132, %p133
    %p135 = pneg %p134
    // Predicated region
    $region9: #{betavae_forward.11} parent=5 // pred_check
      _
    $region10: #{betavae_forward.11} parent=5 // pred_check_branch
      %137 = sbr.rel (%p134) target = $region12
    $region11: #{betavae_forward.11} parent=5 // pred_region
      %s138 = ssub.s32 %s9, 1
      // Predicated region
      $region13: #{betavae_forward.11} parent=11 // pred_check
        %p139 = pneg %p96
      $region14: #{betavae_forward.11} parent=11 // pred_check_branch
        %141 = sbr.rel (%p139) target = $region16
      $region15: #{betavae_forward.11} parent=11 // pred_region
        _
      $region16: #{betavae_forward.11} parent=11 // pred_fallthru
        _
    $region12: #{betavae_forward.11} parent=5 // pred_fallthru
      _
    %p142 = scmp.lt.s32.totalorder %s9, 8
    // Predicated region
    $region17: #{betavae_forward.11} parent=5 // pred_check
      %p143 = pneg %p142
    $region18: #{betavae_forward.11} parent=5 // pred_check_branch
      %145 = sbr.rel (%p143) target = $region20
    $region19: #{betavae_forward.11} parent=5 // pred_region
      // Predicated region
      $region21: #{betavae_forward.11} parent=19 // pred_check
        %p146 = pneg %p43
      $region22: #{betavae_forward.11} parent=19 // pred_check_branch
        %148 = sbr.rel (%p146) target = $region24
      $region23: #{betavae_forward.11} parent=19 // pred_region
        %s149 = smul.u32 2, %s17
        %p150 = scmp.lt.s32.totalorder %s16, 3
        %s151 = scalar_select %p150, %s16, 3
        %p152 = scmp.lt.s32.totalorder %s149, 3
        %s153 = scalar_select %p152, %s149, 3
        %s154 = smul.addr %s153, 4
        %s155 = smul.addr %s151, 16
        %s156 = sadd.s32 %s154, %s155
        %s157 = smul.addr %s156, 8
        %s158 = scalar_lea.vmem %s0, %s157
        %s159 = smul.u32 2, %s17
      $region24: #{betavae_forward.11} parent=19 // pred_fallthru
        _
      // Predicated region
      $region25: #{betavae_forward.11} parent=19 // pred_check
        %p160 = pneg %p69
      $region26: #{betavae_forward.11} parent=19 // pred_check_branch
        %162 = sbr.rel (%p160) target = $region28
      $region27: #{betavae_forward.11} parent=19 // pred_region
        %p163 = scmp.lt.s32.totalorder %s16, 3
        %s164 = scalar_select %p163, %s16, 3
        %s165 = smul.addr %s164, 64
        %s166 = smul.addr %s165, 8
        %s167 = scalar_lea.vmem %s1, %s166
      $region28: #{betavae_forward.11} parent=19 // pred_fallthru
        _
    $region20: #{betavae_forward.11} parent=5 // pred_fallthru
      _
    %p168 = scmp.le.s32.totalorder 1, %s9
    %p169 = scmp.lt.s32.totalorder %s9, 9
    %p170 = pnand %p168, %p169
    %p171 = pneg %p170
    // Predicated region
    $region29: #{betavae_forward.11} parent=5 // pred_check
      _
    $region30: #{betavae_forward.11} parent=5 // pred_check_branch
      %173 = sbr.rel (%p170) target = $region32
    $region31: #{betavae_forward.11} parent=5 // pred_region
      %s174 = ssub.s32 %s9, 1
      %s175 = smul.u32 2, %s19
      %p176 = scmp.lt.s32.totalorder %s18, 3
      %s177 = scalar_select %p176, %s18, 3
      %p178 = scmp.lt.s32.totalorder %s175, 3
      %s179 = scalar_select %p178, %s175, 3
      %s180 = smul.addr %s179, 4
      %s181 = smul.addr %s177, 16
      %s182 = sadd.s32 %s180, %s181
      %s183 = smul.addr %s182, 8
      %s184 = scalar_lea.vmem %s0, %s183
      %p185 = pneg %p49
      %p186 = pneg %p46
      %p187 = scmp.lt.s32.totalorder %s18, 3
      %s188 = scalar_select %p187, %s18, 3
      %s189 = smul.addr %s188, 64
      %s190 = smul.addr %s189, 8
      %s191 = scalar_lea.vmem %s1, %s190
      %p192 = pneg %p75
      %p193 = pneg %p72
      %p194 = pneg %p96
      %p195 = pneg %p93
      %p196 = pneg %p124
      %p197 = pneg %p121
      %s198 = smul.u32 2, %s19
      %p199 = scmp.lt.s32.totalorder %s18, 3
      %s200 = scalar_select %p199, %s18, 3
      %p201 = scmp.lt.s32.totalorder %s198, 3
      %s202 = scalar_select %p201, %s198, 3
      %s203 = smul.addr %s200, 4
      %s204 = sadd.s32 %s202, %s203
      %s205 = smul.addr %s204, 8
      %s206 = scalar_lea.vmem %s3, %s205
      %s207 = smul.u32 2, %s19
      %p208 = scmp.lt.s32.totalorder %s18, 3
      %s209 = scalar_select %p208, %s18, 3
      %p210 = scmp.lt.s32.totalorder %s207, 3
      %s211 = scalar_select %p210, %s207, 3
      %s212 = smul.addr %s211, 4
      %s213 = smul.addr %s209, 16
      %s214 = sadd.s32 %s212, %s213
      %s215 = smul.addr %s214, 8
      %s216 = scalar_lea.vmem %s0, %s215
      %s217 = smul.u32 2, %s19
      %p218 = scmp.lt.s32.totalorder %s18, 3
      %s219 = scalar_select %p218, %s18, 3
      %s220 = smul.addr %s219, 64
      %s221 = smul.addr %s220, 8
      %s222 = scalar_lea.vmem %s1, %s221
      %s223 = smul.u32 2, %s19
      %p224 = scmp.lt.s32.totalorder %s18, 3
      %s225 = scalar_select %p224, %s18, 3
      %p226 = scmp.lt.s32.totalorder %s223, 3
      %s227 = scalar_select %p226, %s223, 3
      %s228 = smul.addr %s225, 4
      %s229 = sadd.s32 %s227, %s228
      %s230 = smul.addr %s229, 8
      %s231 = scalar_lea.vmem %s3, %s230
      %s232 = smul.u32 2, %s19
      %v233 = vld [vmem:[%s216] sm:$0xff]
      %v234 = vld [vmem:[%s216 + $0x8] sm:$0xff]
      %v235 = vld [vmem:[%s216 + $0x10] sm:$0xff]
      %v236 = vld [vmem:[%s216 + $0x18] sm:$0xff]
      %v237 = vld [vmem:[%s216 + $0x20] sm:$0xff]
      %v238 = vld [vmem:[%s216 + $0x28] sm:$0xff]
      %v239 = vld [vmem:[%s216 + $0x30] sm:$0xff]
      %v240 = vld [vmem:[%s216 + $0x38] sm:$0xff]
      %v241 = vld [vmem:[%s222] sm:$0xff]
      %v242 = vld [vmem:[%s222 + $0x8] sm:$0xff]
      %v243 = vld [vmem:[%s222 + $0x10] sm:$0xff]
      %v244 = vld [vmem:[%s222 + $0x18] sm:$0xff]
      %v245 = vld [vmem:[%s222 + $0x20] sm:$0xff]
      %v246 = vld [vmem:[%s222 + $0x28] sm:$0xff]
      %v247 = vld [vmem:[%s222 + $0x30] sm:$0xff]
      %v248 = vld [vmem:[%s222 + $0x38] sm:$0xff]
      %v249 = vld [vmem:[%s222 + $0x40] sm:$0xff]
      %v250 = vld [vmem:[%s222 + $0x48] sm:$0xff]
      %v251 = vld [vmem:[%s222 + $0x50] sm:$0xff]
      %v252 = vld [vmem:[%s222 + $0x58] sm:$0xff]
      %v253 = vld [vmem:[%s222 + $0x60] sm:$0xff]
      %v254 = vld [vmem:[%s222 + $0x68] sm:$0xff]
      %v255 = vld [vmem:[%s222 + $0x70] sm:$0xff]
      %v256 = vld [vmem:[%s222 + $0x78] sm:$0xff]
      %v257 = vld [vmem:[%s222 + $0x80] sm:$0xff]
      %v258 = vld [vmem:[%s222 + $0x88] sm:$0xff]
      %v259 = vld [vmem:[%s222 + $0x90] sm:$0xff]
      %v260 = vld [vmem:[%s222 + $0x98] sm:$0xff]
      %v261 = vld [vmem:[%s222 + $0xa0] sm:$0xff]
      %v262 = vld [vmem:[%s222 + $0xa8] sm:$0xff]
      %v263 = vld [vmem:[%s222 + $0xb0] sm:$0xff]
      %v264 = vld [vmem:[%s222 + $0xb8] sm:$0xff]
      %v265 = vld [vmem:[%s222 + $0xc0] sm:$0xff]
      %v266 = vld [vmem:[%s222 + $0xc8] sm:$0xff]
      %v267 = vld [vmem:[%s222 + $0xd0] sm:$0xff]
      %v268 = vld [vmem:[%s222 + $0xd8] sm:$0xff]
      %v269 = vld [vmem:[%s222 + $0xe0] sm:$0xff]
      %v270 = vld [vmem:[%s222 + $0xe8] sm:$0xff]
      %v271 = vld [vmem:[%s222 + $0xf0] sm:$0xff]
      %v272 = vld [vmem:[%s222 + $0xf8] sm:$0xff]
      %v273 = vld [vmem:[%s222 + $0x100] sm:$0xff]
      %v274 = vld [vmem:[%s222 + $0x108] sm:$0xff]
      %v275 = vld [vmem:[%s222 + $0x110] sm:$0xff]
      %v276 = vld [vmem:[%s222 + $0x118] sm:$0xff]
      %v277 = vld [vmem:[%s222 + $0x120] sm:$0xff]
      %v278 = vld [vmem:[%s222 + $0x128] sm:$0xff]
      %v279 = vld [vmem:[%s222 + $0x130] sm:$0xff]
      %v280 = vld [vmem:[%s222 + $0x138] sm:$0xff]
      %v281 = vld [vmem:[%s222 + $0x140] sm:$0xff]
      %v282 = vld [vmem:[%s222 + $0x148] sm:$0xff]
      %v283 = vld [vmem:[%s222 + $0x150] sm:$0xff]
      %v284 = vld [vmem:[%s222 + $0x158] sm:$0xff]
      %v285 = vld [vmem:[%s222 + $0x160] sm:$0xff]
      %v286 = vld [vmem:[%s222 + $0x168] sm:$0xff]
      %v287 = vld [vmem:[%s222 + $0x170] sm:$0xff]
      %v288 = vld [vmem:[%s222 + $0x178] sm:$0xff]
      %v289 = vld [vmem:[%s222 + $0x180] sm:$0xff]
      %v290 = vld [vmem:[%s222 + $0x188] sm:$0xff]
      %v291 = vld [vmem:[%s222 + $0x190] sm:$0xff]
      %v292 = vld [vmem:[%s222 + $0x198] sm:$0xff]
      %v293 = vld [vmem:[%s222 + $0x1a0] sm:$0xff]
      %v294 = vld [vmem:[%s222 + $0x1a8] sm:$0xff]
      %v295 = vld [vmem:[%s222 + $0x1b0] sm:$0xff]
      %v296 = vld [vmem:[%s222 + $0x1b8] sm:$0xff]
      %v297 = vld [vmem:[%s222 + $0x1c0] sm:$0xff]
      %v298 = vld [vmem:[%s222 + $0x1c8] sm:$0xff]
      %v299 = vld [vmem:[%s222 + $0x1d0] sm:$0xff]
      %v300 = vld [vmem:[%s222 + $0x1d8] sm:$0xff]
      %v301 = vld [vmem:[%s222 + $0x1e0] sm:$0xff]
      %v302 = vld [vmem:[%s222 + $0x1e8] sm:$0xff]
      %v303 = vld [vmem:[%s222 + $0x1f0] sm:$0xff]
      %v304 = vld [vmem:[%s222 + $0x1f8] sm:$0xff]
      %v305 = vld [vmem:[%s2] sm:$0x1]
      %v307 = vlaneseq
      %v308 = vshrl.u32 %v307, 7
      %v309 = vsub.s32 0, %v308
      %v310 = vrot.slane %v305, %v309
      %312 = vmatprep.subr.mxu0 0.0
      %313 = vmatpush1.msra.mxu0 %v241
      %314 = vmatprep.subr.mxu0 0.0
      %315 = vmatpush1.msra.mxu0 %v242
      %316 = vmatprep.subr.mxu0 0.0
      %317 = vmatpush1.msra.mxu0 %v243
      %318 = vmatprep.subr.mxu0 0.0
      %319 = vmatpush1.msra.mxu0 %v244
      %320 = vmatprep.subr.mxu0 0.0
      %321 = vmatpush1.msra.mxu0 %v245
      %322 = vmatprep.subr.mxu0 0.0
      %323 = vmatpush1.msra.mxu0 %v246
      %324 = vmatprep.subr.mxu0 0.0
      %325 = vmatpush1.msra.mxu0 %v247
      %326 = vmatprep.subr.mxu0 0.0
      %327 = vmatpush1.msra.mxu0 %v248
      %328 = vmatprep.subr.mxu0 0.0
      %329 = vmatpush1.msra.mxu0 %v249
      %330 = vmatprep.subr.mxu0 0.0
      %331 = vmatpush1.msra.mxu0 %v250
      %332 = vmatprep.subr.mxu0 0.0
      %333 = vmatpush1.msra.mxu0 %v251
      %334 = vmatprep.subr.mxu0 0.0
      %335 = vmatpush1.msra.mxu0 %v252
      %336 = vmatprep.subr.mxu0 0.0
      %337 = vmatpush1.msra.mxu0 %v253
      %338 = vmatprep.subr.mxu0 0.0
      %339 = vmatpush1.msra.mxu0 %v254
      %340 = vmatprep.subr.mxu0 0.0
      %341 = vmatpush1.msra.mxu0 %v255
      %342 = vmatprep.subr.mxu0 0.0
      %343 = vmatpush1.msra.mxu0 %v256
      %344 = vmatprep.subr.mxu0 0.0
      %345 = vmatpush1.msra.mxu0 %v257
      %346 = vmatprep.subr.mxu0 0.0
      %347 = vmatpush1.msra.mxu0 %v258
      %348 = vmatprep.subr.mxu0 0.0
      %349 = vmatpush1.msra.mxu0 %v259
      %350 = vmatprep.subr.mxu0 0.0
      %351 = vmatpush1.msra.mxu0 %v260
      %352 = vmatprep.subr.mxu0 0.0
      %353 = vmatpush1.msra.mxu0 %v261
      %354 = vmatprep.subr.mxu0 0.0
      %355 = vmatpush1.msra.mxu0 %v262
      %356 = vmatprep.subr.mxu0 0.0
      %357 = vmatpush1.msra.mxu0 %v263
      %358 = vmatprep.subr.mxu0 0.0
      %359 = vmatpush1.msra.mxu0 %v264
      %360 = vmatprep.subr.mxu0 0.0
      %361 = vmatpush1.msra.mxu0 %v265
      %362 = vmatprep.subr.mxu0 0.0
      %363 = vmatpush1.msra.mxu0 %v266
      %364 = vmatprep.subr.mxu0 0.0
      %365 = vmatpush1.msra.mxu0 %v267
      %366 = vmatprep.subr.mxu0 0.0
      %367 = vmatpush1.msra.mxu0 %v268
      %368 = vmatprep.subr.mxu0 0.0
      %369 = vmatpush1.msra.mxu0 %v269
      %370 = vmatprep.subr.mxu0 0.0
      %371 = vmatpush1.msra.mxu0 %v270
      %372 = vmatprep.subr.mxu0 0.0
      %373 = vmatpush1.msra.mxu0 %v271
      %374 = vmatprep.subr.mxu0 0.0
      %375 = vmatpush1.msra.mxu0 %v272
      %376 = vmatprep.mubr.f32.mxu0 %v234
      %377 = vmatmul.mubr.f32.gmra.mrb[0].mxu0 %v233
      %v378 = vpop.f32.mrb[0].mxu0
      %v379 = vadd.f32 %v310, %v378
      %v380 = vpop.f32.mrb[0].mxu0
      %381 = vmatprep.mubr.f32.mxu0 %v238
      %382 = vmatmul.mubr.f32.gmra.mrb[0].mxu0 %v237
      %v383 = vpop.f32.mrb[0].mxu0
      %v384 = vadd.f32 %v310, %v383
      %v385 = vpop.f32.mrb[0].mxu0
      %386 = vdwg.mxu0
      %387 = vmatprep.subr.mxu0 0.0
      %388 = vmatpush1.msra.mxu0 %v273
      %389 = vmatprep.subr.mxu0 0.0
      %390 = vmatpush1.msra.mxu0 %v274
      %391 = vmatprep.subr.mxu0 0.0
      %392 = vmatpush1.msra.mxu0 %v275
      %393 = vmatprep.subr.mxu0 0.0
      %394 = vmatpush1.msra.mxu0 %v276
      %395 = vmatprep.subr.mxu0 0.0
      %396 = vmatpush1.msra.mxu0 %v277
      %397 = vmatprep.subr.mxu0 0.0
      %398 = vmatpush1.msra.mxu0 %v278
      %399 = vmatprep.subr.mxu0 0.0
      %400 = vmatpush1.msra.mxu0 %v279
      %401 = vmatprep.subr.mxu0 0.0
      %402 = vmatpush1.msra.mxu0 %v280
      %403 = vmatprep.subr.mxu0 0.0
      %404 = vmatpush1.msra.mxu0 %v281
      %405 = vmatprep.subr.mxu0 0.0
      %406 = vmatpush1.msra.mxu0 %v282
      %407 = vmatprep.subr.mxu0 0.0
      %408 = vmatpush1.msra.mxu0 %v283
      %409 = vmatprep.subr.mxu0 0.0
      %410 = vmatpush1.msra.mxu0 %v284
      %411 = vmatprep.subr.mxu0 0.0
      %412 = vmatpush1.msra.mxu0 %v285
      %413 = vmatprep.subr.mxu0 0.0
      %414 = vmatpush1.msra.mxu0 %v286
      %415 = vmatprep.subr.mxu0 0.0
      %416 = vmatpush1.msra.mxu0 %v287
      %417 = vmatprep.subr.mxu0 0.0
      %418 = vmatpush1.msra.mxu0 %v288
      %419 = vmatprep.subr.mxu0 0.0
      %420 = vmatpush1.msra.mxu0 %v289
      %421 = vmatprep.subr.mxu0 0.0
      %422 = vmatpush1.msra.mxu0 %v290
      %423 = vmatprep.subr.mxu0 0.0
      %424 = vmatpush1.msra.mxu0 %v291
      %425 = vmatprep.subr.mxu0 0.0
      %426 = vmatpush1.msra.mxu0 %v292
      %427 = vmatprep.subr.mxu0 0.0
      %428 = vmatpush1.msra.mxu0 %v293
      %429 = vmatprep.subr.mxu0 0.0
      %430 = vmatpush1.msra.mxu0 %v294
      %431 = vmatprep.subr.mxu0 0.0
      %432 = vmatpush1.msra.mxu0 %v295
      %433 = vmatprep.subr.mxu0 0.0
      %434 = vmatpush1.msra.mxu0 %v296
      %435 = vmatprep.subr.mxu0 0.0
      %436 = vmatpush1.msra.mxu0 %v297
      %437 = vmatprep.subr.mxu0 0.0
      %438 = vmatpush1.msra.mxu0 %v298
      %439 = vmatprep.subr.mxu0 0.0
      %440 = vmatpush1.msra.mxu0 %v299
      %441 = vmatprep.subr.mxu0 0.0
      %442 = vmatpush1.msra.mxu0 %v300
      %443 = vmatprep.subr.mxu0 0.0
      %444 = vmatpush1.msra.mxu0 %v301
      %445 = vmatprep.subr.mxu0 0.0
      %446 = vmatpush1.msra.mxu0 %v302
      %447 = vmatprep.subr.mxu0 0.0
      %448 = vmatpush1.msra.mxu0 %v303
      %449 = vmatprep.subr.mxu0 0.0
      %450 = vmatpush1.msra.mxu0 %v304
      %451 = vmatprep.mubr.f32.mxu0 %v236
      %452 = vmatmul.mubr.f32.gmra.mrb[0].mxu0 %v235
      %v453 = vpop.f32.mrb[0].mxu0
      %v454 = vadd.f32 %v379, %v453
      %v455 = vpop.f32.mrb[0].mxu0
      %456 = vmatprep.mubr.f32.mxu0 %v240
      %457 = vmatmul.mubr.f32.gmra.mrb[0].mxu0 %v239
      %v458 = vpop.f32.mrb[0].mxu0
      %v459 = vadd.f32 %v384, %v458
      %v460 = vpop.f32.mrb[0].mxu0
      %461 = vdwg.mxu0
      %v462 = vmax.f32 %v454, 0.0
      %v463 = vmax.f32 %v459, 0.0
      %vm464 = vcmask 523264
      %465 = vst.msk [vmem:[%s231] sm:$0xff] %vm464, %v462
      %466 = vst.msk [vmem:[%s231 + $0x8] sm:$0xff] %vm464, %v463
      %s467 = smul.u32 2, %s19
      %p468 = scmp.lt.s32.totalorder %s18, 3
      %s469 = scalar_select %p468, %s18, 3
      %p470 = scmp.lt.s32.totalorder %s467, 3
      %s471 = scalar_select %p470, %s467, 3
      %s472 = smul.addr %s469, 4
      %s473 = sadd.s32 %s471, %s472
      %s474 = smul.addr %s473, 8
      %s475 = scalar_lea.vmem %s3, %s474
      // Predicated region
      $region33: #{betavae_forward.11} parent=31 // pred_check
        %p476 = pneg %p121
      $region34: #{betavae_forward.11} parent=31 // pred_check_branch
        %478 = sbr.rel (%p476) target = $region36
      $region35: #{betavae_forward.11} parent=31 // pred_region
        %s479 = smul.u32 2, %s19
      $region36: #{betavae_forward.11} parent=31 // pred_fallthru
        _
    $region32: #{betavae_forward.11} parent=5 // pred_fallthru
      _
    %p480 = scmp.le.s32.totalorder 2, %s9
    // Predicated region
    $region37: #{betavae_forward.11} parent=5 // pred_check
      %p481 = pneg %p480
    $region38: #{betavae_forward.11} parent=5 // pred_check_branch
      %483 = sbr.rel (%p481) target = $region40
    $region39: #{betavae_forward.11} parent=5 // pred_region
      %s484 = ssub.s32 %s9, 2
      // Predicated region
      $region41: #{betavae_forward.11} parent=39 // pred_check
        %p485 = pneg %p127
      $region42: #{betavae_forward.11} parent=39 // pred_check_branch
        %487 = sbr.rel (%p485) target = $region44
      $region43: #{betavae_forward.11} parent=39 // pred_region
        %s488 = smul.u32 2, %s21
        %p489 = scmp.lt.s32.totalorder %s20, 3
        %s490 = scalar_select %p489, %s20, 3
        %p491 = scmp.lt.s32.totalorder %s488, 3
        %s492 = scalar_select %p491, %s488, 3
        %s493 = smul.addr %s490, 4
        %s494 = sadd.s32 %s492, %s493
        %s495 = smul.addr %s494, 8
        %s496 = scalar_lea.vmem %s3, %s495
      $region44: #{betavae_forward.11} parent=39 // pred_fallthru
        _
    $region40: #{betavae_forward.11} parent=5 // pred_fallthru
      _
  $region6: #{betavae_forward.11} parent=0 // loop_footer
    %s13 = sadd.s32 1, %s9
  $region7: #{betavae_forward.11} parent=0 // loop_footer_branch
    %8 = sbr.rel target = $region3
  $region8: #{betavae_forward.11} parent=0 // loop_exit
    _

// kernel: betavae_forward.12
$region0: #{betavae_forward.12}
  #allocation0 [shape = 'u32[]', space=smem, size = 0x4, offset = 0x4, fixed_abs, tag = 'smem constant byte address 0x4 - core index']
  #allocation1 [shape = 'u32[144,128]{1,0:T(1,128)}', space=vmem, size = 0x12000, scoped, tag = 'internal scratch']
  %s0 = inlined_call_operand.vmem [shape: f32[4,128,256], index: 0, kind: input, shape index: {}]
  %s1 = inlined_call_operand.vmem [shape: f32[4,256,32], index: 1, kind: input, shape index: {}]
  %s2 = inlined_call_operand.vmem [shape: f32[1,32], index: 2, kind: input, shape index: {}]
  %s3 = inlined_call_operand.vmem [shape: f32[4,128,32], index: 3, kind: output, shape index: {}]
  %s4 = sld [smem:[#allocation0]]
  $region45: #{betavae_forward.12} parent=0
    _
  %s6 = ssub.s32 1, %s4
  %s7 = scalar_select 0, %s6, %s4
  loop: start=0, step=1, limit=10
  $region2: #{betavae_forward.12} parent=0 // loop_pre_header
    _
  $region3: #{betavae_forward.12} parent=0 // loop_header
    %s9 = sphi 0, %s13
    %p10 = scmp.ge.s32.totalorder %s9, 10
    %s16 = sphi 0, %s28
    %s17 = sphi 0, %s24
    %s18 = sphi 0, %s16
    %s19 = sphi 0, %s17
    %s20 = sphi 0, %s18
    %s21 = sphi 0, %s19
    %s33 = sphi 0, %s35
    %s36 = sphi 0, %s33
    %s37 = sphi 0, %s36
    %s53 = sphi 0, %s37
    %s59 = sphi 0, %s61
    %s62 = sphi 0, %s59
    %s63 = sphi 0, %s62
    %s79 = sphi 0, %s63
    %s83 = sphi 0, %s83
    %s85 = sphi 0, %s83
    %s86 = sphi 0, %s85
    %s100 = sphi 0, %s86
    %s108 = sphi 0, %s110
    %s111 = sphi 0, %s108
    %s112 = sphi 0, %s111
    %s128 = sphi 0, %s112
  $region4: #{betavae_forward.12} parent=0 // loop_header_branch
    %12 = sbr.rel (%p10) target = $region8
  $region5: #{betavae_forward.12} parent=0 // loop_body
    %s14 = ssub.s32 %s9, 1
    %s15 = ssub.s32 %s9, 2
    %s22 = sadd.s32 1, %s17
    %p23 = scmp.ge.s32.totalorder %s22, 2
    %s24 = scalar_select %p23, 0, %s22
    %s25 = sadd.s32 1, %s16
    %s26 = scalar_select %p23, %s25, %s16
    %p27 = scmp.ge.s32.totalorder %s26, 4
    %s28 = scalar_select %p27, 0, %s26
    %s29 = ssub.s32 %s16, %s28
    %s30 = ssub.s32 %s17, %s24
    %s31 = sor.u32 %s29, %s30
    %p32 = scmp.eq.s32.totalorder %s31, 0
    %s34 = sadd.s32 %s33, 1
    %s35 = scalar_select %p32, %s33, %s34
    %p38 = pneg %p32
    %p39 = scmp.eq.s32.totalorder %s9, 7
    %p40 = por %p38, %p39
    %p41 = scmp.ne.s32.totalorder %s33, %s36
    %p42 = scmp.eq.s32.totalorder %s9, 0
    %p43 = por %p41, %p42
    %p44 = scmp.ne.s32.totalorder %s33, %s36
    %p45 = scmp.eq.s32.totalorder %s14, 7
    %p46 = por %p44, %p45
    %p47 = scmp.ne.s32.totalorder %s36, %s37
    %p48 = scmp.eq.s32.totalorder %s14, 0
    %p49 = por %p47, %p48
    %p50 = scmp.ne.s32.totalorder %s36, %s37
    %p51 = scmp.eq.s32.totalorder %s15, 7
    %p52 = por %p50, %p51
    %p54 = scmp.ne.s32.totalorder %s37, %s53
    %p55 = scmp.eq.s32.totalorder %s15, 0
    %p56 = por %p54, %p55
    %s57 = ssub.s32 %s16, %s28
    %p58 = scmp.eq.s32.totalorder %s57, 0
    %s60 = sadd.s32 %s59, 1
    %s61 = scalar_select %p58, %s59, %s60
    %p64 = pneg %p58
    %p65 = scmp.eq.s32.totalorder %s9, 7
    %p66 = por %p64, %p65
    %p67 = scmp.ne.s32.totalorder %s59, %s62
    %p68 = scmp.eq.s32.totalorder %s9, 0
    %p69 = por %p67, %p68
    %p70 = scmp.ne.s32.totalorder %s59, %s62
    %p71 = scmp.eq.s32.totalorder %s14, 7
    %p72 = por %p70, %p71
    %p73 = scmp.ne.s32.totalorder %s62, %s63
    %p74 = scmp.eq.s32.totalorder %s14, 0
    %p75 = por %p73, %p74
    %p76 = scmp.ne.s32.totalorder %s62, %s63
    %p77 = scmp.eq.s32.totalorder %s15, 7
    %p78 = por %p76, %p77
    %p80 = scmp.ne.s32.totalorder %s63, %s79
    %p81 = scmp.eq.s32.totalorder %s15, 0
    %p82 = por %p80, %p81
    %s84 = sadd.s32 %s83, 1
    %p87 = scmp.eq.s32.totalorder %s9, 7
    %p88 = scmp.ne.s32.totalorder %s83, %s85
    %p89 = scmp.eq.s32.totalorder %s9, 0
    %p90 = por %p88, %p89
    %p91 = scmp.ne.s32.totalorder %s83, %s85
    %p92 = scmp.eq.s32.totalorder %s14, 7
    %p93 = por %p91, %p92
    %p94 = scmp.ne.s32.totalorder %s85, %s86
    %p95 = scmp.eq.s32.totalorder %s14, 0
    %p96 = por %p94, %p95
    %p97 = scmp.ne.s32.totalorder %s85, %s86
    %p98 = scmp.eq.s32.totalorder %s15, 7
    %p99 = por %p97, %p98
    %p101 = scmp.ne.s32.totalorder %s86, %s100
    %p102 = scmp.eq.s32.totalorder %s15, 0
    %p103 = por %p101, %p102
    %s104 = ssub.s32 %s16, %s28
    %s105 = ssub.s32 %s17, %s24
    %s106 = sor.u32 %s104, %s105
    %p107 = scmp.eq.s32.totalorder %s106, 0
    %s109 = sadd.s32 %s108, 1
    %s110 = scalar_select %p107, %s108, %s109
    %p113 = pneg %p107
    %p114 = scmp.eq.s32.totalorder %s9, 7
    %p115 = por %p113, %p114
    %p116 = scmp.ne.s32.totalorder %s108, %s111
    %p117 = scmp.eq.s32.totalorder %s9, 0
    %p118 = por %p116, %p117
    %p119 = scmp.ne.s32.totalorder %s108, %s111
    %p120 = scmp.eq.s32.totalorder %s14, 7
    %p121 = por %p119, %p120
    %p122 = scmp.ne.s32.totalorder %s111, %s112
    %p123 = scmp.eq.s32.totalorder %s14, 0
    %p124 = por %p122, %p123
    %p125 = scmp.ne.s32.totalorder %s111, %s112
    %p126 = scmp.eq.s32.totalorder %s15, 7
    %p127 = por %p125, %p126
    %p129 = scmp.ne.s32.totalorder %s112, %s128
    %p130 = scmp.eq.s32.totalorder %s15, 0
    %p131 = por %p129, %p130
    %p132 = scmp.le.s32.totalorder 1, %s9
    %p133 = scmp.lt.s32.totalorder %s9, 9
    %p134 = pnand %p132, %p133
    %p135 = pneg %p134
    // Predicated region
    $region9: #{betavae_forward.12} parent=5 // pred_check
      _
    $region10: #{betavae_forward.12} parent=5 // pred_check_branch
      %137 = sbr.rel (%p134) target = $region12
    $region11: #{betavae_forward.12} parent=5 // pred_region
      %s138 = ssub.s32 %s9, 1
      // Predicated region
      $region13: #{betavae_forward.12} parent=11 // pred_check
        %p139 = pneg %p96
      $region14: #{betavae_forward.12} parent=11 // pred_check_branch
        %141 = sbr.rel (%p139) target = $region16
      $region15: #{betavae_forward.12} parent=11 // pred_region
        _
      $region16: #{betavae_forward.12} parent=11 // pred_fallthru
        _
    $region12: #{betavae_forward.12} parent=5 // pred_fallthru
      _
    %p142 = scmp.lt.s32.totalorder %s9, 8
    // Predicated region
    $region17: #{betavae_forward.12} parent=5 // pred_check
      %p143 = pneg %p142
    $region18: #{betavae_forward.12} parent=5 // pred_check_branch
      %145 = sbr.rel (%p143) target = $region20
    $region19: #{betavae_forward.12} parent=5 // pred_region
      // Predicated region
      $region21: #{betavae_forward.12} parent=19 // pred_check
        %p146 = pneg %p43
      $region22: #{betavae_forward.12} parent=19 // pred_check_branch
        %148 = sbr.rel (%p146) target = $region24
      $region23: #{betavae_forward.12} parent=19 // pred_region
        %s149 = smul.u32 8, %s17
        %p150 = scmp.lt.s32.totalorder %s16, 3
        %s151 = scalar_select %p150, %s16, 3
        %p152 = scmp.lt.s32.totalorder %s149, 15
        %s153 = scalar_select %p152, %s149, 15
        %s154 = smul.addr %s153, 2
        %s155 = smul.addr %s151, 32
        %s156 = sadd.s32 %s154, %s155
        %s157 = smul.addr %s156, 8
        %s158 = scalar_lea.vmem %s0, %s157
        %s159 = smul.u32 8, %s17
      $region24: #{betavae_forward.12} parent=19 // pred_fallthru
        _
      // Predicated region
      $region25: #{betavae_forward.12} parent=19 // pred_check
        %p160 = pneg %p69
      $region26: #{betavae_forward.12} parent=19 // pred_check_branch
        %162 = sbr.rel (%p160) target = $region28
      $region27: #{betavae_forward.12} parent=19 // pred_region
        %p163 = scmp.lt.s32.totalorder %s16, 3
        %s164 = scalar_select %p163, %s16, 3
        %s165 = smul.addr %s164, 32
        %s166 = smul.addr %s165, 8
        %s167 = scalar_lea.vmem %s1, %s166
      $region28: #{betavae_forward.12} parent=19 // pred_fallthru
        _
    $region20: #{betavae_forward.12} parent=5 // pred_fallthru
      _
    %p168 = scmp.le.s32.totalorder 1, %s9
    %p169 = scmp.lt.s32.totalorder %s9, 9
    %p170 = pnand %p168, %p169
    %p171 = pneg %p170
    // Predicated region
    $region29: #{betavae_forward.12} parent=5 // pred_check
      _
    $region30: #{betavae_forward.12} parent=5 // pred_check_branch
      %173 = sbr.rel (%p170) target = $region32
    $region31: #{betavae_forward.12} parent=5 // pred_region
      %s174 = ssub.s32 %s9, 1
      %s175 = smul.u32 8, %s19
      %p176 = scmp.lt.s32.totalorder %s18, 3
      %s177 = scalar_select %p176, %s18, 3
      %p178 = scmp.lt.s32.totalorder %s175, 15
      %s179 = scalar_select %p178, %s175, 15
      %s180 = smul.addr %s179, 2
      %s181 = smul.addr %s177, 32
      %s182 = sadd.s32 %s180, %s181
      %s183 = smul.addr %s182, 8
      %s184 = scalar_lea.vmem %s0, %s183
      %p185 = pneg %p49
      %p186 = pneg %p46
      %p187 = scmp.lt.s32.totalorder %s18, 3
      %s188 = scalar_select %p187, %s18, 3
      %s189 = smul.addr %s188, 32
      %s190 = smul.addr %s189, 8
      %s191 = scalar_lea.vmem %s1, %s190
      %p192 = pneg %p75
      %p193 = pneg %p72
      %p194 = pneg %p96
      %p195 = pneg %p93
      %p196 = pneg %p124
      %p197 = pneg %p121
      %s198 = smul.u32 8, %s19
      %p199 = scmp.lt.s32.totalorder %s18, 3
      %s200 = scalar_select %p199, %s18, 3
      %p201 = scmp.lt.s32.totalorder %s198, 15
      %s202 = scalar_select %p201, %s198, 15
      %s203 = smul.addr %s200, 16
      %s204 = sadd.s32 %s202, %s203
      %s205 = smul.addr %s204, 8
      %s206 = scalar_lea.vmem %s3, %s205
      %s207 = smul.u32 8, %s19
      %p208 = scmp.lt.s32.totalorder %s18, 3
      %s209 = scalar_select %p208, %s18, 3
      %p210 = scmp.lt.s32.totalorder %s207, 15
      %s211 = scalar_select %p210, %s207, 15
      %s212 = smul.addr %s211, 2
      %s213 = smul.addr %s209, 32
      %s214 = sadd.s32 %s212, %s213
      %s215 = smul.addr %s214, 8
      %s216 = scalar_lea.vmem %s0, %s215
      %s217 = smul.u32 8, %s19
      %p218 = scmp.lt.s32.totalorder %s18, 3
      %s219 = scalar_select %p218, %s18, 3
      %s220 = smul.addr %s219, 32
      %s221 = smul.addr %s220, 8
      %s222 = scalar_lea.vmem %s1, %s221
      %s223 = smul.u32 8, %s19
      %p224 = scmp.lt.s32.totalorder %s18, 3
      %s225 = scalar_select %p224, %s18, 3
      %p226 = scmp.lt.s32.totalorder %s223, 15
      %s227 = scalar_select %p226, %s223, 15
      %s228 = smul.addr %s225, 16
      %s229 = sadd.s32 %s227, %s228
      %s230 = smul.addr %s229, 8
      %s231 = scalar_lea.vmem %s3, %s230
      %s232 = smul.u32 8, %s19
      %v233 = vld [vmem:[%s216] sm:$0xff]
      %v234 = vld [vmem:[%s216 + $0x8] sm:$0xff]
      %v235 = vld [vmem:[%s216 + $0x10] sm:$0xff]
      %v236 = vld [vmem:[%s216 + $0x18] sm:$0xff]
      %v237 = vld [vmem:[%s216 + $0x20] sm:$0xff]
      %v238 = vld [vmem:[%s216 + $0x28] sm:$0xff]
      %v239 = vld [vmem:[%s216 + $0x30] sm:$0xff]
      %v240 = vld [vmem:[%s216 + $0x38] sm:$0xff]
      %v241 = vld [vmem:[%s216 + $0x40] sm:$0xff]
      %v242 = vld [vmem:[%s216 + $0x48] sm:$0xff]
      %v243 = vld [vmem:[%s216 + $0x50] sm:$0xff]
      %v244 = vld [vmem:[%s216 + $0x58] sm:$0xff]
      %v245 = vld [vmem:[%s216 + $0x60] sm:$0xff]
      %v246 = vld [vmem:[%s216 + $0x68] sm:$0xff]
      %v247 = vld [vmem:[%s216 + $0x70] sm:$0xff]
      %v248 = vld [vmem:[%s216 + $0x78] sm:$0xff]
      %v249 = vld [vmem:[%s222] sm:$0xff]
      %v250 = vld [vmem:[%s222 + $0x8] sm:$0xff]
      %v251 = vld [vmem:[%s222 + $0x10] sm:$0xff]
      %v252 = vld [vmem:[%s222 + $0x18] sm:$0xff]
      %v253 = vld [vmem:[%s222 + $0x20] sm:$0xff]
      %v254 = vld [vmem:[%s222 + $0x28] sm:$0xff]
      %v255 = vld [vmem:[%s222 + $0x30] sm:$0xff]
      %v256 = vld [vmem:[%s222 + $0x38] sm:$0xff]
      %v257 = vld [vmem:[%s222 + $0x40] sm:$0xff]
      %v258 = vld [vmem:[%s222 + $0x48] sm:$0xff]
      %v259 = vld [vmem:[%s222 + $0x50] sm:$0xff]
      %v260 = vld [vmem:[%s222 + $0x58] sm:$0xff]
      %v261 = vld [vmem:[%s222 + $0x60] sm:$0xff]
      %v262 = vld [vmem:[%s222 + $0x68] sm:$0xff]
      %v263 = vld [vmem:[%s222 + $0x70] sm:$0xff]
      %v264 = vld [vmem:[%s222 + $0x78] sm:$0xff]
      %v265 = vld [vmem:[%s222 + $0x80] sm:$0xff]
      %v266 = vld [vmem:[%s222 + $0x88] sm:$0xff]
      %v267 = vld [vmem:[%s222 + $0x90] sm:$0xff]
      %v268 = vld [vmem:[%s222 + $0x98] sm:$0xff]
      %v269 = vld [vmem:[%s222 + $0xa0] sm:$0xff]
      %v270 = vld [vmem:[%s222 + $0xa8] sm:$0xff]
      %v271 = vld [vmem:[%s222 + $0xb0] sm:$0xff]
      %v272 = vld [vmem:[%s222 + $0xb8] sm:$0xff]
      %v273 = vld [vmem:[%s222 + $0xc0] sm:$0xff]
      %v274 = vld [vmem:[%s222 + $0xc8] sm:$0xff]
      %v275 = vld [vmem:[%s222 + $0xd0] sm:$0xff]
      %v276 = vld [vmem:[%s222 + $0xd8] sm:$0xff]
      %v277 = vld [vmem:[%s222 + $0xe0] sm:$0xff]
      %v278 = vld [vmem:[%s222 + $0xe8] sm:$0xff]
      %v279 = vld [vmem:[%s222 + $0xf0] sm:$0xff]
      %v280 = vld [vmem:[%s222 + $0xf8] sm:$0xff]
      %v281 = vld [vmem:[%s2] sm:$0x1]
      %v283 = vlaneseq
      %v284 = vshrl.u32 %v283, 7
      %v285 = vsub.s32 0, %v284
      %v286 = vrot.slane %v281, %v285
      %288 = vmatprep.subr.mxu0 0.0
      %289 = vmatpush1.msra.mxu0 %v249
      %290 = vmatprep.subr.mxu0 0.0
      %291 = vmatpush1.msra.mxu0 %v250
      %292 = vmatprep.subr.mxu0 0.0
      %293 = vmatpush1.msra.mxu0 %v251
      %294 = vmatprep.subr.mxu0 0.0
      %295 = vmatpush1.msra.mxu0 %v252
      %296 = vmatprep.subr.mxu0 0.0
      %297 = vmatpush1.msra.mxu0 %v253
      %298 = vmatprep.subr.mxu0 0.0
      %299 = vmatpush1.msra.mxu0 %v254
      %300 = vmatprep.subr.mxu0 0.0
      %301 = vmatpush1.msra.mxu0 %v255
      %302 = vmatprep.subr.mxu0 0.0
      %303 = vmatpush1.msra.mxu0 %v256
      %304 = vmatprep.subr.mxu0 0.0
      %305 = vmatpush1.msra.mxu0 %v257
      %306 = vmatprep.subr.mxu0 0.0
      %307 = vmatpush1.msra.mxu0 %v258
      %308 = vmatprep.subr.mxu0 0.0
      %309 = vmatpush1.msra.mxu0 %v259
      %310 = vmatprep.subr.mxu0 0.0
      %311 = vmatpush1.msra.mxu0 %v260
      %312 = vmatprep.subr.mxu0 0.0
      %313 = vmatpush1.msra.mxu0 %v261
      %314 = vmatprep.subr.mxu0 0.0
      %315 = vmatpush1.msra.mxu0 %v262
      %316 = vmatprep.subr.mxu0 0.0
      %317 = vmatpush1.msra.mxu0 %v263
      %318 = vmatprep.subr.mxu0 0.0
      %319 = vmatpush1.msra.mxu0 %v264
      %320 = vmatprep.subr.mxu0 0.0
      %321 = vmatpush1.msra.mxu0 %v265
      %322 = vmatprep.subr.mxu0 0.0
      %323 = vmatpush1.msra.mxu0 %v266
      %324 = vmatprep.subr.mxu0 0.0
      %325 = vmatpush1.msra.mxu0 %v267
      %326 = vmatprep.subr.mxu0 0.0
      %327 = vmatpush1.msra.mxu0 %v268
      %328 = vmatprep.subr.mxu0 0.0
      %329 = vmatpush1.msra.mxu0 %v269
      %330 = vmatprep.subr.mxu0 0.0
      %331 = vmatpush1.msra.mxu0 %v270
      %332 = vmatprep.subr.mxu0 0.0
      %333 = vmatpush1.msra.mxu0 %v271
      %334 = vmatprep.subr.mxu0 0.0
      %335 = vmatpush1.msra.mxu0 %v272
      %336 = vmatprep.subr.mxu0 0.0
      %337 = vmatpush1.msra.mxu0 %v273
      %338 = vmatprep.subr.mxu0 0.0
      %339 = vmatpush1.msra.mxu0 %v274
      %340 = vmatprep.subr.mxu0 0.0
      %341 = vmatpush1.msra.mxu0 %v275
      %342 = vmatprep.subr.mxu0 0.0
      %343 = vmatpush1.msra.mxu0 %v276
      %344 = vmatprep.subr.mxu0 0.0
      %345 = vmatpush1.msra.mxu0 %v277
      %346 = vmatprep.subr.mxu0 0.0
      %347 = vmatpush1.msra.mxu0 %v278
      %348 = vmatprep.subr.mxu0 0.0
      %349 = vmatpush1.msra.mxu0 %v279
      %350 = vmatprep.subr.mxu0 0.0
      %351 = vmatpush1.msra.mxu0 %v280
      %352 = vmatprep.mubr.f32.mxu0 %v234
      %353 = vmatmul.mubr.f32.gmra.mrb[0].mxu0 %v233
      %v354 = vpop.f32.mrb[0].mxu0
      %v355 = vadd.f32 %v286, %v354
      %v356 = vpop.f32.mrb[0].mxu0
      %357 = vmatprep.mubr.f32.mxu0 %v236
      %358 = vmatmul.mubr.f32.gmra.mrb[0].mxu0 %v235
      %v359 = vpop.f32.mrb[0].mxu0
      %v360 = vadd.f32 %v286, %v359
      %v361 = vpop.f32.mrb[0].mxu0
      %362 = vmatprep.mubr.f32.mxu0 %v238
      %363 = vmatmul.mubr.f32.gmra.mrb[0].mxu0 %v237
      %v364 = vpop.f32.mrb[0].mxu0
      %v365 = vadd.f32 %v286, %v364
      %v366 = vpop.f32.mrb[0].mxu0
      %367 = vmatprep.mubr.f32.mxu0 %v240
      %368 = vmatmul.mubr.f32.gmra.mrb[0].mxu0 %v239
      %v369 = vpop.f32.mrb[0].mxu0
      %v370 = vadd.f32 %v286, %v369
      %v371 = vpop.f32.mrb[0].mxu0
      %372 = vmatprep.mubr.f32.mxu0 %v242
      %373 = vmatmul.mubr.f32.gmra.mrb[0].mxu0 %v241
      %v374 = vpop.f32.mrb[0].mxu0
      %v375 = vadd.f32 %v286, %v374
      %v376 = vpop.f32.mrb[0].mxu0
      %377 = vmatprep.mubr.f32.mxu0 %v244
      %378 = vmatmul.mubr.f32.gmra.mrb[0].mxu0 %v243
      %v379 = vpop.f32.mrb[0].mxu0
      %v380 = vadd.f32 %v286, %v379
      %v381 = vpop.f32.mrb[0].mxu0
      %382 = vmatprep.mubr.f32.mxu0 %v246
      %383 = vmatmul.mubr.f32.gmra.mrb[0].mxu0 %v245
      %v384 = vpop.f32.mrb[0].mxu0
      %v385 = vadd.f32 %v286, %v384
      %v386 = vpop.f32.mrb[0].mxu0
      %387 = vmatprep.mubr.f32.mxu0 %v248
      %388 = vmatmul.mubr.f32.gmra.mrb[0].mxu0 %v247
      %v389 = vpop.f32.mrb[0].mxu0
      %v390 = vadd.f32 %v286, %v389
      %v391 = vpop.f32.mrb[0].mxu0
      %392 = vdwg.mxu0
      %v393 = vmax.f32 %v355, 0.0
      %v394 = vmax.f32 %v360, 0.0
      %v395 = vmax.f32 %v365, 0.0
      %v396 = vmax.f32 %v370, 0.0
      %v397 = vmax.f32 %v375, 0.0
      %v398 = vmax.f32 %v380, 0.0
      %v399 = vmax.f32 %v385, 0.0
      %v400 = vmax.f32 %v390, 0.0
      %vm401 = vcmask 261120
      %402 = vst.msk [vmem:[%s231] sm:$0xff] %vm401, %v393
      %403 = vst.msk [vmem:[%s231 + $0x8] sm:$0xff] %vm401, %v394
      %404 = vst.msk [vmem:[%s231 + $0x10] sm:$0xff] %vm401, %v395
      %405 = vst.msk [vmem:[%s231 + $0x18] sm:$0xff] %vm401, %v396
      %406 = vst.msk [vmem:[%s231 + $0x20] sm:$0xff] %vm401, %v397
      %407 = vst.msk [vmem:[%s231 + $0x28] sm:$0xff] %vm401, %v398
      %408 = vst.msk [vmem:[%s231 + $0x30] sm:$0xff] %vm401, %v399
      %409 = vst.msk [vmem:[%s231 + $0x38] sm:$0xff] %vm401, %v400
      %s410 = smul.u32 8, %s19
      %p411 = scmp.lt.s32.totalorder %s18, 3
      %s412 = scalar_select %p411, %s18, 3
      %p413 = scmp.lt.s32.totalorder %s410, 15
      %s414 = scalar_select %p413, %s410, 15
      %s415 = smul.addr %s412, 16
      %s416 = sadd.s32 %s414, %s415
      %s417 = smul.addr %s416, 8
      %s418 = scalar_lea.vmem %s3, %s417
      // Predicated region
      $region33: #{betavae_forward.12} parent=31 // pred_check
        %p419 = pneg %p121
      $region34: #{betavae_forward.12} parent=31 // pred_check_branch
        %421 = sbr.rel (%p419) target = $region36
      $region35: #{betavae_forward.12} parent=31 // pred_region
        %s422 = smul.u32 8, %s19
      $region36: #{betavae_forward.12} parent=31 // pred_fallthru
        _
    $region32: #{betavae_forward.12} parent=5 // pred_fallthru
      _
    %p423 = scmp.le.s32.totalorder 2, %s9
    // Predicated region
    $region37: #{betavae_forward.12} parent=5 // pred_check
      %p424 = pneg %p423
    $region38: #{betavae_forward.12} parent=5 // pred_check_branch
      %426 = sbr.rel (%p424) target = $region40
    $region39: #{betavae_forward.12} parent=5 // pred_region
      %s427 = ssub.s32 %s9, 2
      // Predicated region
      $region41: #{betavae_forward.12} parent=39 // pred_check
        %p428 = pneg %p127
      $region42: #{betavae_forward.12} parent=39 // pred_check_branch
        %430 = sbr.rel (%p428) target = $region44
      $region43: #{betavae_forward.12} parent=39 // pred_region
        %s431 = smul.u32 8, %s21
        %p432 = scmp.lt.s32.totalorder %s20, 3
        %s433 = scalar_select %p432, %s20, 3
        %p434 = scmp.lt.s32.totalorder %s431, 15
        %s435 = scalar_select %p434, %s431, 15
        %s436 = smul.addr %s433, 16
        %s437 = sadd.s32 %s435, %s436
        %s438 = smul.addr %s437, 8
        %s439 = scalar_lea.vmem %s3, %s438
      $region44: #{betavae_forward.12} parent=39 // pred_fallthru
        _
    $region40: #{betavae_forward.12} parent=5 // pred_fallthru
      _
  $region6: #{betavae_forward.12} parent=0 // loop_footer
    %s13 = sadd.s32 1, %s9
  $region7: #{betavae_forward.12} parent=0 // loop_footer_branch
    %8 = sbr.rel target = $region3
  $region8: #{betavae_forward.12} parent=0 // loop_exit
    _

// kernel: betavae_forward.10
$region0: #{betavae_forward.10}
  #allocation0 [shape = 'u32[]', space=smem, size = 0x4, offset = 0x4, fixed_abs, tag = 'smem constant byte address 0x4 - core index']
  #allocation1 [shape = 'u32[144,128]{1,0:T(1,128)}', space=vmem, size = 0x12000, scoped, tag = 'internal scratch']
  %s0 = inlined_call_operand.vmem [shape: f32[2,2048], index: 0, kind: input, shape index: {}]
  %s1 = inlined_call_operand.vmem [shape: f32[2,16], index: 1, kind: input, shape index: {}]
  %s2 = inlined_call_operand.vmem [shape: f32[2048,256], index: 2, kind: input, shape index: {}]
  %s3 = inlined_call_operand.vmem [shape: f32[1,256], index: 3, kind: input, shape index: {}]
  %s4 = inlined_call_operand.vmem [shape: f32[256,16], index: 4, kind: input, shape index: {}]
  %s5 = inlined_call_operand.vmem [shape: f32[1,16], index: 5, kind: input, shape index: {}]
  %s6 = inlined_call_operand.vmem [shape: f32[256,16], index: 6, kind: input, shape index: {}]
  %s7 = inlined_call_operand.vmem [shape: f32[1,16], index: 7, kind: input, shape index: {}]
  %s8 = inlined_call_operand.vmem [shape: f32[16,256], index: 8, kind: input, shape index: {}]
  %s9 = inlined_call_operand.vmem [shape: f32[1,256], index: 9, kind: input, shape index: {}]
  %s10 = inlined_call_operand.vmem [shape: f32[256,2048], index: 10, kind: input, shape index: {}]
  %s11 = inlined_call_operand.vmem [shape: f32[1,2048], index: 11, kind: input, shape index: {}]
  %s12 = inlined_call_operand.hbm [shape: f32[2,16], index: 12, kind: output, shape index: {0}]
  %s13 = inlined_call_operand.hbm [shape: f32[2,16], index: 13, kind: output, shape index: {1}]
  %s14 = inlined_call_operand.vmem [shape: f32[2,2048], index: 14, kind: output, shape index: {2}]
  %15 = xla_tuple %s12, %s13, %s14
  %s16 = sld [smem:[#allocation0]]
  $region74: #{betavae_forward.10} parent=0
    _
  %s18 = ssub.s32 1, %s16
  %s19 = scalar_select 0, %s18, %s16
  $region1: #{betavae_forward.10} parent=0
    #allocation2 [shape = 'u8[1024]{0}', space=vmem, size = 0x400, scoped, tag = 'output window, operand 0, single buffered']
    #allocation3 [shape = 's32[1]{0}', space=sflag, size = 0x4, scoped, tag = 'scoped memory for betavae_forward.10']
    #allocation4 [shape = 'u8[1024]{0}', space=vmem, size = 0x400, scoped, tag = 'output window, operand 1, single buffered']
    #allocation5 [shape = 's32[1]{0}', space=sflag, size = 0x4, scoped, tag = 'scoped memory for betavae_forward.10']
    %20 = vsyncpa [#allocation3], 0
    %21 = vsyncpa [#allocation5], 0
    // Predicated region
    $region2: #{betavae_forward.10} parent=1 // pred_check
      _
    $region3: #{betavae_forward.10} parent=1 // pred_check_branch
      %23 = sbr.rel (0) target = $region5
    $region4: #{betavae_forward.10} parent=1 // pred_region
      _
    $region5: #{betavae_forward.10} parent=1 // pred_fallthru
      _
    // Predicated region
    $region6: #{betavae_forward.10} parent=1 // pred_check
      _
    $region7: #{betavae_forward.10} parent=1 // pred_check_branch
      %25 = sbr.rel (0) target = $region9
    $region8: #{betavae_forward.10} parent=1 // pred_region
      _
    $region9: #{betavae_forward.10} parent=1 // pred_fallthru
      _
    // Predicated region
    $region10: #{betavae_forward.10} parent=1 // pred_check
      _
    $region11: #{betavae_forward.10} parent=1 // pred_check_branch
      %27 = sbr.rel (0) target = $region13
    $region12: #{betavae_forward.10} parent=1 // pred_region
      _
    $region13: #{betavae_forward.10} parent=1 // pred_fallthru
      _
    // Predicated region
    $region14: #{betavae_forward.10} parent=1 // pred_check
      _
    $region15: #{betavae_forward.10} parent=1 // pred_check_branch
      %29 = sbr.rel (0) target = $region17
    $region16: #{betavae_forward.10} parent=1 // pred_region
      _
    $region17: #{betavae_forward.10} parent=1 // pred_fallthru
      _
    // Predicated region
    $region18: #{betavae_forward.10} parent=1 // pred_check
      _
    $region19: #{betavae_forward.10} parent=1 // pred_check_branch
      %31 = sbr.rel (0) target = $region21
    $region20: #{betavae_forward.10} parent=1 // pred_region
      _
    $region21: #{betavae_forward.10} parent=1 // pred_fallthru
      _
    // Predicated region
    $region22: #{betavae_forward.10} parent=1 // pred_check
      _
    $region23: #{betavae_forward.10} parent=1 // pred_check_branch
      %33 = sbr.rel (0) target = $region25
    $region24: #{betavae_forward.10} parent=1 // pred_region
      _
    $region25: #{betavae_forward.10} parent=1 // pred_fallthru
      _
    // Predicated region
    $region26: #{betavae_forward.10} parent=1 // pred_check
      _
    $region27: #{betavae_forward.10} parent=1 // pred_check_branch
      %35 = sbr.rel (0) target = $region29
    $region28: #{betavae_forward.10} parent=1 // pred_region
      _
    $region29: #{betavae_forward.10} parent=1 // pred_fallthru
      _
    // Predicated region
    $region30: #{betavae_forward.10} parent=1 // pred_check
      _
    $region31: #{betavae_forward.10} parent=1 // pred_check_branch
      %37 = sbr.rel (0) target = $region33
    $region32: #{betavae_forward.10} parent=1 // pred_region
      _
    $region33: #{betavae_forward.10} parent=1 // pred_fallthru
      _
    // Predicated region
    $region34: #{betavae_forward.10} parent=1 // pred_check
      _
    $region35: #{betavae_forward.10} parent=1 // pred_check_branch
      %39 = sbr.rel (0) target = $region37
    $region36: #{betavae_forward.10} parent=1 // pred_region
      _
    $region37: #{betavae_forward.10} parent=1 // pred_fallthru
      _
    // Predicated region
    $region38: #{betavae_forward.10} parent=1 // pred_check
      _
    $region39: #{betavae_forward.10} parent=1 // pred_check_branch
      %41 = sbr.rel (0) target = $region41
    $region40: #{betavae_forward.10} parent=1 // pred_region
      _
    $region41: #{betavae_forward.10} parent=1 // pred_fallthru
      _
    // Predicated region
    $region42: #{betavae_forward.10} parent=1 // pred_check
      _
    $region43: #{betavae_forward.10} parent=1 // pred_check_branch
      %43 = sbr.rel (0) target = $region45
    $region44: #{betavae_forward.10} parent=1 // pred_region
      _
    $region45: #{betavae_forward.10} parent=1 // pred_fallthru
      _
    // Predicated region
    $region46: #{betavae_forward.10} parent=1 // pred_check
      _
    $region47: #{betavae_forward.10} parent=1 // pred_check_branch
      %45 = sbr.rel (0) target = $region49
    $region48: #{betavae_forward.10} parent=1 // pred_region
      _
    $region49: #{betavae_forward.10} parent=1 // pred_fallthru
      _
    %v46 = vld [vmem:[%s0] sm:$0xff]
    %v47 = vld [vmem:[%s0 + $0x8] sm:$0xff]
    %v48 = vld [vmem:[%s0 + $0x10] sm:$0xff]
    %v49 = vld [vmem:[%s0 + $0x18] sm:$0xff]
    %v50 = vld [vmem:[%s2] sm:$0xff]
    %v51 = vld [vmem:[%s2 + $0x8] sm:$0xff]
    %v52 = vld [vmem:[%s2 + $0x10] sm:$0xff]
    %v53 = vld [vmem:[%s2 + $0x18] sm:$0xff]
    %v54 = vld [vmem:[%s2 + $0x20] sm:$0xff]
    %v55 = vld [vmem:[%s2 + $0x28] sm:$0xff]
    %v56 = vld [vmem:[%s2 + $0x30] sm:$0xff]
    %v57 = vld [vmem:[%s2 + $0x38] sm:$0xff]
    %v58 = vld [vmem:[%s2 + $0x40] sm:$0xff]
    %v59 = vld [vmem:[%s2 + $0x48] sm:$0xff]
    %v60 = vld [vmem:[%s2 + $0x50] sm:$0xff]
    %v61 = vld [vmem:[%s2 + $0x58] sm:$0xff]
    %v62 = vld [vmem:[%s2 + $0x60] sm:$0xff]
    %v63 = vld [vmem:[%s2 + $0x68] sm:$0xff]
    %v64 = vld [vmem:[%s2 + $0x70] sm:$0xff]
    %v65 = vld [vmem:[%s2 + $0x78] sm:$0xff]
    %v66 = vld [vmem:[%s2 + $0x80] sm:$0xff]
    %v67 = vld [vmem:[%s2 + $0x88] sm:$0xff]
    %v68 = vld [vmem:[%s2 + $0x90] sm:$0xff]
    %v69 = vld [vmem:[%s2 + $0x98] sm:$0xff]
    %v70 = vld [vmem:[%s2 + $0xa0] sm:$0xff]
    %v71 = vld [vmem:[%s2 + $0xa8] sm:$0xff]
    %v72 = vld [vmem:[%s2 + $0xb0] sm:$0xff]
    %v73 = vld [vmem:[%s2 + $0xb8] sm:$0xff]
    %v74 = vld [vmem:[%s2 + $0xc0] sm:$0xff]
    %v75 = vld [vmem:[%s2 + $0xc8] sm:$0xff]
    %v76 = vld [vmem:[%s2 + $0xd0] sm:$0xff]
    %v77 = vld [vmem:[%s2 + $0xd8] sm:$0xff]
    %v78 = vld [vmem:[%s2 + $0xe0] sm:$0xff]
    %v79 = vld [vmem:[%s2 + $0xe8] sm:$0xff]
    %v80 = vld [vmem:[%s2 + $0xf0] sm:$0xff]
    %v81 = vld [vmem:[%s2 + $0xf8] sm:$0xff]
    %v82 = vld [vmem:[%s2 + $0x100] sm:$0xff]
    %v83 = vld [vmem:[%s2 + $0x108] sm:$0xff]
    %v84 = vld [vmem:[%s2 + $0x110] sm:$0xff]
    %v85 = vld [vmem:[%s2 + $0x118] sm:$0xff]
    %v86 = vld [vmem:[%s2 + $0x120] sm:$0xff]
    %v87 = vld [vmem:[%s2 + $0x128] sm:$0xff]
    %v88 = vld [vmem:[%s2 + $0x130] sm:$0xff]
    %v89 = vld [vmem:[%s2 + $0x138] sm:$0xff]
    %v90 = vld [vmem:[%s2 + $0x140] sm:$0xff]
    %v91 = vld [vmem:[%s2 + $0x148] sm:$0xff]
    %v92 = vld [vmem:[%s2 + $0x150] sm:$0xff]
    %v93 = vld [vmem:[%s2 + $0x158] sm:$0xff]
    %v94 = vld [vmem:[%s2 + $0x160] sm:$0xff]
    %v95 = vld [vmem:[%s2 + $0x168] sm:$0xff]
    %v96 = vld [vmem:[%s2 + $0x170] sm:$0xff]
    %v97 = vld [vmem:[%s2 + $0x178] sm:$0xff]
    %v98 = vld [vmem:[%s2 + $0x180] sm:$0xff]
    %v99 = vld [vmem:[%s2 + $0x188] sm:$0xff]
    %v100 = vld [vmem:[%s2 + $0x190] sm:$0xff]
    %v101 = vld [vmem:[%s2 + $0x198] sm:$0xff]
    %v102 = vld [vmem:[%s2 + $0x1a0] sm:$0xff]
    %v103 = vld [vmem:[%s2 + $0x1a8] sm:$0xff]
    %v104 = vld [vmem:[%s2 + $0x1b0] sm:$0xff]
    %v105 = vld [vmem:[%s2 + $0x1b8] sm:$0xff]
    %v106 = vld [vmem:[%s2 + $0x1c0] sm:$0xff]
    %v107 = vld [vmem:[%s2 + $0x1c8] sm:$0xff]
    %v108 = vld [vmem:[%s2 + $0x1d0] sm:$0xff]
    %v109 = vld [vmem:[%s2 + $0x1d8] sm:$0xff]
    %v110 = vld [vmem:[%s2 + $0x1e0] sm:$0xff]
    %v111 = vld [vmem:[%s2 + $0x1e8] sm:$0xff]
    %v112 = vld [vmem:[%s2 + $0x1f0] sm:$0xff]
    %v113 = vld [vmem:[%s2 + $0x1f8] sm:$0xff]
    %v114 = vld [vmem:[%s2 + $0x200] sm:$0xff]
    %v115 = vld [vmem:[%s2 + $0x208] sm:$0xff]
    %v116 = vld [vmem:[%s2 + $0x210] sm:$0xff]
    %v117 = vld [vmem:[%s2 + $0x218] sm:$0xff]
    %v118 = vld [vmem:[%s2 + $0x220] sm:$0xff]
    %v119 = vld [vmem:[%s2 + $0x228] sm:$0xff]
    %v120 = vld [vmem:[%s2 + $0x230] sm:$0xff]
    %v121 = vld [vmem:[%s2 + $0x238] sm:$0xff]
    %v122 = vld [vmem:[%s2 + $0x240] sm:$0xff]
    %v123 = vld [vmem:[%s2 + $0x248] sm:$0xff]
    %v124 = vld [vmem:[%s2 + $0x250] sm:$0xff]
    %v125 = vld [vmem:[%s2 + $0x258] sm:$0xff]
    %v126 = vld [vmem:[%s2 + $0x260] sm:$0xff]
    %v127 = vld [vmem:[%s2 + $0x268] sm:$0xff]
    %v128 = vld [vmem:[%s2 + $0x270] sm:$0xff]
    %v129 = vld [vmem:[%s2 + $0x278] sm:$0xff]
    %v130 = vld [vmem:[%s2 + $0x280] sm:$0xff]
    %v131 = vld [vmem:[%s2 + $0x288] sm:$0xff]
    %v132 = vld [vmem:[%s2 + $0x290] sm:$0xff]
    %v133 = vld [vmem:[%s2 + $0x298] sm:$0xff]
    %v134 = vld [vmem:[%s2 + $0x2a0] sm:$0xff]
    %v135 = vld [vmem:[%s2 + $0x2a8] sm:$0xff]
    %v136 = vld [vmem:[%s2 + $0x2b0] sm:$0xff]
    %v137 = vld [vmem:[%s2 + $0x2b8] sm:$0xff]
    %v138 = vld [vmem:[%s2 + $0x2c0] sm:$0xff]
    %v139 = vld [vmem:[%s2 + $0x2c8] sm:$0xff]
    %v140 = vld [vmem:[%s2 + $0x2d0] sm:$0xff]
    %v141 = vld [vmem:[%s2 + $0x2d8] sm:$0xff]
    %v142 = vld [vmem:[%s2 + $0x2e0] sm:$0xff]
    %v143 = vld [vmem:[%s2 + $0x2e8] sm:$0xff]
    %v144 = vld [vmem:[%s2 + $0x2f0] sm:$0xff]
    %v145 = vld [vmem:[%s2 + $0x2f8] sm:$0xff]
    %v146 = vld [vmem:[%s2 + $0x300] sm:$0xff]
    %v147 = vld [vmem:[%s2 + $0x308] sm:$0xff]
    %v148 = vld [vmem:[%s2 + $0x310] sm:$0xff]
    %v149 = vld [vmem:[%s2 + $0x318] sm:$0xff]
    %v150 = vld [vmem:[%s2 + $0x320] sm:$0xff]
    %v151 = vld [vmem:[%s2 + $0x328] sm:$0xff]
    %v152 = vld [vmem:[%s2 + $0x330] sm:$0xff]
    %v153 = vld [vmem:[%s2 + $0x338] sm:$0xff]
    %v154 = vld [vmem:[%s2 + $0x340] sm:$0xff]
    %v155 = vld [vmem:[%s2 + $0x348] sm:$0xff]
    %v156 = vld [vmem:[%s2 + $0x350] sm:$0xff]
    %v157 = vld [vmem:[%s2 + $0x358] sm:$0xff]
    %v158 = vld [vmem:[%s2 + $0x360] sm:$0xff]
    %v159 = vld [vmem:[%s2 + $0x368] sm:$0xff]
    %v160 = vld [vmem:[%s2 + $0x370] sm:$0xff]
    %v161 = vld [vmem:[%s2 + $0x378] sm:$0xff]
    %v162 = vld [vmem:[%s2 + $0x380] sm:$0xff]
    %v163 = vld [vmem:[%s2 + $0x388] sm:$0xff]
    %v164 = vld [vmem:[%s2 + $0x390] sm:$0xff]
    %v165 = vld [vmem:[%s2 + $0x398] sm:$0xff]
    %v166 = vld [vmem:[%s2 + $0x3a0] sm:$0xff]
    %v167 = vld [vmem:[%s2 + $0x3a8] sm:$0xff]
    %v168 = vld [vmem:[%s2 + $0x3b0] sm:$0xff]
    %v169 = vld [vmem:[%s2 + $0x3b8] sm:$0xff]
    %v170 = vld [vmem:[%s2 + $0x3c0] sm:$0xff]
    %v171 = vld [vmem:[%s2 + $0x3c8] sm:$0xff]
    %v172 = vld [vmem:[%s2 + $0x3d0] sm:$0xff]
    %v173 = vld [vmem:[%s2 + $0x3d8] sm:$0xff]
    %v174 = vld [vmem:[%s2 + $0x3e0] sm:$0xff]
    %v175 = vld [vmem:[%s2 + $0x3e8] sm:$0xff]
    %v176 = vld [vmem:[%s2 + $0x3f0] sm:$0xff]
    %v177 = vld [vmem:[%s2 + $0x3f8] sm:$0xff]
    %v178 = vld [vmem:[%s2 + $0x400] sm:$0xff]
    %v179 = vld [vmem:[%s2 + $0x408] sm:$0xff]
    %v180 = vld [vmem:[%s2 + $0x410] sm:$0xff]
    %v181 = vld [vmem:[%s2 + $0x418] sm:$0xff]
    %v182 = vld [vmem:[%s2 + $0x420] sm:$0xff]
    %v183 = vld [vmem:[%s2 + $0x428] sm:$0xff]
    %v184 = vld [vmem:[%s2 + $0x430] sm:$0xff]
    %v185 = vld [vmem:[%s2 + $0x438] sm:$0xff]
    %v186 = vld [vmem:[%s2 + $0x440] sm:$0xff]
    %v187 = vld [vmem:[%s2 + $0x448] sm:$0xff]
    %v188 = vld [vmem:[%s2 + $0x450] sm:$0xff]
    %v189 = vld [vmem:[%s2 + $0x458] sm:$0xff]
    %v190 = vld [vmem:[%s2 + $0x460] sm:$0xff]
    %v191 = vld [vmem:[%s2 + $0x468] sm:$0xff]
    %v192 = vld [vmem:[%s2 + $0x470] sm:$0xff]
    %v193 = vld [vmem:[%s2 + $0x478] sm:$0xff]
    %v194 = vld [vmem:[%s2 + $0x480] sm:$0xff]
    %v195 = vld [vmem:[%s2 + $0x488] sm:$0xff]
    %v196 = vld [vmem:[%s2 + $0x490] sm:$0xff]
    %v197 = vld [vmem:[%s2 + $0x498] sm:$0xff]
    %v198 = vld [vmem:[%s2 + $0x4a0] sm:$0xff]
    %v199 = vld [vmem:[%s2 + $0x4a8] sm:$0xff]
    %v200 = vld [vmem:[%s2 + $0x4b0] sm:$0xff]
    %v201 = vld [vmem:[%s2 + $0x4b8] sm:$0xff]
    %v202 = vld [vmem:[%s2 + $0x4c0] sm:$0xff]
    %v203 = vld [vmem:[%s2 + $0x4c8] sm:$0xff]
    %v204 = vld [vmem:[%s2 + $0x4d0] sm:$0xff]
    %v205 = vld [vmem:[%s2 + $0x4d8] sm:$0xff]
    %v206 = vld [vmem:[%s2 + $0x4e0] sm:$0xff]
    %v207 = vld [vmem:[%s2 + $0x4e8] sm:$0xff]
    %v208 = vld [vmem:[%s2 + $0x4f0] sm:$0xff]
    %v209 = vld [vmem:[%s2 + $0x4f8] sm:$0xff]
    %v210 = vld [vmem:[%s2 + $0x500] sm:$0xff]
    %v211 = vld [vmem:[%s2 + $0x508] sm:$0xff]
    %v212 = vld [vmem:[%s2 + $0x510] sm:$0xff]
    %v213 = vld [vmem:[%s2 + $0x518] sm:$0xff]
    %v214 = vld [vmem:[%s2 + $0x520] sm:$0xff]
    %v215 = vld [vmem:[%s2 + $0x528] sm:$0xff]
    %v216 = vld [vmem:[%s2 + $0x530] sm:$0xff]
    %v217 = vld [vmem:[%s2 + $0x538] sm:$0xff]
    %v218 = vld [vmem:[%s2 + $0x540] sm:$0xff]
    %v219 = vld [vmem:[%s2 + $0x548] sm:$0xff]
    %v220 = vld [vmem:[%s2 + $0x550] sm:$0xff]
    %v221 = vld [vmem:[%s2 + $0x558] sm:$0xff]
    %v222 = vld [vmem:[%s2 + $0x560] sm:$0xff]
    %v223 = vld [vmem:[%s2 + $0x568] sm:$0xff]
    %v224 = vld [vmem:[%s2 + $0x570] sm:$0xff]
    %v225 = vld [vmem:[%s2 + $0x578] sm:$0xff]
    %v226 = vld [vmem:[%s2 + $0x580] sm:$0xff]
    %v227 = vld [vmem:[%s2 + $0x588] sm:$0xff]
    %v228 = vld [vmem:[%s2 + $0x590] sm:$0xff]
    %v229 = vld [vmem:[%s2 + $0x598] sm:$0xff]
    %v230 = vld [vmem:[%s2 + $0x5a0] sm:$0xff]
    %v231 = vld [vmem:[%s2 + $0x5a8] sm:$0xff]
    %v232 = vld [vmem:[%s2 + $0x5b0] sm:$0xff]
    %v233 = vld [vmem:[%s2 + $0x5b8] sm:$0xff]
    %v234 = vld [vmem:[%s2 + $0x5c0] sm:$0xff]
    %v235 = vld [vmem:[%s2 + $0x5c8] sm:$0xff]
    %v236 = vld [vmem:[%s2 + $0x5d0] sm:$0xff]
    %v237 = vld [vmem:[%s2 + $0x5d8] sm:$0xff]
    %v238 = vld [vmem:[%s2 + $0x5e0] sm:$0xff]
    %v239 = vld [vmem:[%s2 + $0x5e8] sm:$0xff]
    %v240 = vld [vmem:[%s2 + $0x5f0] sm:$0xff]
    %v241 = vld [vmem:[%s2 + $0x5f8] sm:$0xff]
    %v242 = vld [vmem:[%s2 + $0x600] sm:$0xff]
    %v243 = vld [vmem:[%s2 + $0x608] sm:$0xff]
    %v244 = vld [vmem:[%s2 + $0x610] sm:$0xff]
    %v245 = vld [vmem:[%s2 + $0x618] sm:$0xff]
    %v246 = vld [vmem:[%s2 + $0x620] sm:$0xff]
    %v247 = vld [vmem:[%s2 + $0x628] sm:$0xff]
    %v248 = vld [vmem:[%s2 + $0x630] sm:$0xff]
    %v249 = vld [vmem:[%s2 + $0x638] sm:$0xff]
    %v250 = vld [vmem:[%s2 + $0x640] sm:$0xff]
    %v251 = vld [vmem:[%s2 + $0x648] sm:$0xff]
    %v252 = vld [vmem:[%s2 + $0x650] sm:$0xff]
    %v253 = vld [vmem:[%s2 + $0x658] sm:$0xff]
    %v254 = vld [vmem:[%s2 + $0x660] sm:$0xff]
    %v255 = vld [vmem:[%s2 + $0x668] sm:$0xff]
    %v256 = vld [vmem:[%s2 + $0x670] sm:$0xff]
    %v257 = vld [vmem:[%s2 + $0x678] sm:$0xff]
    %v258 = vld [vmem:[%s2 + $0x680] sm:$0xff]
    %v259 = vld [vmem:[%s2 + $0x688] sm:$0xff]
    %v260 = vld [vmem:[%s2 + $0x690] sm:$0xff]
    %v261 = vld [vmem:[%s2 + $0x698] sm:$0xff]
    %v262 = vld [vmem:[%s2 + $0x6a0] sm:$0xff]
    %v263 = vld [vmem:[%s2 + $0x6a8] sm:$0xff]
    %v264 = vld [vmem:[%s2 + $0x6b0] sm:$0xff]
    %v265 = vld [vmem:[%s2 + $0x6b8] sm:$0xff]
    %v266 = vld [vmem:[%s2 + $0x6c0] sm:$0xff]
    %v267 = vld [vmem:[%s2 + $0x6c8] sm:$0xff]
    %v268 = vld [vmem:[%s2 + $0x6d0] sm:$0xff]
    %v269 = vld [vmem:[%s2 + $0x6d8] sm:$0xff]
    %v270 = vld [vmem:[%s2 + $0x6e0] sm:$0xff]
    %v271 = vld [vmem:[%s2 + $0x6e8] sm:$0xff]
    %v272 = vld [vmem:[%s2 + $0x6f0] sm:$0xff]
    %v273 = vld [vmem:[%s2 + $0x6f8] sm:$0xff]
    %v274 = vld [vmem:[%s2 + $0x700] sm:$0xff]
    %v275 = vld [vmem:[%s2 + $0x708] sm:$0xff]
    %v276 = vld [vmem:[%s2 + $0x710] sm:$0xff]
    %v277 = vld [vmem:[%s2 + $0x718] sm:$0xff]
    %v278 = vld [vmem:[%s2 + $0x720] sm:$0xff]
    %v279 = vld [vmem:[%s2 + $0x728] sm:$0xff]
    %v280 = vld [vmem:[%s2 + $0x730] sm:$0xff]
    %v281 = vld [vmem:[%s2 + $0x738] sm:$0xff]
    %v282 = vld [vmem:[%s2 + $0x740] sm:$0xff]
    %v283 = vld [vmem:[%s2 + $0x748] sm:$0xff]
    %v284 = vld [vmem:[%s2 + $0x750] sm:$0xff]
    %v285 = vld [vmem:[%s2 + $0x758] sm:$0xff]
    %v286 = vld [vmem:[%s2 + $0x760] sm:$0xff]
    %v287 = vld [vmem:[%s2 + $0x768] sm:$0xff]
    %v288 = vld [vmem:[%s2 + $0x770] sm:$0xff]
    %v289 = vld [vmem:[%s2 + $0x778] sm:$0xff]
    %v290 = vld [vmem:[%s2 + $0x780] sm:$0xff]
    %v291 = vld [vmem:[%s2 + $0x788] sm:$0xff]
    %v292 = vld [vmem:[%s2 + $0x790] sm:$0xff]
    %v293 = vld [vmem:[%s2 + $0x798] sm:$0xff]
    %v294 = vld [vmem:[%s2 + $0x7a0] sm:$0xff]
    %v295 = vld [vmem:[%s2 + $0x7a8] sm:$0xff]
    %v296 = vld [vmem:[%s2 + $0x7b0] sm:$0xff]
    %v297 = vld [vmem:[%s2 + $0x7b8] sm:$0xff]
    %v298 = vld [vmem:[%s2 + $0x7c0] sm:$0xff]
    %v299 = vld [vmem:[%s2 + $0x7c8] sm:$0xff]
    %v300 = vld [vmem:[%s2 + $0x7d0] sm:$0xff]
    %v301 = vld [vmem:[%s2 + $0x7d8] sm:$0xff]
    %v302 = vld [vmem:[%s2 + $0x7e0] sm:$0xff]
    %v303 = vld [vmem:[%s2 + $0x7e8] sm:$0xff]
    %v304 = vld [vmem:[%s2 + $0x7f0] sm:$0xff]
    %v305 = vld [vmem:[%s2 + $0x7f8] sm:$0xff]
    %v306 = vld [vmem:[%s2 + $0x800] sm:$0xff]
    %v307 = vld [vmem:[%s2 + $0x808] sm:$0xff]
    %v308 = vld [vmem:[%s2 + $0x810] sm:$0xff]
    %v309 = vld [vmem:[%s2 + $0x818] sm:$0xff]
    %v310 = vld [vmem:[%s2 + $0x820] sm:$0xff]
    %v311 = vld [vmem:[%s2 + $0x828] sm:$0xff]
    %v312 = vld [vmem:[%s2 + $0x830] sm:$0xff]
    %v313 = vld [vmem:[%s2 + $0x838] sm:$0xff]
    %v314 = vld [vmem:[%s2 + $0x840] sm:$0xff]
    %v315 = vld [vmem:[%s2 + $0x848] sm:$0xff]
    %v316 = vld [vmem:[%s2 + $0x850] sm:$0xff]
    %v317 = vld [vmem:[%s2 + $0x858] sm:$0xff]
    %v318 = vld [vmem:[%s2 + $0x860] sm:$0xff]
    %v319 = vld [vmem:[%s2 + $0x868] sm:$0xff]
    %v320 = vld [vmem:[%s2 + $0x870] sm:$0xff]
    %v321 = vld [vmem:[%s2 + $0x878] sm:$0xff]
    %v322 = vld [vmem:[%s2 + $0x880] sm:$0xff]
    %v323 = vld [vmem:[%s2 + $0x888] sm:$0xff]
    %v324 = vld [vmem:[%s2 + $0x890] sm:$0xff]
    %v325 = vld [vmem:[%s2 + $0x898] sm:$0xff]
    %v326 = vld [vmem:[%s2 + $0x8a0] sm:$0xff]
    %v327 = vld [vmem:[%s2 + $0x8a8] sm:$0xff]
    %v328 = vld [vmem:[%s2 + $0x8b0] sm:$0xff]
    %v329 = vld [vmem:[%s2 + $0x8b8] sm:$0xff]
    %v330 = vld [vmem:[%s2 + $0x8c0] sm:$0xff]
    %v331 = vld [vmem:[%s2 + $0x8c8] sm:$0xff]
    %v332 = vld [vmem:[%s2 + $0x8d0] sm:$0xff]
    %v333 = vld [vmem:[%s2 + $0x8d8] sm:$0xff]
    %v334 = vld [vmem:[%s2 + $0x8e0] sm:$0xff]
    %v335 = vld [vmem:[%s2 + $0x8e8] sm:$0xff]
    %v336 = vld [vmem:[%s2 + $0x8f0] sm:$0xff]
    %v337 = vld [vmem:[%s2 + $0x8f8] sm:$0xff]
    %v338 = vld [vmem:[%s2 + $0x900] sm:$0xff]
    %v339 = vld [vmem:[%s2 + $0x908] sm:$0xff]
    %v340 = vld [vmem:[%s2 + $0x910] sm:$0xff]
    %v341 = vld [vmem:[%s2 + $0x918] sm:$0xff]
    %v342 = vld [vmem:[%s2 + $0x920] sm:$0xff]
    %v343 = vld [vmem:[%s2 + $0x928] sm:$0xff]
    %v344 = vld [vmem:[%s2 + $0x930] sm:$0xff]
    %v345 = vld [vmem:[%s2 + $0x938] sm:$0xff]
    %v346 = vld [vmem:[%s2 + $0x940] sm:$0xff]
    %v347 = vld [vmem:[%s2 + $0x948] sm:$0xff]
    %v348 = vld [vmem:[%s2 + $0x950] sm:$0xff]
    %v349 = vld [vmem:[%s2 + $0x958] sm:$0xff]
    %v350 = vld [vmem:[%s2 + $0x960] sm:$0xff]
    %v351 = vld [vmem:[%s2 + $0x968] sm:$0xff]
    %v352 = vld [vmem:[%s2 + $0x970] sm:$0xff]
    %v353 = vld [vmem:[%s2 + $0x978] sm:$0xff]
    %v354 = vld [vmem:[%s2 + $0x980] sm:$0xff]
    %v355 = vld [vmem:[%s2 + $0x988] sm:$0xff]
    %v356 = vld [vmem:[%s2 + $0x990] sm:$0xff]
    %v357 = vld [vmem:[%s2 + $0x998] sm:$0xff]
    %v358 = vld [vmem:[%s2 + $0x9a0] sm:$0xff]
    %v359 = vld [vmem:[%s2 + $0x9a8] sm:$0xff]
    %v360 = vld [vmem:[%s2 + $0x9b0] sm:$0xff]
    %v361 = vld [vmem:[%s2 + $0x9b8] sm:$0xff]
    %v362 = vld [vmem:[%s2 + $0x9c0] sm:$0xff]
    %v363 = vld [vmem:[%s2 + $0x9c8] sm:$0xff]
    %v364 = vld [vmem:[%s2 + $0x9d0] sm:$0xff]
    %v365 = vld [vmem:[%s2 + $0x9d8] sm:$0xff]
    %v366 = vld [vmem:[%s2 + $0x9e0] sm:$0xff]
    %v367 = vld [vmem:[%s2 + $0x9e8] sm:$0xff]
    %v368 = vld [vmem:[%s2 + $0x9f0] sm:$0xff]
    %v369 = vld [vmem:[%s2 + $0x9f8] sm:$0xff]
    %v370 = vld [vmem:[%s2 + $0xa00] sm:$0xff]
    %v371 = vld [vmem:[%s2 + $0xa08] sm:$0xff]
    %v372 = vld [vmem:[%s2 + $0xa10] sm:$0xff]
    %v373 = vld [vmem:[%s2 + $0xa18] sm:$0xff]
    %v374 = vld [vmem:[%s2 + $0xa20] sm:$0xff]
    %v375 = vld [vmem:[%s2 + $0xa28] sm:$0xff]
    %v376 = vld [vmem:[%s2 + $0xa30] sm:$0xff]
    %v377 = vld [vmem:[%s2 + $0xa38] sm:$0xff]
    %v378 = vld [vmem:[%s2 + $0xa40] sm:$0xff]
    %v379 = vld [vmem:[%s2 + $0xa48] sm:$0xff]
    %v380 = vld [vmem:[%s2 + $0xa50] sm:$0xff]
    %v381 = vld [vmem:[%s2 + $0xa58] sm:$0xff]
    %v382 = vld [vmem:[%s2 + $0xa60] sm:$0xff]
    %v383 = vld [vmem:[%s2 + $0xa68] sm:$0xff]
    %v384 = vld [vmem:[%s2 + $0xa70] sm:$0xff]
    %v385 = vld [vmem:[%s2 + $0xa78] sm:$0xff]
    %v386 = vld [vmem:[%s2 + $0xa80] sm:$0xff]
    %v387 = vld [vmem:[%s2 + $0xa88] sm:$0xff]
    %v388 = vld [vmem:[%s2 + $0xa90] sm:$0xff]
    %v389 = vld [vmem:[%s2 + $0xa98] sm:$0xff]
    %v390 = vld [vmem:[%s2 + $0xaa0] sm:$0xff]
    %v391 = vld [vmem:[%s2 + $0xaa8] sm:$0xff]
    %v392 = vld [vmem:[%s2 + $0xab0] sm:$0xff]
    %v393 = vld [vmem:[%s2 + $0xab8] sm:$0xff]
    %v394 = vld [vmem:[%s2 + $0xac0] sm:$0xff]
    %v395 = vld [vmem:[%s2 + $0xac8] sm:$0xff]
    %v396 = vld [vmem:[%s2 + $0xad0] sm:$0xff]
    %v397 = vld [vmem:[%s2 + $0xad8] sm:$0xff]
    %v398 = vld [vmem:[%s2 + $0xae0] sm:$0xff]
    %v399 = vld [vmem:[%s2 + $0xae8] sm:$0xff]
    %v400 = vld [vmem:[%s2 + $0xaf0] sm:$0xff]
    %v401 = vld [vmem:[%s2 + $0xaf8] sm:$0xff]
    %v402 = vld [vmem:[%s2 + $0xb00] sm:$0xff]
    %v403 = vld [vmem:[%s2 + $0xb08] sm:$0xff]
    %v404 = vld [vmem:[%s2 + $0xb10] sm:$0xff]
    %v405 = vld [vmem:[%s2 + $0xb18] sm:$0xff]
    %v406 = vld [vmem:[%s2 + $0xb20] sm:$0xff]
    %v407 = vld [vmem:[%s2 + $0xb28] sm:$0xff]
    %v408 = vld [vmem:[%s2 + $0xb30] sm:$0xff]
    %v409 = vld [vmem:[%s2 + $0xb38] sm:$0xff]
    %v410 = vld [vmem:[%s2 + $0xb40] sm:$0xff]
    %v411 = vld [vmem:[%s2 + $0xb48] sm:$0xff]
    %v412 = vld [vmem:[%s2 + $0xb50] sm:$0xff]
    %v413 = vld [vmem:[%s2 + $0xb58] sm:$0xff]
    %v414 = vld [vmem:[%s2 + $0xb60] sm:$0xff]
    %v415 = vld [vmem:[%s2 + $0xb68] sm:$0xff]
    %v416 = vld [vmem:[%s2 + $0xb70] sm:$0xff]
    %v417 = vld [vmem:[%s2 + $0xb78] sm:$0xff]
    %v418 = vld [vmem:[%s2 + $0xb80] sm:$0xff]
    %v419 = vld [vmem:[%s2 + $0xb88] sm:$0xff]
    %v420 = vld [vmem:[%s2 + $0xb90] sm:$0xff]
    %v421 = vld [vmem:[%s2 + $0xb98] sm:$0xff]
    %v422 = vld [vmem:[%s2 + $0xba0] sm:$0xff]
    %v423 = vld [vmem:[%s2 + $0xba8] sm:$0xff]
    %v424 = vld [vmem:[%s2 + $0xbb0] sm:$0xff]
    %v425 = vld [vmem:[%s2 + $0xbb8] sm:$0xff]
    %v426 = vld [vmem:[%s2 + $0xbc0] sm:$0xff]
    %v427 = vld [vmem:[%s2 + $0xbc8] sm:$0xff]
    %v428 = vld [vmem:[%s2 + $0xbd0] sm:$0xff]
    %v429 = vld [vmem:[%s2 + $0xbd8] sm:$0xff]
    %v430 = vld [vmem:[%s2 + $0xbe0] sm:$0xff]
    %v431 = vld [vmem:[%s2 + $0xbe8] sm:$0xff]
    %v432 = vld [vmem:[%s2 + $0xbf0] sm:$0xff]
    %v433 = vld [vmem:[%s2 + $0xbf8] sm:$0xff]
    %v434 = vld [vmem:[%s2 + $0xc00] sm:$0xff]
    %v435 = vld [vmem:[%s2 + $0xc08] sm:$0xff]
    %v436 = vld [vmem:[%s2 + $0xc10] sm:$0xff]
    %v437 = vld [vmem:[%s2 + $0xc18] sm:$0xff]
    %v438 = vld [vmem:[%s2 + $0xc20] sm:$0xff]
    %v439 = vld [vmem:[%s2 + $0xc28] sm:$0xff]
    %v440 = vld [vmem:[%s2 + $0xc30] sm:$0xff]
    %v441 = vld [vmem:[%s2 + $0xc38] sm:$0xff]
    %v442 = vld [vmem:[%s2 + $0xc40] sm:$0xff]
    %v443 = vld [vmem:[%s2 + $0xc48] sm:$0xff]
    %v444 = vld [vmem:[%s2 + $0xc50] sm:$0xff]
    %v445 = vld [vmem:[%s2 + $0xc58] sm:$0xff]
    %v446 = vld [vmem:[%s2 + $0xc60] sm:$0xff]
    %v447 = vld [vmem:[%s2 + $0xc68] sm:$0xff]
    %v448 = vld [vmem:[%s2 + $0xc70] sm:$0xff]
    %v449 = vld [vmem:[%s2 + $0xc78] sm:$0xff]
    %v450 = vld [vmem:[%s2 + $0xc80] sm:$0xff]
    %v451 = vld [vmem:[%s2 + $0xc88] sm:$0xff]
    %v452 = vld [vmem:[%s2 + $0xc90] sm:$0xff]
    %v453 = vld [vmem:[%s2 + $0xc98] sm:$0xff]
    %v454 = vld [vmem:[%s2 + $0xca0] sm:$0xff]
    %v455 = vld [vmem:[%s2 + $0xca8] sm:$0xff]
    %v456 = vld [vmem:[%s2 + $0xcb0] sm:$0xff]
    %v457 = vld [vmem:[%s2 + $0xcb8] sm:$0xff]
    %v458 = vld [vmem:[%s2 + $0xcc0] sm:$0xff]
    %v459 = vld [vmem:[%s2 + $0xcc8] sm:$0xff]
    %v460 = vld [vmem:[%s2 + $0xcd0] sm:$0xff]
    %v461 = vld [vmem:[%s2 + $0xcd8] sm:$0xff]
    %v462 = vld [vmem:[%s2 + $0xce0] sm:$0xff]
    %v463 = vld [vmem:[%s2 + $0xce8] sm:$0xff]
    %v464 = vld [vmem:[%s2 + $0xcf0] sm:$0xff]
    %v465 = vld [vmem:[%s2 + $0xcf8] sm:$0xff]
    %v466 = vld [vmem:[%s2 + $0xd00] sm:$0xff]
    %v467 = vld [vmem:[%s2 + $0xd08] sm:$0xff]
    %v468 = vld [vmem:[%s2 + $0xd10] sm:$0xff]
    %v469 = vld [vmem:[%s2 + $0xd18] sm:$0xff]
    %v470 = vld [vmem:[%s2 + $0xd20] sm:$0xff]
    %v471 = vld [vmem:[%s2 + $0xd28] sm:$0xff]
    %v472 = vld [vmem:[%s2 + $0xd30] sm:$0xff]
    %v473 = vld [vmem:[%s2 + $0xd38] sm:$0xff]
    %v474 = vld [vmem:[%s2 + $0xd40] sm:$0xff]
    %v475 = vld [vmem:[%s2 + $0xd48] sm:$0xff]
    %v476 = vld [vmem:[%s2 + $0xd50] sm:$0xff]
    %v477 = vld [vmem:[%s2 + $0xd58] sm:$0xff]
    %v478 = vld [vmem:[%s2 + $0xd60] sm:$0xff]
    %v479 = vld [vmem:[%s2 + $0xd68] sm:$0xff]
    %v480 = vld [vmem:[%s2 + $0xd70] sm:$0xff]
    %v481 = vld [vmem:[%s2 + $0xd78] sm:$0xff]
    %v482 = vld [vmem:[%s2 + $0xd80] sm:$0xff]
    %v483 = vld [vmem:[%s2 + $0xd88] sm:$0xff]
    %v484 = vld [vmem:[%s2 + $0xd90] sm:$0xff]
    %v485 = vld [vmem:[%s2 + $0xd98] sm:$0xff]
    %v486 = vld [vmem:[%s2 + $0xda0] sm:$0xff]
    %v487 = vld [vmem:[%s2 + $0xda8] sm:$0xff]
    %v488 = vld [vmem:[%s2 + $0xdb0] sm:$0xff]
    %v489 = vld [vmem:[%s2 + $0xdb8] sm:$0xff]
    %v490 = vld [vmem:[%s2 + $0xdc0] sm:$0xff]
    %v491 = vld [vmem:[%s2 + $0xdc8] sm:$0xff]
    %v492 = vld [vmem:[%s2 + $0xdd0] sm:$0xff]
    %v493 = vld [vmem:[%s2 + $0xdd8] sm:$0xff]
    %v494 = vld [vmem:[%s2 + $0xde0] sm:$0xff]
    %v495 = vld [vmem:[%s2 + $0xde8] sm:$0xff]
    %v496 = vld [vmem:[%s2 + $0xdf0] sm:$0xff]
    %v497 = vld [vmem:[%s2 + $0xdf8] sm:$0xff]
    %v498 = vld [vmem:[%s2 + $0xe00] sm:$0xff]
    %v499 = vld [vmem:[%s2 + $0xe08] sm:$0xff]
    %v500 = vld [vmem:[%s2 + $0xe10] sm:$0xff]
    %v501 = vld [vmem:[%s2 + $0xe18] sm:$0xff]
    %v502 = vld [vmem:[%s2 + $0xe20] sm:$0xff]
    %v503 = vld [vmem:[%s2 + $0xe28] sm:$0xff]
    %v504 = vld [vmem:[%s2 + $0xe30] sm:$0xff]
    %v505 = vld [vmem:[%s2 + $0xe38] sm:$0xff]
    %v506 = vld [vmem:[%s2 + $0xe40] sm:$0xff]
    %v507 = vld [vmem:[%s2 + $0xe48] sm:$0xff]
    %v508 = vld [vmem:[%s2 + $0xe50] sm:$0xff]
    %v509 = vld [vmem:[%s2 + $0xe58] sm:$0xff]
    %v510 = vld [vmem:[%s2 + $0xe60] sm:$0xff]
    %v511 = vld [vmem:[%s2 + $0xe68] sm:$0xff]
    %v512 = vld [vmem:[%s2 + $0xe70] sm:$0xff]
    %v513 = vld [vmem:[%s2 + $0xe78] sm:$0xff]
    %v514 = vld [vmem:[%s2 + $0xe80] sm:$0xff]
    %v515 = vld [vmem:[%s2 + $0xe88] sm:$0xff]
    %v516 = vld [vmem:[%s2 + $0xe90] sm:$0xff]
    %v517 = vld [vmem:[%s2 + $0xe98] sm:$0xff]
    %v518 = vld [vmem:[%s2 + $0xea0] sm:$0xff]
    %v519 = vld [vmem:[%s2 + $0xea8] sm:$0xff]
    %v520 = vld [vmem:[%s2 + $0xeb0] sm:$0xff]
    %v521 = vld [vmem:[%s2 + $0xeb8] sm:$0xff]
    %v522 = vld [vmem:[%s2 + $0xec0] sm:$0xff]
    %v523 = vld [vmem:[%s2 + $0xec8] sm:$0xff]
    %v524 = vld [vmem:[%s2 + $0xed0] sm:$0xff]
    %v525 = vld [vmem:[%s2 + $0xed8] sm:$0xff]
    %v526 = vld [vmem:[%s2 + $0xee0] sm:$0xff]
    %v527 = vld [vmem:[%s2 + $0xee8] sm:$0xff]
    %v528 = vld [vmem:[%s2 + $0xef0] sm:$0xff]
    %v529 = vld [vmem:[%s2 + $0xef8] sm:$0xff]
    %v530 = vld [vmem:[%s2 + $0xf00] sm:$0xff]
    %v531 = vld [vmem:[%s2 + $0xf08] sm:$0xff]
    %v532 = vld [vmem:[%s2 + $0xf10] sm:$0xff]
    %v533 = vld [vmem:[%s2 + $0xf18] sm:$0xff]
    %v534 = vld [vmem:[%s2 + $0xf20] sm:$0xff]
    %v535 = vld [vmem:[%s2 + $0xf28] sm:$0xff]
    %v536 = vld [vmem:[%s2 + $0xf30] sm:$0xff]
    %v537 = vld [vmem:[%s2 + $0xf38] sm:$0xff]
    %v538 = vld [vmem:[%s2 + $0xf40] sm:$0xff]
    %v539 = vld [vmem:[%s2 + $0xf48] sm:$0xff]
    %v540 = vld [vmem:[%s2 + $0xf50] sm:$0xff]
    %v541 = vld [vmem:[%s2 + $0xf58] sm:$0xff]
    %v542 = vld [vmem:[%s2 + $0xf60] sm:$0xff]
    %v543 = vld [vmem:[%s2 + $0xf68] sm:$0xff]
    %v544 = vld [vmem:[%s2 + $0xf70] sm:$0xff]
    %v545 = vld [vmem:[%s2 + $0xf78] sm:$0xff]
    %v546 = vld [vmem:[%s2 + $0xf80] sm:$0xff]
    %v547 = vld [vmem:[%s2 + $0xf88] sm:$0xff]
    %v548 = vld [vmem:[%s2 + $0xf90] sm:$0xff]
    %v549 = vld [vmem:[%s2 + $0xf98] sm:$0xff]
    %v550 = vld [vmem:[%s2 + $0xfa0] sm:$0xff]
    %v551 = vld [vmem:[%s2 + $0xfa8] sm:$0xff]
    %v552 = vld [vmem:[%s2 + $0xfb0] sm:$0xff]
    %v553 = vld [vmem:[%s2 + $0xfb8] sm:$0xff]
    %v554 = vld [vmem:[%s2 + $0xfc0] sm:$0xff]
    %v555 = vld [vmem:[%s2 + $0xfc8] sm:$0xff]
    %v556 = vld [vmem:[%s2 + $0xfd0] sm:$0xff]
    %v557 = vld [vmem:[%s2 + $0xfd8] sm:$0xff]
    %v558 = vld [vmem:[%s2 + $0xfe0] sm:$0xff]
    %v559 = vld [vmem:[%s2 + $0xfe8] sm:$0xff]
    %v560 = vld [vmem:[%s2 + $0xff0] sm:$0xff]
    %v561 = vld [vmem:[%s2 + $0xff8] sm:$0xff]
    %v562 = vld [vmem:[%s3] sm:$0x3]
    %v564 = vlaneseq
    %v565 = vshrl.u32 %v564, 7
    %v566 = vsub.s32 0, %v565
    %v567 = vrot.slane %v562, %v566
    %v568 = vlaneseq
    %v569 = vshrl.u32 %v568, 7
    %v570 = vsub.s32 1, %v569
    %v571 = vrot.slane %v562, %v570
    %v578 = vcombine.high %v46, %v46
    %v580 = vunpack.c.l.s4 1983009808
    %v581 = vunpack.c.0.s8 %v580
    %v582 = vlaneseq
    %v583 = vshrl.u32 %v582, 7
    %v584 = vsub.s32 %v581, %v583
    %v585 = vrot.slane %v46, %v584
    %v587 = vunpack.c.l.s4 1983009808
    %v588 = vunpack.c.0.s8 %v587
    %v589 = vlaneseq
    %v590 = vshrl.u32 %v589, 7
    %v591 = vsub.s32 %v588, %v590
    %v592 = vrot.slane %v578, %v591
    %v593 = vcombine.high %v585, %v585
    %v594 = vcombine.high %v592, %v592
    %v595 = vcombine.high %v47, %v47
    %v597 = vunpack.c.l.s4 1983009808
    %v598 = vunpack.c.0.s8 %v597
    %v599 = vlaneseq
    %v600 = vshrl.u32 %v599, 7
    %v601 = vsub.s32 %v598, %v600
    %v602 = vrot.slane %v47, %v601
    %v604 = vunpack.c.l.s4 1983009808
    %v605 = vunpack.c.0.s8 %v604
    %v606 = vlaneseq
    %v607 = vshrl.u32 %v606, 7
    %v608 = vsub.s32 %v605, %v607
    %v609 = vrot.slane %v595, %v608
    %v610 = vcombine.high %v602, %v602
    %v611 = vcombine.high %v609, %v609
    %v612 = vcombine.high %v48, %v48
    %v614 = vunpack.c.l.s4 1983009808
    %v615 = vunpack.c.0.s8 %v614
    %v616 = vlaneseq
    %v617 = vshrl.u32 %v616, 7
    %v618 = vsub.s32 %v615, %v617
    %v619 = vrot.slane %v48, %v618
    %v621 = vunpack.c.l.s4 1983009808
    %v622 = vunpack.c.0.s8 %v621
    %v623 = vlaneseq
    %v624 = vshrl.u32 %v623, 7
    %v625 = vsub.s32 %v622, %v624
    %v626 = vrot.slane %v612, %v625
    %v627 = vcombine.high %v619, %v619
    %v628 = vcombine.high %v626, %v626
    %v629 = vcombine.high %v49, %v49
    %v631 = vunpack.c.l.s4 1983009808
    %v632 = vunpack.c.0.s8 %v631
    %v633 = vlaneseq
    %v634 = vshrl.u32 %v633, 7
    %v635 = vsub.s32 %v632, %v634
    %v636 = vrot.slane %v49, %v635
    %v638 = vunpack.c.l.s4 1983009808
    %v639 = vunpack.c.0.s8 %v638
    %v640 = vlaneseq
    %v641 = vshrl.u32 %v640, 7
    %v642 = vsub.s32 %v639, %v641
    %v643 = vrot.slane %v629, %v642
    %v644 = vcombine.high %v636, %v636
    %v645 = vcombine.high %v643, %v643
    %662 = vmatprep.subr.mxu0 %v51
    %663 = vmatpush1.msra.mxu0 %v50
    %664 = vmatprep.subr.mxu0 %v53
    %665 = vmatpush1.msra.mxu0 %v52
    %666 = vmatprep.subr.mxu0 %v55
    %667 = vmatpush1.msra.mxu0 %v54
    %668 = vmatprep.subr.mxu0 %v57
    %669 = vmatpush1.msra.mxu0 %v56
    %670 = vmatprep.subr.mxu0 %v59
    %671 = vmatpush1.msra.mxu0 %v58
    %672 = vmatprep.subr.mxu0 %v61
    %673 = vmatpush1.msra.mxu0 %v60
    %674 = vmatprep.subr.mxu0 %v63
    %675 = vmatpush1.msra.mxu0 %v62
    %676 = vmatprep.subr.mxu0 %v65
    %677 = vmatpush1.msra.mxu0 %v64
    %678 = vmatprep.subr.mxu0 %v67
    %679 = vmatpush1.msra.mxu0 %v66
    %680 = vmatprep.subr.mxu0 %v69
    %681 = vmatpush1.msra.mxu0 %v68
    %682 = vmatprep.subr.mxu0 %v71
    %683 = vmatpush1.msra.mxu0 %v70
    %684 = vmatprep.subr.mxu0 %v73
    %685 = vmatpush1.msra.mxu0 %v72
    %686 = vmatprep.subr.mxu0 %v75
    %687 = vmatpush1.msra.mxu0 %v74
    %688 = vmatprep.subr.mxu0 %v77
    %689 = vmatpush1.msra.mxu0 %v76
    %690 = vmatprep.subr.mxu0 %v79
    %691 = vmatpush1.msra.mxu0 %v78
    %692 = vmatprep.subr.mxu0 %v81
    %693 = vmatpush1.msra.mxu0 %v80
    %694 = vmatprep.subr.mxu0 %v83
    %695 = vmatpush1.msra.mxu0 %v82
    %696 = vmatprep.subr.mxu0 %v85
    %697 = vmatpush1.msra.mxu0 %v84
    %698 = vmatprep.subr.mxu0 %v87
    %699 = vmatpush1.msra.mxu0 %v86
    %700 = vmatprep.subr.mxu0 %v89
    %701 = vmatpush1.msra.mxu0 %v88
    %702 = vmatprep.subr.mxu0 %v91
    %703 = vmatpush1.msra.mxu0 %v90
    %704 = vmatprep.subr.mxu0 %v93
    %705 = vmatpush1.msra.mxu0 %v92
    %706 = vmatprep.subr.mxu0 %v95
    %707 = vmatpush1.msra.mxu0 %v94
    %708 = vmatprep.subr.mxu0 %v97
    %709 = vmatpush1.msra.mxu0 %v96
    %710 = vmatprep.subr.mxu0 %v99
    %711 = vmatpush1.msra.mxu0 %v98
    %712 = vmatprep.subr.mxu0 %v101
    %713 = vmatpush1.msra.mxu0 %v100
    %714 = vmatprep.subr.mxu0 %v103
    %715 = vmatpush1.msra.mxu0 %v102
    %716 = vmatprep.subr.mxu0 %v105
    %717 = vmatpush1.msra.mxu0 %v104
    %718 = vmatprep.subr.mxu0 %v107
    %719 = vmatpush1.msra.mxu0 %v106
    %720 = vmatprep.subr.mxu0 %v109
    %721 = vmatpush1.msra.mxu0 %v108
    %722 = vmatprep.subr.mxu0 %v111
    %723 = vmatpush1.msra.mxu0 %v110
    %724 = vmatprep.subr.mxu0 %v113
    %725 = vmatpush1.msra.mxu0 %v112
    %726 = vmatprep.mubr.f32.mxu0 %v593
    %727 = vmatmul.mubr.f32.gmra.mrb[0].mxu0 %v585
    %v728 = vpop.f32.mrb[0].mxu0
    %v729 = vadd.f32 %v567, %v728
    %v730 = vpop.f32.mrb[0].mxu0
    %v731 = vadd.f32 %v571, %v730
    %732 = vdwg.mxu0
    %733 = vmatprep.subr.mxu0 %v115
    %734 = vmatpush1.msra.mxu0 %v114
    %735 = vmatprep.subr.mxu0 %v117
    %736 = vmatpush1.msra.mxu0 %v116
    %737 = vmatprep.subr.mxu0 %v119
    %738 = vmatpush1.msra.mxu0 %v118
    %739 = vmatprep.subr.mxu0 %v121
    %740 = vmatpush1.msra.mxu0 %v120
    %741 = vmatprep.subr.mxu0 %v123
    %742 = vmatpush1.msra.mxu0 %v122
    %743 = vmatprep.subr.mxu0 %v125
    %744 = vmatpush1.msra.mxu0 %v124
    %745 = vmatprep.subr.mxu0 %v127
    %746 = vmatpush1.msra.mxu0 %v126
    %747 = vmatprep.subr.mxu0 %v129
    %748 = vmatpush1.msra.mxu0 %v128
    %749 = vmatprep.subr.mxu0 %v131
    %750 = vmatpush1.msra.mxu0 %v130
    %751 = vmatprep.subr.mxu0 %v133
    %752 = vmatpush1.msra.mxu0 %v132
    %753 = vmatprep.subr.mxu0 %v135
    %754 = vmatpush1.msra.mxu0 %v134
    %755 = vmatprep.subr.mxu0 %v137
    %756 = vmatpush1.msra.mxu0 %v136
    %757 = vmatprep.subr.mxu0 %v139
    %758 = vmatpush1.msra.mxu0 %v138
    %759 = vmatprep.subr.mxu0 %v141
    %760 = vmatpush1.msra.mxu0 %v140
    %761 = vmatprep.subr.mxu0 %v143
    %762 = vmatpush1.msra.mxu0 %v142
    %763 = vmatprep.subr.mxu0 %v145
    %764 = vmatpush1.msra.mxu0 %v144
    %765 = vmatprep.subr.mxu0 %v147
    %766 = vmatpush1.msra.mxu0 %v146
    %767 = vmatprep.subr.mxu0 %v149
    %768 = vmatpush1.msra.mxu0 %v148
    %769 = vmatprep.subr.mxu0 %v151
    %770 = vmatpush1.msra.mxu0 %v150
    %771 = vmatprep.subr.mxu0 %v153
    %772 = vmatpush1.msra.mxu0 %v152
    %773 = vmatprep.subr.mxu0 %v155
    %774 = vmatpush1.msra.mxu0 %v154
    %775 = vmatprep.subr.mxu0 %v157
    %776 = vmatpush1.msra.mxu0 %v156
    %777 = vmatprep.subr.mxu0 %v159
    %778 = vmatpush1.msra.mxu0 %v158
    %779 = vmatprep.subr.mxu0 %v161
    %780 = vmatpush1.msra.mxu0 %v160
    %781 = vmatprep.subr.mxu0 %v163
    %782 = vmatpush1.msra.mxu0 %v162
    %783 = vmatprep.subr.mxu0 %v165
    %784 = vmatpush1.msra.mxu0 %v164
    %785 = vmatprep.subr.mxu0 %v167
    %786 = vmatpush1.msra.mxu0 %v166
    %787 = vmatprep.subr.mxu0 %v169
    %788 = vmatpush1.msra.mxu0 %v168
    %789 = vmatprep.subr.mxu0 %v171
    %790 = vmatpush1.msra.mxu0 %v170
    %791 = vmatprep.subr.mxu0 %v173
    %792 = vmatpush1.msra.mxu0 %v172
    %793 = vmatprep.subr.mxu0 %v175
    %794 = vmatpush1.msra.mxu0 %v174
    %795 = vmatprep.subr.mxu0 %v177
    %796 = vmatpush1.msra.mxu0 %v176
    %797 = vmatprep.mubr.f32.mxu0 %v594
    %798 = vmatmul.mubr.f32.gmra.mrb[0].mxu0 %v592
    %v799 = vpop.f32.mrb[0].mxu0
    %v800 = vadd.f32 %v729, %v799
    %v801 = vpop.f32.mrb[0].mxu0
    %v802 = vadd.f32 %v731, %v801
    %803 = vdwg.mxu0
    %804 = vmatprep.subr.mxu0 %v179
    %805 = vmatpush1.msra.mxu0 %v178
    %806 = vmatprep.subr.mxu0 %v181
    %807 = vmatpush1.msra.mxu0 %v180
    %808 = vmatprep.subr.mxu0 %v183
    %809 = vmatpush1.msra.mxu0 %v182
    %810 = vmatprep.subr.mxu0 %v185
    %811 = vmatpush1.msra.mxu0 %v184
    %812 = vmatprep.subr.mxu0 %v187
    %813 = vmatpush1.msra.mxu0 %v186
    %814 = vmatprep.subr.mxu0 %v189
    %815 = vmatpush1.msra.mxu0 %v188
    %816 = vmatprep.subr.mxu0 %v191
    %817 = vmatpush1.msra.mxu0 %v190
    %818 = vmatprep.subr.mxu0 %v193
    %819 = vmatpush1.msra.mxu0 %v192
    %820 = vmatprep.subr.mxu0 %v195
    %821 = vmatpush1.msra.mxu0 %v194
    %822 = vmatprep.subr.mxu0 %v197
    %823 = vmatpush1.msra.mxu0 %v196
    %824 = vmatprep.subr.mxu0 %v199
    %825 = vmatpush1.msra.mxu0 %v198
    %826 = vmatprep.subr.mxu0 %v201
    %827 = vmatpush1.msra.mxu0 %v200
    %828 = vmatprep.subr.mxu0 %v203
    %829 = vmatpush1.msra.mxu0 %v202
    %830 = vmatprep.subr.mxu0 %v205
    %831 = vmatpush1.msra.mxu0 %v204
    %832 = vmatprep.subr.mxu0 %v207
    %833 = vmatpush1.msra.mxu0 %v206
    %834 = vmatprep.subr.mxu0 %v209
    %835 = vmatpush1.msra.mxu0 %v208
    %836 = vmatprep.subr.mxu0 %v211
    %837 = vmatpush1.msra.mxu0 %v210
    %838 = vmatprep.subr.mxu0 %v213
    %839 = vmatpush1.msra.mxu0 %v212
    %840 = vmatprep.subr.mxu0 %v215
    %841 = vmatpush1.msra.mxu0 %v214
    %842 = vmatprep.subr.mxu0 %v217
    %843 = vmatpush1.msra.mxu0 %v216
    %844 = vmatprep.subr.mxu0 %v219
    %845 = vmatpush1.msra.mxu0 %v218
    %846 = vmatprep.subr.mxu0 %v221
    %847 = vmatpush1.msra.mxu0 %v220
    %848 = vmatprep.subr.mxu0 %v223
    %849 = vmatpush1.msra.mxu0 %v222
    %850 = vmatprep.subr.mxu0 %v225
    %851 = vmatpush1.msra.mxu0 %v224
    %852 = vmatprep.subr.mxu0 %v227
    %853 = vmatpush1.msra.mxu0 %v226
    %854 = vmatprep.subr.mxu0 %v229
    %855 = vmatpush1.msra.mxu0 %v228
    %856 = vmatprep.subr.mxu0 %v231
    %857 = vmatpush1.msra.mxu0 %v230
    %858 = vmatprep.subr.mxu0 %v233
    %859 = vmatpush1.msra.mxu0 %v232
    %860 = vmatprep.subr.mxu0 %v235
    %861 = vmatpush1.msra.mxu0 %v234
    %862 = vmatprep.subr.mxu0 %v237
    %863 = vmatpush1.msra.mxu0 %v236
    %864 = vmatprep.subr.mxu0 %v239
    %865 = vmatpush1.msra.mxu0 %v238
    %866 = vmatprep.subr.mxu0 %v241
    %867 = vmatpush1.msra.mxu0 %v240
    %868 = vmatprep.mubr.f32.mxu0 %v610
    %869 = vmatmul.mubr.f32.gmra.mrb[0].mxu0 %v602
    %v870 = vpop.f32.mrb[0].mxu0
    %v871 = vadd.f32 %v800, %v870
    %v872 = vpop.f32.mrb[0].mxu0
    %v873 = vadd.f32 %v802, %v872
    %874 = vdwg.mxu0
    %875 = vmatprep.subr.mxu0 %v243
    %876 = vmatpush1.msra.mxu0 %v242
    %877 = vmatprep.subr.mxu0 %v245
    %878 = vmatpush1.msra.mxu0 %v244
    %879 = vmatprep.subr.mxu0 %v247
    %880 = vmatpush1.msra.mxu0 %v246
    %881 = vmatprep.subr.mxu0 %v249
    %882 = vmatpush1.msra.mxu0 %v248
    %883 = vmatprep.subr.mxu0 %v251
    %884 = vmatpush1.msra.mxu0 %v250
    %885 = vmatprep.subr.mxu0 %v253
    %886 = vmatpush1.msra.mxu0 %v252
    %887 = vmatprep.subr.mxu0 %v255
    %888 = vmatpush1.msra.mxu0 %v254
    %889 = vmatprep.subr.mxu0 %v257
    %890 = vmatpush1.msra.mxu0 %v256
    %891 = vmatprep.subr.mxu0 %v259
    %892 = vmatpush1.msra.mxu0 %v258
    %893 = vmatprep.subr.mxu0 %v261
    %894 = vmatpush1.msra.mxu0 %v260
    %895 = vmatprep.subr.mxu0 %v263
    %896 = vmatpush1.msra.mxu0 %v262
    %897 = vmatprep.subr.mxu0 %v265
    %898 = vmatpush1.msra.mxu0 %v264
    %899 = vmatprep.subr.mxu0 %v267
    %900 = vmatpush1.msra.mxu0 %v266
    %901 = vmatprep.subr.mxu0 %v269
    %902 = vmatpush1.msra.mxu0 %v268
    %903 = vmatprep.subr.mxu0 %v271
    %904 = vmatpush1.msra.mxu0 %v270
    %905 = vmatprep.subr.mxu0 %v273
    %906 = vmatpush1.msra.mxu0 %v272
    %907 = vmatprep.subr.mxu0 %v275
    %908 = vmatpush1.msra.mxu0 %v274
    %909 = vmatprep.subr.mxu0 %v277
    %910 = vmatpush1.msra.mxu0 %v276
    %911 = vmatprep.subr.mxu0 %v279
    %912 = vmatpush1.msra.mxu0 %v278
    %913 = vmatprep.subr.mxu0 %v281
    %914 = vmatpush1.msra.mxu0 %v280
    %915 = vmatprep.subr.mxu0 %v283
    %916 = vmatpush1.msra.mxu0 %v282
    %917 = vmatprep.subr.mxu0 %v285
    %918 = vmatpush1.msra.mxu0 %v284
    %919 = vmatprep.subr.mxu0 %v287
    %920 = vmatpush1.msra.mxu0 %v286
    %921 = vmatprep.subr.mxu0 %v289
    %922 = vmatpush1.msra.mxu0 %v288
    %923 = vmatprep.subr.mxu0 %v291
    %924 = vmatpush1.msra.mxu0 %v290
    %925 = vmatprep.subr.mxu0 %v293
    %926 = vmatpush1.msra.mxu0 %v292
    %927 = vmatprep.subr.mxu0 %v295
    %928 = vmatpush1.msra.mxu0 %v294
    %929 = vmatprep.subr.mxu0 %v297
    %930 = vmatpush1.msra.mxu0 %v296
    %931 = vmatprep.subr.mxu0 %v299
    %932 = vmatpush1.msra.mxu0 %v298
    %933 = vmatprep.subr.mxu0 %v301
    %934 = vmatpush1.msra.mxu0 %v300
    %935 = vmatprep.subr.mxu0 %v303
    %936 = vmatpush1.msra.mxu0 %v302
    %937 = vmatprep.subr.mxu0 %v305
    %938 = vmatpush1.msra.mxu0 %v304
    %939 = vmatprep.mubr.f32.mxu0 %v611
    %940 = vmatmul.mubr.f32.gmra.mrb[0].mxu0 %v609
    %v941 = vpop.f32.mrb[0].mxu0
    %v942 = vadd.f32 %v871, %v941
    %v943 = vpop.f32.mrb[0].mxu0
    %v944 = vadd.f32 %v873, %v943
    %945 = vdwg.mxu0
    %946 = vmatprep.subr.mxu0 %v307
    %947 = vmatpush1.msra.mxu0 %v306
    %948 = vmatprep.subr.mxu0 %v309
    %949 = vmatpush1.msra.mxu0 %v308
    %950 = vmatprep.subr.mxu0 %v311
    %951 = vmatpush1.msra.mxu0 %v310
    %952 = vmatprep.subr.mxu0 %v313
    %953 = vmatpush1.msra.mxu0 %v312
    %954 = vmatprep.subr.mxu0 %v315
    %955 = vmatpush1.msra.mxu0 %v314
    %956 = vmatprep.subr.mxu0 %v317
    %957 = vmatpush1.msra.mxu0 %v316
    %958 = vmatprep.subr.mxu0 %v319
    %959 = vmatpush1.msra.mxu0 %v318
    %960 = vmatprep.subr.mxu0 %v321
    %961 = vmatpush1.msra.mxu0 %v320
    %962 = vmatprep.subr.mxu0 %v323
    %963 = vmatpush1.msra.mxu0 %v322
    %964 = vmatprep.subr.mxu0 %v325
    %965 = vmatpush1.msra.mxu0 %v324
    %966 = vmatprep.subr.mxu0 %v327
    %967 = vmatpush1.msra.mxu0 %v326
    %968 = vmatprep.subr.mxu0 %v329
    %969 = vmatpush1.msra.mxu0 %v328
    %970 = vmatprep.subr.mxu0 %v331
    %971 = vmatpush1.msra.mxu0 %v330
    %972 = vmatprep.subr.mxu0 %v333
    %973 = vmatpush1.msra.mxu0 %v332
    %974 = vmatprep.subr.mxu0 %v335
    %975 = vmatpush1.msra.mxu0 %v334
    %976 = vmatprep.subr.mxu0 %v337
    %977 = vmatpush1.msra.mxu0 %v336
    %978 = vmatprep.subr.mxu0 %v339
    %979 = vmatpush1.msra.mxu0 %v338
    %980 = vmatprep.subr.mxu0 %v341
    %981 = vmatpush1.msra.mxu0 %v340
    %982 = vmatprep.subr.mxu0 %v343
    %983 = vmatpush1.msra.mxu0 %v342
    %984 = vmatprep.subr.mxu0 %v345
    %985 = vmatpush1.msra.mxu0 %v344
    %986 = vmatprep.subr.mxu0 %v347
    %987 = vmatpush1.msra.mxu0 %v346
    %988 = vmatprep.subr.mxu0 %v349
    %989 = vmatpush1.msra.mxu0 %v348
    %990 = vmatprep.subr.mxu0 %v351
    %991 = vmatpush1.msra.mxu0 %v350
    %992 = vmatprep.subr.mxu0 %v353
    %993 = vmatpush1.msra.mxu0 %v352
    %994 = vmatprep.subr.mxu0 %v355
    %995 = vmatpush1.msra.mxu0 %v354
    %996 = vmatprep.subr.mxu0 %v357
    %997 = vmatpush1.msra.mxu0 %v356
    %998 = vmatprep.subr.mxu0 %v359
    %999 = vmatpush1.msra.mxu0 %v358
    %1000 = vmatprep.subr.mxu0 %v361
    %1001 = vmatpush1.msra.mxu0 %v360
    %1002 = vmatprep.subr.mxu0 %v363
    %1003 = vmatpush1.msra.mxu0 %v362
    %1004 = vmatprep.subr.mxu0 %v365
    %1005 = vmatpush1.msra.mxu0 %v364
    %1006 = vmatprep.subr.mxu0 %v367
    %1007 = vmatpush1.msra.mxu0 %v366
    %1008 = vmatprep.subr.mxu0 %v369
    %1009 = vmatpush1.msra.mxu0 %v368
    %1010 = vmatprep.mubr.f32.mxu0 %v627
    %1011 = vmatmul.mubr.f32.gmra.mrb[0].mxu0 %v619
    %v1012 = vpop.f32.mrb[0].mxu0
    %v1013 = vadd.f32 %v942, %v1012
    %v1014 = vpop.f32.mrb[0].mxu0
    %v1015 = vadd.f32 %v944, %v1014
    %1016 = vdwg.mxu0
    %1017 = vmatprep.subr.mxu0 %v371
    %1018 = vmatpush1.msra.mxu0 %v370
    %1019 = vmatprep.subr.mxu0 %v373
    %1020 = vmatpush1.msra.mxu0 %v372
    %1021 = vmatprep.subr.mxu0 %v375
    %1022 = vmatpush1.msra.mxu0 %v374
    %1023 = vmatprep.subr.mxu0 %v377
    %1024 = vmatpush1.msra.mxu0 %v376
    %1025 = vmatprep.subr.mxu0 %v379
    %1026 = vmatpush1.msra.mxu0 %v378
    %1027 = vmatprep.subr.mxu0 %v381
    %1028 = vmatpush1.msra.mxu0 %v380
    %1029 = vmatprep.subr.mxu0 %v383
    %1030 = vmatpush1.msra.mxu0 %v382
    %1031 = vmatprep.subr.mxu0 %v385
    %1032 = vmatpush1.msra.mxu0 %v384
    %1033 = vmatprep.subr.mxu0 %v387
    %1034 = vmatpush1.msra.mxu0 %v386
    %1035 = vmatprep.subr.mxu0 %v389
    %1036 = vmatpush1.msra.mxu0 %v388
    %1037 = vmatprep.subr.mxu0 %v391
    %1038 = vmatpush1.msra.mxu0 %v390
    %1039 = vmatprep.subr.mxu0 %v393
    %1040 = vmatpush1.msra.mxu0 %v392
    %1041 = vmatprep.subr.mxu0 %v395
    %1042 = vmatpush1.msra.mxu0 %v394
    %1043 = vmatprep.subr.mxu0 %v397
    %1044 = vmatpush1.msra.mxu0 %v396
    %1045 = vmatprep.subr.mxu0 %v399
    %1046 = vmatpush1.msra.mxu0 %v398
    %1047 = vmatprep.subr.mxu0 %v401
    %1048 = vmatpush1.msra.mxu0 %v400
    %1049 = vmatprep.subr.mxu0 %v403
    %1050 = vmatpush1.msra.mxu0 %v402
    %1051 = vmatprep.subr.mxu0 %v405
    %1052 = vmatpush1.msra.mxu0 %v404
    %1053 = vmatprep.subr.mxu0 %v407
    %1054 = vmatpush1.msra.mxu0 %v406
    %1055 = vmatprep.subr.mxu0 %v409
    %1056 = vmatpush1.msra.mxu0 %v408
    %1057 = vmatprep.subr.mxu0 %v411
    %1058 = vmatpush1.msra.mxu0 %v410
    %1059 = vmatprep.subr.mxu0 %v413
    %1060 = vmatpush1.msra.mxu0 %v412
    %1061 = vmatprep.subr.mxu0 %v415
    %1062 = vmatpush1.msra.mxu0 %v414
    %1063 = vmatprep.subr.mxu0 %v417
    %1064 = vmatpush1.msra.mxu0 %v416
    %1065 = vmatprep.subr.mxu0 %v419
    %1066 = vmatpush1.msra.mxu0 %v418
    %1067 = vmatprep.subr.mxu0 %v421
    %1068 = vmatpush1.msra.mxu0 %v420
    %1069 = vmatprep.subr.mxu0 %v423
    %1070 = vmatpush1.msra.mxu0 %v422
    %1071 = vmatprep.subr.mxu0 %v425
    %1072 = vmatpush1.msra.mxu0 %v424
    %1073 = vmatprep.subr.mxu0 %v427
    %1074 = vmatpush1.msra.mxu0 %v426
    %1075 = vmatprep.subr.mxu0 %v429
    %1076 = vmatpush1.msra.mxu0 %v428
    %1077 = vmatprep.subr.mxu0 %v431
    %1078 = vmatpush1.msra.mxu0 %v430
    %1079 = vmatprep.subr.mxu0 %v433
    %1080 = vmatpush1.msra.mxu0 %v432
    %1081 = vmatprep.mubr.f32.mxu0 %v628
    %1082 = vmatmul.mubr.f32.gmra.mrb[0].mxu0 %v626
    %v1083 = vpop.f32.mrb[0].mxu0
    %v1084 = vadd.f32 %v1013, %v1083
    %v1085 = vpop.f32.mrb[0].mxu0
    %v1086 = vadd.f32 %v1015, %v1085
    %1087 = vdwg.mxu0
    %1088 = vmatprep.subr.mxu0 %v435
    %1089 = vmatpush1.msra.mxu0 %v434
    %1090 = vmatprep.subr.mxu0 %v437
    %1091 = vmatpush1.msra.mxu0 %v436
    %1092 = vmatprep.subr.mxu0 %v439
    %1093 = vmatpush1.msra.mxu0 %v438
    %1094 = vmatprep.subr.mxu0 %v441
    %1095 = vmatpush1.msra.mxu0 %v440
    %1096 = vmatprep.subr.mxu0 %v443
    %1097 = vmatpush1.msra.mxu0 %v442
    %1098 = vmatprep.subr.mxu0 %v445
    %1099 = vmatpush1.msra.mxu0 %v444
    %1100 = vmatprep.subr.mxu0 %v447
    %1101 = vmatpush1.msra.mxu0 %v446
    %1102 = vmatprep.subr.mxu0 %v449
    %1103 = vmatpush1.msra.mxu0 %v448
    %1104 = vmatprep.subr.mxu0 %v451
    %1105 = vmatpush1.msra.mxu0 %v450
    %1106 = vmatprep.subr.mxu0 %v453
    %1107 = vmatpush1.msra.mxu0 %v452
    %1108 = vmatprep.subr.mxu0 %v455
    %1109 = vmatpush1.msra.mxu0 %v454
    %1110 = vmatprep.subr.mxu0 %v457
    %1111 = vmatpush1.msra.mxu0 %v456
    %1112 = vmatprep.subr.mxu0 %v459
    %1113 = vmatpush1.msra.mxu0 %v458
    %1114 = vmatprep.subr.mxu0 %v461
    %1115 = vmatpush1.msra.mxu0 %v460
    %1116 = vmatprep.subr.mxu0 %v463
    %1117 = vmatpush1.msra.mxu0 %v462
    %1118 = vmatprep.subr.mxu0 %v465
    %1119 = vmatpush1.msra.mxu0 %v464
    %1120 = vmatprep.subr.mxu0 %v467
    %1121 = vmatpush1.msra.mxu0 %v466
    %1122 = vmatprep.subr.mxu0 %v469
    %1123 = vmatpush1.msra.mxu0 %v468
    %1124 = vmatprep.subr.mxu0 %v471
    %1125 = vmatpush1.msra.mxu0 %v470
    %1126 = vmatprep.subr.mxu0 %v473
    %1127 = vmatpush1.msra.mxu0 %v472
    %1128 = vmatprep.subr.mxu0 %v475
    %1129 = vmatpush1.msra.mxu0 %v474
    %1130 = vmatprep.subr.mxu0 %v477
    %1131 = vmatpush1.msra.mxu0 %v476
    %1132 = vmatprep.subr.mxu0 %v479
    %1133 = vmatpush1.msra.mxu0 %v478
    %1134 = vmatprep.subr.mxu0 %v481
    %1135 = vmatpush1.msra.mxu0 %v480
    %1136 = vmatprep.subr.mxu0 %v483
    %1137 = vmatpush1.msra.mxu0 %v482
    %1138 = vmatprep.subr.mxu0 %v485
    %1139 = vmatpush1.msra.mxu0 %v484
    %1140 = vmatprep.subr.mxu0 %v487
    %1141 = vmatpush1.msra.mxu0 %v486
    %1142 = vmatprep.subr.mxu0 %v489
    %1143 = vmatpush1.msra.mxu0 %v488
    %1144 = vmatprep.subr.mxu0 %v491
    %1145 = vmatpush1.msra.mxu0 %v490
    %1146 = vmatprep.subr.mxu0 %v493
    %1147 = vmatpush1.msra.mxu0 %v492
    %1148 = vmatprep.subr.mxu0 %v495
    %1149 = vmatpush1.msra.mxu0 %v494
    %1150 = vmatprep.subr.mxu0 %v497
    %1151 = vmatpush1.msra.mxu0 %v496
    %1152 = vmatprep.mubr.f32.mxu0 %v644
    %1153 = vmatmul.mubr.f32.gmra.mrb[0].mxu0 %v636
    %v1154 = vpop.f32.mrb[0].mxu0
    %v1155 = vadd.f32 %v1084, %v1154
    %v1156 = vpop.f32.mrb[0].mxu0
    %v1157 = vadd.f32 %v1086, %v1156
    %1158 = vdwg.mxu0
    %1159 = vmatprep.subr.mxu0 %v499
    %1160 = vmatpush1.msra.mxu0 %v498
    %1161 = vmatprep.subr.mxu0 %v501
    %1162 = vmatpush1.msra.mxu0 %v500
    %1163 = vmatprep.subr.mxu0 %v503
    %1164 = vmatpush1.msra.mxu0 %v502
    %1165 = vmatprep.subr.mxu0 %v505
    %1166 = vmatpush1.msra.mxu0 %v504
    %1167 = vmatprep.subr.mxu0 %v507
    %1168 = vmatpush1.msra.mxu0 %v506
    %1169 = vmatprep.subr.mxu0 %v509
    %1170 = vmatpush1.msra.mxu0 %v508
    %1171 = vmatprep.subr.mxu0 %v511
    %1172 = vmatpush1.msra.mxu0 %v510
    %1173 = vmatprep.subr.mxu0 %v513
    %1174 = vmatpush1.msra.mxu0 %v512
    %1175 = vmatprep.subr.mxu0 %v515
    %1176 = vmatpush1.msra.mxu0 %v514
    %1177 = vmatprep.subr.mxu0 %v517
    %1178 = vmatpush1.msra.mxu0 %v516
    %1179 = vmatprep.subr.mxu0 %v519
    %1180 = vmatpush1.msra.mxu0 %v518
    %1181 = vmatprep.subr.mxu0 %v521
    %1182 = vmatpush1.msra.mxu0 %v520
    %1183 = vmatprep.subr.mxu0 %v523
    %1184 = vmatpush1.msra.mxu0 %v522
    %1185 = vmatprep.subr.mxu0 %v525
    %1186 = vmatpush1.msra.mxu0 %v524
    %1187 = vmatprep.subr.mxu0 %v527
    %1188 = vmatpush1.msra.mxu0 %v526
    %1189 = vmatprep.subr.mxu0 %v529
    %1190 = vmatpush1.msra.mxu0 %v528
    %1191 = vmatprep.subr.mxu0 %v531
    %1192 = vmatpush1.msra.mxu0 %v530
    %1193 = vmatprep.subr.mxu0 %v533
    %1194 = vmatpush1.msra.mxu0 %v532
    %1195 = vmatprep.subr.mxu0 %v535
    %1196 = vmatpush1.msra.mxu0 %v534
    %1197 = vmatprep.subr.mxu0 %v537
    %1198 = vmatpush1.msra.mxu0 %v536
    %1199 = vmatprep.subr.mxu0 %v539
    %1200 = vmatpush1.msra.mxu0 %v538
    %1201 = vmatprep.subr.mxu0 %v541
    %1202 = vmatpush1.msra.mxu0 %v540
    %1203 = vmatprep.subr.mxu0 %v543
    %1204 = vmatpush1.msra.mxu0 %v542
    %1205 = vmatprep.subr.mxu0 %v545
    %1206 = vmatpush1.msra.mxu0 %v544
    %1207 = vmatprep.subr.mxu0 %v547
    %1208 = vmatpush1.msra.mxu0 %v546
    %1209 = vmatprep.subr.mxu0 %v549
    %1210 = vmatpush1.msra.mxu0 %v548
    %1211 = vmatprep.subr.mxu0 %v551
    %1212 = vmatpush1.msra.mxu0 %v550
    %1213 = vmatprep.subr.mxu0 %v553
    %1214 = vmatpush1.msra.mxu0 %v552
    %1215 = vmatprep.subr.mxu0 %v555
    %1216 = vmatpush1.msra.mxu0 %v554
    %1217 = vmatprep.subr.mxu0 %v557
    %1218 = vmatpush1.msra.mxu0 %v556
    %1219 = vmatprep.subr.mxu0 %v559
    %1220 = vmatpush1.msra.mxu0 %v558
    %1221 = vmatprep.subr.mxu0 %v561
    %1222 = vmatpush1.msra.mxu0 %v560
    %1223 = vmatprep.mubr.f32.mxu0 %v645
    %1224 = vmatmul.mubr.f32.gmra.mrb[0].mxu0 %v643
    %v1225 = vpop.f32.mrb[0].mxu0
    %v1226 = vadd.f32 %v1155, %v1225
    %v1227 = vpop.f32.mrb[0].mxu0
    %v1228 = vadd.f32 %v1157, %v1227
    %1229 = vdwg.mxu0
    %v1230 = vmax.f32 %v1226, 0.0
    %v1231 = vmax.f32 %v1228, 0.0
    %v1232 = vld [vmem:[%s4] sm:$0xff]
    %v1233 = vld [vmem:[%s4 + $0x8] sm:$0xff]
    %v1234 = vld [vmem:[%s4 + $0x10] sm:$0xff]
    %v1235 = vld [vmem:[%s4 + $0x18] sm:$0xff]
    %v1236 = vld [vmem:[%s4 + $0x20] sm:$0xff]
    %v1237 = vld [vmem:[%s4 + $0x28] sm:$0xff]
    %v1238 = vld [vmem:[%s4 + $0x30] sm:$0xff]
    %v1239 = vld [vmem:[%s4 + $0x38] sm:$0xff]
    %v1240 = vld [vmem:[%s4 + $0x40] sm:$0xff]
    %v1241 = vld [vmem:[%s4 + $0x48] sm:$0xff]
    %v1242 = vld [vmem:[%s4 + $0x50] sm:$0xff]
    %v1243 = vld [vmem:[%s4 + $0x58] sm:$0xff]
    %v1244 = vld [vmem:[%s4 + $0x60] sm:$0xff]
    %v1245 = vld [vmem:[%s4 + $0x68] sm:$0xff]
    %v1246 = vld [vmem:[%s4 + $0x70] sm:$0xff]
    %v1247 = vld [vmem:[%s4 + $0x78] sm:$0xff]
    %v1248 = vld [vmem:[%s4 + $0x80] sm:$0xff]
    %v1249 = vld [vmem:[%s4 + $0x88] sm:$0xff]
    %v1250 = vld [vmem:[%s4 + $0x90] sm:$0xff]
    %v1251 = vld [vmem:[%s4 + $0x98] sm:$0xff]
    %v1252 = vld [vmem:[%s4 + $0xa0] sm:$0xff]
    %v1253 = vld [vmem:[%s4 + $0xa8] sm:$0xff]
    %v1254 = vld [vmem:[%s4 + $0xb0] sm:$0xff]
    %v1255 = vld [vmem:[%s4 + $0xb8] sm:$0xff]
    %v1256 = vld [vmem:[%s4 + $0xc0] sm:$0xff]
    %v1257 = vld [vmem:[%s4 + $0xc8] sm:$0xff]
    %v1258 = vld [vmem:[%s4 + $0xd0] sm:$0xff]
    %v1259 = vld [vmem:[%s4 + $0xd8] sm:$0xff]
    %v1260 = vld [vmem:[%s4 + $0xe0] sm:$0xff]
    %v1261 = vld [vmem:[%s4 + $0xe8] sm:$0xff]
    %v1262 = vld [vmem:[%s4 + $0xf0] sm:$0xff]
    %v1263 = vld [vmem:[%s4 + $0xf8] sm:$0xff]
    %v1264 = vld [vmem:[%s5] sm:$0x1]
    %v1266 = vlaneseq
    %v1267 = vshrl.u32 %v1266, 7
    %v1268 = vsub.s32 0, %v1267
    %v1269 = vrot.slane %v1264, %v1268
    %1271 = vmatprep.subr.mxu0 0.0
    %1272 = vmatpush1.msra.mxu0 %v1232
    %1273 = vmatprep.subr.mxu0 0.0
    %1274 = vmatpush1.msra.mxu0 %v1233
    %1275 = vmatprep.subr.mxu0 0.0
    %1276 = vmatpush1.msra.mxu0 %v1234
    %1277 = vmatprep.subr.mxu0 0.0
    %1278 = vmatpush1.msra.mxu0 %v1235
    %1279 = vmatprep.subr.mxu0 0.0
    %1280 = vmatpush1.msra.mxu0 %v1236
    %1281 = vmatprep.subr.mxu0 0.0
    %1282 = vmatpush1.msra.mxu0 %v1237
    %1283 = vmatprep.subr.mxu0 0.0
    %1284 = vmatpush1.msra.mxu0 %v1238
    %1285 = vmatprep.subr.mxu0 0.0
    %1286 = vmatpush1.msra.mxu0 %v1239
    %1287 = vmatprep.subr.mxu0 0.0
    %1288 = vmatpush1.msra.mxu0 %v1240
    %1289 = vmatprep.subr.mxu0 0.0
    %1290 = vmatpush1.msra.mxu0 %v1241
    %1291 = vmatprep.subr.mxu0 0.0
    %1292 = vmatpush1.msra.mxu0 %v1242
    %1293 = vmatprep.subr.mxu0 0.0
    %1294 = vmatpush1.msra.mxu0 %v1243
    %1295 = vmatprep.subr.mxu0 0.0
    %1296 = vmatpush1.msra.mxu0 %v1244
    %1297 = vmatprep.subr.mxu0 0.0
    %1298 = vmatpush1.msra.mxu0 %v1245
    %1299 = vmatprep.subr.mxu0 0.0
    %1300 = vmatpush1.msra.mxu0 %v1246
    %1301 = vmatprep.subr.mxu0 0.0
    %1302 = vmatpush1.msra.mxu0 %v1247
    %1303 = vmatprep.subr.mxu0 0.0
    %1304 = vmatpush1.msra.mxu0 %v1248
    %1305 = vmatprep.subr.mxu0 0.0
    %1306 = vmatpush1.msra.mxu0 %v1249
    %1307 = vmatprep.subr.mxu0 0.0
    %1308 = vmatpush1.msra.mxu0 %v1250
    %1309 = vmatprep.subr.mxu0 0.0
    %1310 = vmatpush1.msra.mxu0 %v1251
    %1311 = vmatprep.subr.mxu0 0.0
    %1312 = vmatpush1.msra.mxu0 %v1252
    %1313 = vmatprep.subr.mxu0 0.0
    %1314 = vmatpush1.msra.mxu0 %v1253
    %1315 = vmatprep.subr.mxu0 0.0
    %1316 = vmatpush1.msra.mxu0 %v1254
    %1317 = vmatprep.subr.mxu0 0.0
    %1318 = vmatpush1.msra.mxu0 %v1255
    %1319 = vmatprep.subr.mxu0 0.0
    %1320 = vmatpush1.msra.mxu0 %v1256
    %1321 = vmatprep.subr.mxu0 0.0
    %1322 = vmatpush1.msra.mxu0 %v1257
    %1323 = vmatprep.subr.mxu0 0.0
    %1324 = vmatpush1.msra.mxu0 %v1258
    %1325 = vmatprep.subr.mxu0 0.0
    %1326 = vmatpush1.msra.mxu0 %v1259
    %1327 = vmatprep.subr.mxu0 0.0
    %1328 = vmatpush1.msra.mxu0 %v1260
    %1329 = vmatprep.subr.mxu0 0.0
    %1330 = vmatpush1.msra.mxu0 %v1261
    %1331 = vmatprep.subr.mxu0 0.0
    %1332 = vmatpush1.msra.mxu0 %v1262
    %1333 = vmatprep.subr.mxu0 0.0
    %1334 = vmatpush1.msra.mxu0 %v1263
    %1335 = vmatprep.mubr.f32.mxu0 %v1231
    %1336 = vmatmul.mubr.f32.gmra.mrb[0].mxu0 %v1230
    %v1337 = vpop.f32.mrb[0].mxu0
    %v1338 = vadd.f32 %v1269, %v1337
    %v1339 = vpop.f32.mrb[0].mxu0
    %1340 = vdwg.mxu0
    %v1341 = vld [vmem:[%s6] sm:$0xff]
    %v1342 = vld [vmem:[%s6 + $0x8] sm:$0xff]
    %v1343 = vld [vmem:[%s6 + $0x10] sm:$0xff]
    %v1344 = vld [vmem:[%s6 + $0x18] sm:$0xff]
    %v1345 = vld [vmem:[%s6 + $0x20] sm:$0xff]
    %v1346 = vld [vmem:[%s6 + $0x28] sm:$0xff]
    %v1347 = vld [vmem:[%s6 + $0x30] sm:$0xff]
    %v1348 = vld [vmem:[%s6 + $0x38] sm:$0xff]
    %v1349 = vld [vmem:[%s6 + $0x40] sm:$0xff]
    %v1350 = vld [vmem:[%s6 + $0x48] sm:$0xff]
    %v1351 = vld [vmem:[%s6 + $0x50] sm:$0xff]
    %v1352 = vld [vmem:[%s6 + $0x58] sm:$0xff]
    %v1353 = vld [vmem:[%s6 + $0x60] sm:$0xff]
    %v1354 = vld [vmem:[%s6 + $0x68] sm:$0xff]
    %v1355 = vld [vmem:[%s6 + $0x70] sm:$0xff]
    %v1356 = vld [vmem:[%s6 + $0x78] sm:$0xff]
    %v1357 = vld [vmem:[%s6 + $0x80] sm:$0xff]
    %v1358 = vld [vmem:[%s6 + $0x88] sm:$0xff]
    %v1359 = vld [vmem:[%s6 + $0x90] sm:$0xff]
    %v1360 = vld [vmem:[%s6 + $0x98] sm:$0xff]
    %v1361 = vld [vmem:[%s6 + $0xa0] sm:$0xff]
    %v1362 = vld [vmem:[%s6 + $0xa8] sm:$0xff]
    %v1363 = vld [vmem:[%s6 + $0xb0] sm:$0xff]
    %v1364 = vld [vmem:[%s6 + $0xb8] sm:$0xff]
    %v1365 = vld [vmem:[%s6 + $0xc0] sm:$0xff]
    %v1366 = vld [vmem:[%s6 + $0xc8] sm:$0xff]
    %v1367 = vld [vmem:[%s6 + $0xd0] sm:$0xff]
    %v1368 = vld [vmem:[%s6 + $0xd8] sm:$0xff]
    %v1369 = vld [vmem:[%s6 + $0xe0] sm:$0xff]
    %v1370 = vld [vmem:[%s6 + $0xe8] sm:$0xff]
    %v1371 = vld [vmem:[%s6 + $0xf0] sm:$0xff]
    %v1372 = vld [vmem:[%s6 + $0xf8] sm:$0xff]
    %v1373 = vld [vmem:[%s7] sm:$0x1]
    %v1375 = vlaneseq
    %v1376 = vshrl.u32 %v1375, 7
    %v1377 = vsub.s32 0, %v1376
    %v1378 = vrot.slane %v1373, %v1377
    %1380 = vmatprep.subr.mxu0 0.0
    %1381 = vmatpush1.msra.mxu0 %v1341
    %1382 = vmatprep.subr.mxu0 0.0
    %1383 = vmatpush1.msra.mxu0 %v1342
    %1384 = vmatprep.subr.mxu0 0.0
    %1385 = vmatpush1.msra.mxu0 %v1343
    %1386 = vmatprep.subr.mxu0 0.0
    %1387 = vmatpush1.msra.mxu0 %v1344
    %1388 = vmatprep.subr.mxu0 0.0
    %1389 = vmatpush1.msra.mxu0 %v1345
    %1390 = vmatprep.subr.mxu0 0.0
    %1391 = vmatpush1.msra.mxu0 %v1346
    %1392 = vmatprep.subr.mxu0 0.0
    %1393 = vmatpush1.msra.mxu0 %v1347
    %1394 = vmatprep.subr.mxu0 0.0
    %1395 = vmatpush1.msra.mxu0 %v1348
    %1396 = vmatprep.subr.mxu0 0.0
    %1397 = vmatpush1.msra.mxu0 %v1349
    %1398 = vmatprep.subr.mxu0 0.0
    %1399 = vmatpush1.msra.mxu0 %v1350
    %1400 = vmatprep.subr.mxu0 0.0
    %1401 = vmatpush1.msra.mxu0 %v1351
    %1402 = vmatprep.subr.mxu0 0.0
    %1403 = vmatpush1.msra.mxu0 %v1352
    %1404 = vmatprep.subr.mxu0 0.0
    %1405 = vmatpush1.msra.mxu0 %v1353
    %1406 = vmatprep.subr.mxu0 0.0
    %1407 = vmatpush1.msra.mxu0 %v1354
    %1408 = vmatprep.subr.mxu0 0.0
    %1409 = vmatpush1.msra.mxu0 %v1355
    %1410 = vmatprep.subr.mxu0 0.0
    %1411 = vmatpush1.msra.mxu0 %v1356
    %1412 = vmatprep.subr.mxu0 0.0
    %1413 = vmatpush1.msra.mxu0 %v1357
    %1414 = vmatprep.subr.mxu0 0.0
    %1415 = vmatpush1.msra.mxu0 %v1358
    %1416 = vmatprep.subr.mxu0 0.0
    %1417 = vmatpush1.msra.mxu0 %v1359
    %1418 = vmatprep.subr.mxu0 0.0
    %1419 = vmatpush1.msra.mxu0 %v1360
    %1420 = vmatprep.subr.mxu0 0.0
    %1421 = vmatpush1.msra.mxu0 %v1361
    %1422 = vmatprep.subr.mxu0 0.0
    %1423 = vmatpush1.msra.mxu0 %v1362
    %1424 = vmatprep.subr.mxu0 0.0
    %1425 = vmatpush1.msra.mxu0 %v1363
    %1426 = vmatprep.subr.mxu0 0.0
    %1427 = vmatpush1.msra.mxu0 %v1364
    %1428 = vmatprep.subr.mxu0 0.0
    %1429 = vmatpush1.msra.mxu0 %v1365
    %1430 = vmatprep.subr.mxu0 0.0
    %1431 = vmatpush1.msra.mxu0 %v1366
    %1432 = vmatprep.subr.mxu0 0.0
    %1433 = vmatpush1.msra.mxu0 %v1367
    %1434 = vmatprep.subr.mxu0 0.0
    %1435 = vmatpush1.msra.mxu0 %v1368
    %1436 = vmatprep.subr.mxu0 0.0
    %1437 = vmatpush1.msra.mxu0 %v1369
    %1438 = vmatprep.subr.mxu0 0.0
    %1439 = vmatpush1.msra.mxu0 %v1370
    %1440 = vmatprep.subr.mxu0 0.0
    %1441 = vmatpush1.msra.mxu0 %v1371
    %1442 = vmatprep.subr.mxu0 0.0
    %1443 = vmatpush1.msra.mxu0 %v1372
    %1444 = vmatprep.mubr.f32.mxu0 %v1231
    %1445 = vmatmul.mubr.f32.gmra.mrb[0].mxu0 %v1230
    %v1446 = vpop.f32.mrb[0].mxu0
    %v1447 = vadd.f32 %v1378, %v1446
    %v1448 = vpop.f32.mrb[0].mxu0
    %1449 = vdwg.mxu0
    %v1450 = vmul.f32 %v1447, 0.5
    %v1451 = vmul.f32 %v1450, 1.442695
    %v1452 = vpow.pop %v1451
    %v1453 = vld [vmem:[%s1] sm:$0x3]
    %v1454 = vmul.f32 %v1452, %v1453
    %v1455 = vadd.f32 %v1338, %v1454
    %v1456 = vld [vmem:[%s8] sm:$0xff]
    %v1457 = vld [vmem:[%s8 + $0x8] sm:$0xff]
    %v1458 = vld [vmem:[%s8 + $0x10] sm:$0xff]
    %v1459 = vld [vmem:[%s8 + $0x18] sm:$0xff]
    %v1460 = vld [vmem:[%s9] sm:$0x3]
    %v1462 = vlaneseq
    %v1463 = vshrl.u32 %v1462, 7
    %v1464 = vsub.s32 0, %v1463
    %v1465 = vrot.slane %v1460, %v1464
    %v1466 = vlaneseq
    %v1467 = vshrl.u32 %v1466, 7
    %v1468 = vsub.s32 1, %v1467
    %v1469 = vrot.slane %v1460, %v1468
    %vm1472 = vcmask 130048
    %v1474 = vsel %vm1472, %v1455, 0
    %1476 = vmatprep.subr.mxu0 %v1457
    %1477 = vmatpush1.msra.mxu0 %v1456
    %1478 = vmatprep.subr.mxu0 %v1459
    %1479 = vmatpush1.msra.mxu0 %v1458
    %1480 = vmatprep.subr.mxu0 0.0
    %1481 = vmatpush1.msra.mxu0 0.0
    %1482 = vmatprep.subr.mxu0 0.0
    %1483 = vmatpush1.msra.mxu0 0.0
    %1484 = vmatprep.subr.mxu0 0.0
    %1485 = vmatpush1.msra.mxu0 0.0
    %1486 = vmatprep.subr.mxu0 0.0
    %1487 = vmatpush1.msra.mxu0 0.0
    %1488 = vmatprep.subr.mxu0 0.0
    %1489 = vmatpush1.msra.mxu0 0.0
    %1490 = vmatprep.subr.mxu0 0.0
    %1491 = vmatpush1.msra.mxu0 0.0
    %1492 = vmatprep.subr.mxu0 0.0
    %1493 = vmatpush1.msra.mxu0 0.0
    %1494 = vmatprep.subr.mxu0 0.0
    %1495 = vmatpush1.msra.mxu0 0.0
    %1496 = vmatprep.subr.mxu0 0.0
    %1497 = vmatpush1.msra.mxu0 0.0
    %1498 = vmatprep.subr.mxu0 0.0
    %1499 = vmatpush1.msra.mxu0 0.0
    %1500 = vmatprep.subr.mxu0 0.0
    %1501 = vmatpush1.msra.mxu0 0.0
    %1502 = vmatprep.subr.mxu0 0.0
    %1503 = vmatpush1.msra.mxu0 0.0
    %1504 = vmatprep.subr.mxu0 0.0
    %1505 = vmatpush1.msra.mxu0 0.0
    %1506 = vmatprep.subr.mxu0 0.0
    %1507 = vmatpush1.msra.mxu0 0.0
    %1508 = vmatprep.subr.mxu0 0.0
    %1509 = vmatpush1.msra.mxu0 0.0
    %1510 = vmatprep.subr.mxu0 0.0
    %1511 = vmatpush1.msra.mxu0 0.0
    %1512 = vmatprep.subr.mxu0 0.0
    %1513 = vmatpush1.msra.mxu0 0.0
    %1514 = vmatprep.subr.mxu0 0.0
    %1515 = vmatpush1.msra.mxu0 0.0
    %1516 = vmatprep.subr.mxu0 0.0
    %1517 = vmatpush1.msra.mxu0 0.0
    %1518 = vmatprep.subr.mxu0 0.0
    %1519 = vmatpush1.msra.mxu0 0.0
    %1520 = vmatprep.subr.mxu0 0.0
    %1521 = vmatpush1.msra.mxu0 0.0
    %1522 = vmatprep.subr.mxu0 0.0
    %1523 = vmatpush1.msra.mxu0 0.0
    %1524 = vmatprep.subr.mxu0 0.0
    %1525 = vmatpush1.msra.mxu0 0.0
    %1526 = vmatprep.subr.mxu0 0.0
    %1527 = vmatpush1.msra.mxu0 0.0
    %1528 = vmatprep.subr.mxu0 0.0
    %1529 = vmatpush1.msra.mxu0 0.0
    %1530 = vmatprep.subr.mxu0 0.0
    %1531 = vmatpush1.msra.mxu0 0.0
    %1532 = vmatprep.subr.mxu0 0.0
    %1533 = vmatpush1.msra.mxu0 0.0
    %1534 = vmatprep.subr.mxu0 0.0
    %1535 = vmatpush1.msra.mxu0 0.0
    %1536 = vmatprep.subr.mxu0 0.0
    %1537 = vmatpush1.msra.mxu0 0.0
    %1538 = vmatprep.subr.mxu0 0.0
    %1539 = vmatpush1.msra.mxu0 0.0
    %1540 = vmatprep.mubr.f32.mxu0 0.0
    %1541 = vmatmul.mubr.f32.gmra.mrb[0].mxu0 %v1474
    %v1542 = vpop.f32.mrb[0].mxu0
    %v1543 = vadd.f32 %v1465, %v1542
    %v1544 = vpop.f32.mrb[0].mxu0
    %v1545 = vadd.f32 %v1469, %v1544
    %1546 = vdwg.mxu0
    %v1547 = vld [vmem:[%s10] sm:$0xff]
    %v1548 = vld [vmem:[%s10 + $0x8] sm:$0xff]
    %v1549 = vld [vmem:[%s10 + $0x10] sm:$0xff]
    %v1550 = vld [vmem:[%s10 + $0x18] sm:$0xff]
    %v1551 = vld [vmem:[%s10 + $0x20] sm:$0xff]
    %v1552 = vld [vmem:[%s10 + $0x28] sm:$0xff]
    %v1553 = vld [vmem:[%s10 + $0x30] sm:$0xff]
    %v1554 = vld [vmem:[%s10 + $0x38] sm:$0xff]
    %v1555 = vld [vmem:[%s10 + $0x40] sm:$0xff]
    %v1556 = vld [vmem:[%s10 + $0x48] sm:$0xff]
    %v1557 = vld [vmem:[%s10 + $0x50] sm:$0xff]
    %v1558 = vld [vmem:[%s10 + $0x58] sm:$0xff]
    %v1559 = vld [vmem:[%s10 + $0x60] sm:$0xff]
    %v1560 = vld [vmem:[%s10 + $0x68] sm:$0xff]
    %v1561 = vld [vmem:[%s10 + $0x70] sm:$0xff]
    %v1562 = vld [vmem:[%s10 + $0x78] sm:$0xff]
    %v1563 = vld [vmem:[%s10 + $0x80] sm:$0xff]
    %v1564 = vld [vmem:[%s10 + $0x88] sm:$0xff]
    %v1565 = vld [vmem:[%s10 + $0x90] sm:$0xff]
    %v1566 = vld [vmem:[%s10 + $0x98] sm:$0xff]
    %v1567 = vld [vmem:[%s10 + $0xa0] sm:$0xff]
    %v1568 = vld [vmem:[%s10 + $0xa8] sm:$0xff]
    %v1569 = vld [vmem:[%s10 + $0xb0] sm:$0xff]
    %v1570 = vld [vmem:[%s10 + $0xb8] sm:$0xff]
    %v1571 = vld [vmem:[%s10 + $0xc0] sm:$0xff]
    %v1572 = vld [vmem:[%s10 + $0xc8] sm:$0xff]
    %v1573 = vld [vmem:[%s10 + $0xd0] sm:$0xff]
    %v1574 = vld [vmem:[%s10 + $0xd8] sm:$0xff]
    %v1575 = vld [vmem:[%s10 + $0xe0] sm:$0xff]
    %v1576 = vld [vmem:[%s10 + $0xe8] sm:$0xff]
    %v1577 = vld [vmem:[%s10 + $0xf0] sm:$0xff]
    %v1578 = vld [vmem:[%s10 + $0xf8] sm:$0xff]
    %v1579 = vld [vmem:[%s10 + $0x100] sm:$0xff]
    %v1580 = vld [vmem:[%s10 + $0x108] sm:$0xff]
    %v1581 = vld [vmem:[%s10 + $0x110] sm:$0xff]
    %v1582 = vld [vmem:[%s10 + $0x118] sm:$0xff]
    %v1583 = vld [vmem:[%s10 + $0x120] sm:$0xff]
    %v1584 = vld [vmem:[%s10 + $0x128] sm:$0xff]
    %v1585 = vld [vmem:[%s10 + $0x130] sm:$0xff]
    %v1586 = vld [vmem:[%s10 + $0x138] sm:$0xff]
    %v1587 = vld [vmem:[%s10 + $0x140] sm:$0xff]
    %v1588 = vld [vmem:[%s10 + $0x148] sm:$0xff]
    %v1589 = vld [vmem:[%s10 + $0x150] sm:$0xff]
    %v1590 = vld [vmem:[%s10 + $0x158] sm:$0xff]
    %v1591 = vld [vmem:[%s10 + $0x160] sm:$0xff]
    %v1592 = vld [vmem:[%s10 + $0x168] sm:$0xff]
    %v1593 = vld [vmem:[%s10 + $0x170] sm:$0xff]
    %v1594 = vld [vmem:[%s10 + $0x178] sm:$0xff]
    %v1595 = vld [vmem:[%s10 + $0x180] sm:$0xff]
    %v1596 = vld [vmem:[%s10 + $0x188] sm:$0xff]
    %v1597 = vld [vmem:[%s10 + $0x190] sm:$0xff]
    %v1598 = vld [vmem:[%s10 + $0x198] sm:$0xff]
    %v1599 = vld [vmem:[%s10 + $0x1a0] sm:$0xff]
    %v1600 = vld [vmem:[%s10 + $0x1a8] sm:$0xff]
    %v1601 = vld [vmem:[%s10 + $0x1b0] sm:$0xff]
    %v1602 = vld [vmem:[%s10 + $0x1b8] sm:$0xff]
    %v1603 = vld [vmem:[%s10 + $0x1c0] sm:$0xff]
    %v1604 = vld [vmem:[%s10 + $0x1c8] sm:$0xff]
    %v1605 = vld [vmem:[%s10 + $0x1d0] sm:$0xff]
    %v1606 = vld [vmem:[%s10 + $0x1d8] sm:$0xff]
    %v1607 = vld [vmem:[%s10 + $0x1e0] sm:$0xff]
    %v1608 = vld [vmem:[%s10 + $0x1e8] sm:$0xff]
    %v1609 = vld [vmem:[%s10 + $0x1f0] sm:$0xff]
    %v1610 = vld [vmem:[%s10 + $0x1f8] sm:$0xff]
    %v1611 = vld [vmem:[%s10 + $0x200] sm:$0xff]
    %v1612 = vld [vmem:[%s10 + $0x208] sm:$0xff]
    %v1613 = vld [vmem:[%s10 + $0x210] sm:$0xff]
    %v1614 = vld [vmem:[%s10 + $0x218] sm:$0xff]
    %v1615 = vld [vmem:[%s10 + $0x220] sm:$0xff]
    %v1616 = vld [vmem:[%s10 + $0x228] sm:$0xff]
    %v1617 = vld [vmem:[%s10 + $0x230] sm:$0xff]
    %v1618 = vld [vmem:[%s10 + $0x238] sm:$0xff]
    %v1619 = vld [vmem:[%s10 + $0x240] sm:$0xff]
    %v1620 = vld [vmem:[%s10 + $0x248] sm:$0xff]
    %v1621 = vld [vmem:[%s10 + $0x250] sm:$0xff]
    %v1622 = vld [vmem:[%s10 + $0x258] sm:$0xff]
    %v1623 = vld [vmem:[%s10 + $0x260] sm:$0xff]
    %v1624 = vld [vmem:[%s10 + $0x268] sm:$0xff]
    %v1625 = vld [vmem:[%s10 + $0x270] sm:$0xff]
    %v1626 = vld [vmem:[%s10 + $0x278] sm:$0xff]
    %v1627 = vld [vmem:[%s10 + $0x280] sm:$0xff]
    %v1628 = vld [vmem:[%s10 + $0x288] sm:$0xff]
    %v1629 = vld [vmem:[%s10 + $0x290] sm:$0xff]
    %v1630 = vld [vmem:[%s10 + $0x298] sm:$0xff]
    %v1631 = vld [vmem:[%s10 + $0x2a0] sm:$0xff]
    %v1632 = vld [vmem:[%s10 + $0x2a8] sm:$0xff]
    %v1633 = vld [vmem:[%s10 + $0x2b0] sm:$0xff]
    %v1634 = vld [vmem:[%s10 + $0x2b8] sm:$0xff]
    %v1635 = vld [vmem:[%s10 + $0x2c0] sm:$0xff]
    %v1636 = vld [vmem:[%s10 + $0x2c8] sm:$0xff]
    %v1637 = vld [vmem:[%s10 + $0x2d0] sm:$0xff]
    %v1638 = vld [vmem:[%s10 + $0x2d8] sm:$0xff]
    %v1639 = vld [vmem:[%s10 + $0x2e0] sm:$0xff]
    %v1640 = vld [vmem:[%s10 + $0x2e8] sm:$0xff]
    %v1641 = vld [vmem:[%s10 + $0x2f0] sm:$0xff]
    %v1642 = vld [vmem:[%s10 + $0x2f8] sm:$0xff]
    %v1643 = vld [vmem:[%s10 + $0x300] sm:$0xff]
    %v1644 = vld [vmem:[%s10 + $0x308] sm:$0xff]
    %v1645 = vld [vmem:[%s10 + $0x310] sm:$0xff]
    %v1646 = vld [vmem:[%s10 + $0x318] sm:$0xff]
    %v1647 = vld [vmem:[%s10 + $0x320] sm:$0xff]
    %v1648 = vld [vmem:[%s10 + $0x328] sm:$0xff]
    %v1649 = vld [vmem:[%s10 + $0x330] sm:$0xff]
    %v1650 = vld [vmem:[%s10 + $0x338] sm:$0xff]
    %v1651 = vld [vmem:[%s10 + $0x340] sm:$0xff]
    %v1652 = vld [vmem:[%s10 + $0x348] sm:$0xff]
    %v1653 = vld [vmem:[%s10 + $0x350] sm:$0xff]
    %v1654 = vld [vmem:[%s10 + $0x358] sm:$0xff]
    %v1655 = vld [vmem:[%s10 + $0x360] sm:$0xff]
    %v1656 = vld [vmem:[%s10 + $0x368] sm:$0xff]
    %v1657 = vld [vmem:[%s10 + $0x370] sm:$0xff]
    %v1658 = vld [vmem:[%s10 + $0x378] sm:$0xff]
    %v1659 = vld [vmem:[%s10 + $0x380] sm:$0xff]
    %v1660 = vld [vmem:[%s10 + $0x388] sm:$0xff]
    %v1661 = vld [vmem:[%s10 + $0x390] sm:$0xff]
    %v1662 = vld [vmem:[%s10 + $0x398] sm:$0xff]
    %v1663 = vld [vmem:[%s10 + $0x3a0] sm:$0xff]
    %v1664 = vld [vmem:[%s10 + $0x3a8] sm:$0xff]
    %v1665 = vld [vmem:[%s10 + $0x3b0] sm:$0xff]
    %v1666 = vld [vmem:[%s10 + $0x3b8] sm:$0xff]
    %v1667 = vld [vmem:[%s10 + $0x3c0] sm:$0xff]
    %v1668 = vld [vmem:[%s10 + $0x3c8] sm:$0xff]
    %v1669 = vld [vmem:[%s10 + $0x3d0] sm:$0xff]
    %v1670 = vld [vmem:[%s10 + $0x3d8] sm:$0xff]
    %v1671 = vld [vmem:[%s10 + $0x3e0] sm:$0xff]
    %v1672 = vld [vmem:[%s10 + $0x3e8] sm:$0xff]
    %v1673 = vld [vmem:[%s10 + $0x3f0] sm:$0xff]
    %v1674 = vld [vmem:[%s10 + $0x3f8] sm:$0xff]
    %v1675 = vld [vmem:[%s10 + $0x400] sm:$0xff]
    %v1676 = vld [vmem:[%s10 + $0x408] sm:$0xff]
    %v1677 = vld [vmem:[%s10 + $0x410] sm:$0xff]
    %v1678 = vld [vmem:[%s10 + $0x418] sm:$0xff]
    %v1679 = vld [vmem:[%s10 + $0x420] sm:$0xff]
    %v1680 = vld [vmem:[%s10 + $0x428] sm:$0xff]
    %v1681 = vld [vmem:[%s10 + $0x430] sm:$0xff]
    %v1682 = vld [vmem:[%s10 + $0x438] sm:$0xff]
    %v1683 = vld [vmem:[%s10 + $0x440] sm:$0xff]
    %v1684 = vld [vmem:[%s10 + $0x448] sm:$0xff]
    %v1685 = vld [vmem:[%s10 + $0x450] sm:$0xff]
    %v1686 = vld [vmem:[%s10 + $0x458] sm:$0xff]
    %v1687 = vld [vmem:[%s10 + $0x460] sm:$0xff]
    %v1688 = vld [vmem:[%s10 + $0x468] sm:$0xff]
    %v1689 = vld [vmem:[%s10 + $0x470] sm:$0xff]
    %v1690 = vld [vmem:[%s10 + $0x478] sm:$0xff]
    %v1691 = vld [vmem:[%s10 + $0x480] sm:$0xff]
    %v1692 = vld [vmem:[%s10 + $0x488] sm:$0xff]
    %v1693 = vld [vmem:[%s10 + $0x490] sm:$0xff]
    %v1694 = vld [vmem:[%s10 + $0x498] sm:$0xff]
    %v1695 = vld [vmem:[%s10 + $0x4a0] sm:$0xff]
    %v1696 = vld [vmem:[%s10 + $0x4a8] sm:$0xff]
    %v1697 = vld [vmem:[%s10 + $0x4b0] sm:$0xff]
    %v1698 = vld [vmem:[%s10 + $0x4b8] sm:$0xff]
    %v1699 = vld [vmem:[%s10 + $0x4c0] sm:$0xff]
    %v1700 = vld [vmem:[%s10 + $0x4c8] sm:$0xff]
    %v1701 = vld [vmem:[%s10 + $0x4d0] sm:$0xff]
    %v1702 = vld [vmem:[%s10 + $0x4d8] sm:$0xff]
    %v1703 = vld [vmem:[%s10 + $0x4e0] sm:$0xff]
    %v1704 = vld [vmem:[%s10 + $0x4e8] sm:$0xff]
    %v1705 = vld [vmem:[%s10 + $0x4f0] sm:$0xff]
    %v1706 = vld [vmem:[%s10 + $0x4f8] sm:$0xff]
    %v1707 = vld [vmem:[%s10 + $0x500] sm:$0xff]
    %v1708 = vld [vmem:[%s10 + $0x508] sm:$0xff]
    %v1709 = vld [vmem:[%s10 + $0x510] sm:$0xff]
    %v1710 = vld [vmem:[%s10 + $0x518] sm:$0xff]
    %v1711 = vld [vmem:[%s10 + $0x520] sm:$0xff]
    %v1712 = vld [vmem:[%s10 + $0x528] sm:$0xff]
    %v1713 = vld [vmem:[%s10 + $0x530] sm:$0xff]
    %v1714 = vld [vmem:[%s10 + $0x538] sm:$0xff]
    %v1715 = vld [vmem:[%s10 + $0x540] sm:$0xff]
    %v1716 = vld [vmem:[%s10 + $0x548] sm:$0xff]
    %v1717 = vld [vmem:[%s10 + $0x550] sm:$0xff]
    %v1718 = vld [vmem:[%s10 + $0x558] sm:$0xff]
    %v1719 = vld [vmem:[%s10 + $0x560] sm:$0xff]
    %v1720 = vld [vmem:[%s10 + $0x568] sm:$0xff]
    %v1721 = vld [vmem:[%s10 + $0x570] sm:$0xff]
    %v1722 = vld [vmem:[%s10 + $0x578] sm:$0xff]
    %v1723 = vld [vmem:[%s10 + $0x580] sm:$0xff]
    %v1724 = vld [vmem:[%s10 + $0x588] sm:$0xff]
    %v1725 = vld [vmem:[%s10 + $0x590] sm:$0xff]
    %v1726 = vld [vmem:[%s10 + $0x598] sm:$0xff]
    %v1727 = vld [vmem:[%s10 + $0x5a0] sm:$0xff]
    %v1728 = vld [vmem:[%s10 + $0x5a8] sm:$0xff]
    %v1729 = vld [vmem:[%s10 + $0x5b0] sm:$0xff]
    %v1730 = vld [vmem:[%s10 + $0x5b8] sm:$0xff]
    %v1731 = vld [vmem:[%s10 + $0x5c0] sm:$0xff]
    %v1732 = vld [vmem:[%s10 + $0x5c8] sm:$0xff]
    %v1733 = vld [vmem:[%s10 + $0x5d0] sm:$0xff]
    %v1734 = vld [vmem:[%s10 + $0x5d8] sm:$0xff]
    %v1735 = vld [vmem:[%s10 + $0x5e0] sm:$0xff]
    %v1736 = vld [vmem:[%s10 + $0x5e8] sm:$0xff]
    %v1737 = vld [vmem:[%s10 + $0x5f0] sm:$0xff]
    %v1738 = vld [vmem:[%s10 + $0x5f8] sm:$0xff]
    %v1739 = vld [vmem:[%s10 + $0x600] sm:$0xff]
    %v1740 = vld [vmem:[%s10 + $0x608] sm:$0xff]
    %v1741 = vld [vmem:[%s10 + $0x610] sm:$0xff]
    %v1742 = vld [vmem:[%s10 + $0x618] sm:$0xff]
    %v1743 = vld [vmem:[%s10 + $0x620] sm:$0xff]
    %v1744 = vld [vmem:[%s10 + $0x628] sm:$0xff]
    %v1745 = vld [vmem:[%s10 + $0x630] sm:$0xff]
    %v1746 = vld [vmem:[%s10 + $0x638] sm:$0xff]
    %v1747 = vld [vmem:[%s10 + $0x640] sm:$0xff]
    %v1748 = vld [vmem:[%s10 + $0x648] sm:$0xff]
    %v1749 = vld [vmem:[%s10 + $0x650] sm:$0xff]
    %v1750 = vld [vmem:[%s10 + $0x658] sm:$0xff]
    %v1751 = vld [vmem:[%s10 + $0x660] sm:$0xff]
    %v1752 = vld [vmem:[%s10 + $0x668] sm:$0xff]
    %v1753 = vld [vmem:[%s10 + $0x670] sm:$0xff]
    %v1754 = vld [vmem:[%s10 + $0x678] sm:$0xff]
    %v1755 = vld [vmem:[%s10 + $0x680] sm:$0xff]
    %v1756 = vld [vmem:[%s10 + $0x688] sm:$0xff]
    %v1757 = vld [vmem:[%s10 + $0x690] sm:$0xff]
    %v1758 = vld [vmem:[%s10 + $0x698] sm:$0xff]
    %v1759 = vld [vmem:[%s10 + $0x6a0] sm:$0xff]
    %v1760 = vld [vmem:[%s10 + $0x6a8] sm:$0xff]
    %v1761 = vld [vmem:[%s10 + $0x6b0] sm:$0xff]
    %v1762 = vld [vmem:[%s10 + $0x6b8] sm:$0xff]
    %v1763 = vld [vmem:[%s10 + $0x6c0] sm:$0xff]
    %v1764 = vld [vmem:[%s10 + $0x6c8] sm:$0xff]
    %v1765 = vld [vmem:[%s10 + $0x6d0] sm:$0xff]
    %v1766 = vld [vmem:[%s10 + $0x6d8] sm:$0xff]
    %v1767 = vld [vmem:[%s10 + $0x6e0] sm:$0xff]
    %v1768 = vld [vmem:[%s10 + $0x6e8] sm:$0xff]
    %v1769 = vld [vmem:[%s10 + $0x6f0] sm:$0xff]
    %v1770 = vld [vmem:[%s10 + $0x6f8] sm:$0xff]
    %v1771 = vld [vmem:[%s10 + $0x700] sm:$0xff]
    %v1772 = vld [vmem:[%s10 + $0x708] sm:$0xff]
    %v1773 = vld [vmem:[%s10 + $0x710] sm:$0xff]
    %v1774 = vld [vmem:[%s10 + $0x718] sm:$0xff]
    %v1775 = vld [vmem:[%s10 + $0x720] sm:$0xff]
    %v1776 = vld [vmem:[%s10 + $0x728] sm:$0xff]
    %v1777 = vld [vmem:[%s10 + $0x730] sm:$0xff]
    %v1778 = vld [vmem:[%s10 + $0x738] sm:$0xff]
    %v1779 = vld [vmem:[%s10 + $0x740] sm:$0xff]
    %v1780 = vld [vmem:[%s10 + $0x748] sm:$0xff]
    %v1781 = vld [vmem:[%s10 + $0x750] sm:$0xff]
    %v1782 = vld [vmem:[%s10 + $0x758] sm:$0xff]
    %v1783 = vld [vmem:[%s10 + $0x760] sm:$0xff]
    %v1784 = vld [vmem:[%s10 + $0x768] sm:$0xff]
    %v1785 = vld [vmem:[%s10 + $0x770] sm:$0xff]
    %v1786 = vld [vmem:[%s10 + $0x778] sm:$0xff]
    %v1787 = vld [vmem:[%s10 + $0x780] sm:$0xff]
    %v1788 = vld [vmem:[%s10 + $0x788] sm:$0xff]
    %v1789 = vld [vmem:[%s10 + $0x790] sm:$0xff]
    %v1790 = vld [vmem:[%s10 + $0x798] sm:$0xff]
    %v1791 = vld [vmem:[%s10 + $0x7a0] sm:$0xff]
    %v1792 = vld [vmem:[%s10 + $0x7a8] sm:$0xff]
    %v1793 = vld [vmem:[%s10 + $0x7b0] sm:$0xff]
    %v1794 = vld [vmem:[%s10 + $0x7b8] sm:$0xff]
    %v1795 = vld [vmem:[%s10 + $0x7c0] sm:$0xff]
    %v1796 = vld [vmem:[%s10 + $0x7c8] sm:$0xff]
    %v1797 = vld [vmem:[%s10 + $0x7d0] sm:$0xff]
    %v1798 = vld [vmem:[%s10 + $0x7d8] sm:$0xff]
    %v1799 = vld [vmem:[%s10 + $0x7e0] sm:$0xff]
    %v1800 = vld [vmem:[%s10 + $0x7e8] sm:$0xff]
    %v1801 = vld [vmem:[%s10 + $0x7f0] sm:$0xff]
    %v1802 = vld [vmem:[%s10 + $0x7f8] sm:$0xff]
    %v1803 = vld [vmem:[%s10 + $0x800] sm:$0xff]
    %v1804 = vld [vmem:[%s10 + $0x808] sm:$0xff]
    %v1805 = vld [vmem:[%s10 + $0x810] sm:$0xff]
    %v1806 = vld [vmem:[%s10 + $0x818] sm:$0xff]
    %v1807 = vld [vmem:[%s10 + $0x820] sm:$0xff]
    %v1808 = vld [vmem:[%s10 + $0x828] sm:$0xff]
    %v1809 = vld [vmem:[%s10 + $0x830] sm:$0xff]
    %v1810 = vld [vmem:[%s10 + $0x838] sm:$0xff]
    %v1811 = vld [vmem:[%s10 + $0x840] sm:$0xff]
    %v1812 = vld [vmem:[%s10 + $0x848] sm:$0xff]
    %v1813 = vld [vmem:[%s10 + $0x850] sm:$0xff]
    %v1814 = vld [vmem:[%s10 + $0x858] sm:$0xff]
    %v1815 = vld [vmem:[%s10 + $0x860] sm:$0xff]
    %v1816 = vld [vmem:[%s10 + $0x868] sm:$0xff]
    %v1817 = vld [vmem:[%s10 + $0x870] sm:$0xff]
    %v1818 = vld [vmem:[%s10 + $0x878] sm:$0xff]
    %v1819 = vld [vmem:[%s10 + $0x880] sm:$0xff]
    %v1820 = vld [vmem:[%s10 + $0x888] sm:$0xff]
    %v1821 = vld [vmem:[%s10 + $0x890] sm:$0xff]
    %v1822 = vld [vmem:[%s10 + $0x898] sm:$0xff]
    %v1823 = vld [vmem:[%s10 + $0x8a0] sm:$0xff]
    %v1824 = vld [vmem:[%s10 + $0x8a8] sm:$0xff]
    %v1825 = vld [vmem:[%s10 + $0x8b0] sm:$0xff]
    %v1826 = vld [vmem:[%s10 + $0x8b8] sm:$0xff]
    %v1827 = vld [vmem:[%s10 + $0x8c0] sm:$0xff]
    %v1828 = vld [vmem:[%s10 + $0x8c8] sm:$0xff]
    %v1829 = vld [vmem:[%s10 + $0x8d0] sm:$0xff]
    %v1830 = vld [vmem:[%s10 + $0x8d8] sm:$0xff]
    %v1831 = vld [vmem:[%s10 + $0x8e0] sm:$0xff]
    %v1832 = vld [vmem:[%s10 + $0x8e8] sm:$0xff]
    %v1833 = vld [vmem:[%s10 + $0x8f0] sm:$0xff]
    %v1834 = vld [vmem:[%s10 + $0x8f8] sm:$0xff]
    %v1835 = vld [vmem:[%s10 + $0x900] sm:$0xff]
    %v1836 = vld [vmem:[%s10 + $0x908] sm:$0xff]
    %v1837 = vld [vmem:[%s10 + $0x910] sm:$0xff]
    %v1838 = vld [vmem:[%s10 + $0x918] sm:$0xff]
    %v1839 = vld [vmem:[%s10 + $0x920] sm:$0xff]
    %v1840 = vld [vmem:[%s10 + $0x928] sm:$0xff]
    %v1841 = vld [vmem:[%s10 + $0x930] sm:$0xff]
    %v1842 = vld [vmem:[%s10 + $0x938] sm:$0xff]
    %v1843 = vld [vmem:[%s10 + $0x940] sm:$0xff]
    %v1844 = vld [vmem:[%s10 + $0x948] sm:$0xff]
    %v1845 = vld [vmem:[%s10 + $0x950] sm:$0xff]
    %v1846 = vld [vmem:[%s10 + $0x958] sm:$0xff]
    %v1847 = vld [vmem:[%s10 + $0x960] sm:$0xff]
    %v1848 = vld [vmem:[%s10 + $0x968] sm:$0xff]
    %v1849 = vld [vmem:[%s10 + $0x970] sm:$0xff]
    %v1850 = vld [vmem:[%s10 + $0x978] sm:$0xff]
    %v1851 = vld [vmem:[%s10 + $0x980] sm:$0xff]
    %v1852 = vld [vmem:[%s10 + $0x988] sm:$0xff]
    %v1853 = vld [vmem:[%s10 + $0x990] sm:$0xff]
    %v1854 = vld [vmem:[%s10 + $0x998] sm:$0xff]
    %v1855 = vld [vmem:[%s10 + $0x9a0] sm:$0xff]
    %v1856 = vld [vmem:[%s10 + $0x9a8] sm:$0xff]
    %v1857 = vld [vmem:[%s10 + $0x9b0] sm:$0xff]
    %v1858 = vld [vmem:[%s10 + $0x9b8] sm:$0xff]
    %v1859 = vld [vmem:[%s10 + $0x9c0] sm:$0xff]
    %v1860 = vld [vmem:[%s10 + $0x9c8] sm:$0xff]
    %v1861 = vld [vmem:[%s10 + $0x9d0] sm:$0xff]
    %v1862 = vld [vmem:[%s10 + $0x9d8] sm:$0xff]
    %v1863 = vld [vmem:[%s10 + $0x9e0] sm:$0xff]
    %v1864 = vld [vmem:[%s10 + $0x9e8] sm:$0xff]
    %v1865 = vld [vmem:[%s10 + $0x9f0] sm:$0xff]
    %v1866 = vld [vmem:[%s10 + $0x9f8] sm:$0xff]
    %v1867 = vld [vmem:[%s10 + $0xa00] sm:$0xff]
    %v1868 = vld [vmem:[%s10 + $0xa08] sm:$0xff]
    %v1869 = vld [vmem:[%s10 + $0xa10] sm:$0xff]
    %v1870 = vld [vmem:[%s10 + $0xa18] sm:$0xff]
    %v1871 = vld [vmem:[%s10 + $0xa20] sm:$0xff]
    %v1872 = vld [vmem:[%s10 + $0xa28] sm:$0xff]
    %v1873 = vld [vmem:[%s10 + $0xa30] sm:$0xff]
    %v1874 = vld [vmem:[%s10 + $0xa38] sm:$0xff]
    %v1875 = vld [vmem:[%s10 + $0xa40] sm:$0xff]
    %v1876 = vld [vmem:[%s10 + $0xa48] sm:$0xff]
    %v1877 = vld [vmem:[%s10 + $0xa50] sm:$0xff]
    %v1878 = vld [vmem:[%s10 + $0xa58] sm:$0xff]
    %v1879 = vld [vmem:[%s10 + $0xa60] sm:$0xff]
    %v1880 = vld [vmem:[%s10 + $0xa68] sm:$0xff]
    %v1881 = vld [vmem:[%s10 + $0xa70] sm:$0xff]
    %v1882 = vld [vmem:[%s10 + $0xa78] sm:$0xff]
    %v1883 = vld [vmem:[%s10 + $0xa80] sm:$0xff]
    %v1884 = vld [vmem:[%s10 + $0xa88] sm:$0xff]
    %v1885 = vld [vmem:[%s10 + $0xa90] sm:$0xff]
    %v1886 = vld [vmem:[%s10 + $0xa98] sm:$0xff]
    %v1887 = vld [vmem:[%s10 + $0xaa0] sm:$0xff]
    %v1888 = vld [vmem:[%s10 + $0xaa8] sm:$0xff]
    %v1889 = vld [vmem:[%s10 + $0xab0] sm:$0xff]
    %v1890 = vld [vmem:[%s10 + $0xab8] sm:$0xff]
    %v1891 = vld [vmem:[%s10 + $0xac0] sm:$0xff]
    %v1892 = vld [vmem:[%s10 + $0xac8] sm:$0xff]
    %v1893 = vld [vmem:[%s10 + $0xad0] sm:$0xff]
    %v1894 = vld [vmem:[%s10 + $0xad8] sm:$0xff]
    %v1895 = vld [vmem:[%s10 + $0xae0] sm:$0xff]
    %v1896 = vld [vmem:[%s10 + $0xae8] sm:$0xff]
    %v1897 = vld [vmem:[%s10 + $0xaf0] sm:$0xff]
    %v1898 = vld [vmem:[%s10 + $0xaf8] sm:$0xff]
    %v1899 = vld [vmem:[%s10 + $0xb00] sm:$0xff]
    %v1900 = vld [vmem:[%s10 + $0xb08] sm:$0xff]
    %v1901 = vld [vmem:[%s10 + $0xb10] sm:$0xff]
    %v1902 = vld [vmem:[%s10 + $0xb18] sm:$0xff]
    %v1903 = vld [vmem:[%s10 + $0xb20] sm:$0xff]
    %v1904 = vld [vmem:[%s10 + $0xb28] sm:$0xff]
    %v1905 = vld [vmem:[%s10 + $0xb30] sm:$0xff]
    %v1906 = vld [vmem:[%s10 + $0xb38] sm:$0xff]
    %v1907 = vld [vmem:[%s10 + $0xb40] sm:$0xff]
    %v1908 = vld [vmem:[%s10 + $0xb48] sm:$0xff]
    %v1909 = vld [vmem:[%s10 + $0xb50] sm:$0xff]
    %v1910 = vld [vmem:[%s10 + $0xb58] sm:$0xff]
    %v1911 = vld [vmem:[%s10 + $0xb60] sm:$0xff]
    %v1912 = vld [vmem:[%s10 + $0xb68] sm:$0xff]
    %v1913 = vld [vmem:[%s10 + $0xb70] sm:$0xff]
    %v1914 = vld [vmem:[%s10 + $0xb78] sm:$0xff]
    %v1915 = vld [vmem:[%s10 + $0xb80] sm:$0xff]
    %v1916 = vld [vmem:[%s10 + $0xb88] sm:$0xff]
    %v1917 = vld [vmem:[%s10 + $0xb90] sm:$0xff]
    %v1918 = vld [vmem:[%s10 + $0xb98] sm:$0xff]
    %v1919 = vld [vmem:[%s10 + $0xba0] sm:$0xff]
    %v1920 = vld [vmem:[%s10 + $0xba8] sm:$0xff]
    %v1921 = vld [vmem:[%s10 + $0xbb0] sm:$0xff]
    %v1922 = vld [vmem:[%s10 + $0xbb8] sm:$0xff]
    %v1923 = vld [vmem:[%s10 + $0xbc0] sm:$0xff]
    %v1924 = vld [vmem:[%s10 + $0xbc8] sm:$0xff]
    %v1925 = vld [vmem:[%s10 + $0xbd0] sm:$0xff]
    %v1926 = vld [vmem:[%s10 + $0xbd8] sm:$0xff]
    %v1927 = vld [vmem:[%s10 + $0xbe0] sm:$0xff]
    %v1928 = vld [vmem:[%s10 + $0xbe8] sm:$0xff]
    %v1929 = vld [vmem:[%s10 + $0xbf0] sm:$0xff]
    %v1930 = vld [vmem:[%s10 + $0xbf8] sm:$0xff]
    %v1931 = vld [vmem:[%s10 + $0xc00] sm:$0xff]
    %v1932 = vld [vmem:[%s10 + $0xc08] sm:$0xff]
    %v1933 = vld [vmem:[%s10 + $0xc10] sm:$0xff]
    %v1934 = vld [vmem:[%s10 + $0xc18] sm:$0xff]
    %v1935 = vld [vmem:[%s10 + $0xc20] sm:$0xff]
    %v1936 = vld [vmem:[%s10 + $0xc28] sm:$0xff]
    %v1937 = vld [vmem:[%s10 + $0xc30] sm:$0xff]
    %v1938 = vld [vmem:[%s10 + $0xc38] sm:$0xff]
    %v1939 = vld [vmem:[%s10 + $0xc40] sm:$0xff]
    %v1940 = vld [vmem:[%s10 + $0xc48] sm:$0xff]
    %v1941 = vld [vmem:[%s10 + $0xc50] sm:$0xff]
    %v1942 = vld [vmem:[%s10 + $0xc58] sm:$0xff]
    %v1943 = vld [vmem:[%s10 + $0xc60] sm:$0xff]
    %v1944 = vld [vmem:[%s10 + $0xc68] sm:$0xff]
    %v1945 = vld [vmem:[%s10 + $0xc70] sm:$0xff]
    %v1946 = vld [vmem:[%s10 + $0xc78] sm:$0xff]
    %v1947 = vld [vmem:[%s10 + $0xc80] sm:$0xff]
    %v1948 = vld [vmem:[%s10 + $0xc88] sm:$0xff]
    %v1949 = vld [vmem:[%s10 + $0xc90] sm:$0xff]
    %v1950 = vld [vmem:[%s10 + $0xc98] sm:$0xff]
    %v1951 = vld [vmem:[%s10 + $0xca0] sm:$0xff]
    %v1952 = vld [vmem:[%s10 + $0xca8] sm:$0xff]
    %v1953 = vld [vmem:[%s10 + $0xcb0] sm:$0xff]
    %v1954 = vld [vmem:[%s10 + $0xcb8] sm:$0xff]
    %v1955 = vld [vmem:[%s10 + $0xcc0] sm:$0xff]
    %v1956 = vld [vmem:[%s10 + $0xcc8] sm:$0xff]
    %v1957 = vld [vmem:[%s10 + $0xcd0] sm:$0xff]
    %v1958 = vld [vmem:[%s10 + $0xcd8] sm:$0xff]
    %v1959 = vld [vmem:[%s10 + $0xce0] sm:$0xff]
    %v1960 = vld [vmem:[%s10 + $0xce8] sm:$0xff]
    %v1961 = vld [vmem:[%s10 + $0xcf0] sm:$0xff]
    %v1962 = vld [vmem:[%s10 + $0xcf8] sm:$0xff]
    %v1963 = vld [vmem:[%s10 + $0xd00] sm:$0xff]
    %v1964 = vld [vmem:[%s10 + $0xd08] sm:$0xff]
    %v1965 = vld [vmem:[%s10 + $0xd10] sm:$0xff]
    %v1966 = vld [vmem:[%s10 + $0xd18] sm:$0xff]
    %v1967 = vld [vmem:[%s10 + $0xd20] sm:$0xff]
    %v1968 = vld [vmem:[%s10 + $0xd28] sm:$0xff]
    %v1969 = vld [vmem:[%s10 + $0xd30] sm:$0xff]
    %v1970 = vld [vmem:[%s10 + $0xd38] sm:$0xff]
    %v1971 = vld [vmem:[%s10 + $0xd40] sm:$0xff]
    %v1972 = vld [vmem:[%s10 + $0xd48] sm:$0xff]
    %v1973 = vld [vmem:[%s10 + $0xd50] sm:$0xff]
    %v1974 = vld [vmem:[%s10 + $0xd58] sm:$0xff]
    %v1975 = vld [vmem:[%s10 + $0xd60] sm:$0xff]
    %v1976 = vld [vmem:[%s10 + $0xd68] sm:$0xff]
    %v1977 = vld [vmem:[%s10 + $0xd70] sm:$0xff]
    %v1978 = vld [vmem:[%s10 + $0xd78] sm:$0xff]
    %v1979 = vld [vmem:[%s10 + $0xd80] sm:$0xff]
    %v1980 = vld [vmem:[%s10 + $0xd88] sm:$0xff]
    %v1981 = vld [vmem:[%s10 + $0xd90] sm:$0xff]
    %v1982 = vld [vmem:[%s10 + $0xd98] sm:$0xff]
    %v1983 = vld [vmem:[%s10 + $0xda0] sm:$0xff]
    %v1984 = vld [vmem:[%s10 + $0xda8] sm:$0xff]
    %v1985 = vld [vmem:[%s10 + $0xdb0] sm:$0xff]
    %v1986 = vld [vmem:[%s10 + $0xdb8] sm:$0xff]
    %v1987 = vld [vmem:[%s10 + $0xdc0] sm:$0xff]
    %v1988 = vld [vmem:[%s10 + $0xdc8] sm:$0xff]
    %v1989 = vld [vmem:[%s10 + $0xdd0] sm:$0xff]
    %v1990 = vld [vmem:[%s10 + $0xdd8] sm:$0xff]
    %v1991 = vld [vmem:[%s10 + $0xde0] sm:$0xff]
    %v1992 = vld [vmem:[%s10 + $0xde8] sm:$0xff]
    %v1993 = vld [vmem:[%s10 + $0xdf0] sm:$0xff]
    %v1994 = vld [vmem:[%s10 + $0xdf8] sm:$0xff]
    %v1995 = vld [vmem:[%s10 + $0xe00] sm:$0xff]
    %v1996 = vld [vmem:[%s10 + $0xe08] sm:$0xff]
    %v1997 = vld [vmem:[%s10 + $0xe10] sm:$0xff]
    %v1998 = vld [vmem:[%s10 + $0xe18] sm:$0xff]
    %v1999 = vld [vmem:[%s10 + $0xe20] sm:$0xff]
    %v2000 = vld [vmem:[%s10 + $0xe28] sm:$0xff]
    %v2001 = vld [vmem:[%s10 + $0xe30] sm:$0xff]
    %v2002 = vld [vmem:[%s10 + $0xe38] sm:$0xff]
    %v2003 = vld [vmem:[%s10 + $0xe40] sm:$0xff]
    %v2004 = vld [vmem:[%s10 + $0xe48] sm:$0xff]
    %v2005 = vld [vmem:[%s10 + $0xe50] sm:$0xff]
    %v2006 = vld [vmem:[%s10 + $0xe58] sm:$0xff]
    %v2007 = vld [vmem:[%s10 + $0xe60] sm:$0xff]
    %v2008 = vld [vmem:[%s10 + $0xe68] sm:$0xff]
    %v2009 = vld [vmem:[%s10 + $0xe70] sm:$0xff]
    %v2010 = vld [vmem:[%s10 + $0xe78] sm:$0xff]
    %v2011 = vld [vmem:[%s10 + $0xe80] sm:$0xff]
    %v2012 = vld [vmem:[%s10 + $0xe88] sm:$0xff]
    %v2013 = vld [vmem:[%s10 + $0xe90] sm:$0xff]
    %v2014 = vld [vmem:[%s10 + $0xe98] sm:$0xff]
    %v2015 = vld [vmem:[%s10 + $0xea0] sm:$0xff]
    %v2016 = vld [vmem:[%s10 + $0xea8] sm:$0xff]
    %v2017 = vld [vmem:[%s10 + $0xeb0] sm:$0xff]
    %v2018 = vld [vmem:[%s10 + $0xeb8] sm:$0xff]
    %v2019 = vld [vmem:[%s10 + $0xec0] sm:$0xff]
    %v2020 = vld [vmem:[%s10 + $0xec8] sm:$0xff]
    %v2021 = vld [vmem:[%s10 + $0xed0] sm:$0xff]
    %v2022 = vld [vmem:[%s10 + $0xed8] sm:$0xff]
    %v2023 = vld [vmem:[%s10 + $0xee0] sm:$0xff]
    %v2024 = vld [vmem:[%s10 + $0xee8] sm:$0xff]
    %v2025 = vld [vmem:[%s10 + $0xef0] sm:$0xff]
    %v2026 = vld [vmem:[%s10 + $0xef8] sm:$0xff]
    %v2027 = vld [vmem:[%s10 + $0xf00] sm:$0xff]
    %v2028 = vld [vmem:[%s10 + $0xf08] sm:$0xff]
    %v2029 = vld [vmem:[%s10 + $0xf10] sm:$0xff]
    %v2030 = vld [vmem:[%s10 + $0xf18] sm:$0xff]
    %v2031 = vld [vmem:[%s10 + $0xf20] sm:$0xff]
    %v2032 = vld [vmem:[%s10 + $0xf28] sm:$0xff]
    %v2033 = vld [vmem:[%s10 + $0xf30] sm:$0xff]
    %v2034 = vld [vmem:[%s10 + $0xf38] sm:$0xff]
    %v2035 = vld [vmem:[%s10 + $0xf40] sm:$0xff]
    %v2036 = vld [vmem:[%s10 + $0xf48] sm:$0xff]
    %v2037 = vld [vmem:[%s10 + $0xf50] sm:$0xff]
    %v2038 = vld [vmem:[%s10 + $0xf58] sm:$0xff]
    %v2039 = vld [vmem:[%s10 + $0xf60] sm:$0xff]
    %v2040 = vld [vmem:[%s10 + $0xf68] sm:$0xff]
    %v2041 = vld [vmem:[%s10 + $0xf70] sm:$0xff]
    %v2042 = vld [vmem:[%s10 + $0xf78] sm:$0xff]
    %v2043 = vld [vmem:[%s10 + $0xf80] sm:$0xff]
    %v2044 = vld [vmem:[%s10 + $0xf88] sm:$0xff]
    %v2045 = vld [vmem:[%s10 + $0xf90] sm:$0xff]
    %v2046 = vld [vmem:[%s10 + $0xf98] sm:$0xff]
    %v2047 = vld [vmem:[%s10 + $0xfa0] sm:$0xff]
    %v2048 = vld [vmem:[%s10 + $0xfa8] sm:$0xff]
    %v2049 = vld [vmem:[%s10 + $0xfb0] sm:$0xff]
    %v2050 = vld [vmem:[%s10 + $0xfb8] sm:$0xff]
    %v2051 = vld [vmem:[%s10 + $0xfc0] sm:$0xff]
    %v2052 = vld [vmem:[%s10 + $0xfc8] sm:$0xff]
    %v2053 = vld [vmem:[%s10 + $0xfd0] sm:$0xff]
    %v2054 = vld [vmem:[%s10 + $0xfd8] sm:$0xff]
    %v2055 = vld [vmem:[%s10 + $0xfe0] sm:$0xff]
    %v2056 = vld [vmem:[%s10 + $0xfe8] sm:$0xff]
    %v2057 = vld [vmem:[%s10 + $0xff0] sm:$0xff]
    %v2058 = vld [vmem:[%s10 + $0xff8] sm:$0xff]
    %v2059 = vld [vmem:[%s11] sm:$0xff]
    %v2060 = vld [vmem:[%s11 + $0x8] sm:$0xff]
    %v2063 = vlaneseq
    %v2064 = vshrl.u32 %v2063, 7
    %v2065 = vsub.s32 0, %v2064
    %v2066 = vrot.slane %v2059, %v2065
    %v2067 = vlaneseq
    %v2068 = vshrl.u32 %v2067, 7
    %v2069 = vsub.s32 1, %v2068
    %v2070 = vrot.slane %v2059, %v2069
    %v2071 = vlaneseq
    %v2072 = vshrl.u32 %v2071, 7
    %v2073 = vsub.s32 2, %v2072
    %v2074 = vrot.slane %v2059, %v2073
    %v2075 = vlaneseq
    %v2076 = vshrl.u32 %v2075, 7
    %v2077 = vsub.s32 3, %v2076
    %v2078 = vrot.slane %v2059, %v2077
    %v2079 = vlaneseq
    %v2080 = vshrl.u32 %v2079, 7
    %v2081 = vsub.s32 4, %v2080
    %v2082 = vrot.slane %v2059, %v2081
    %v2083 = vlaneseq
    %v2084 = vshrl.u32 %v2083, 7
    %v2085 = vsub.s32 5, %v2084
    %v2086 = vrot.slane %v2059, %v2085
    %v2087 = vlaneseq
    %v2088 = vshrl.u32 %v2087, 7
    %v2089 = vsub.s32 6, %v2088
    %v2090 = vrot.slane %v2059, %v2089
    %v2091 = vlaneseq
    %v2092 = vshrl.u32 %v2091, 7
    %v2093 = vsub.s32 7, %v2092
    %v2094 = vrot.slane %v2059, %v2093
    %v2095 = vlaneseq
    %v2096 = vshrl.u32 %v2095, 7
    %v2097 = vsub.s32 0, %v2096
    %v2098 = vrot.slane %v2060, %v2097
    %v2099 = vlaneseq
    %v2100 = vshrl.u32 %v2099, 7
    %v2101 = vsub.s32 1, %v2100
    %v2102 = vrot.slane %v2060, %v2101
    %v2103 = vlaneseq
    %v2104 = vshrl.u32 %v2103, 7
    %v2105 = vsub.s32 2, %v2104
    %v2106 = vrot.slane %v2060, %v2105
    %v2107 = vlaneseq
    %v2108 = vshrl.u32 %v2107, 7
    %v2109 = vsub.s32 3, %v2108
    %v2110 = vrot.slane %v2060, %v2109
    %v2111 = vlaneseq
    %v2112 = vshrl.u32 %v2111, 7
    %v2113 = vsub.s32 4, %v2112
    %v2114 = vrot.slane %v2060, %v2113
    %v2115 = vlaneseq
    %v2116 = vshrl.u32 %v2115, 7
    %v2117 = vsub.s32 5, %v2116
    %v2118 = vrot.slane %v2060, %v2117
    %v2119 = vlaneseq
    %v2120 = vshrl.u32 %v2119, 7
    %v2121 = vsub.s32 6, %v2120
    %v2122 = vrot.slane %v2060, %v2121
    %v2123 = vlaneseq
    %v2124 = vshrl.u32 %v2123, 7
    %v2125 = vsub.s32 7, %v2124
    %v2126 = vrot.slane %v2060, %v2125
    %2143 = vmatprep.subr.mxu0 %v1548
    %2144 = vmatpush1.msra.mxu0 %v1547
    %2145 = vmatprep.subr.mxu0 %v1564
    %2146 = vmatpush1.msra.mxu0 %v1563
    %2147 = vmatprep.subr.mxu0 %v1580
    %2148 = vmatpush1.msra.mxu0 %v1579
    %2149 = vmatprep.subr.mxu0 %v1596
    %2150 = vmatpush1.msra.mxu0 %v1595
    %2151 = vmatprep.subr.mxu0 %v1612
    %2152 = vmatpush1.msra.mxu0 %v1611
    %2153 = vmatprep.subr.mxu0 %v1628
    %2154 = vmatpush1.msra.mxu0 %v1627
    %2155 = vmatprep.subr.mxu0 %v1644
    %2156 = vmatpush1.msra.mxu0 %v1643
    %2157 = vmatprep.subr.mxu0 %v1660
    %2158 = vmatpush1.msra.mxu0 %v1659
    %2159 = vmatprep.subr.mxu0 %v1676
    %2160 = vmatpush1.msra.mxu0 %v1675
    %2161 = vmatprep.subr.mxu0 %v1692
    %2162 = vmatpush1.msra.mxu0 %v1691
    %2163 = vmatprep.subr.mxu0 %v1708
    %2164 = vmatpush1.msra.mxu0 %v1707
    %2165 = vmatprep.subr.mxu0 %v1724
    %2166 = vmatpush1.msra.mxu0 %v1723
    %2167 = vmatprep.subr.mxu0 %v1740
    %2168 = vmatpush1.msra.mxu0 %v1739
    %2169 = vmatprep.subr.mxu0 %v1756
    %2170 = vmatpush1.msra.mxu0 %v1755
    %2171 = vmatprep.subr.mxu0 %v1772
    %2172 = vmatpush1.msra.mxu0 %v1771
    %2173 = vmatprep.subr.mxu0 %v1788
    %2174 = vmatpush1.msra.mxu0 %v1787
    %2175 = vmatprep.subr.mxu0 %v1804
    %2176 = vmatpush1.msra.mxu0 %v1803
    %2177 = vmatprep.subr.mxu0 %v1820
    %2178 = vmatpush1.msra.mxu0 %v1819
    %2179 = vmatprep.subr.mxu0 %v1836
    %2180 = vmatpush1.msra.mxu0 %v1835
    %2181 = vmatprep.subr.mxu0 %v1852
    %2182 = vmatpush1.msra.mxu0 %v1851
    %2183 = vmatprep.subr.mxu0 %v1868
    %2184 = vmatpush1.msra.mxu0 %v1867
    %2185 = vmatprep.subr.mxu0 %v1884
    %2186 = vmatpush1.msra.mxu0 %v1883
    %2187 = vmatprep.subr.mxu0 %v1900
    %2188 = vmatpush1.msra.mxu0 %v1899
    %2189 = vmatprep.subr.mxu0 %v1916
    %2190 = vmatpush1.msra.mxu0 %v1915
    %2191 = vmatprep.subr.mxu0 %v1932
    %2192 = vmatpush1.msra.mxu0 %v1931
    %2193 = vmatprep.subr.mxu0 %v1948
    %2194 = vmatpush1.msra.mxu0 %v1947
    %2195 = vmatprep.subr.mxu0 %v1964
    %2196 = vmatpush1.msra.mxu0 %v1963
    %2197 = vmatprep.subr.mxu0 %v1980
    %2198 = vmatpush1.msra.mxu0 %v1979
    %2199 = vmatprep.subr.mxu0 %v1996
    %2200 = vmatpush1.msra.mxu0 %v1995
    %2201 = vmatprep.subr.mxu0 %v2012
    %2202 = vmatpush1.msra.mxu0 %v2011
    %2203 = vmatprep.subr.mxu0 %v2028
    %2204 = vmatpush1.msra.mxu0 %v2027
    %2205 = vmatprep.subr.mxu0 %v2044
    %2206 = vmatpush1.msra.mxu0 %v2043
    %2207 = vmatprep.mubr.f32.mxu0 %v1545
    %2208 = vmatmul.mubr.f32.gmra.mrb[0].mxu0 %v1543
    %v2209 = vpop.f32.mrb[0].mxu0
    %v2210 = vadd.f32 %v2066, %v2209
    %v2211 = vpop.f32.mrb[0].mxu0
    %v2212 = vadd.f32 %v2070, %v2211
    %2213 = vdwg.mxu0
    %2214 = vmatprep.subr.mxu0 %v1550
    %2215 = vmatpush1.msra.mxu0 %v1549
    %2216 = vmatprep.subr.mxu0 %v1566
    %2217 = vmatpush1.msra.mxu0 %v1565
    %2218 = vmatprep.subr.mxu0 %v1582
    %2219 = vmatpush1.msra.mxu0 %v1581
    %2220 = vmatprep.subr.mxu0 %v1598
    %2221 = vmatpush1.msra.mxu0 %v1597
    %2222 = vmatprep.subr.mxu0 %v1614
    %2223 = vmatpush1.msra.mxu0 %v1613
    %2224 = vmatprep.subr.mxu0 %v1630
    %2225 = vmatpush1.msra.mxu0 %v1629
    %2226 = vmatprep.subr.mxu0 %v1646
    %2227 = vmatpush1.msra.mxu0 %v1645
    %2228 = vmatprep.subr.mxu0 %v1662
    %2229 = vmatpush1.msra.mxu0 %v1661
    %2230 = vmatprep.subr.mxu0 %v1678
    %2231 = vmatpush1.msra.mxu0 %v1677
    %2232 = vmatprep.subr.mxu0 %v1694
    %2233 = vmatpush1.msra.mxu0 %v1693
    %2234 = vmatprep.subr.mxu0 %v1710
    %2235 = vmatpush1.msra.mxu0 %v1709
    %2236 = vmatprep.subr.mxu0 %v1726
    %2237 = vmatpush1.msra.mxu0 %v1725
    %2238 = vmatprep.subr.mxu0 %v1742
    %2239 = vmatpush1.msra.mxu0 %v1741
    %2240 = vmatprep.subr.mxu0 %v1758
    %2241 = vmatpush1.msra.mxu0 %v1757
    %2242 = vmatprep.subr.mxu0 %v1774
    %2243 = vmatpush1.msra.mxu0 %v1773
    %2244 = vmatprep.subr.mxu0 %v1790
    %2245 = vmatpush1.msra.mxu0 %v1789
    %2246 = vmatprep.subr.mxu0 %v1806
    %2247 = vmatpush1.msra.mxu0 %v1805
    %2248 = vmatprep.subr.mxu0 %v1822
    %2249 = vmatpush1.msra.mxu0 %v1821
    %2250 = vmatprep.subr.mxu0 %v1838
    %2251 = vmatpush1.msra.mxu0 %v1837
    %2252 = vmatprep.subr.mxu0 %v1854
    %2253 = vmatpush1.msra.mxu0 %v1853
    %2254 = vmatprep.subr.mxu0 %v1870
    %2255 = vmatpush1.msra.mxu0 %v1869
    %2256 = vmatprep.subr.mxu0 %v1886
    %2257 = vmatpush1.msra.mxu0 %v1885
    %2258 = vmatprep.subr.mxu0 %v1902
    %2259 = vmatpush1.msra.mxu0 %v1901
    %2260 = vmatprep.subr.mxu0 %v1918
    %2261 = vmatpush1.msra.mxu0 %v1917
    %2262 = vmatprep.subr.mxu0 %v1934
    %2263 = vmatpush1.msra.mxu0 %v1933
    %2264 = vmatprep.subr.mxu0 %v1950
    %2265 = vmatpush1.msra.mxu0 %v1949
    %2266 = vmatprep.subr.mxu0 %v1966
    %2267 = vmatpush1.msra.mxu0 %v1965
    %2268 = vmatprep.subr.mxu0 %v1982
    %2269 = vmatpush1.msra.mxu0 %v1981
    %2270 = vmatprep.subr.mxu0 %v1998
    %2271 = vmatpush1.msra.mxu0 %v1997
    %2272 = vmatprep.subr.mxu0 %v2014
    %2273 = vmatpush1.msra.mxu0 %v2013
    %2274 = vmatprep.subr.mxu0 %v2030
    %2275 = vmatpush1.msra.mxu0 %v2029
    %2276 = vmatprep.subr.mxu0 %v2046
    %2277 = vmatpush1.msra.mxu0 %v2045
    %2278 = vmatprep.mubr.f32.mxu0 %v1545
    %2279 = vmatmul.mubr.f32.gmra.mrb[0].mxu0 %v1543
    %v2280 = vpop.f32.mrb[0].mxu0
    %v2281 = vadd.f32 %v2074, %v2280
    %v2282 = vpop.f32.mrb[0].mxu0
    %v2283 = vadd.f32 %v2078, %v2282
    %2284 = vdwg.mxu0
    %2285 = vmatprep.subr.mxu0 %v1552
    %2286 = vmatpush1.msra.mxu0 %v1551
    %2287 = vmatprep.subr.mxu0 %v1568
    %2288 = vmatpush1.msra.mxu0 %v1567
    %2289 = vmatprep.subr.mxu0 %v1584
    %2290 = vmatpush1.msra.mxu0 %v1583
    %2291 = vmatprep.subr.mxu0 %v1600
    %2292 = vmatpush1.msra.mxu0 %v1599
    %2293 = vmatprep.subr.mxu0 %v1616
    %2294 = vmatpush1.msra.mxu0 %v1615
    %2295 = vmatprep.subr.mxu0 %v1632
    %2296 = vmatpush1.msra.mxu0 %v1631
    %2297 = vmatprep.subr.mxu0 %v1648
    %2298 = vmatpush1.msra.mxu0 %v1647
    %2299 = vmatprep.subr.mxu0 %v1664
    %2300 = vmatpush1.msra.mxu0 %v1663
    %2301 = vmatprep.subr.mxu0 %v1680
    %2302 = vmatpush1.msra.mxu0 %v1679
    %2303 = vmatprep.subr.mxu0 %v1696
    %2304 = vmatpush1.msra.mxu0 %v1695
    %2305 = vmatprep.subr.mxu0 %v1712
    %2306 = vmatpush1.msra.mxu0 %v1711
    %2307 = vmatprep.subr.mxu0 %v1728
    %2308 = vmatpush1.msra.mxu0 %v1727
    %2309 = vmatprep.subr.mxu0 %v1744
    %2310 = vmatpush1.msra.mxu0 %v1743
    %2311 = vmatprep.subr.mxu0 %v1760
    %2312 = vmatpush1.msra.mxu0 %v1759
    %2313 = vmatprep.subr.mxu0 %v1776
    %2314 = vmatpush1.msra.mxu0 %v1775
    %2315 = vmatprep.subr.mxu0 %v1792
    %2316 = vmatpush1.msra.mxu0 %v1791
    %2317 = vmatprep.subr.mxu0 %v1808
    %2318 = vmatpush1.msra.mxu0 %v1807
    %2319 = vmatprep.subr.mxu0 %v1824
    %2320 = vmatpush1.msra.mxu0 %v1823
    %2321 = vmatprep.subr.mxu0 %v1840
    %2322 = vmatpush1.msra.mxu0 %v1839
    %2323 = vmatprep.subr.mxu0 %v1856
    %2324 = vmatpush1.msra.mxu0 %v1855
    %2325 = vmatprep.subr.mxu0 %v1872
    %2326 = vmatpush1.msra.mxu0 %v1871
    %2327 = vmatprep.subr.mxu0 %v1888
    %2328 = vmatpush1.msra.mxu0 %v1887
    %2329 = vmatprep.subr.mxu0 %v1904
    %2330 = vmatpush1.msra.mxu0 %v1903
    %2331 = vmatprep.subr.mxu0 %v1920
    %2332 = vmatpush1.msra.mxu0 %v1919
    %2333 = vmatprep.subr.mxu0 %v1936
    %2334 = vmatpush1.msra.mxu0 %v1935
    %2335 = vmatprep.subr.mxu0 %v1952
    %2336 = vmatpush1.msra.mxu0 %v1951
    %2337 = vmatprep.subr.mxu0 %v1968
    %2338 = vmatpush1.msra.mxu0 %v1967
    %2339 = vmatprep.subr.mxu0 %v1984
    %2340 = vmatpush1.msra.mxu0 %v1983
    %2341 = vmatprep.subr.mxu0 %v2000
    %2342 = vmatpush1.msra.mxu0 %v1999
    %2343 = vmatprep.subr.mxu0 %v2016
    %2344 = vmatpush1.msra.mxu0 %v2015
    %2345 = vmatprep.subr.mxu0 %v2032
    %2346 = vmatpush1.msra.mxu0 %v2031
    %2347 = vmatprep.subr.mxu0 %v2048
    %2348 = vmatpush1.msra.mxu0 %v2047
    %2349 = vmatprep.mubr.f32.mxu0 %v1545
    %2350 = vmatmul.mubr.f32.gmra.mrb[0].mxu0 %v1543
    %v2351 = vpop.f32.mrb[0].mxu0
    %v2352 = vadd.f32 %v2082, %v2351
    %v2353 = vpop.f32.mrb[0].mxu0
    %v2354 = vadd.f32 %v2086, %v2353
    %2355 = vdwg.mxu0
    %2356 = vmatprep.subr.mxu0 %v1554
    %2357 = vmatpush1.msra.mxu0 %v1553
    %2358 = vmatprep.subr.mxu0 %v1570
    %2359 = vmatpush1.msra.mxu0 %v1569
    %2360 = vmatprep.subr.mxu0 %v1586
    %2361 = vmatpush1.msra.mxu0 %v1585
    %2362 = vmatprep.subr.mxu0 %v1602
    %2363 = vmatpush1.msra.mxu0 %v1601
    %2364 = vmatprep.subr.mxu0 %v1618
    %2365 = vmatpush1.msra.mxu0 %v1617
    %2366 = vmatprep.subr.mxu0 %v1634
    %2367 = vmatpush1.msra.mxu0 %v1633
    %2368 = vmatprep.subr.mxu0 %v1650
    %2369 = vmatpush1.msra.mxu0 %v1649
    %2370 = vmatprep.subr.mxu0 %v1666
    %2371 = vmatpush1.msra.mxu0 %v1665
    %2372 = vmatprep.subr.mxu0 %v1682
    %2373 = vmatpush1.msra.mxu0 %v1681
    %2374 = vmatprep.subr.mxu0 %v1698
    %2375 = vmatpush1.msra.mxu0 %v1697
    %2376 = vmatprep.subr.mxu0 %v1714
    %2377 = vmatpush1.msra.mxu0 %v1713
    %2378 = vmatprep.subr.mxu0 %v1730
    %2379 = vmatpush1.msra.mxu0 %v1729
    %2380 = vmatprep.subr.mxu0 %v1746
    %2381 = vmatpush1.msra.mxu0 %v1745
    %2382 = vmatprep.subr.mxu0 %v1762
    %2383 = vmatpush1.msra.mxu0 %v1761
    %2384 = vmatprep.subr.mxu0 %v1778
    %2385 = vmatpush1.msra.mxu0 %v1777
    %2386 = vmatprep.subr.mxu0 %v1794
    %2387 = vmatpush1.msra.mxu0 %v1793
    %2388 = vmatprep.subr.mxu0 %v1810
    %2389 = vmatpush1.msra.mxu0 %v1809
    %2390 = vmatprep.subr.mxu0 %v1826
    %2391 = vmatpush1.msra.mxu0 %v1825
    %2392 = vmatprep.subr.mxu0 %v1842
    %2393 = vmatpush1.msra.mxu0 %v1841
    %2394 = vmatprep.subr.mxu0 %v1858
    %2395 = vmatpush1.msra.mxu0 %v1857
    %2396 = vmatprep.subr.mxu0 %v1874
    %2397 = vmatpush1.msra.mxu0 %v1873
    %2398 = vmatprep.subr.mxu0 %v1890
    %2399 = vmatpush1.msra.mxu0 %v1889
    %2400 = vmatprep.subr.mxu0 %v1906
    %2401 = vmatpush1.msra.mxu0 %v1905
    %2402 = vmatprep.subr.mxu0 %v1922
    %2403 = vmatpush1.msra.mxu0 %v1921
    %2404 = vmatprep.subr.mxu0 %v1938
    %2405 = vmatpush1.msra.mxu0 %v1937
    %2406 = vmatprep.subr.mxu0 %v1954
    %2407 = vmatpush1.msra.mxu0 %v1953
    %2408 = vmatprep.subr.mxu0 %v1970
    %2409 = vmatpush1.msra.mxu0 %v1969
    %2410 = vmatprep.subr.mxu0 %v1986
    %2411 = vmatpush1.msra.mxu0 %v1985
    %2412 = vmatprep.subr.mxu0 %v2002
    %2413 = vmatpush1.msra.mxu0 %v2001
    %2414 = vmatprep.subr.mxu0 %v2018
    %2415 = vmatpush1.msra.mxu0 %v2017
    %2416 = vmatprep.subr.mxu0 %v2034
    %2417 = vmatpush1.msra.mxu0 %v2033
    %2418 = vmatprep.subr.mxu0 %v2050
    %2419 = vmatpush1.msra.mxu0 %v2049
    %2420 = vmatprep.mubr.f32.mxu0 %v1545
    %2421 = vmatmul.mubr.f32.gmra.mrb[0].mxu0 %v1543
    %v2422 = vpop.f32.mrb[0].mxu0
    %v2423 = vadd.f32 %v2090, %v2422
    %v2424 = vpop.f32.mrb[0].mxu0
    %v2425 = vadd.f32 %v2094, %v2424
    %2426 = vdwg.mxu0
    %2427 = vmatprep.subr.mxu0 %v1556
    %2428 = vmatpush1.msra.mxu0 %v1555
    %2429 = vmatprep.subr.mxu0 %v1572
    %2430 = vmatpush1.msra.mxu0 %v1571
    %2431 = vmatprep.subr.mxu0 %v1588
    %2432 = vmatpush1.msra.mxu0 %v1587
    %2433 = vmatprep.subr.mxu0 %v1604
    %2434 = vmatpush1.msra.mxu0 %v1603
    %2435 = vmatprep.subr.mxu0 %v1620
    %2436 = vmatpush1.msra.mxu0 %v1619
    %2437 = vmatprep.subr.mxu0 %v1636
    %2438 = vmatpush1.msra.mxu0 %v1635
    %2439 = vmatprep.subr.mxu0 %v1652
    %2440 = vmatpush1.msra.mxu0 %v1651
    %2441 = vmatprep.subr.mxu0 %v1668
    %2442 = vmatpush1.msra.mxu0 %v1667
    %2443 = vmatprep.subr.mxu0 %v1684
    %2444 = vmatpush1.msra.mxu0 %v1683
    %2445 = vmatprep.subr.mxu0 %v1700
    %2446 = vmatpush1.msra.mxu0 %v1699
    %2447 = vmatprep.subr.mxu0 %v1716
    %2448 = vmatpush1.msra.mxu0 %v1715
    %2449 = vmatprep.subr.mxu0 %v1732
    %2450 = vmatpush1.msra.mxu0 %v1731
    %2451 = vmatprep.subr.mxu0 %v1748
    %2452 = vmatpush1.msra.mxu0 %v1747
    %2453 = vmatprep.subr.mxu0 %v1764
    %2454 = vmatpush1.msra.mxu0 %v1763
    %2455 = vmatprep.subr.mxu0 %v1780
    %2456 = vmatpush1.msra.mxu0 %v1779
    %2457 = vmatprep.subr.mxu0 %v1796
    %2458 = vmatpush1.msra.mxu0 %v1795
    %2459 = vmatprep.subr.mxu0 %v1812
    %2460 = vmatpush1.msra.mxu0 %v1811
    %2461 = vmatprep.subr.mxu0 %v1828
    %2462 = vmatpush1.msra.mxu0 %v1827
    %2463 = vmatprep.subr.mxu0 %v1844
    %2464 = vmatpush1.msra.mxu0 %v1843
    %2465 = vmatprep.subr.mxu0 %v1860
    %2466 = vmatpush1.msra.mxu0 %v1859
    %2467 = vmatprep.subr.mxu0 %v1876
    %2468 = vmatpush1.msra.mxu0 %v1875
    %2469 = vmatprep.subr.mxu0 %v1892
    %2470 = vmatpush1.msra.mxu0 %v1891
    %2471 = vmatprep.subr.mxu0 %v1908
    %2472 = vmatpush1.msra.mxu0 %v1907
    %2473 = vmatprep.subr.mxu0 %v1924
    %2474 = vmatpush1.msra.mxu0 %v1923
    %2475 = vmatprep.subr.mxu0 %v1940
    %2476 = vmatpush1.msra.mxu0 %v1939
    %2477 = vmatprep.subr.mxu0 %v1956
    %2478 = vmatpush1.msra.mxu0 %v1955
    %2479 = vmatprep.subr.mxu0 %v1972
    %2480 = vmatpush1.msra.mxu0 %v1971
    %2481 = vmatprep.subr.mxu0 %v1988
    %2482 = vmatpush1.msra.mxu0 %v1987
    %2483 = vmatprep.subr.mxu0 %v2004
    %2484 = vmatpush1.msra.mxu0 %v2003
    %2485 = vmatprep.subr.mxu0 %v2020
    %2486 = vmatpush1.msra.mxu0 %v2019
    %2487 = vmatprep.subr.mxu0 %v2036
    %2488 = vmatpush1.msra.mxu0 %v2035
    %2489 = vmatprep.subr.mxu0 %v2052
    %2490 = vmatpush1.msra.mxu0 %v2051
    %2491 = vmatprep.mubr.f32.mxu0 %v1545
    %2492 = vmatmul.mubr.f32.gmra.mrb[0].mxu0 %v1543
    %v2493 = vpop.f32.mrb[0].mxu0
    %v2494 = vadd.f32 %v2098, %v2493
    %v2495 = vpop.f32.mrb[0].mxu0
    %v2496 = vadd.f32 %v2102, %v2495
    %2497 = vdwg.mxu0
    %2498 = vmatprep.subr.mxu0 %v1558
    %2499 = vmatpush1.msra.mxu0 %v1557
    %2500 = vmatprep.subr.mxu0 %v1574
    %2501 = vmatpush1.msra.mxu0 %v1573
    %2502 = vmatprep.subr.mxu0 %v1590
    %2503 = vmatpush1.msra.mxu0 %v1589
    %2504 = vmatprep.subr.mxu0 %v1606
    %2505 = vmatpush1.msra.mxu0 %v1605
    %2506 = vmatprep.subr.mxu0 %v1622
    %2507 = vmatpush1.msra.mxu0 %v1621
    %2508 = vmatprep.subr.mxu0 %v1638
    %2509 = vmatpush1.msra.mxu0 %v1637
    %2510 = vmatprep.subr.mxu0 %v1654
    %2511 = vmatpush1.msra.mxu0 %v1653
    %2512 = vmatprep.subr.mxu0 %v1670
    %2513 = vmatpush1.msra.mxu0 %v1669
    %2514 = vmatprep.subr.mxu0 %v1686
    %2515 = vmatpush1.msra.mxu0 %v1685
    %2516 = vmatprep.subr.mxu0 %v1702
    %2517 = vmatpush1.msra.mxu0 %v1701
    %2518 = vmatprep.subr.mxu0 %v1718
    %2519 = vmatpush1.msra.mxu0 %v1717
    %2520 = vmatprep.subr.mxu0 %v1734
    %2521 = vmatpush1.msra.mxu0 %v1733
    %2522 = vmatprep.subr.mxu0 %v1750
    %2523 = vmatpush1.msra.mxu0 %v1749
    %2524 = vmatprep.subr.mxu0 %v1766
    %2525 = vmatpush1.msra.mxu0 %v1765
    %2526 = vmatprep.subr.mxu0 %v1782
    %2527 = vmatpush1.msra.mxu0 %v1781
    %2528 = vmatprep.subr.mxu0 %v1798
    %2529 = vmatpush1.msra.mxu0 %v1797
    %2530 = vmatprep.subr.mxu0 %v1814
    %2531 = vmatpush1.msra.mxu0 %v1813
    %2532 = vmatprep.subr.mxu0 %v1830
    %2533 = vmatpush1.msra.mxu0 %v1829
    %2534 = vmatprep.subr.mxu0 %v1846
    %2535 = vmatpush1.msra.mxu0 %v1845
    %2536 = vmatprep.subr.mxu0 %v1862
    %2537 = vmatpush1.msra.mxu0 %v1861
    %2538 = vmatprep.subr.mxu0 %v1878
    %2539 = vmatpush1.msra.mxu0 %v1877
    %2540 = vmatprep.subr.mxu0 %v1894
    %2541 = vmatpush1.msra.mxu0 %v1893
    %2542 = vmatprep.subr.mxu0 %v1910
    %2543 = vmatpush1.msra.mxu0 %v1909
    %2544 = vmatprep.subr.mxu0 %v1926
    %2545 = vmatpush1.msra.mxu0 %v1925
    %2546 = vmatprep.subr.mxu0 %v1942
    %2547 = vmatpush1.msra.mxu0 %v1941
    %2548 = vmatprep.subr.mxu0 %v1958
    %2549 = vmatpush1.msra.mxu0 %v1957
    %2550 = vmatprep.subr.mxu0 %v1974
    %2551 = vmatpush1.msra.mxu0 %v1973
    %2552 = vmatprep.subr.mxu0 %v1990
    %2553 = vmatpush1.msra.mxu0 %v1989
    %2554 = vmatprep.subr.mxu0 %v2006
    %2555 = vmatpush1.msra.mxu0 %v2005
    %2556 = vmatprep.subr.mxu0 %v2022
    %2557 = vmatpush1.msra.mxu0 %v2021
    %2558 = vmatprep.subr.mxu0 %v2038
    %2559 = vmatpush1.msra.mxu0 %v2037
    %2560 = vmatprep.subr.mxu0 %v2054
    %2561 = vmatpush1.msra.mxu0 %v2053
    %2562 = vmatprep.mubr.f32.mxu0 %v1545
    %2563 = vmatmul.mubr.f32.gmra.mrb[0].mxu0 %v1543
    %v2564 = vpop.f32.mrb[0].mxu0
    %v2565 = vadd.f32 %v2106, %v2564
    %v2566 = vpop.f32.mrb[0].mxu0
    %v2567 = vadd.f32 %v2110, %v2566
    %2568 = vdwg.mxu0
    %2569 = vmatprep.subr.mxu0 %v1560
    %2570 = vmatpush1.msra.mxu0 %v1559
    %2571 = vmatprep.subr.mxu0 %v1576
    %2572 = vmatpush1.msra.mxu0 %v1575
    %2573 = vmatprep.subr.mxu0 %v1592
    %2574 = vmatpush1.msra.mxu0 %v1591
    %2575 = vmatprep.subr.mxu0 %v1608
    %2576 = vmatpush1.msra.mxu0 %v1607
    %2577 = vmatprep.subr.mxu0 %v1624
    %2578 = vmatpush1.msra.mxu0 %v1623
    %2579 = vmatprep.subr.mxu0 %v1640
    %2580 = vmatpush1.msra.mxu0 %v1639
    %2581 = vmatprep.subr.mxu0 %v1656
    %2582 = vmatpush1.msra.mxu0 %v1655
    %2583 = vmatprep.subr.mxu0 %v1672
    %2584 = vmatpush1.msra.mxu0 %v1671
    %2585 = vmatprep.subr.mxu0 %v1688
    %2586 = vmatpush1.msra.mxu0 %v1687
    %2587 = vmatprep.subr.mxu0 %v1704
    %2588 = vmatpush1.msra.mxu0 %v1703
    %2589 = vmatprep.subr.mxu0 %v1720
    %2590 = vmatpush1.msra.mxu0 %v1719
    %2591 = vmatprep.subr.mxu0 %v1736
    %2592 = vmatpush1.msra.mxu0 %v1735
    %2593 = vmatprep.subr.mxu0 %v1752
    %2594 = vmatpush1.msra.mxu0 %v1751
    %2595 = vmatprep.subr.mxu0 %v1768
    %2596 = vmatpush1.msra.mxu0 %v1767
    %2597 = vmatprep.subr.mxu0 %v1784
    %2598 = vmatpush1.msra.mxu0 %v1783
    %2599 = vmatprep.subr.mxu0 %v1800
    %2600 = vmatpush1.msra.mxu0 %v1799
    %2601 = vmatprep.subr.mxu0 %v1816
    %2602 = vmatpush1.msra.mxu0 %v1815
    %2603 = vmatprep.subr.mxu0 %v1832
    %2604 = vmatpush1.msra.mxu0 %v1831
    %2605 = vmatprep.subr.mxu0 %v1848
    %2606 = vmatpush1.msra.mxu0 %v1847
    %2607 = vmatprep.subr.mxu0 %v1864
    %2608 = vmatpush1.msra.mxu0 %v1863
    %2609 = vmatprep.subr.mxu0 %v1880
    %2610 = vmatpush1.msra.mxu0 %v1879
    %2611 = vmatprep.subr.mxu0 %v1896
    %2612 = vmatpush1.msra.mxu0 %v1895
    %2613 = vmatprep.subr.mxu0 %v1912
    %2614 = vmatpush1.msra.mxu0 %v1911
    %2615 = vmatprep.subr.mxu0 %v1928
    %2616 = vmatpush1.msra.mxu0 %v1927
    %2617 = vmatprep.subr.mxu0 %v1944
    %2618 = vmatpush1.msra.mxu0 %v1943
    %2619 = vmatprep.subr.mxu0 %v1960
    %2620 = vmatpush1.msra.mxu0 %v1959
    %2621 = vmatprep.subr.mxu0 %v1976
    %2622 = vmatpush1.msra.mxu0 %v1975
    %2623 = vmatprep.subr.mxu0 %v1992
    %2624 = vmatpush1.msra.mxu0 %v1991
    %2625 = vmatprep.subr.mxu0 %v2008
    %2626 = vmatpush1.msra.mxu0 %v2007
    %2627 = vmatprep.subr.mxu0 %v2024
    %2628 = vmatpush1.msra.mxu0 %v2023
    %2629 = vmatprep.subr.mxu0 %v2040
    %2630 = vmatpush1.msra.mxu0 %v2039
    %2631 = vmatprep.subr.mxu0 %v2056
    %2632 = vmatpush1.msra.mxu0 %v2055
    %2633 = vmatprep.mubr.f32.mxu0 %v1545
    %2634 = vmatmul.mubr.f32.gmra.mrb[0].mxu0 %v1543
    %v2635 = vpop.f32.mrb[0].mxu0
    %v2636 = vadd.f32 %v2114, %v2635
    %v2637 = vpop.f32.mrb[0].mxu0
    %v2638 = vadd.f32 %v2118, %v2637
    %2639 = vdwg.mxu0
    %2640 = vmatprep.subr.mxu0 %v1562
    %2641 = vmatpush1.msra.mxu0 %v1561
    %2642 = vmatprep.subr.mxu0 %v1578
    %2643 = vmatpush1.msra.mxu0 %v1577
    %2644 = vmatprep.subr.mxu0 %v1594
    %2645 = vmatpush1.msra.mxu0 %v1593
    %2646 = vmatprep.subr.mxu0 %v1610
    %2647 = vmatpush1.msra.mxu0 %v1609
    %2648 = vmatprep.subr.mxu0 %v1626
    %2649 = vmatpush1.msra.mxu0 %v1625
    %2650 = vmatprep.subr.mxu0 %v1642
    %2651 = vmatpush1.msra.mxu0 %v1641
    %2652 = vmatprep.subr.mxu0 %v1658
    %2653 = vmatpush1.msra.mxu0 %v1657
    %2654 = vmatprep.subr.mxu0 %v1674
    %2655 = vmatpush1.msra.mxu0 %v1673
    %2656 = vmatprep.subr.mxu0 %v1690
    %2657 = vmatpush1.msra.mxu0 %v1689
    %2658 = vmatprep.subr.mxu0 %v1706
    %2659 = vmatpush1.msra.mxu0 %v1705
    %2660 = vmatprep.subr.mxu0 %v1722
    %2661 = vmatpush1.msra.mxu0 %v1721
    %2662 = vmatprep.subr.mxu0 %v1738
    %2663 = vmatpush1.msra.mxu0 %v1737
    %2664 = vmatprep.subr.mxu0 %v1754
    %2665 = vmatpush1.msra.mxu0 %v1753
    %2666 = vmatprep.subr.mxu0 %v1770
    %2667 = vmatpush1.msra.mxu0 %v1769
    %2668 = vmatprep.subr.mxu0 %v1786
    %2669 = vmatpush1.msra.mxu0 %v1785
    %2670 = vmatprep.subr.mxu0 %v1802
    %2671 = vmatpush1.msra.mxu0 %v1801
    %2672 = vmatprep.subr.mxu0 %v1818
    %2673 = vmatpush1.msra.mxu0 %v1817
    %2674 = vmatprep.subr.mxu0 %v1834
    %2675 = vmatpush1.msra.mxu0 %v1833
    %2676 = vmatprep.subr.mxu0 %v1850
    %2677 = vmatpush1.msra.mxu0 %v1849
    %2678 = vmatprep.subr.mxu0 %v1866
    %2679 = vmatpush1.msra.mxu0 %v1865
    %2680 = vmatprep.subr.mxu0 %v1882
    %2681 = vmatpush1.msra.mxu0 %v1881
    %2682 = vmatprep.subr.mxu0 %v1898
    %2683 = vmatpush1.msra.mxu0 %v1897
    %2684 = vmatprep.subr.mxu0 %v1914
    %2685 = vmatpush1.msra.mxu0 %v1913
    %2686 = vmatprep.subr.mxu0 %v1930
    %2687 = vmatpush1.msra.mxu0 %v1929
    %2688 = vmatprep.subr.mxu0 %v1946
    %2689 = vmatpush1.msra.mxu0 %v1945
    %2690 = vmatprep.subr.mxu0 %v1962
    %2691 = vmatpush1.msra.mxu0 %v1961
    %2692 = vmatprep.subr.mxu0 %v1978
    %2693 = vmatpush1.msra.mxu0 %v1977
    %2694 = vmatprep.subr.mxu0 %v1994
    %2695 = vmatpush1.msra.mxu0 %v1993
    %2696 = vmatprep.subr.mxu0 %v2010
    %2697 = vmatpush1.msra.mxu0 %v2009
    %2698 = vmatprep.subr.mxu0 %v2026
    %2699 = vmatpush1.msra.mxu0 %v2025
    %2700 = vmatprep.subr.mxu0 %v2042
    %2701 = vmatpush1.msra.mxu0 %v2041
    %2702 = vmatprep.subr.mxu0 %v2058
    %2703 = vmatpush1.msra.mxu0 %v2057
    %2704 = vmatprep.mubr.f32.mxu0 %v1545
    %2705 = vmatmul.mubr.f32.gmra.mrb[0].mxu0 %v1543
    %v2706 = vpop.f32.mrb[0].mxu0
    %v2707 = vadd.f32 %v2122, %v2706
    %v2708 = vpop.f32.mrb[0].mxu0
    %v2709 = vadd.f32 %v2126, %v2708
    %2710 = vdwg.mxu0
    %vm2711 = vcmask 123904
    %2712 = vst.msk [vmem:[#allocation2] sm:$0x3] %vm2711, %v1338
    %2713 = vst.msk [vmem:[#allocation4] sm:$0x3] %vm2711, %v1447
    %v2714 = vmax.f32 %v2210, 0.0
    %v2715 = vmax.f32 %v2212, 0.0
    %v2716 = vmax.f32 %v2281, 0.0
    %v2717 = vmax.f32 %v2283, 0.0
    %v2718 = vmax.f32 %v2352, 0.0
    %v2719 = vmax.f32 %v2354, 0.0
    %v2720 = vmax.f32 %v2423, 0.0
    %v2721 = vmax.f32 %v2425, 0.0
    %v2722 = vmax.f32 %v2494, 0.0
    %v2723 = vmax.f32 %v2496, 0.0
    %v2724 = vmax.f32 %v2565, 0.0
    %v2725 = vmax.f32 %v2567, 0.0
    %v2726 = vmax.f32 %v2636, 0.0
    %v2727 = vmax.f32 %v2638, 0.0
    %v2728 = vmax.f32 %v2707, 0.0
    %v2729 = vmax.f32 %v2709, 0.0
    %v2746 = vcombine.low %v2714, %v2715
    %v2747 = vcombine.low %v2716, %v2717
    %v2749 = vunpack.c.l.s4 1983009808
    %v2750 = vunpack.c.0.s8 %v2749
    %v2751 = vlaneseq
    %v2752 = vshrl.u32 %v2751, 7
    %v2753 = vsub.s32 %v2750, %v2752
    %v2754 = vrot.slane %v2746, %v2753
    %v2756 = vunpack.c.l.s4 1983009808
    %v2757 = vunpack.c.0.s8 %v2756
    %v2758 = vlaneseq
    %v2759 = vshrl.u32 %v2758, 7
    %v2760 = vsub.s32 %v2757, %v2759
    %v2761 = vrot.slane %v2747, %v2760
    %v2762 = vcombine.low %v2754, %v2761
    %v2763 = vcombine.low %v2718, %v2719
    %v2764 = vcombine.low %v2720, %v2721
    %v2766 = vunpack.c.l.s4 1983009808
    %v2767 = vunpack.c.0.s8 %v2766
    %v2768 = vlaneseq
    %v2769 = vshrl.u32 %v2768, 7
    %v2770 = vsub.s32 %v2767, %v2769
    %v2771 = vrot.slane %v2763, %v2770
    %v2773 = vunpack.c.l.s4 1983009808
    %v2774 = vunpack.c.0.s8 %v2773
    %v2775 = vlaneseq
    %v2776 = vshrl.u32 %v2775, 7
    %v2777 = vsub.s32 %v2774, %v2776
    %v2778 = vrot.slane %v2764, %v2777
    %v2779 = vcombine.low %v2771, %v2778
    %v2780 = vcombine.low %v2722, %v2723
    %v2781 = vcombine.low %v2724, %v2725
    %v2783 = vunpack.c.l.s4 1983009808
    %v2784 = vunpack.c.0.s8 %v2783
    %v2785 = vlaneseq
    %v2786 = vshrl.u32 %v2785, 7
    %v2787 = vsub.s32 %v2784, %v2786
    %v2788 = vrot.slane %v2780, %v2787
    %v2790 = vunpack.c.l.s4 1983009808
    %v2791 = vunpack.c.0.s8 %v2790
    %v2792 = vlaneseq
    %v2793 = vshrl.u32 %v2792, 7
    %v2794 = vsub.s32 %v2791, %v2793
    %v2795 = vrot.slane %v2781, %v2794
    %v2796 = vcombine.low %v2788, %v2795
    %v2797 = vcombine.low %v2726, %v2727
    %v2798 = vcombine.low %v2728, %v2729
    %v2800 = vunpack.c.l.s4 1983009808
    %v2801 = vunpack.c.0.s8 %v2800
    %v2802 = vlaneseq
    %v2803 = vshrl.u32 %v2802, 7
    %v2804 = vsub.s32 %v2801, %v2803
    %v2805 = vrot.slane %v2797, %v2804
    %v2807 = vunpack.c.l.s4 1983009808
    %v2808 = vunpack.c.0.s8 %v2807
    %v2809 = vlaneseq
    %v2810 = vshrl.u32 %v2809, 7
    %v2811 = vsub.s32 %v2808, %v2810
    %v2812 = vrot.slane %v2798, %v2811
    %v2813 = vcombine.low %v2805, %v2812
    %2818 = vst [vmem:[%s14] sm:$0xff] %v2762
    %2819 = vst [vmem:[%s14 + $0x8] sm:$0xff] %v2779
    %2820 = vst [vmem:[%s14 + $0x10] sm:$0xff] %v2796
    %2821 = vst [vmem:[%s14 + $0x18] sm:$0xff] %v2813
    // Predicated region
    $region50: #{betavae_forward.10} parent=1 // pred_check
      _
    $region51: #{betavae_forward.10} parent=1 // pred_check_branch
      %2823 = sbr.rel (0) target = $region53
    $region52: #{betavae_forward.10} parent=1 // pred_region
      %s2825 = ssub.s32 32, 32
      %2826 = vsyncadd [#allocation3], %s2825
      %s2828 = sshll.u32 [#allocation2], 4
      %s2829 = int_to_ptr.vmem [resolvable:$true] %s2828
      %2831 = dma.vmem_to_hbm [thread:$0]  %s2829, 32, %s12, [#allocation3]
    $region53: #{betavae_forward.10} parent=1 // pred_fallthru
      _
    // Predicated region
    $region54: #{betavae_forward.10} parent=1 // pred_check
      _
    $region55: #{betavae_forward.10} parent=1 // pred_check_branch
      %2833 = sbr.rel (0) target = $region57
    $region56: #{betavae_forward.10} parent=1 // pred_region
      %s2835 = ssub.s32 32, 32
      %2836 = vsyncadd [#allocation5], %s2835
      %s2838 = sshll.u32 [#allocation4], 4
      %s2839 = int_to_ptr.vmem [resolvable:$true] %s2838
      %2841 = dma.vmem_to_hbm [thread:$0]  %s2839, 32, %s13, [#allocation5]
    $region57: #{betavae_forward.10} parent=1 // pred_fallthru
      _
    // Predicated region
    $region58: #{betavae_forward.10} parent=1 // pred_check
      _
    $region59: #{betavae_forward.10} parent=1 // pred_check_branch
      %2843 = sbr.rel (0) target = $region61
    $region60: #{betavae_forward.10} parent=1 // pred_region
      _
    $region61: #{betavae_forward.10} parent=1 // pred_fallthru
      _
    // Predicated region
    $region62: #{betavae_forward.10} parent=1 // pred_check
      _
    $region63: #{betavae_forward.10} parent=1 // pred_check_branch
      %2845 = sbr.rel (0) target = $region65
    $region64: #{betavae_forward.10} parent=1 // pred_region
      %2846 = dma.done [#allocation3], 32
    $region65: #{betavae_forward.10} parent=1 // pred_fallthru
      _
    // Predicated region
    $region66: #{betavae_forward.10} parent=1 // pred_check
      _
    $region67: #{betavae_forward.10} parent=1 // pred_check_branch
      %2848 = sbr.rel (0) target = $region69
    $region68: #{betavae_forward.10} parent=1 // pred_region
      %2849 = dma.done [#allocation5], 32
    $region69: #{betavae_forward.10} parent=1 // pred_fallthru
      _
    // Predicated region
    $region70: #{betavae_forward.10} parent=1 // pred_check
      _
    $region71: #{betavae_forward.10} parent=1 // pred_check_branch
      %2851 = sbr.rel (0) target = $region73
    $region72: #{betavae_forward.10} parent=1 // pred_region
      _
    $region73: #{betavae_forward.10} parent=1 // pred_fallthru
      _
    %2852 = vsyncpa [#allocation3], 1
    %2853 = vsyncpa [#allocation5], 1

// kernel: betavae_forward.13
$region0: #{betavae_forward.13}
  #allocation0 [shape = 'u32[]', space=smem, size = 0x4, offset = 0x4, fixed_abs, tag = 'smem constant byte address 0x4 - core index']
  #allocation1 [shape = 'u32[144,128]{1,0:T(1,128)}', space=vmem, size = 0x12000, scoped, tag = 'internal scratch']
  %s0 = inlined_call_operand.vmem [shape: f32[4,512,128], index: 0, kind: input, shape index: {}]
  %s1 = inlined_call_operand.vmem [shape: f32[4,128,3], index: 1, kind: input, shape index: {}]
  %s2 = inlined_call_operand.vmem [shape: f32[1,3], index: 2, kind: input, shape index: {}]
  %s3 = inlined_call_operand.vmem [shape: f32[4,512,3], index: 3, kind: output, shape index: {}]
  %s4 = sld [smem:[#allocation0]]
  $region45: #{betavae_forward.13} parent=0
    _
  %s6 = ssub.s32 1, %s4
  %s7 = scalar_select 0, %s6, %s4
  loop: start=0, step=1, limit=10
  $region2: #{betavae_forward.13} parent=0 // loop_pre_header
    _
  $region3: #{betavae_forward.13} parent=0 // loop_header
    %s9 = sphi 0, %s13
    %p10 = scmp.ge.s32.totalorder %s9, 10
    %s16 = sphi 0, %s28
    %s17 = sphi 0, %s24
    %s18 = sphi 0, %s16
    %s19 = sphi 0, %s17
    %s20 = sphi 0, %s18
    %s21 = sphi 0, %s19
    %s33 = sphi 0, %s35
    %s36 = sphi 0, %s33
    %s37 = sphi 0, %s36
    %s53 = sphi 0, %s37
    %s59 = sphi 0, %s61
    %s62 = sphi 0, %s59
    %s63 = sphi 0, %s62
    %s79 = sphi 0, %s63
    %s83 = sphi 0, %s83
    %s85 = sphi 0, %s83
    %s86 = sphi 0, %s85
    %s100 = sphi 0, %s86
    %s108 = sphi 0, %s110
    %s111 = sphi 0, %s108
    %s112 = sphi 0, %s111
    %s128 = sphi 0, %s112
  $region4: #{betavae_forward.13} parent=0 // loop_header_branch
    %12 = sbr.rel (%p10) target = $region8
  $region5: #{betavae_forward.13} parent=0 // loop_body
    %s14 = ssub.s32 %s9, 1
    %s15 = ssub.s32 %s9, 2
    %s22 = sadd.s32 1, %s17
    %p23 = scmp.ge.s32.totalorder %s22, 2
    %s24 = scalar_select %p23, 0, %s22
    %s25 = sadd.s32 1, %s16
    %s26 = scalar_select %p23, %s25, %s16
    %p27 = scmp.ge.s32.totalorder %s26, 4
    %s28 = scalar_select %p27, 0, %s26
    %s29 = ssub.s32 %s16, %s28
    %s30 = ssub.s32 %s17, %s24
    %s31 = sor.u32 %s29, %s30
    %p32 = scmp.eq.s32.totalorder %s31, 0
    %s34 = sadd.s32 %s33, 1
    %s35 = scalar_select %p32, %s33, %s34
    %p38 = pneg %p32
    %p39 = scmp.eq.s32.totalorder %s9, 7
    %p40 = por %p38, %p39
    %p41 = scmp.ne.s32.totalorder %s33, %s36
    %p42 = scmp.eq.s32.totalorder %s9, 0
    %p43 = por %p41, %p42
    %p44 = scmp.ne.s32.totalorder %s33, %s36
    %p45 = scmp.eq.s32.totalorder %s14, 7
    %p46 = por %p44, %p45
    %p47 = scmp.ne.s32.totalorder %s36, %s37
    %p48 = scmp.eq.s32.totalorder %s14, 0
    %p49 = por %p47, %p48
    %p50 = scmp.ne.s32.totalorder %s36, %s37
    %p51 = scmp.eq.s32.totalorder %s15, 7
    %p52 = por %p50, %p51
    %p54 = scmp.ne.s32.totalorder %s37, %s53
    %p55 = scmp.eq.s32.totalorder %s15, 0
    %p56 = por %p54, %p55
    %s57 = ssub.s32 %s16, %s28
    %p58 = scmp.eq.s32.totalorder %s57, 0
    %s60 = sadd.s32 %s59, 1
    %s61 = scalar_select %p58, %s59, %s60
    %p64 = pneg %p58
    %p65 = scmp.eq.s32.totalorder %s9, 7
    %p66 = por %p64, %p65
    %p67 = scmp.ne.s32.totalorder %s59, %s62
    %p68 = scmp.eq.s32.totalorder %s9, 0
    %p69 = por %p67, %p68
    %p70 = scmp.ne.s32.totalorder %s59, %s62
    %p71 = scmp.eq.s32.totalorder %s14, 7
    %p72 = por %p70, %p71
    %p73 = scmp.ne.s32.totalorder %s62, %s63
    %p74 = scmp.eq.s32.totalorder %s14, 0
    %p75 = por %p73, %p74
    %p76 = scmp.ne.s32.totalorder %s62, %s63
    %p77 = scmp.eq.s32.totalorder %s15, 7
    %p78 = por %p76, %p77
    %p80 = scmp.ne.s32.totalorder %s63, %s79
    %p81 = scmp.eq.s32.totalorder %s15, 0
    %p82 = por %p80, %p81
    %s84 = sadd.s32 %s83, 1
    %p87 = scmp.eq.s32.totalorder %s9, 7
    %p88 = scmp.ne.s32.totalorder %s83, %s85
    %p89 = scmp.eq.s32.totalorder %s9, 0
    %p90 = por %p88, %p89
    %p91 = scmp.ne.s32.totalorder %s83, %s85
    %p92 = scmp.eq.s32.totalorder %s14, 7
    %p93 = por %p91, %p92
    %p94 = scmp.ne.s32.totalorder %s85, %s86
    %p95 = scmp.eq.s32.totalorder %s14, 0
    %p96 = por %p94, %p95
    %p97 = scmp.ne.s32.totalorder %s85, %s86
    %p98 = scmp.eq.s32.totalorder %s15, 7
    %p99 = por %p97, %p98
    %p101 = scmp.ne.s32.totalorder %s86, %s100
    %p102 = scmp.eq.s32.totalorder %s15, 0
    %p103 = por %p101, %p102
    %s104 = ssub.s32 %s16, %s28
    %s105 = ssub.s32 %s17, %s24
    %s106 = sor.u32 %s104, %s105
    %p107 = scmp.eq.s32.totalorder %s106, 0
    %s109 = sadd.s32 %s108, 1
    %s110 = scalar_select %p107, %s108, %s109
    %p113 = pneg %p107
    %p114 = scmp.eq.s32.totalorder %s9, 7
    %p115 = por %p113, %p114
    %p116 = scmp.ne.s32.totalorder %s108, %s111
    %p117 = scmp.eq.s32.totalorder %s9, 0
    %p118 = por %p116, %p117
    %p119 = scmp.ne.s32.totalorder %s108, %s111
    %p120 = scmp.eq.s32.totalorder %s14, 7
    %p121 = por %p119, %p120
    %p122 = scmp.ne.s32.totalorder %s111, %s112
    %p123 = scmp.eq.s32.totalorder %s14, 0
    %p124 = por %p122, %p123
    %p125 = scmp.ne.s32.totalorder %s111, %s112
    %p126 = scmp.eq.s32.totalorder %s15, 7
    %p127 = por %p125, %p126
    %p129 = scmp.ne.s32.totalorder %s112, %s128
    %p130 = scmp.eq.s32.totalorder %s15, 0
    %p131 = por %p129, %p130
    %p132 = scmp.le.s32.totalorder 1, %s9
    %p133 = scmp.lt.s32.totalorder %s9, 9
    %p134 = pnand %p132, %p133
    %p135 = pneg %p134
    // Predicated region
    $region9: #{betavae_forward.13} parent=5 // pred_check
      _
    $region10: #{betavae_forward.13} parent=5 // pred_check_branch
      %137 = sbr.rel (%p134) target = $region12
    $region11: #{betavae_forward.13} parent=5 // pred_region
      %s138 = ssub.s32 %s9, 1
      // Predicated region
      $region13: #{betavae_forward.13} parent=11 // pred_check
        %p139 = pneg %p96
      $region14: #{betavae_forward.13} parent=11 // pred_check_branch
        %141 = sbr.rel (%p139) target = $region16
      $region15: #{betavae_forward.13} parent=11 // pred_region
        _
      $region16: #{betavae_forward.13} parent=11 // pred_fallthru
        _
    $region12: #{betavae_forward.13} parent=5 // pred_fallthru
      _
    %p142 = scmp.lt.s32.totalorder %s9, 8
    // Predicated region
    $region17: #{betavae_forward.13} parent=5 // pred_check
      %p143 = pneg %p142
    $region18: #{betavae_forward.13} parent=5 // pred_check_branch
      %145 = sbr.rel (%p143) target = $region20
    $region19: #{betavae_forward.13} parent=5 // pred_region
      // Predicated region
      $region21: #{betavae_forward.13} parent=19 // pred_check
        %p146 = pneg %p43
      $region22: #{betavae_forward.13} parent=19 // pred_check_branch
        %148 = sbr.rel (%p146) target = $region24
      $region23: #{betavae_forward.13} parent=19 // pred_region
        %s149 = smul.u32 32, %s17
        %p150 = scmp.lt.s32.totalorder %s16, 3
        %s151 = scalar_select %p150, %s16, 3
        %p152 = scmp.lt.s32.totalorder %s149, 63
        %s153 = scalar_select %p152, %s149, 63
        %s154 = smul.addr %s151, 64
        %s155 = sadd.s32 %s153, %s154
        %s156 = smul.addr %s155, 8
        %s157 = scalar_lea.vmem %s0, %s156
        %s158 = smul.u32 32, %s17
      $region24: #{betavae_forward.13} parent=19 // pred_fallthru
        _
      // Predicated region
      $region25: #{betavae_forward.13} parent=19 // pred_check
        %p159 = pneg %p69
      $region26: #{betavae_forward.13} parent=19 // pred_check_branch
        %161 = sbr.rel (%p159) target = $region28
      $region27: #{betavae_forward.13} parent=19 // pred_region
        %p162 = scmp.lt.s32.totalorder %s16, 3
        %s163 = scalar_select %p162, %s16, 3
        %s164 = smul.addr %s163, 16
        %s165 = smul.addr %s164, 8
        %s166 = scalar_lea.vmem %s1, %s165
      $region28: #{betavae_forward.13} parent=19 // pred_fallthru
        _
    $region20: #{betavae_forward.13} parent=5 // pred_fallthru
      _
    %p167 = scmp.le.s32.totalorder 1, %s9
    %p168 = scmp.lt.s32.totalorder %s9, 9
    %p169 = pnand %p167, %p168
    %p170 = pneg %p169
    // Predicated region
    $region29: #{betavae_forward.13} parent=5 // pred_check
      _
    $region30: #{betavae_forward.13} parent=5 // pred_check_branch
      %172 = sbr.rel (%p169) target = $region32
    $region31: #{betavae_forward.13} parent=5 // pred_region
      %s173 = ssub.s32 %s9, 1
      %s174 = smul.u32 32, %s19
      %p175 = scmp.lt.s32.totalorder %s18, 3
      %s176 = scalar_select %p175, %s18, 3
      %p177 = scmp.lt.s32.totalorder %s174, 63
      %s178 = scalar_select %p177, %s174, 63
      %s179 = smul.addr %s176, 64
      %s180 = sadd.s32 %s178, %s179
      %s181 = smul.addr %s180, 8
      %s182 = scalar_lea.vmem %s0, %s181
      %p183 = pneg %p49
      %p184 = pneg %p46
      %p185 = scmp.lt.s32.totalorder %s18, 3
      %s186 = scalar_select %p185, %s18, 3
      %s187 = smul.addr %s186, 16
      %s188 = smul.addr %s187, 8
      %s189 = scalar_lea.vmem %s1, %s188
      %p190 = pneg %p75
      %p191 = pneg %p72
      %p192 = pneg %p96
      %p193 = pneg %p93
      %p194 = pneg %p124
      %p195 = pneg %p121
      %s196 = smul.u32 32, %s19
      %p197 = scmp.lt.s32.totalorder %s18, 3
      %s198 = scalar_select %p197, %s18, 3
      %p199 = scmp.lt.s32.totalorder %s196, 63
      %s200 = scalar_select %p199, %s196, 63
      %s201 = smul.addr %s198, 64
      %s202 = sadd.s32 %s200, %s201
      %s203 = smul.addr %s202, 8
      %s204 = scalar_lea.vmem %s3, %s203
      %s205 = smul.u32 32, %s19
      %p206 = scmp.lt.s32.totalorder %s18, 3
      %s207 = scalar_select %p206, %s18, 3
      %p208 = scmp.lt.s32.totalorder %s205, 63
      %s209 = scalar_select %p208, %s205, 63
      %s210 = smul.addr %s207, 64
      %s211 = sadd.s32 %s209, %s210
      %s212 = smul.addr %s211, 8
      %s213 = scalar_lea.vmem %s0, %s212
      %s214 = smul.u32 32, %s19
      %p215 = scmp.lt.s32.totalorder %s18, 3
      %s216 = scalar_select %p215, %s18, 3
      %s217 = smul.addr %s216, 16
      %s218 = smul.addr %s217, 8
      %s219 = scalar_lea.vmem %s1, %s218
      %s220 = smul.u32 32, %s19
      %p221 = scmp.lt.s32.totalorder %s18, 3
      %s222 = scalar_select %p221, %s18, 3
      %p223 = scmp.lt.s32.totalorder %s220, 63
      %s224 = scalar_select %p223, %s220, 63
      %s225 = smul.addr %s222, 64
      %s226 = sadd.s32 %s224, %s225
      %s227 = smul.addr %s226, 8
      %s228 = scalar_lea.vmem %s3, %s227
      %s229 = smul.u32 32, %s19
      %v230 = vld [vmem:[%s213] sm:$0xff]
      %v231 = vld [vmem:[%s213 + $0x8] sm:$0xff]
      %v232 = vld [vmem:[%s213 + $0x10] sm:$0xff]
      %v233 = vld [vmem:[%s213 + $0x18] sm:$0xff]
      %v234 = vld [vmem:[%s213 + $0x20] sm:$0xff]
      %v235 = vld [vmem:[%s213 + $0x28] sm:$0xff]
      %v236 = vld [vmem:[%s213 + $0x30] sm:$0xff]
      %v237 = vld [vmem:[%s213 + $0x38] sm:$0xff]
      %v238 = vld [vmem:[%s213 + $0x40] sm:$0xff]
      %v239 = vld [vmem:[%s213 + $0x48] sm:$0xff]
      %v240 = vld [vmem:[%s213 + $0x50] sm:$0xff]
      %v241 = vld [vmem:[%s213 + $0x58] sm:$0xff]
      %v242 = vld [vmem:[%s213 + $0x60] sm:$0xff]
      %v243 = vld [vmem:[%s213 + $0x68] sm:$0xff]
      %v244 = vld [vmem:[%s213 + $0x70] sm:$0xff]
      %v245 = vld [vmem:[%s213 + $0x78] sm:$0xff]
      %v246 = vld [vmem:[%s213 + $0x80] sm:$0xff]
      %v247 = vld [vmem:[%s213 + $0x88] sm:$0xff]
      %v248 = vld [vmem:[%s213 + $0x90] sm:$0xff]
      %v249 = vld [vmem:[%s213 + $0x98] sm:$0xff]
      %v250 = vld [vmem:[%s213 + $0xa0] sm:$0xff]
      %v251 = vld [vmem:[%s213 + $0xa8] sm:$0xff]
      %v252 = vld [vmem:[%s213 + $0xb0] sm:$0xff]
      %v253 = vld [vmem:[%s213 + $0xb8] sm:$0xff]
      %v254 = vld [vmem:[%s213 + $0xc0] sm:$0xff]
      %v255 = vld [vmem:[%s213 + $0xc8] sm:$0xff]
      %v256 = vld [vmem:[%s213 + $0xd0] sm:$0xff]
      %v257 = vld [vmem:[%s213 + $0xd8] sm:$0xff]
      %v258 = vld [vmem:[%s213 + $0xe0] sm:$0xff]
      %v259 = vld [vmem:[%s213 + $0xe8] sm:$0xff]
      %v260 = vld [vmem:[%s213 + $0xf0] sm:$0xff]
      %v261 = vld [vmem:[%s213 + $0xf8] sm:$0xff]
      %v262 = vld [vmem:[%s219] sm:$0xff]
      %v263 = vld [vmem:[%s219 + $0x8] sm:$0xff]
      %v264 = vld [vmem:[%s219 + $0x10] sm:$0xff]
      %v265 = vld [vmem:[%s219 + $0x18] sm:$0xff]
      %v266 = vld [vmem:[%s219 + $0x20] sm:$0xff]
      %v267 = vld [vmem:[%s219 + $0x28] sm:$0xff]
      %v268 = vld [vmem:[%s219 + $0x30] sm:$0xff]
      %v269 = vld [vmem:[%s219 + $0x38] sm:$0xff]
      %v270 = vld [vmem:[%s219 + $0x40] sm:$0xff]
      %v271 = vld [vmem:[%s219 + $0x48] sm:$0xff]
      %v272 = vld [vmem:[%s219 + $0x50] sm:$0xff]
      %v273 = vld [vmem:[%s219 + $0x58] sm:$0xff]
      %v274 = vld [vmem:[%s219 + $0x60] sm:$0xff]
      %v275 = vld [vmem:[%s219 + $0x68] sm:$0xff]
      %v276 = vld [vmem:[%s219 + $0x70] sm:$0xff]
      %v277 = vld [vmem:[%s219 + $0x78] sm:$0xff]
      %v278 = vld [vmem:[%s2] sm:$0x1]
      %v280 = vlaneseq
      %v281 = vshrl.u32 %v280, 7
      %v282 = vsub.s32 0, %v281
      %v283 = vrot.slane %v278, %v282
      %285 = vmatprep.subr.mxu0 0.0
      %286 = vmatpush1.msra.mxu0 %v262
      %287 = vmatprep.subr.mxu0 0.0
      %288 = vmatpush1.msra.mxu0 %v263
      %289 = vmatprep.subr.mxu0 0.0
      %290 = vmatpush1.msra.mxu0 %v264
      %291 = vmatprep.subr.mxu0 0.0
      %292 = vmatpush1.msra.mxu0 %v265
      %293 = vmatprep.subr.mxu0 0.0
      %294 = vmatpush1.msra.mxu0 %v266
      %295 = vmatprep.subr.mxu0 0.0
      %296 = vmatpush1.msra.mxu0 %v267
      %297 = vmatprep.subr.mxu0 0.0
      %298 = vmatpush1.msra.mxu0 %v268
      %299 = vmatprep.subr.mxu0 0.0
      %300 = vmatpush1.msra.mxu0 %v269
      %301 = vmatprep.subr.mxu0 0.0
      %302 = vmatpush1.msra.mxu0 %v270
      %303 = vmatprep.subr.mxu0 0.0
      %304 = vmatpush1.msra.mxu0 %v271
      %305 = vmatprep.subr.mxu0 0.0
      %306 = vmatpush1.msra.mxu0 %v272
      %307 = vmatprep.subr.mxu0 0.0
      %308 = vmatpush1.msra.mxu0 %v273
      %309 = vmatprep.subr.mxu0 0.0
      %310 = vmatpush1.msra.mxu0 %v274
      %311 = vmatprep.subr.mxu0 0.0
      %312 = vmatpush1.msra.mxu0 %v275
      %313 = vmatprep.subr.mxu0 0.0
      %314 = vmatpush1.msra.mxu0 %v276
      %315 = vmatprep.subr.mxu0 0.0
      %316 = vmatpush1.msra.mxu0 %v277
      %317 = vmatprep.subr.mxu0 0.0
      %318 = vmatpush1.msra.mxu0 0.0
      %319 = vmatprep.subr.mxu0 0.0
      %320 = vmatpush1.msra.mxu0 0.0
      %321 = vmatprep.subr.mxu0 0.0
      %322 = vmatpush1.msra.mxu0 0.0
      %323 = vmatprep.subr.mxu0 0.0
      %324 = vmatpush1.msra.mxu0 0.0
      %325 = vmatprep.subr.mxu0 0.0
      %326 = vmatpush1.msra.mxu0 0.0
      %327 = vmatprep.subr.mxu0 0.0
      %328 = vmatpush1.msra.mxu0 0.0
      %329 = vmatprep.subr.mxu0 0.0
      %330 = vmatpush1.msra.mxu0 0.0
      %331 = vmatprep.subr.mxu0 0.0
      %332 = vmatpush1.msra.mxu0 0.0
      %333 = vmatprep.subr.mxu0 0.0
      %334 = vmatpush1.msra.mxu0 0.0
      %335 = vmatprep.subr.mxu0 0.0
      %336 = vmatpush1.msra.mxu0 0.0
      %337 = vmatprep.subr.mxu0 0.0
      %338 = vmatpush1.msra.mxu0 0.0
      %339 = vmatprep.subr.mxu0 0.0
      %340 = vmatpush1.msra.mxu0 0.0
      %341 = vmatprep.subr.mxu0 0.0
      %342 = vmatpush1.msra.mxu0 0.0
      %343 = vmatprep.subr.mxu0 0.0
      %344 = vmatpush1.msra.mxu0 0.0
      %345 = vmatprep.subr.mxu0 0.0
      %346 = vmatpush1.msra.mxu0 0.0
      %347 = vmatprep.subr.mxu0 0.0
      %348 = vmatpush1.msra.mxu0 0.0
      %349 = vmatprep.mubr.f32.mxu0 0.0
      %350 = vmatmul.mubr.f32.gmra.mrb[0].mxu0 %v230
      %v351 = vpop.f32.mrb[0].mxu0
      %v352 = vadd.f32 %v283, %v351
      %v353 = vpop.f32.mrb[0].mxu0
      %354 = vmatprep.mubr.f32.mxu0 0.0
      %355 = vmatmul.mubr.f32.gmra.mrb[0].mxu0 %v231
      %v356 = vpop.f32.mrb[0].mxu0
      %v357 = vadd.f32 %v283, %v356
      %v358 = vpop.f32.mrb[0].mxu0
      %359 = vmatprep.mubr.f32.mxu0 0.0
      %360 = vmatmul.mubr.f32.gmra.mrb[0].mxu0 %v232
      %v361 = vpop.f32.mrb[0].mxu0
      %v362 = vadd.f32 %v283, %v361
      %v363 = vpop.f32.mrb[0].mxu0
      %364 = vmatprep.mubr.f32.mxu0 0.0
      %365 = vmatmul.mubr.f32.gmra.mrb[0].mxu0 %v233
      %v366 = vpop.f32.mrb[0].mxu0
      %v367 = vadd.f32 %v283, %v366
      %v368 = vpop.f32.mrb[0].mxu0
      %369 = vmatprep.mubr.f32.mxu0 0.0
      %370 = vmatmul.mubr.f32.gmra.mrb[0].mxu0 %v234
      %v371 = vpop.f32.mrb[0].mxu0
      %v372 = vadd.f32 %v283, %v371
      %v373 = vpop.f32.mrb[0].mxu0
      %374 = vmatprep.mubr.f32.mxu0 0.0
      %375 = vmatmul.mubr.f32.gmra.mrb[0].mxu0 %v235
      %v376 = vpop.f32.mrb[0].mxu0
      %v377 = vadd.f32 %v283, %v376
      %v378 = vpop.f32.mrb[0].mxu0
      %379 = vmatprep.mubr.f32.mxu0 0.0
      %380 = vmatmul.mubr.f32.gmra.mrb[0].mxu0 %v236
      %v381 = vpop.f32.mrb[0].mxu0
      %v382 = vadd.f32 %v283, %v381
      %v383 = vpop.f32.mrb[0].mxu0
      %384 = vmatprep.mubr.f32.mxu0 0.0
      %385 = vmatmul.mubr.f32.gmra.mrb[0].mxu0 %v237
      %v386 = vpop.f32.mrb[0].mxu0
      %v387 = vadd.f32 %v283, %v386
      %v388 = vpop.f32.mrb[0].mxu0
      %389 = vmatprep.mubr.f32.mxu0 0.0
      %390 = vmatmul.mubr.f32.gmra.mrb[0].mxu0 %v238
      %v391 = vpop.f32.mrb[0].mxu0
      %v392 = vadd.f32 %v283, %v391
      %v393 = vpop.f32.mrb[0].mxu0
      %394 = vmatprep.mubr.f32.mxu0 0.0
      %395 = vmatmul.mubr.f32.gmra.mrb[0].mxu0 %v239
      %v396 = vpop.f32.mrb[0].mxu0
      %v397 = vadd.f32 %v283, %v396
      %v398 = vpop.f32.mrb[0].mxu0
      %399 = vmatprep.mubr.f32.mxu0 0.0
      %400 = vmatmul.mubr.f32.gmra.mrb[0].mxu0 %v240
      %v401 = vpop.f32.mrb[0].mxu0
      %v402 = vadd.f32 %v283, %v401
      %v403 = vpop.f32.mrb[0].mxu0
      %404 = vmatprep.mubr.f32.mxu0 0.0
      %405 = vmatmul.mubr.f32.gmra.mrb[0].mxu0 %v241
      %v406 = vpop.f32.mrb[0].mxu0
      %v407 = vadd.f32 %v283, %v406
      %v408 = vpop.f32.mrb[0].mxu0
      %409 = vmatprep.mubr.f32.mxu0 0.0
      %410 = vmatmul.mubr.f32.gmra.mrb[0].mxu0 %v242
      %v411 = vpop.f32.mrb[0].mxu0
      %v412 = vadd.f32 %v283, %v411
      %v413 = vpop.f32.mrb[0].mxu0
      %414 = vmatprep.mubr.f32.mxu0 0.0
      %415 = vmatmul.mubr.f32.gmra.mrb[0].mxu0 %v243
      %v416 = vpop.f32.mrb[0].mxu0
      %v417 = vadd.f32 %v283, %v416
      %v418 = vpop.f32.mrb[0].mxu0
      %419 = vmatprep.mubr.f32.mxu0 0.0
      %420 = vmatmul.mubr.f32.gmra.mrb[0].mxu0 %v244
      %v421 = vpop.f32.mrb[0].mxu0
      %v422 = vadd.f32 %v283, %v421
      %v423 = vpop.f32.mrb[0].mxu0
      %424 = vmatprep.mubr.f32.mxu0 0.0
      %425 = vmatmul.mubr.f32.gmra.mrb[0].mxu0 %v245
      %v426 = vpop.f32.mrb[0].mxu0
      %v427 = vadd.f32 %v283, %v426
      %v428 = vpop.f32.mrb[0].mxu0
      %429 = vmatprep.mubr.f32.mxu0 0.0
      %430 = vmatmul.mubr.f32.gmra.mrb[0].mxu0 %v246
      %v431 = vpop.f32.mrb[0].mxu0
      %v432 = vadd.f32 %v283, %v431
      %v433 = vpop.f32.mrb[0].mxu0
      %434 = vmatprep.mubr.f32.mxu0 0.0
      %435 = vmatmul.mubr.f32.gmra.mrb[0].mxu0 %v247
      %v436 = vpop.f32.mrb[0].mxu0
      %v437 = vadd.f32 %v283, %v436
      %v438 = vpop.f32.mrb[0].mxu0
      %439 = vmatprep.mubr.f32.mxu0 0.0
      %440 = vmatmul.mubr.f32.gmra.mrb[0].mxu0 %v248
      %v441 = vpop.f32.mrb[0].mxu0
      %v442 = vadd.f32 %v283, %v441
      %v443 = vpop.f32.mrb[0].mxu0
      %444 = vmatprep.mubr.f32.mxu0 0.0
      %445 = vmatmul.mubr.f32.gmra.mrb[0].mxu0 %v249
      %v446 = vpop.f32.mrb[0].mxu0
      %v447 = vadd.f32 %v283, %v446
      %v448 = vpop.f32.mrb[0].mxu0
      %449 = vmatprep.mubr.f32.mxu0 0.0
      %450 = vmatmul.mubr.f32.gmra.mrb[0].mxu0 %v250
      %v451 = vpop.f32.mrb[0].mxu0
      %v452 = vadd.f32 %v283, %v451
      %v453 = vpop.f32.mrb[0].mxu0
      %454 = vmatprep.mubr.f32.mxu0 0.0
      %455 = vmatmul.mubr.f32.gmra.mrb[0].mxu0 %v251
      %v456 = vpop.f32.mrb[0].mxu0
      %v457 = vadd.f32 %v283, %v456
      %v458 = vpop.f32.mrb[0].mxu0
      %459 = vmatprep.mubr.f32.mxu0 0.0
      %460 = vmatmul.mubr.f32.gmra.mrb[0].mxu0 %v252
      %v461 = vpop.f32.mrb[0].mxu0
      %v462 = vadd.f32 %v283, %v461
      %v463 = vpop.f32.mrb[0].mxu0
      %464 = vmatprep.mubr.f32.mxu0 0.0
      %465 = vmatmul.mubr.f32.gmra.mrb[0].mxu0 %v253
      %v466 = vpop.f32.mrb[0].mxu0
      %v467 = vadd.f32 %v283, %v466
      %v468 = vpop.f32.mrb[0].mxu0
      %469 = vmatprep.mubr.f32.mxu0 0.0
      %470 = vmatmul.mubr.f32.gmra.mrb[0].mxu0 %v254
      %v471 = vpop.f32.mrb[0].mxu0
      %v472 = vadd.f32 %v283, %v471
      %v473 = vpop.f32.mrb[0].mxu0
      %474 = vmatprep.mubr.f32.mxu0 0.0
      %475 = vmatmul.mubr.f32.gmra.mrb[0].mxu0 %v255
      %v476 = vpop.f32.mrb[0].mxu0
      %v477 = vadd.f32 %v283, %v476
      %v478 = vpop.f32.mrb[0].mxu0
      %479 = vmatprep.mubr.f32.mxu0 0.0
      %480 = vmatmul.mubr.f32.gmra.mrb[0].mxu0 %v256
      %v481 = vpop.f32.mrb[0].mxu0
      %v482 = vadd.f32 %v283, %v481
      %v483 = vpop.f32.mrb[0].mxu0
      %484 = vmatprep.mubr.f32.mxu0 0.0
      %485 = vmatmul.mubr.f32.gmra.mrb[0].mxu0 %v257
      %v486 = vpop.f32.mrb[0].mxu0
      %v487 = vadd.f32 %v283, %v486
      %v488 = vpop.f32.mrb[0].mxu0
      %489 = vmatprep.mubr.f32.mxu0 0.0
      %490 = vmatmul.mubr.f32.gmra.mrb[0].mxu0 %v258
      %v491 = vpop.f32.mrb[0].mxu0
      %v492 = vadd.f32 %v283, %v491
      %v493 = vpop.f32.mrb[0].mxu0
      %494 = vmatprep.mubr.f32.mxu0 0.0
      %495 = vmatmul.mubr.f32.gmra.mrb[0].mxu0 %v259
      %v496 = vpop.f32.mrb[0].mxu0
      %v497 = vadd.f32 %v283, %v496
      %v498 = vpop.f32.mrb[0].mxu0
      %499 = vmatprep.mubr.f32.mxu0 0.0
      %500 = vmatmul.mubr.f32.gmra.mrb[0].mxu0 %v260
      %v501 = vpop.f32.mrb[0].mxu0
      %v502 = vadd.f32 %v283, %v501
      %v503 = vpop.f32.mrb[0].mxu0
      %504 = vmatprep.mubr.f32.mxu0 0.0
      %505 = vmatmul.mubr.f32.gmra.mrb[0].mxu0 %v261
      %v506 = vpop.f32.mrb[0].mxu0
      %v507 = vadd.f32 %v283, %v506
      %v508 = vpop.f32.mrb[0].mxu0
      %509 = vdwg.mxu0
      %v510 = vxor.u32 %v352, 2147483648
      %v511 = vxor.u32 %v357, 2147483648
      %v512 = vxor.u32 %v362, 2147483648
      %v513 = vxor.u32 %v367, 2147483648
      %v514 = vxor.u32 %v372, 2147483648
      %v515 = vxor.u32 %v377, 2147483648
      %v516 = vxor.u32 %v382, 2147483648
      %v517 = vxor.u32 %v387, 2147483648
      %v518 = vxor.u32 %v392, 2147483648
      %v519 = vxor.u32 %v397, 2147483648
      %v520 = vxor.u32 %v402, 2147483648
      %v521 = vxor.u32 %v407, 2147483648
      %v522 = vxor.u32 %v412, 2147483648
      %v523 = vxor.u32 %v417, 2147483648
      %v524 = vxor.u32 %v422, 2147483648
      %v525 = vxor.u32 %v427, 2147483648
      %v526 = vxor.u32 %v432, 2147483648
      %v527 = vxor.u32 %v437, 2147483648
      %v528 = vxor.u32 %v442, 2147483648
      %v529 = vxor.u32 %v447, 2147483648
      %v530 = vxor.u32 %v452, 2147483648
      %v531 = vxor.u32 %v457, 2147483648
      %v532 = vxor.u32 %v462, 2147483648
      %v533 = vxor.u32 %v467, 2147483648
      %v534 = vxor.u32 %v472, 2147483648
      %v535 = vxor.u32 %v477, 2147483648
      %v536 = vxor.u32 %v482, 2147483648
      %v537 = vxor.u32 %v487, 2147483648
      %v538 = vxor.u32 %v492, 2147483648
      %v539 = vxor.u32 %v497, 2147483648
      %v540 = vxor.u32 %v502, 2147483648
      %v541 = vxor.u32 %v507, 2147483648
      %v542 = vmul.f32 %v510, 1.442695
      %v543 = vpow.pop %v542
      %v544 = vmul.f32 %v511, 1.442695
      %v545 = vpow.pop %v544
      %v546 = vmul.f32 %v512, 1.442695
      %v547 = vpow.pop %v546
      %v548 = vmul.f32 %v513, 1.442695
      %v549 = vpow.pop %v548
      %v550 = vmul.f32 %v514, 1.442695
      %v551 = vpow.pop %v550
      %v552 = vmul.f32 %v515, 1.442695
      %v553 = vpow.pop %v552
      %v554 = vmul.f32 %v516, 1.442695
      %v555 = vpow.pop %v554
      %v556 = vmul.f32 %v517, 1.442695
      %v557 = vpow.pop %v556
      %v558 = vmul.f32 %v518, 1.442695
      %v559 = vpow.pop %v558
      %v560 = vmul.f32 %v519, 1.442695
      %v561 = vpow.pop %v560
      %v562 = vmul.f32 %v520, 1.442695
      %v563 = vpow.pop %v562
      %v564 = vmul.f32 %v521, 1.442695
      %v565 = vpow.pop %v564
      %v566 = vmul.f32 %v522, 1.442695
      %v567 = vpow.pop %v566
      %v568 = vmul.f32 %v523, 1.442695
      %v569 = vpow.pop %v568
      %v570 = vmul.f32 %v524, 1.442695
      %v571 = vpow.pop %v570
      %v572 = vmul.f32 %v525, 1.442695
      %v573 = vpow.pop %v572
      %v574 = vmul.f32 %v526, 1.442695
      %v575 = vpow.pop %v574
      %v576 = vmul.f32 %v527, 1.442695
      %v577 = vpow.pop %v576
      %v578 = vmul.f32 %v528, 1.442695
      %v579 = vpow.pop %v578
      %v580 = vmul.f32 %v529, 1.442695
      %v581 = vpow.pop %v580
      %v582 = vmul.f32 %v530, 1.442695
      %v583 = vpow.pop %v582
      %v584 = vmul.f32 %v531, 1.442695
      %v585 = vpow.pop %v584
      %v586 = vmul.f32 %v532, 1.442695
      %v587 = vpow.pop %v586
      %v588 = vmul.f32 %v533, 1.442695
      %v589 = vpow.pop %v588
      %v590 = vmul.f32 %v534, 1.442695
      %v591 = vpow.pop %v590
      %v592 = vmul.f32 %v535, 1.442695
      %v593 = vpow.pop %v592
      %v594 = vmul.f32 %v536, 1.442695
      %v595 = vpow.pop %v594
      %v596 = vmul.f32 %v537, 1.442695
      %v597 = vpow.pop %v596
      %v598 = vmul.f32 %v538, 1.442695
      %v599 = vpow.pop %v598
      %v600 = vmul.f32 %v539, 1.442695
      %v601 = vpow.pop %v600
      %v602 = vmul.f32 %v540, 1.442695
      %v603 = vpow.pop %v602
      %v604 = vmul.f32 %v541, 1.442695
      %v605 = vpow.pop %v604
      %v606 = vadd.f32 %v543, 1.0
      %v607 = vadd.f32 %v545, 1.0
      %v608 = vadd.f32 %v547, 1.0
      %v609 = vadd.f32 %v549, 1.0
      %v610 = vadd.f32 %v551, 1.0
      %v611 = vadd.f32 %v553, 1.0
      %v612 = vadd.f32 %v555, 1.0
      %v613 = vadd.f32 %v557, 1.0
      %v614 = vadd.f32 %v559, 1.0
      %v615 = vadd.f32 %v561, 1.0
      %v616 = vadd.f32 %v563, 1.0
      %v617 = vadd.f32 %v565, 1.0
      %v618 = vadd.f32 %v567, 1.0
      %v619 = vadd.f32 %v569, 1.0
      %v620 = vadd.f32 %v571, 1.0
      %v621 = vadd.f32 %v573, 1.0
      %v622 = vadd.f32 %v575, 1.0
      %v623 = vadd.f32 %v577, 1.0
      %v624 = vadd.f32 %v579, 1.0
      %v625 = vadd.f32 %v581, 1.0
      %v626 = vadd.f32 %v583, 1.0
      %v627 = vadd.f32 %v585, 1.0
      %v628 = vadd.f32 %v587, 1.0
      %v629 = vadd.f32 %v589, 1.0
      %v630 = vadd.f32 %v591, 1.0
      %v631 = vadd.f32 %v593, 1.0
      %v632 = vadd.f32 %v595, 1.0
      %v633 = vadd.f32 %v597, 1.0
      %v634 = vadd.f32 %v599, 1.0
      %v635 = vadd.f32 %v601, 1.0
      %v636 = vadd.f32 %v603, 1.0
      %v637 = vadd.f32 %v605, 1.0
      %v638 = vrcp.pop %v606
      %v639 = vmul.f32 1.0, %v638
      %v640 = vrcp.pop %v607
      %v641 = vmul.f32 1.0, %v640
      %v642 = vrcp.pop %v608
      %v643 = vmul.f32 1.0, %v642
      %v644 = vrcp.pop %v609
      %v645 = vmul.f32 1.0, %v644
      %v646 = vrcp.pop %v610
      %v647 = vmul.f32 1.0, %v646
      %v648 = vrcp.pop %v611
      %v649 = vmul.f32 1.0, %v648
      %v650 = vrcp.pop %v612
      %v651 = vmul.f32 1.0, %v650
      %v652 = vrcp.pop %v613
      %v653 = vmul.f32 1.0, %v652
      %v654 = vrcp.pop %v614
      %v655 = vmul.f32 1.0, %v654
      %v656 = vrcp.pop %v615
      %v657 = vmul.f32 1.0, %v656
      %v658 = vrcp.pop %v616
      %v659 = vmul.f32 1.0, %v658
      %v660 = vrcp.pop %v617
      %v661 = vmul.f32 1.0, %v660
      %v662 = vrcp.pop %v618
      %v663 = vmul.f32 1.0, %v662
      %v664 = vrcp.pop %v619
      %v665 = vmul.f32 1.0, %v664
      %v666 = vrcp.pop %v620
      %v667 = vmul.f32 1.0, %v666
      %v668 = vrcp.pop %v621
      %v669 = vmul.f32 1.0, %v668
      %v670 = vrcp.pop %v622
      %v671 = vmul.f32 1.0, %v670
      %v672 = vrcp.pop %v623
      %v673 = vmul.f32 1.0, %v672
      %v674 = vrcp.pop %v624
      %v675 = vmul.f32 1.0, %v674
      %v676 = vrcp.pop %v625
      %v677 = vmul.f32 1.0, %v676
      %v678 = vrcp.pop %v626
      %v679 = vmul.f32 1.0, %v678
      %v680 = vrcp.pop %v627
      %v681 = vmul.f32 1.0, %v680
      %v682 = vrcp.pop %v628
      %v683 = vmul.f32 1.0, %v682
      %v684 = vrcp.pop %v629
      %v685 = vmul.f32 1.0, %v684
      %v686 = vrcp.pop %v630
      %v687 = vmul.f32 1.0, %v686
      %v688 = vrcp.pop %v631
      %v689 = vmul.f32 1.0, %v688
      %v690 = vrcp.pop %v632
      %v691 = vmul.f32 1.0, %v690
      %v692 = vrcp.pop %v633
      %v693 = vmul.f32 1.0, %v692
      %v694 = vrcp.pop %v634
      %v695 = vmul.f32 1.0, %v694
      %v696 = vrcp.pop %v635
      %v697 = vmul.f32 1.0, %v696
      %v698 = vrcp.pop %v636
      %v699 = vmul.f32 1.0, %v698
      %v700 = vrcp.pop %v637
      %v701 = vmul.f32 1.0, %v700
      %vm702 = vcmask 23552
      %703 = vst.msk [vmem:[%s228] sm:$0xff] %vm702, %v639
      %704 = vst.msk [vmem:[%s228 + $0x8] sm:$0xff] %vm702, %v641
      %705 = vst.msk [vmem:[%s228 + $0x10] sm:$0xff] %vm702, %v643
      %706 = vst.msk [vmem:[%s228 + $0x18] sm:$0xff] %vm702, %v645
      %707 = vst.msk [vmem:[%s228 + $0x20] sm:$0xff] %vm702, %v647
      %708 = vst.msk [vmem:[%s228 + $0x28] sm:$0xff] %vm702, %v649
      %709 = vst.msk [vmem:[%s228 + $0x30] sm:$0xff] %vm702, %v651
      %710 = vst.msk [vmem:[%s228 + $0x38] sm:$0xff] %vm702, %v653
      %711 = vst.msk [vmem:[%s228 + $0x40] sm:$0xff] %vm702, %v655
      %712 = vst.msk [vmem:[%s228 + $0x48] sm:$0xff] %vm702, %v657
      %713 = vst.msk [vmem:[%s228 + $0x50] sm:$0xff] %vm702, %v659
      %714 = vst.msk [vmem:[%s228 + $0x58] sm:$0xff] %vm702, %v661
      %715 = vst.msk [vmem:[%s228 + $0x60] sm:$0xff] %vm702, %v663
      %716 = vst.msk [vmem:[%s228 + $0x68] sm:$0xff] %vm702, %v665
      %717 = vst.msk [vmem:[%s228 + $0x70] sm:$0xff] %vm702, %v667
      %718 = vst.msk [vmem:[%s228 + $0x78] sm:$0xff] %vm702, %v669
      %719 = vst.msk [vmem:[%s228 + $0x80] sm:$0xff] %vm702, %v671
      %720 = vst.msk [vmem:[%s228 + $0x88] sm:$0xff] %vm702, %v673
      %721 = vst.msk [vmem:[%s228 + $0x90] sm:$0xff] %vm702, %v675
      %722 = vst.msk [vmem:[%s228 + $0x98] sm:$0xff] %vm702, %v677
      %723 = vst.msk [vmem:[%s228 + $0xa0] sm:$0xff] %vm702, %v679
      %724 = vst.msk [vmem:[%s228 + $0xa8] sm:$0xff] %vm702, %v681
      %725 = vst.msk [vmem:[%s228 + $0xb0] sm:$0xff] %vm702, %v683
      %726 = vst.msk [vmem:[%s228 + $0xb8] sm:$0xff] %vm702, %v685
      %727 = vst.msk [vmem:[%s228 + $0xc0] sm:$0xff] %vm702, %v687
      %728 = vst.msk [vmem:[%s228 + $0xc8] sm:$0xff] %vm702, %v689
      %729 = vst.msk [vmem:[%s228 + $0xd0] sm:$0xff] %vm702, %v691
      %730 = vst.msk [vmem:[%s228 + $0xd8] sm:$0xff] %vm702, %v693
      %731 = vst.msk [vmem:[%s228 + $0xe0] sm:$0xff] %vm702, %v695
      %732 = vst.msk [vmem:[%s228 + $0xe8] sm:$0xff] %vm702, %v697
      %733 = vst.msk [vmem:[%s228 + $0xf0] sm:$0xff] %vm702, %v699
      %734 = vst.msk [vmem:[%s228 + $0xf8] sm:$0xff] %vm702, %v701
      %s735 = smul.u32 32, %s19
      %p736 = scmp.lt.s32.totalorder %s18, 3
      %s737 = scalar_select %p736, %s18, 3
      %p738 = scmp.lt.s32.totalorder %s735, 63
      %s739 = scalar_select %p738, %s735, 63
      %s740 = smul.addr %s737, 64
      %s741 = sadd.s32 %s739, %s740
      %s742 = smul.addr %s741, 8
      %s743 = scalar_lea.vmem %s3, %s742
      // Predicated region
      $region33: #{betavae_forward.13} parent=31 // pred_check
        %p744 = pneg %p121
      $region34: #{betavae_forward.13} parent=31 // pred_check_branch
        %746 = sbr.rel (%p744) target = $region36
      $region35: #{betavae_forward.13} parent=31 // pred_region
        %s747 = smul.u32 32, %s19
      $region36: #{betavae_forward.13} parent=31 // pred_fallthru
        _
    $region32: #{betavae_forward.13} parent=5 // pred_fallthru
      _
    %p748 = scmp.le.s32.totalorder 2, %s9
    // Predicated region
    $region37: #{betavae_forward.13} parent=5 // pred_check
      %p749 = pneg %p748
    $region38: #{betavae_forward.13} parent=5 // pred_check_branch
      %751 = sbr.rel (%p749) target = $region40
    $region39: #{betavae_forward.13} parent=5 // pred_region
      %s752 = ssub.s32 %s9, 2
      // Predicated region
      $region41: #{betavae_forward.13} parent=39 // pred_check
        %p753 = pneg %p127
      $region42: #{betavae_forward.13} parent=39 // pred_check_branch
        %755 = sbr.rel (%p753) target = $region44
      $region43: #{betavae_forward.13} parent=39 // pred_region
        %s756 = smul.u32 32, %s21
        %p757 = scmp.lt.s32.totalorder %s20, 3
        %s758 = scalar_select %p757, %s20, 3
        %p759 = scmp.lt.s32.totalorder %s756, 63
        %s760 = scalar_select %p759, %s756, 63
        %s761 = smul.addr %s758, 64
        %s762 = sadd.s32 %s760, %s761
        %s763 = smul.addr %s762, 8
        %s764 = scalar_lea.vmem %s3, %s763
      $region44: #{betavae_forward.13} parent=39 // pred_fallthru
        _
    $region40: #{betavae_forward.13} parent=5 // pred_fallthru
      _
  $region6: #{betavae_forward.13} parent=0 // loop_footer
    %s13 = sadd.s32 1, %s9
  $region7: #{betavae_forward.13} parent=0 // loop_footer_branch
    %8 = sbr.rel target = $region3
  $region8: #{betavae_forward.13} parent=0 // loop_exit
    _

</llo_original>
